<compile_context>
chip_gen: v5e
topology: v5e:2x2
jax: 0.10.0
libtpu: 0.0.40
codegen_flags: <defaults>
</compile_context>

<pallas_src>
import jax
import jax.numpy as jnp
from jax.experimental import pallas as pl
from jax.experimental.pallas import tpu as pltpu


def _log_sigmoid(x):
    # Numerically stable log(sigmoid(x)) = min(x, 0) - log1p(exp(-|x|))
    return jnp.minimum(x, 0.0) - jnp.log1p(jnp.exp(-jnp.abs(x)))


def _make_skipgram_kernel(tb: int, K: int, B: int):
    """Build the kernel for a batch tile of `tb` rows, K negatives, true batch B."""

    def kernel(pos_u_ref, pos_v_ref, neg_v_ref,   # SMEM scalar-prefetch (int32)
               u_w_hbm, v_w_hbm,                  # HBM embedding tables (pl.ANY)
               out_ref,                           # (1, 1, 128) VMEM partial-loss block
               u_buf, v_buf, neg_buf,             # VMEM gather scratch
               sem):                              # DMA semaphore
        t = pl.program_id(0)
        base = t * tb

        # ---- issue every row-gather DMA for this tile, then wait ------------
        # All copies have identical shape (D,), so they can share one DMA
        # semaphore; we only read the buffers after *all* waits have returned.
        copies = []
        for r in range(tb):
            cu = pltpu.make_async_copy(
                u_w_hbm.at[pos_u_ref[base + r]], u_buf.at[r], sem.at[0])
            cv = pltpu.make_async_copy(
                v_w_hbm.at[pos_v_ref[base + r]], v_buf.at[r], sem.at[0])
            cu.start()
            cv.start()
            copies += [cu, cv]
            for k in range(K):
                cn = pltpu.make_async_copy(
                    v_w_hbm.at[neg_v_ref[(base + r) * K + k]],
                    neg_buf.at[r, k], sem.at[0])
                cn.start()
                copies.append(cn)
        for c in copies:
            c.wait()

        # ---- compute this tile's loss contribution --------------------------
        u = u_buf[...]                                       # (tb, D) f32
        v = v_buf[...]                                       # (tb, D) f32
        neg = neg_buf[...]                                   # (tb, K, D) f32

        pos_score = jnp.sum(u * v, axis=1, keepdims=True)    # (tb, 1)
        pos_ls = _log_sigmoid(pos_score)                     # (tb, 1)

        neg_score = jnp.sum(neg * u[:, None, :], axis=2)     # (tb, K)
        neg_ls = _log_sigmoid(-neg_score)                    # (tb, K)

        # Mask out batch-padding rows (indices were padded with row 0).
        row_id = base + jax.lax.broadcasted_iota(jnp.int32, (tb, 1), 0)
        valid = row_id < B
        pos_ls = jnp.where(valid, pos_ls, 0.0)
        neg_ls = jnp.where(valid, neg_ls, 0.0)

        partial = -(jnp.sum(pos_ls) + jnp.sum(neg_ls))
        # Lane-dense store of the per-tile partial (wrapper reads lane 0).
        out_ref[...] = jnp.zeros_like(out_ref) + partial

    return kernel


def skipgram_loss(u_weight, v_weight, pos_u, pos_v, neg_v, *, tile_b=8):
    """Fused gather + skip-gram negative-sampling loss."""
    u_weight = u_weight.astype(jnp.float32)
    v_weight = v_weight.astype(jnp.float32)
    V, D = u_weight.shape
    B = int(pos_u.shape[0])
    K = int(neg_v.shape[1])

    num_tiles = (B + tile_b - 1) // tile_b
    Bp = num_tiles * tile_b

    # Pad index arrays with a valid row (0); padded rows are masked in-kernel.
    pos_u_p = jnp.pad(pos_u.astype(jnp.int32), (0, Bp - B))
    pos_v_p = jnp.pad(pos_v.astype(jnp.int32), (0, Bp - B))
    neg_v_p = jnp.pad(neg_v.astype(jnp.int32).reshape(-1), (0, (Bp - B) * K))

    kernel = _make_skipgram_kernel(tile_b, K, B)

    grid_spec = pltpu.PrefetchScalarGridSpec(
        num_scalar_prefetch=3,
        grid=(num_tiles,),
        in_specs=[
            pl.BlockSpec(memory_space=pl.ANY),   # u_embeddings weight (stays in HBM)
            pl.BlockSpec(memory_space=pl.ANY),   # v_embeddings weight (stays in HBM)
        ],
        out_specs=pl.BlockSpec((1, 1, 128), lambda t, pu, pv, nv: (t, 0, 0)),
        scratch_shapes=[
            pltpu.VMEM((tile_b, D), jnp.float32),      # gathered emb_u rows
            pltpu.VMEM((tile_b, D), jnp.float32),      # gathered emb_v rows
            pltpu.VMEM((tile_b, K, D), jnp.float32),   # gathered negative rows
            pltpu.SemaphoreType.DMA((1,)),             # shared gather semaphore
        ],
    )

    partials = pl.pallas_call(
        kernel,
        out_shape=jax.ShapeDtypeStruct((num_tiles, 1, 128), jnp.float32),
        grid_spec=grid_spec,
        compiler_params=pltpu.CompilerParams(
            dimension_semantics=("parallel",)),
    )(pos_u_p, pos_v_p, neg_v_p, u_weight, v_weight)

    # Per-tile partial losses -> scalar loss (tiny reduce done in plain JAX).
    return jnp.sum(partials[:, 0, 0])


class SkipGramModelPallas:
    """JAX/Pallas port of SkipGramModel(emb_size, emb_dimension)."""

    def __init__(self, emb_size, emb_dimension, key):
        self.emb_size = emb_size
        self.emb_dimension = emb_dimension
        initrange = 0.5 / emb_dimension
        ku, kv = jax.random.split(key)
        # nn.Embedding weight shape: (emb_size, emb_dimension), uniform init.
        self.u_weight = jax.random.uniform(
            ku, (emb_size, emb_dimension), jnp.float32, -initrange, initrange)
        self.v_weight = jax.random.uniform(
            kv, (emb_size, emb_dimension), jnp.float32, -initrange, initrange)

    def forward(self, pos_u, pos_v, neg_v):
        # Indices go straight into the kernel; the gather is fused (no jnp.take).
        return skipgram_loss(self.u_weight, self.v_weight, pos_u, pos_v, neg_v)


def reference_forward(model, pos_u, pos_v, neg_v):
    emb_u = jnp.take(model.u_weight, pos_u, axis=0)
    emb_v = jnp.take(model.v_weight, pos_v, axis=0)
    score = jax.nn.log_sigmoid(jnp.sum(emb_u * emb_v, axis=1))
    neg_emb_v = jnp.take(model.v_weight, neg_v, axis=0)
    neg_score = jax.nn.log_sigmoid(-jnp.einsum('bkd,bd->bk', neg_emb_v, emb_u))
    return -(jnp.sum(score) + jnp.sum(neg_score))


if __name__ == "__main__":
    key = jax.random.PRNGKey(0)
    k_model, k_u, k_v, k_neg = jax.random.split(key, 4)

    emb_size = 256        # vocabulary size
    emb_dimension = 128   # embedding dim (multiple of 128 -> lane-dense)
    B = 16                # batch size (two tiles of 8 -> exercises the grid)
    K = 8                 # negative samples per positive (fills 8 sublanes)

    model = SkipGramModelPallas(emb_size, emb_dimension, k_model)

    pos_u = jax.random.randint(k_u, (B,), 0, emb_size, dtype=jnp.int32)
    pos_v = jax.random.randint(k_v, (B,), 0, emb_size, dtype=jnp.int32)
    neg_v = jax.random.randint(k_neg, (B, K), 0, emb_size, dtype=jnp.int32)

    loss = model.forward(pos_u, pos_v, neg_v)
    jax.block_until_ready(loss)

    ref = reference_forward(model, pos_u, pos_v, neg_v)
    assert jnp.allclose(loss, ref, rtol=1e-4, atol=1e-4), (loss, ref)

    print("KERNEL_OK")
</pallas_src>

<mosaic_0001>
module attributes {stable_mosaic.version = 11 : i64} {
  func.func @kernel(%arg0: i32, %arg1: memref<16xi32, #tpu.memory_space<smem>>, %arg2: memref<16xi32, #tpu.memory_space<smem>>, %arg3: memref<128xi32, #tpu.memory_space<smem>>, %arg4: memref<256x128xf32, #tpu.memory_space<any>>, %arg5: memref<256x128xf32, #tpu.memory_space<any>>, %arg6: memref<1x1x128xf32, #tpu.memory_space<vmem>>, %arg7: memref<8x128xf32, #tpu.memory_space<vmem>>, %arg8: memref<8x128xf32, #tpu.memory_space<vmem>>, %arg9: memref<8x8x128xf32, #tpu.memory_space<vmem>>, %arg10: memref<1x!tpu.dma_semaphore, #tpu.memory_space<semaphore_mem>>) attributes {dimension_semantics = [#tpu.dimension_semantics<parallel>], iteration_bounds = array<i64: 2>, scalar_prefetch = 3 : i64, scratch_operands = 4 : i64, tpu.core_type = #tpu.core_type<tc>, window_params = [{}, {}, {transform_indices = @transform_2, window_bounds = array<i64: 1, 1, 128>}]} {
    %c8_i32 = arith.constant 8 : i32
    %0 = arith.muli %arg0, %c8_i32 : i32
    %c0_i32 = arith.constant 0 : i32
    %1 = arith.addi %0, %c0_i32 : i32
    %2 = arith.index_cast %1 : i32 to index
    %3 = memref.load %arg1[%2] : memref<16xi32, #tpu.memory_space<smem>>
    %c0_i32_0 = arith.constant 0 : i32
    %4 = arith.addi %0, %c0_i32_0 : i32
    %5 = arith.index_cast %4 : i32 to index
    %6 = memref.load %arg2[%5] : memref<16xi32, #tpu.memory_space<smem>>
    %c0_i32_1 = arith.constant 0 : i32
    %c0_i32_2 = arith.constant 0 : i32
    %c0_i32_3 = arith.constant 0 : i32
    %7 = tpu.memref_slice %arg4[%3, %c0_i32_3] : memref<256x128xf32, #tpu.memory_space<any>> -> memref<1x128xf32, #tpu.memory_space<any>>
    %8 = tpu.memref_squeeze %7 : memref<1x128xf32, #tpu.memory_space<any>> -> memref<128xf32, #tpu.memory_space<any>>
    %c0_i32_4 = arith.constant 0 : i32
    %9 = tpu.memref_slice %arg7[%c0_i32_1, %c0_i32_4] : memref<8x128xf32, #tpu.memory_space<vmem>> -> memref<1x128xf32, #tpu.memory_space<vmem>>
    %10 = tpu.memref_squeeze %9 : memref<1x128xf32, #tpu.memory_space<vmem>> -> memref<128xf32, #tpu.memory_space<vmem>>
    %11 = tpu.memref_slice %arg10[%c0_i32_2] : memref<1x!tpu.dma_semaphore, #tpu.memory_space<semaphore_mem>> -> memref<1x!tpu.dma_semaphore, #tpu.memory_space<semaphore_mem>>
    %12 = tpu.memref_squeeze %11 : memref<1x!tpu.dma_semaphore, #tpu.memory_space<semaphore_mem>> -> memref<!tpu.dma_semaphore, #tpu.memory_space<semaphore_mem>>
    tpu.enqueue_dma source(%8 : memref<128xf32, #tpu.memory_space<any>>) target(%10 : memref<128xf32, #tpu.memory_space<vmem>>) target_semaphore(%12 : memref<!tpu.dma_semaphore, #tpu.memory_space<semaphore_mem>>)
    %c0_i32_5 = arith.constant 0 : i32
    %c0_i32_6 = arith.constant 0 : i32
    %c0_i32_7 = arith.constant 0 : i32
    %13 = tpu.memref_slice %arg5[%6, %c0_i32_7] : memref<256x128xf32, #tpu.memory_space<any>> -> memref<1x128xf32, #tpu.memory_space<any>>
    %14 = tpu.memref_squeeze %13 : memref<1x128xf32, #tpu.memory_space<any>> -> memref<128xf32, #tpu.memory_space<any>>
    %c0_i32_8 = arith.constant 0 : i32
    %15 = tpu.memref_slice %arg8[%c0_i32_5, %c0_i32_8] : memref<8x128xf32, #tpu.memory_space<vmem>> -> memref<1x128xf32, #tpu.memory_space<vmem>>
    %16 = tpu.memref_squeeze %15 : memref<1x128xf32, #tpu.memory_space<vmem>> -> memref<128xf32, #tpu.memory_space<vmem>>
    %17 = tpu.memref_slice %arg10[%c0_i32_6] : memref<1x!tpu.dma_semaphore, #tpu.memory_space<semaphore_mem>> -> memref<1x!tpu.dma_semaphore, #tpu.memory_space<semaphore_mem>>
    %18 = tpu.memref_squeeze %17 : memref<1x!tpu.dma_semaphore, #tpu.memory_space<semaphore_mem>> -> memref<!tpu.dma_semaphore, #tpu.memory_space<semaphore_mem>>
    tpu.enqueue_dma source(%14 : memref<128xf32, #tpu.memory_space<any>>) target(%16 : memref<128xf32, #tpu.memory_space<vmem>>) target_semaphore(%18 : memref<!tpu.dma_semaphore, #tpu.memory_space<semaphore_mem>>)
    %c0_i32_9 = arith.constant 0 : i32
    %19 = arith.addi %0, %c0_i32_9 : i32
    %c8_i32_10 = arith.constant 8 : i32
    %20 = arith.muli %19, %c8_i32_10 : i32
    %c0_i32_11 = arith.constant 0 : i32
    %21 = arith.addi %20, %c0_i32_11 : i32
    %22 = arith.index_cast %21 : i32 to index
    %23 = memref.load %arg3[%22] : memref<128xi32, #tpu.memory_space<smem>>
    %c0_i32_12 = arith.constant 0 : i32
    %c0_i32_13 = arith.constant 0 : i32
    %c0_i32_14 = arith.constant 0 : i32
    %c0_i32_15 = arith.constant 0 : i32
    %24 = tpu.memref_slice %arg5[%23, %c0_i32_15] : memref<256x128xf32, #tpu.memory_space<any>> -> memref<1x128xf32, #tpu.memory_space<any>>
    %25 = tpu.memref_squeeze %24 : memref<1x128xf32, #tpu.memory_space<any>> -> memref<128xf32, #tpu.memory_space<any>>
    %c0_i32_16 = arith.constant 0 : i32
    %26 = tpu.memref_slice %arg9[%c0_i32_12, %c0_i32_13, %c0_i32_16] : memref<8x8x128xf32, #tpu.memory_space<vmem>> -> memref<1x1x128xf32, #tpu.memory_space<vmem>>
    %27 = tpu.memref_squeeze %26 : memref<1x1x128xf32, #tpu.memory_space<vmem>> -> memref<128xf32, #tpu.memory_space<vmem>>
    %28 = tpu.memref_slice %arg10[%c0_i32_14] : memref<1x!tpu.dma_semaphore, #tpu.memory_space<semaphore_mem>> -> memref<1x!tpu.dma_semaphore, #tpu.memory_space<semaphore_mem>>
    %29 = tpu.memref_squeeze %28 : memref<1x!tpu.dma_semaphore, #tpu.memory_space<semaphore_mem>> -> memref<!tpu.dma_semaphore, #tpu.memory_space<semaphore_mem>>
    tpu.enqueue_dma source(%25 : memref<128xf32, #tpu.memory_space<any>>) target(%27 : memref<128xf32, #tpu.memory_space<vmem>>) target_semaphore(%29 : memref<!tpu.dma_semaphore, #tpu.memory_space<semaphore_mem>>)
    %c0_i32_17 = arith.constant 0 : i32
    %30 = arith.addi %0, %c0_i32_17 : i32
    %c8_i32_18 = arith.constant 8 : i32
    %31 = arith.muli %30, %c8_i32_18 : i32
    %c1_i32 = arith.constant 1 : i32
    %32 = arith.addi %31, %c1_i32 : i32
    %33 = arith.index_cast %32 : i32 to index
    %34 = memref.load %arg3[%33] : memref<128xi32, #tpu.memory_space<smem>>
    %c0_i32_19 = arith.constant 0 : i32
    %c1_i32_20 = arith.constant 1 : i32
    %c0_i32_21 = arith.constant 0 : i32
    %c0_i32_22 = arith.constant 0 : i32
    %35 = tpu.memref_slice %arg5[%34, %c0_i32_22] : memref<256x128xf32, #tpu.memory_space<any>> -> memref<1x128xf32, #tpu.memory_space<any>>
    %36 = tpu.memref_squeeze %35 : memref<1x128xf32, #tpu.memory_space<any>> -> memref<128xf32, #tpu.memory_space<any>>
    %c0_i32_23 = arith.constant 0 : i32
    %37 = tpu.memref_slice %arg9[%c0_i32_19, %c1_i32_20, %c0_i32_23] : memref<8x8x128xf32, #tpu.memory_space<vmem>> -> memref<1x1x128xf32, #tpu.memory_space<vmem>>
    %38 = tpu.memref_squeeze %37 : memref<1x1x128xf32, #tpu.memory_space<vmem>> -> memref<128xf32, #tpu.memory_space<vmem>>
    %39 = tpu.memref_slice %arg10[%c0_i32_21] : memref<1x!tpu.dma_semaphore, #tpu.memory_space<semaphore_mem>> -> memref<1x!tpu.dma_semaphore, #tpu.memory_space<semaphore_mem>>
    %40 = tpu.memref_squeeze %39 : memref<1x!tpu.dma_semaphore, #tpu.memory_space<semaphore_mem>> -> memref<!tpu.dma_semaphore, #tpu.memory_space<semaphore_mem>>
    tpu.enqueue_dma source(%36 : memref<128xf32, #tpu.memory_space<any>>) target(%38 : memref<128xf32, #tpu.memory_space<vmem>>) target_semaphore(%40 : memref<!tpu.dma_semaphore, #tpu.memory_space<semaphore_mem>>)
    %c0_i32_24 = arith.constant 0 : i32
    %41 = arith.addi %0, %c0_i32_24 : i32
    %c8_i32_25 = arith.constant 8 : i32
    %42 = arith.muli %41, %c8_i32_25 : i32
    %c2_i32 = arith.constant 2 : i32
    %43 = arith.addi %42, %c2_i32 : i32
    %44 = arith.index_cast %43 : i32 to index
    %45 = memref.load %arg3[%44] : memref<128xi32, #tpu.memory_space<smem>>
    %c0_i32_26 = arith.constant 0 : i32
    %c2_i32_27 = arith.constant 2 : i32
    %c0_i32_28 = arith.constant 0 : i32
    %c0_i32_29 = arith.constant 0 : i32
    %46 = tpu.memref_slice %arg5[%45, %c0_i32_29] : memref<256x128xf32, #tpu.memory_space<any>> -> memref<1x128xf32, #tpu.memory_space<any>>
    %47 = tpu.memref_squeeze %46 : memref<1x128xf32, #tpu.memory_space<any>> -> memref<128xf32, #tpu.memory_space<any>>
    %c0_i32_30 = arith.constant 0 : i32
    %48 = tpu.memref_slice %arg9[%c0_i32_26, %c2_i32_27, %c0_i32_30] : memref<8x8x128xf32, #tpu.memory_space<vmem>> -> memref<1x1x128xf32, #tpu.memory_space<vmem>>
    %49 = tpu.memref_squeeze %48 : memref<1x1x128xf32, #tpu.memory_space<vmem>> -> memref<128xf32, #tpu.memory_space<vmem>>
    %50 = tpu.memref_slice %arg10[%c0_i32_28] : memref<1x!tpu.dma_semaphore, #tpu.memory_space<semaphore_mem>> -> memref<1x!tpu.dma_semaphore, #tpu.memory_space<semaphore_mem>>
    %51 = tpu.memref_squeeze %50 : memref<1x!tpu.dma_semaphore, #tpu.memory_space<semaphore_mem>> -> memref<!tpu.dma_semaphore, #tpu.memory_space<semaphore_mem>>
    tpu.enqueue_dma source(%47 : memref<128xf32, #tpu.memory_space<any>>) target(%49 : memref<128xf32, #tpu.memory_space<vmem>>) target_semaphore(%51 : memref<!tpu.dma_semaphore, #tpu.memory_space<semaphore_mem>>)
    %c0_i32_31 = arith.constant 0 : i32
    %52 = arith.addi %0, %c0_i32_31 : i32
    %c8_i32_32 = arith.constant 8 : i32
    %53 = arith.muli %52, %c8_i32_32 : i32
    %c3_i32 = arith.constant 3 : i32
    %54 = arith.addi %53, %c3_i32 : i32
    %55 = arith.index_cast %54 : i32 to index
    %56 = memref.load %arg3[%55] : memref<128xi32, #tpu.memory_space<smem>>
    %c0_i32_33 = arith.constant 0 : i32
    %c3_i32_34 = arith.constant 3 : i32
    %c0_i32_35 = arith.constant 0 : i32
    %c0_i32_36 = arith.constant 0 : i32
    %57 = tpu.memref_slice %arg5[%56, %c0_i32_36] : memref<256x128xf32, #tpu.memory_space<any>> -> memref<1x128xf32, #tpu.memory_space<any>>
    %58 = tpu.memref_squeeze %57 : memref<1x128xf32, #tpu.memory_space<any>> -> memref<128xf32, #tpu.memory_space<any>>
    %c0_i32_37 = arith.constant 0 : i32
    %59 = tpu.memref_slice %arg9[%c0_i32_33, %c3_i32_34, %c0_i32_37] : memref<8x8x128xf32, #tpu.memory_space<vmem>> -> memref<1x1x128xf32, #tpu.memory_space<vmem>>
    %60 = tpu.memref_squeeze %59 : memref<1x1x128xf32, #tpu.memory_space<vmem>> -> memref<128xf32, #tpu.memory_space<vmem>>
    %61 = tpu.memref_slice %arg10[%c0_i32_35] : memref<1x!tpu.dma_semaphore, #tpu.memory_space<semaphore_mem>> -> memref<1x!tpu.dma_semaphore, #tpu.memory_space<semaphore_mem>>
    %62 = tpu.memref_squeeze %61 : memref<1x!tpu.dma_semaphore, #tpu.memory_space<semaphore_mem>> -> memref<!tpu.dma_semaphore, #tpu.memory_space<semaphore_mem>>
    tpu.enqueue_dma source(%58 : memref<128xf32, #tpu.memory_space<any>>) target(%60 : memref<128xf32, #tpu.memory_space<vmem>>) target_semaphore(%62 : memref<!tpu.dma_semaphore, #tpu.memory_space<semaphore_mem>>)
    %c0_i32_38 = arith.constant 0 : i32
    %63 = arith.addi %0, %c0_i32_38 : i32
    %c8_i32_39 = arith.constant 8 : i32
    %64 = arith.muli %63, %c8_i32_39 : i32
    %c4_i32 = arith.constant 4 : i32
    %65 = arith.addi %64, %c4_i32 : i32
    %66 = arith.index_cast %65 : i32 to index
    %67 = memref.load %arg3[%66] : memref<128xi32, #tpu.memory_space<smem>>
    %c0_i32_40 = arith.constant 0 : i32
    %c4_i32_41 = arith.constant 4 : i32
    %c0_i32_42 = arith.constant 0 : i32
    %c0_i32_43 = arith.constant 0 : i32
    %68 = tpu.memref_slice %arg5[%67, %c0_i32_43] : memref<256x128xf32, #tpu.memory_space<any>> -> memref<1x128xf32, #tpu.memory_space<any>>
    %69 = tpu.memref_squeeze %68 : memref<1x128xf32, #tpu.memory_space<any>> -> memref<128xf32, #tpu.memory_space<any>>
    %c0_i32_44 = arith.constant 0 : i32
    %70 = tpu.memref_slice %arg9[%c0_i32_40, %c4_i32_41, %c0_i32_44] : memref<8x8x128xf32, #tpu.memory_space<vmem>> -> memref<1x1x128xf32, #tpu.memory_space<vmem>>
    %71 = tpu.memref_squeeze %70 : memref<1x1x128xf32, #tpu.memory_space<vmem>> -> memref<128xf32, #tpu.memory_space<vmem>>
    %72 = tpu.memref_slice %arg10[%c0_i32_42] : memref<1x!tpu.dma_semaphore, #tpu.memory_space<semaphore_mem>> -> memref<1x!tpu.dma_semaphore, #tpu.memory_space<semaphore_mem>>
    %73 = tpu.memref_squeeze %72 : memref<1x!tpu.dma_semaphore, #tpu.memory_space<semaphore_mem>> -> memref<!tpu.dma_semaphore, #tpu.memory_space<semaphore_mem>>
    tpu.enqueue_dma source(%69 : memref<128xf32, #tpu.memory_space<any>>) target(%71 : memref<128xf32, #tpu.memory_space<vmem>>) target_semaphore(%73 : memref<!tpu.dma_semaphore, #tpu.memory_space<semaphore_mem>>)
    %c0_i32_45 = arith.constant 0 : i32
    %74 = arith.addi %0, %c0_i32_45 : i32
    %c8_i32_46 = arith.constant 8 : i32
    %75 = arith.muli %74, %c8_i32_46 : i32
    %c5_i32 = arith.constant 5 : i32
    %76 = arith.addi %75, %c5_i32 : i32
    %77 = arith.index_cast %76 : i32 to index
    %78 = memref.load %arg3[%77] : memref<128xi32, #tpu.memory_space<smem>>
    %c0_i32_47 = arith.constant 0 : i32
    %c5_i32_48 = arith.constant 5 : i32
    %c0_i32_49 = arith.constant 0 : i32
    %c0_i32_50 = arith.constant 0 : i32
    %79 = tpu.memref_slice %arg5[%78, %c0_i32_50] : memref<256x128xf32, #tpu.memory_space<any>> -> memref<1x128xf32, #tpu.memory_space<any>>
    %80 = tpu.memref_squeeze %79 : memref<1x128xf32, #tpu.memory_space<any>> -> memref<128xf32, #tpu.memory_space<any>>
    %c0_i32_51 = arith.constant 0 : i32
    %81 = tpu.memref_slice %arg9[%c0_i32_47, %c5_i32_48, %c0_i32_51] : memref<8x8x128xf32, #tpu.memory_space<vmem>> -> memref<1x1x128xf32, #tpu.memory_space<vmem>>
    %82 = tpu.memref_squeeze %81 : memref<1x1x128xf32, #tpu.memory_space<vmem>> -> memref<128xf32, #tpu.memory_space<vmem>>
    %83 = tpu.memref_slice %arg10[%c0_i32_49] : memref<1x!tpu.dma_semaphore, #tpu.memory_space<semaphore_mem>> -> memref<1x!tpu.dma_semaphore, #tpu.memory_space<semaphore_mem>>
    %84 = tpu.memref_squeeze %83 : memref<1x!tpu.dma_semaphore, #tpu.memory_space<semaphore_mem>> -> memref<!tpu.dma_semaphore, #tpu.memory_space<semaphore_mem>>
    tpu.enqueue_dma source(%80 : memref<128xf32, #tpu.memory_space<any>>) target(%82 : memref<128xf32, #tpu.memory_space<vmem>>) target_semaphore(%84 : memref<!tpu.dma_semaphore, #tpu.memory_space<semaphore_mem>>)
    %c0_i32_52 = arith.constant 0 : i32
    %85 = arith.addi %0, %c0_i32_52 : i32
    %c8_i32_53 = arith.constant 8 : i32
    %86 = arith.muli %85, %c8_i32_53 : i32
    %c6_i32 = arith.constant 6 : i32
    %87 = arith.addi %86, %c6_i32 : i32
    %88 = arith.index_cast %87 : i32 to index
    %89 = memref.load %arg3[%88] : memref<128xi32, #tpu.memory_space<smem>>
    %c0_i32_54 = arith.constant 0 : i32
    %c6_i32_55 = arith.constant 6 : i32
    %c0_i32_56 = arith.constant 0 : i32
    %c0_i32_57 = arith.constant 0 : i32
    %90 = tpu.memref_slice %arg5[%89, %c0_i32_57] : memref<256x128xf32, #tpu.memory_space<any>> -> memref<1x128xf32, #tpu.memory_space<any>>
    %91 = tpu.memref_squeeze %90 : memref<1x128xf32, #tpu.memory_space<any>> -> memref<128xf32, #tpu.memory_space<any>>
    %c0_i32_58 = arith.constant 0 : i32
    %92 = tpu.memref_slice %arg9[%c0_i32_54, %c6_i32_55, %c0_i32_58] : memref<8x8x128xf32, #tpu.memory_space<vmem>> -> memref<1x1x128xf32, #tpu.memory_space<vmem>>
    %93 = tpu.memref_squeeze %92 : memref<1x1x128xf32, #tpu.memory_space<vmem>> -> memref<128xf32, #tpu.memory_space<vmem>>
    %94 = tpu.memref_slice %arg10[%c0_i32_56] : memref<1x!tpu.dma_semaphore, #tpu.memory_space<semaphore_mem>> -> memref<1x!tpu.dma_semaphore, #tpu.memory_space<semaphore_mem>>
    %95 = tpu.memref_squeeze %94 : memref<1x!tpu.dma_semaphore, #tpu.memory_space<semaphore_mem>> -> memref<!tpu.dma_semaphore, #tpu.memory_space<semaphore_mem>>
    tpu.enqueue_dma source(%91 : memref<128xf32, #tpu.memory_space<any>>) target(%93 : memref<128xf32, #tpu.memory_space<vmem>>) target_semaphore(%95 : memref<!tpu.dma_semaphore, #tpu.memory_space<semaphore_mem>>)
    %c0_i32_59 = arith.constant 0 : i32
    %96 = arith.addi %0, %c0_i32_59 : i32
    %c8_i32_60 = arith.constant 8 : i32
    %97 = arith.muli %96, %c8_i32_60 : i32
    %c7_i32 = arith.constant 7 : i32
    %98 = arith.addi %97, %c7_i32 : i32
    %99 = arith.index_cast %98 : i32 to index
    %100 = memref.load %arg3[%99] : memref<128xi32, #tpu.memory_space<smem>>
    %c0_i32_61 = arith.constant 0 : i32
    %c7_i32_62 = arith.constant 7 : i32
    %c0_i32_63 = arith.constant 0 : i32
    %c0_i32_64 = arith.constant 0 : i32
    %101 = tpu.memref_slice %arg5[%100, %c0_i32_64] : memref<256x128xf32, #tpu.memory_space<any>> -> memref<1x128xf32, #tpu.memory_space<any>>
    %102 = tpu.memref_squeeze %101 : memref<1x128xf32, #tpu.memory_space<any>> -> memref<128xf32, #tpu.memory_space<any>>
    %c0_i32_65 = arith.constant 0 : i32
    %103 = tpu.memref_slice %arg9[%c0_i32_61, %c7_i32_62, %c0_i32_65] : memref<8x8x128xf32, #tpu.memory_space<vmem>> -> memref<1x1x128xf32, #tpu.memory_space<vmem>>
    %104 = tpu.memref_squeeze %103 : memref<1x1x128xf32, #tpu.memory_space<vmem>> -> memref<128xf32, #tpu.memory_space<vmem>>
    %105 = tpu.memref_slice %arg10[%c0_i32_63] : memref<1x!tpu.dma_semaphore, #tpu.memory_space<semaphore_mem>> -> memref<1x!tpu.dma_semaphore, #tpu.memory_space<semaphore_mem>>
    %106 = tpu.memref_squeeze %105 : memref<1x!tpu.dma_semaphore, #tpu.memory_space<semaphore_mem>> -> memref<!tpu.dma_semaphore, #tpu.memory_space<semaphore_mem>>
    tpu.enqueue_dma source(%102 : memref<128xf32, #tpu.memory_space<any>>) target(%104 : memref<128xf32, #tpu.memory_space<vmem>>) target_semaphore(%106 : memref<!tpu.dma_semaphore, #tpu.memory_space<semaphore_mem>>)
    %c1_i32_66 = arith.constant 1 : i32
    %107 = arith.addi %0, %c1_i32_66 : i32
    %108 = arith.index_cast %107 : i32 to index
    %109 = memref.load %arg1[%108] : memref<16xi32, #tpu.memory_space<smem>>
    %c1_i32_67 = arith.constant 1 : i32
    %110 = arith.addi %0, %c1_i32_67 : i32
    %111 = arith.index_cast %110 : i32 to index
    %112 = memref.load %arg2[%111] : memref<16xi32, #tpu.memory_space<smem>>
    %c1_i32_68 = arith.constant 1 : i32
    %c0_i32_69 = arith.constant 0 : i32
    %c0_i32_70 = arith.constant 0 : i32
    %113 = tpu.memref_slice %arg4[%109, %c0_i32_70] : memref<256x128xf32, #tpu.memory_space<any>> -> memref<1x128xf32, #tpu.memory_space<any>>
    %114 = tpu.memref_squeeze %113 : memref<1x128xf32, #tpu.memory_space<any>> -> memref<128xf32, #tpu.memory_space<any>>
    %c0_i32_71 = arith.constant 0 : i32
    %115 = tpu.memref_slice %arg7[%c1_i32_68, %c0_i32_71] : memref<8x128xf32, #tpu.memory_space<vmem>> -> memref<1x128xf32, #tpu.memory_space<vmem>>
    %116 = tpu.memref_squeeze %115 : memref<1x128xf32, #tpu.memory_space<vmem>> -> memref<128xf32, #tpu.memory_space<vmem>>
    %117 = tpu.memref_slice %arg10[%c0_i32_69] : memref<1x!tpu.dma_semaphore, #tpu.memory_space<semaphore_mem>> -> memref<1x!tpu.dma_semaphore, #tpu.memory_space<semaphore_mem>>
    %118 = tpu.memref_squeeze %117 : memref<1x!tpu.dma_semaphore, #tpu.memory_space<semaphore_mem>> -> memref<!tpu.dma_semaphore, #tpu.memory_space<semaphore_mem>>
    tpu.enqueue_dma source(%114 : memref<128xf32, #tpu.memory_space<any>>) target(%116 : memref<128xf32, #tpu.memory_space<vmem>>) target_semaphore(%118 : memref<!tpu.dma_semaphore, #tpu.memory_space<semaphore_mem>>)
    %c1_i32_72 = arith.constant 1 : i32
    %c0_i32_73 = arith.constant 0 : i32
    %c0_i32_74 = arith.constant 0 : i32
    %119 = tpu.memref_slice %arg5[%112, %c0_i32_74] : memref<256x128xf32, #tpu.memory_space<any>> -> memref<1x128xf32, #tpu.memory_space<any>>
    %120 = tpu.memref_squeeze %119 : memref<1x128xf32, #tpu.memory_space<any>> -> memref<128xf32, #tpu.memory_space<any>>
    %c0_i32_75 = arith.constant 0 : i32
    %121 = tpu.memref_slice %arg8[%c1_i32_72, %c0_i32_75] : memref<8x128xf32, #tpu.memory_space<vmem>> -> memref<1x128xf32, #tpu.memory_space<vmem>>
    %122 = tpu.memref_squeeze %121 : memref<1x128xf32, #tpu.memory_space<vmem>> -> memref<128xf32, #tpu.memory_space<vmem>>
    %123 = tpu.memref_slice %arg10[%c0_i32_73] : memref<1x!tpu.dma_semaphore, #tpu.memory_space<semaphore_mem>> -> memref<1x!tpu.dma_semaphore, #tpu.memory_space<semaphore_mem>>
    %124 = tpu.memref_squeeze %123 : memref<1x!tpu.dma_semaphore, #tpu.memory_space<semaphore_mem>> -> memref<!tpu.dma_semaphore, #tpu.memory_space<semaphore_mem>>
    tpu.enqueue_dma source(%120 : memref<128xf32, #tpu.memory_space<any>>) target(%122 : memref<128xf32, #tpu.memory_space<vmem>>) target_semaphore(%124 : memref<!tpu.dma_semaphore, #tpu.memory_space<semaphore_mem>>)
    %c1_i32_76 = arith.constant 1 : i32
    %125 = arith.addi %0, %c1_i32_76 : i32
    %c8_i32_77 = arith.constant 8 : i32
    %126 = arith.muli %125, %c8_i32_77 : i32
    %c0_i32_78 = arith.constant 0 : i32
    %127 = arith.addi %126, %c0_i32_78 : i32
    %128 = arith.index_cast %127 : i32 to index
    %129 = memref.load %arg3[%128] : memref<128xi32, #tpu.memory_space<smem>>
    %c1_i32_79 = arith.constant 1 : i32
    %c0_i32_80 = arith.constant 0 : i32
    %c0_i32_81 = arith.constant 0 : i32
    %c0_i32_82 = arith.constant 0 : i32
    %130 = tpu.memref_slice %arg5[%129, %c0_i32_82] : memref<256x128xf32, #tpu.memory_space<any>> -> memref<1x128xf32, #tpu.memory_space<any>>
    %131 = tpu.memref_squeeze %130 : memref<1x128xf32, #tpu.memory_space<any>> -> memref<128xf32, #tpu.memory_space<any>>
    %c0_i32_83 = arith.constant 0 : i32
    %132 = tpu.memref_slice %arg9[%c1_i32_79, %c0_i32_80, %c0_i32_83] : memref<8x8x128xf32, #tpu.memory_space<vmem>> -> memref<1x1x128xf32, #tpu.memory_space<vmem>>
    %133 = tpu.memref_squeeze %132 : memref<1x1x128xf32, #tpu.memory_space<vmem>> -> memref<128xf32, #tpu.memory_space<vmem>>
    %134 = tpu.memref_slice %arg10[%c0_i32_81] : memref<1x!tpu.dma_semaphore, #tpu.memory_space<semaphore_mem>> -> memref<1x!tpu.dma_semaphore, #tpu.memory_space<semaphore_mem>>
    %135 = tpu.memref_squeeze %134 : memref<1x!tpu.dma_semaphore, #tpu.memory_space<semaphore_mem>> -> memref<!tpu.dma_semaphore, #tpu.memory_space<semaphore_mem>>
    tpu.enqueue_dma source(%131 : memref<128xf32, #tpu.memory_space<any>>) target(%133 : memref<128xf32, #tpu.memory_space<vmem>>) target_semaphore(%135 : memref<!tpu.dma_semaphore, #tpu.memory_space<semaphore_mem>>)
    %c1_i32_84 = arith.constant 1 : i32
    %136 = arith.addi %0, %c1_i32_84 : i32
    %c8_i32_85 = arith.constant 8 : i32
    %137 = arith.muli %136, %c8_i32_85 : i32
    %c1_i32_86 = arith.constant 1 : i32
    %138 = arith.addi %137, %c1_i32_86 : i32
    %139 = arith.index_cast %138 : i32 to index
    %140 = memref.load %arg3[%139] : memref<128xi32, #tpu.memory_space<smem>>
    %c1_i32_87 = arith.constant 1 : i32
    %c1_i32_88 = arith.constant 1 : i32
    %c0_i32_89 = arith.constant 0 : i32
    %c0_i32_90 = arith.constant 0 : i32
    %141 = tpu.memref_slice %arg5[%140, %c0_i32_90] : memref<256x128xf32, #tpu.memory_space<any>> -> memref<1x128xf32, #tpu.memory_space<any>>
    %142 = tpu.memref_squeeze %141 : memref<1x128xf32, #tpu.memory_space<any>> -> memref<128xf32, #tpu.memory_space<any>>
    %c0_i32_91 = arith.constant 0 : i32
    %143 = tpu.memref_slice %arg9[%c1_i32_87, %c1_i32_88, %c0_i32_91] : memref<8x8x128xf32, #tpu.memory_space<vmem>> -> memref<1x1x128xf32, #tpu.memory_space<vmem>>
    %144 = tpu.memref_squeeze %143 : memref<1x1x128xf32, #tpu.memory_space<vmem>> -> memref<128xf32, #tpu.memory_space<vmem>>
    %145 = tpu.memref_slice %arg10[%c0_i32_89] : memref<1x!tpu.dma_semaphore, #tpu.memory_space<semaphore_mem>> -> memref<1x!tpu.dma_semaphore, #tpu.memory_space<semaphore_mem>>
    %146 = tpu.memref_squeeze %145 : memref<1x!tpu.dma_semaphore, #tpu.memory_space<semaphore_mem>> -> memref<!tpu.dma_semaphore, #tpu.memory_space<semaphore_mem>>
    tpu.enqueue_dma source(%142 : memref<128xf32, #tpu.memory_space<any>>) target(%144 : memref<128xf32, #tpu.memory_space<vmem>>) target_semaphore(%146 : memref<!tpu.dma_semaphore, #tpu.memory_space<semaphore_mem>>)
    %c1_i32_92 = arith.constant 1 : i32
    %147 = arith.addi %0, %c1_i32_92 : i32
    %c8_i32_93 = arith.constant 8 : i32
    %148 = arith.muli %147, %c8_i32_93 : i32
    %c2_i32_94 = arith.constant 2 : i32
    %149 = arith.addi %148, %c2_i32_94 : i32
    %150 = arith.index_cast %149 : i32 to index
    %151 = memref.load %arg3[%150] : memref<128xi32, #tpu.memory_space<smem>>
    %c1_i32_95 = arith.constant 1 : i32
    %c2_i32_96 = arith.constant 2 : i32
    %c0_i32_97 = arith.constant 0 : i32
    %c0_i32_98 = arith.constant 0 : i32
    %152 = tpu.memref_slice %arg5[%151, %c0_i32_98] : memref<256x128xf32, #tpu.memory_space<any>> -> memref<1x128xf32, #tpu.memory_space<any>>
    %153 = tpu.memref_squeeze %152 : memref<1x128xf32, #tpu.memory_space<any>> -> memref<128xf32, #tpu.memory_space<any>>
    %c0_i32_99 = arith.constant 0 : i32
    %154 = tpu.memref_slice %arg9[%c1_i32_95, %c2_i32_96, %c0_i32_99] : memref<8x8x128xf32, #tpu.memory_space<vmem>> -> memref<1x1x128xf32, #tpu.memory_space<vmem>>
    %155 = tpu.memref_squeeze %154 : memref<1x1x128xf32, #tpu.memory_space<vmem>> -> memref<128xf32, #tpu.memory_space<vmem>>
    %156 = tpu.memref_slice %arg10[%c0_i32_97] : memref<1x!tpu.dma_semaphore, #tpu.memory_space<semaphore_mem>> -> memref<1x!tpu.dma_semaphore, #tpu.memory_space<semaphore_mem>>
    %157 = tpu.memref_squeeze %156 : memref<1x!tpu.dma_semaphore, #tpu.memory_space<semaphore_mem>> -> memref<!tpu.dma_semaphore, #tpu.memory_space<semaphore_mem>>
    tpu.enqueue_dma source(%153 : memref<128xf32, #tpu.memory_space<any>>) target(%155 : memref<128xf32, #tpu.memory_space<vmem>>) target_semaphore(%157 : memref<!tpu.dma_semaphore, #tpu.memory_space<semaphore_mem>>)
    %c1_i32_100 = arith.constant 1 : i32
    %158 = arith.addi %0, %c1_i32_100 : i32
    %c8_i32_101 = arith.constant 8 : i32
    %159 = arith.muli %158, %c8_i32_101 : i32
    %c3_i32_102 = arith.constant 3 : i32
    %160 = arith.addi %159, %c3_i32_102 : i32
    %161 = arith.index_cast %160 : i32 to index
    %162 = memref.load %arg3[%161] : memref<128xi32, #tpu.memory_space<smem>>
    %c1_i32_103 = arith.constant 1 : i32
    %c3_i32_104 = arith.constant 3 : i32
    %c0_i32_105 = arith.constant 0 : i32
    %c0_i32_106 = arith.constant 0 : i32
    %163 = tpu.memref_slice %arg5[%162, %c0_i32_106] : memref<256x128xf32, #tpu.memory_space<any>> -> memref<1x128xf32, #tpu.memory_space<any>>
    %164 = tpu.memref_squeeze %163 : memref<1x128xf32, #tpu.memory_space<any>> -> memref<128xf32, #tpu.memory_space<any>>
    %c0_i32_107 = arith.constant 0 : i32
    %165 = tpu.memref_slice %arg9[%c1_i32_103, %c3_i32_104, %c0_i32_107] : memref<8x8x128xf32, #tpu.memory_space<vmem>> -> memref<1x1x128xf32, #tpu.memory_space<vmem>>
    %166 = tpu.memref_squeeze %165 : memref<1x1x128xf32, #tpu.memory_space<vmem>> -> memref<128xf32, #tpu.memory_space<vmem>>
    %167 = tpu.memref_slice %arg10[%c0_i32_105] : memref<1x!tpu.dma_semaphore, #tpu.memory_space<semaphore_mem>> -> memref<1x!tpu.dma_semaphore, #tpu.memory_space<semaphore_mem>>
    %168 = tpu.memref_squeeze %167 : memref<1x!tpu.dma_semaphore, #tpu.memory_space<semaphore_mem>> -> memref<!tpu.dma_semaphore, #tpu.memory_space<semaphore_mem>>
    tpu.enqueue_dma source(%164 : memref<128xf32, #tpu.memory_space<any>>) target(%166 : memref<128xf32, #tpu.memory_space<vmem>>) target_semaphore(%168 : memref<!tpu.dma_semaphore, #tpu.memory_space<semaphore_mem>>)
    %c1_i32_108 = arith.constant 1 : i32
    %169 = arith.addi %0, %c1_i32_108 : i32
    %c8_i32_109 = arith.constant 8 : i32
    %170 = arith.muli %169, %c8_i32_109 : i32
    %c4_i32_110 = arith.constant 4 : i32
    %171 = arith.addi %170, %c4_i32_110 : i32
    %172 = arith.index_cast %171 : i32 to index
    %173 = memref.load %arg3[%172] : memref<128xi32, #tpu.memory_space<smem>>
    %c1_i32_111 = arith.constant 1 : i32
    %c4_i32_112 = arith.constant 4 : i32
    %c0_i32_113 = arith.constant 0 : i32
    %c0_i32_114 = arith.constant 0 : i32
    %174 = tpu.memref_slice %arg5[%173, %c0_i32_114] : memref<256x128xf32, #tpu.memory_space<any>> -> memref<1x128xf32, #tpu.memory_space<any>>
    %175 = tpu.memref_squeeze %174 : memref<1x128xf32, #tpu.memory_space<any>> -> memref<128xf32, #tpu.memory_space<any>>
    %c0_i32_115 = arith.constant 0 : i32
    %176 = tpu.memref_slice %arg9[%c1_i32_111, %c4_i32_112, %c0_i32_115] : memref<8x8x128xf32, #tpu.memory_space<vmem>> -> memref<1x1x128xf32, #tpu.memory_space<vmem>>
    %177 = tpu.memref_squeeze %176 : memref<1x1x128xf32, #tpu.memory_space<vmem>> -> memref<128xf32, #tpu.memory_space<vmem>>
    %178 = tpu.memref_slice %arg10[%c0_i32_113] : memref<1x!tpu.dma_semaphore, #tpu.memory_space<semaphore_mem>> -> memref<1x!tpu.dma_semaphore, #tpu.memory_space<semaphore_mem>>
    %179 = tpu.memref_squeeze %178 : memref<1x!tpu.dma_semaphore, #tpu.memory_space<semaphore_mem>> -> memref<!tpu.dma_semaphore, #tpu.memory_space<semaphore_mem>>
    tpu.enqueue_dma source(%175 : memref<128xf32, #tpu.memory_space<any>>) target(%177 : memref<128xf32, #tpu.memory_space<vmem>>) target_semaphore(%179 : memref<!tpu.dma_semaphore, #tpu.memory_space<semaphore_mem>>)
    %c1_i32_116 = arith.constant 1 : i32
    %180 = arith.addi %0, %c1_i32_116 : i32
    %c8_i32_117 = arith.constant 8 : i32
    %181 = arith.muli %180, %c8_i32_117 : i32
    %c5_i32_118 = arith.constant 5 : i32
    %182 = arith.addi %181, %c5_i32_118 : i32
    %183 = arith.index_cast %182 : i32 to index
    %184 = memref.load %arg3[%183] : memref<128xi32, #tpu.memory_space<smem>>
    %c1_i32_119 = arith.constant 1 : i32
    %c5_i32_120 = arith.constant 5 : i32
    %c0_i32_121 = arith.constant 0 : i32
    %c0_i32_122 = arith.constant 0 : i32
    %185 = tpu.memref_slice %arg5[%184, %c0_i32_122] : memref<256x128xf32, #tpu.memory_space<any>> -> memref<1x128xf32, #tpu.memory_space<any>>
    %186 = tpu.memref_squeeze %185 : memref<1x128xf32, #tpu.memory_space<any>> -> memref<128xf32, #tpu.memory_space<any>>
    %c0_i32_123 = arith.constant 0 : i32
    %187 = tpu.memref_slice %arg9[%c1_i32_119, %c5_i32_120, %c0_i32_123] : memref<8x8x128xf32, #tpu.memory_space<vmem>> -> memref<1x1x128xf32, #tpu.memory_space<vmem>>
    %188 = tpu.memref_squeeze %187 : memref<1x1x128xf32, #tpu.memory_space<vmem>> -> memref<128xf32, #tpu.memory_space<vmem>>
    %189 = tpu.memref_slice %arg10[%c0_i32_121] : memref<1x!tpu.dma_semaphore, #tpu.memory_space<semaphore_mem>> -> memref<1x!tpu.dma_semaphore, #tpu.memory_space<semaphore_mem>>
    %190 = tpu.memref_squeeze %189 : memref<1x!tpu.dma_semaphore, #tpu.memory_space<semaphore_mem>> -> memref<!tpu.dma_semaphore, #tpu.memory_space<semaphore_mem>>
    tpu.enqueue_dma source(%186 : memref<128xf32, #tpu.memory_space<any>>) target(%188 : memref<128xf32, #tpu.memory_space<vmem>>) target_semaphore(%190 : memref<!tpu.dma_semaphore, #tpu.memory_space<semaphore_mem>>)
    %c1_i32_124 = arith.constant 1 : i32
    %191 = arith.addi %0, %c1_i32_124 : i32
    %c8_i32_125 = arith.constant 8 : i32
    %192 = arith.muli %191, %c8_i32_125 : i32
    %c6_i32_126 = arith.constant 6 : i32
    %193 = arith.addi %192, %c6_i32_126 : i32
    %194 = arith.index_cast %193 : i32 to index
    %195 = memref.load %arg3[%194] : memref<128xi32, #tpu.memory_space<smem>>
    %c1_i32_127 = arith.constant 1 : i32
    %c6_i32_128 = arith.constant 6 : i32
    %c0_i32_129 = arith.constant 0 : i32
    %c0_i32_130 = arith.constant 0 : i32
    %196 = tpu.memref_slice %arg5[%195, %c0_i32_130] : memref<256x128xf32, #tpu.memory_space<any>> -> memref<1x128xf32, #tpu.memory_space<any>>
    %197 = tpu.memref_squeeze %196 : memref<1x128xf32, #tpu.memory_space<any>> -> memref<128xf32, #tpu.memory_space<any>>
    %c0_i32_131 = arith.constant 0 : i32
    %198 = tpu.memref_slice %arg9[%c1_i32_127, %c6_i32_128, %c0_i32_131] : memref<8x8x128xf32, #tpu.memory_space<vmem>> -> memref<1x1x128xf32, #tpu.memory_space<vmem>>
    %199 = tpu.memref_squeeze %198 : memref<1x1x128xf32, #tpu.memory_space<vmem>> -> memref<128xf32, #tpu.memory_space<vmem>>
    %200 = tpu.memref_slice %arg10[%c0_i32_129] : memref<1x!tpu.dma_semaphore, #tpu.memory_space<semaphore_mem>> -> memref<1x!tpu.dma_semaphore, #tpu.memory_space<semaphore_mem>>
    %201 = tpu.memref_squeeze %200 : memref<1x!tpu.dma_semaphore, #tpu.memory_space<semaphore_mem>> -> memref<!tpu.dma_semaphore, #tpu.memory_space<semaphore_mem>>
    tpu.enqueue_dma source(%197 : memref<128xf32, #tpu.memory_space<any>>) target(%199 : memref<128xf32, #tpu.memory_space<vmem>>) target_semaphore(%201 : memref<!tpu.dma_semaphore, #tpu.memory_space<semaphore_mem>>)
    %c1_i32_132 = arith.constant 1 : i32
    %202 = arith.addi %0, %c1_i32_132 : i32
    %c8_i32_133 = arith.constant 8 : i32
    %203 = arith.muli %202, %c8_i32_133 : i32
    %c7_i32_134 = arith.constant 7 : i32
    %204 = arith.addi %203, %c7_i32_134 : i32
    %205 = arith.index_cast %204 : i32 to index
    %206 = memref.load %arg3[%205] : memref<128xi32, #tpu.memory_space<smem>>
    %c1_i32_135 = arith.constant 1 : i32
    %c7_i32_136 = arith.constant 7 : i32
    %c0_i32_137 = arith.constant 0 : i32
    %c0_i32_138 = arith.constant 0 : i32
    %207 = tpu.memref_slice %arg5[%206, %c0_i32_138] : memref<256x128xf32, #tpu.memory_space<any>> -> memref<1x128xf32, #tpu.memory_space<any>>
    %208 = tpu.memref_squeeze %207 : memref<1x128xf32, #tpu.memory_space<any>> -> memref<128xf32, #tpu.memory_space<any>>
    %c0_i32_139 = arith.constant 0 : i32
    %209 = tpu.memref_slice %arg9[%c1_i32_135, %c7_i32_136, %c0_i32_139] : memref<8x8x128xf32, #tpu.memory_space<vmem>> -> memref<1x1x128xf32, #tpu.memory_space<vmem>>
    %210 = tpu.memref_squeeze %209 : memref<1x1x128xf32, #tpu.memory_space<vmem>> -> memref<128xf32, #tpu.memory_space<vmem>>
    %211 = tpu.memref_slice %arg10[%c0_i32_137] : memref<1x!tpu.dma_semaphore, #tpu.memory_space<semaphore_mem>> -> memref<1x!tpu.dma_semaphore, #tpu.memory_space<semaphore_mem>>
    %212 = tpu.memref_squeeze %211 : memref<1x!tpu.dma_semaphore, #tpu.memory_space<semaphore_mem>> -> memref<!tpu.dma_semaphore, #tpu.memory_space<semaphore_mem>>
    tpu.enqueue_dma source(%208 : memref<128xf32, #tpu.memory_space<any>>) target(%210 : memref<128xf32, #tpu.memory_space<vmem>>) target_semaphore(%212 : memref<!tpu.dma_semaphore, #tpu.memory_space<semaphore_mem>>)
    %c2_i32_140 = arith.constant 2 : i32
    %213 = arith.addi %0, %c2_i32_140 : i32
    %214 = arith.index_cast %213 : i32 to index
    %215 = memref.load %arg1[%214] : memref<16xi32, #tpu.memory_space<smem>>
    %c2_i32_141 = arith.constant 2 : i32
    %216 = arith.addi %0, %c2_i32_141 : i32
    %217 = arith.index_cast %216 : i32 to index
    %218 = memref.load %arg2[%217] : memref<16xi32, #tpu.memory_space<smem>>
    %c2_i32_142 = arith.constant 2 : i32
    %c0_i32_143 = arith.constant 0 : i32
    %c0_i32_144 = arith.constant 0 : i32
    %219 = tpu.memref_slice %arg4[%215, %c0_i32_144] : memref<256x128xf32, #tpu.memory_space<any>> -> memref<1x128xf32, #tpu.memory_space<any>>
    %220 = tpu.memref_squeeze %219 : memref<1x128xf32, #tpu.memory_space<any>> -> memref<128xf32, #tpu.memory_space<any>>
    %c0_i32_145 = arith.constant 0 : i32
    %221 = tpu.memref_slice %arg7[%c2_i32_142, %c0_i32_145] : memref<8x128xf32, #tpu.memory_space<vmem>> -> memref<1x128xf32, #tpu.memory_space<vmem>>
    %222 = tpu.memref_squeeze %221 : memref<1x128xf32, #tpu.memory_space<vmem>> -> memref<128xf32, #tpu.memory_space<vmem>>
    %223 = tpu.memref_slice %arg10[%c0_i32_143] : memref<1x!tpu.dma_semaphore, #tpu.memory_space<semaphore_mem>> -> memref<1x!tpu.dma_semaphore, #tpu.memory_space<semaphore_mem>>
    %224 = tpu.memref_squeeze %223 : memref<1x!tpu.dma_semaphore, #tpu.memory_space<semaphore_mem>> -> memref<!tpu.dma_semaphore, #tpu.memory_space<semaphore_mem>>
    tpu.enqueue_dma source(%220 : memref<128xf32, #tpu.memory_space<any>>) target(%222 : memref<128xf32, #tpu.memory_space<vmem>>) target_semaphore(%224 : memref<!tpu.dma_semaphore, #tpu.memory_space<semaphore_mem>>)
    %c2_i32_146 = arith.constant 2 : i32
    %c0_i32_147 = arith.constant 0 : i32
    %c0_i32_148 = arith.constant 0 : i32
    %225 = tpu.memref_slice %arg5[%218, %c0_i32_148] : memref<256x128xf32, #tpu.memory_space<any>> -> memref<1x128xf32, #tpu.memory_space<any>>
    %226 = tpu.memref_squeeze %225 : memref<1x128xf32, #tpu.memory_space<any>> -> memref<128xf32, #tpu.memory_space<any>>
    %c0_i32_149 = arith.constant 0 : i32
    %227 = tpu.memref_slice %arg8[%c2_i32_146, %c0_i32_149] : memref<8x128xf32, #tpu.memory_space<vmem>> -> memref<1x128xf32, #tpu.memory_space<vmem>>
    %228 = tpu.memref_squeeze %227 : memref<1x128xf32, #tpu.memory_space<vmem>> -> memref<128xf32, #tpu.memory_space<vmem>>
    %229 = tpu.memref_slice %arg10[%c0_i32_147] : memref<1x!tpu.dma_semaphore, #tpu.memory_space<semaphore_mem>> -> memref<1x!tpu.dma_semaphore, #tpu.memory_space<semaphore_mem>>
    %230 = tpu.memref_squeeze %229 : memref<1x!tpu.dma_semaphore, #tpu.memory_space<semaphore_mem>> -> memref<!tpu.dma_semaphore, #tpu.memory_space<semaphore_mem>>
    tpu.enqueue_dma source(%226 : memref<128xf32, #tpu.memory_space<any>>) target(%228 : memref<128xf32, #tpu.memory_space<vmem>>) target_semaphore(%230 : memref<!tpu.dma_semaphore, #tpu.memory_space<semaphore_mem>>)
    %c2_i32_150 = arith.constant 2 : i32
    %231 = arith.addi %0, %c2_i32_150 : i32
    %c8_i32_151 = arith.constant 8 : i32
    %232 = arith.muli %231, %c8_i32_151 : i32
    %c0_i32_152 = arith.constant 0 : i32
    %233 = arith.addi %232, %c0_i32_152 : i32
    %234 = arith.index_cast %233 : i32 to index
    %235 = memref.load %arg3[%234] : memref<128xi32, #tpu.memory_space<smem>>
    %c2_i32_153 = arith.constant 2 : i32
    %c0_i32_154 = arith.constant 0 : i32
    %c0_i32_155 = arith.constant 0 : i32
    %c0_i32_156 = arith.constant 0 : i32
    %236 = tpu.memref_slice %arg5[%235, %c0_i32_156] : memref<256x128xf32, #tpu.memory_space<any>> -> memref<1x128xf32, #tpu.memory_space<any>>
    %237 = tpu.memref_squeeze %236 : memref<1x128xf32, #tpu.memory_space<any>> -> memref<128xf32, #tpu.memory_space<any>>
    %c0_i32_157 = arith.constant 0 : i32
    %238 = tpu.memref_slice %arg9[%c2_i32_153, %c0_i32_154, %c0_i32_157] : memref<8x8x128xf32, #tpu.memory_space<vmem>> -> memref<1x1x128xf32, #tpu.memory_space<vmem>>
    %239 = tpu.memref_squeeze %238 : memref<1x1x128xf32, #tpu.memory_space<vmem>> -> memref<128xf32, #tpu.memory_space<vmem>>
    %240 = tpu.memref_slice %arg10[%c0_i32_155] : memref<1x!tpu.dma_semaphore, #tpu.memory_space<semaphore_mem>> -> memref<1x!tpu.dma_semaphore, #tpu.memory_space<semaphore_mem>>
    %241 = tpu.memref_squeeze %240 : memref<1x!tpu.dma_semaphore, #tpu.memory_space<semaphore_mem>> -> memref<!tpu.dma_semaphore, #tpu.memory_space<semaphore_mem>>
    tpu.enqueue_dma source(%237 : memref<128xf32, #tpu.memory_space<any>>) target(%239 : memref<128xf32, #tpu.memory_space<vmem>>) target_semaphore(%241 : memref<!tpu.dma_semaphore, #tpu.memory_space<semaphore_mem>>)
    %c2_i32_158 = arith.constant 2 : i32
    %242 = arith.addi %0, %c2_i32_158 : i32
    %c8_i32_159 = arith.constant 8 : i32
    %243 = arith.muli %242, %c8_i32_159 : i32
    %c1_i32_160 = arith.constant 1 : i32
    %244 = arith.addi %243, %c1_i32_160 : i32
    %245 = arith.index_cast %244 : i32 to index
    %246 = memref.load %arg3[%245] : memref<128xi32, #tpu.memory_space<smem>>
    %c2_i32_161 = arith.constant 2 : i32
    %c1_i32_162 = arith.constant 1 : i32
    %c0_i32_163 = arith.constant 0 : i32
    %c0_i32_164 = arith.constant 0 : i32
    %247 = tpu.memref_slice %arg5[%246, %c0_i32_164] : memref<256x128xf32, #tpu.memory_space<any>> -> memref<1x128xf32, #tpu.memory_space<any>>
    %248 = tpu.memref_squeeze %247 : memref<1x128xf32, #tpu.memory_space<any>> -> memref<128xf32, #tpu.memory_space<any>>
    %c0_i32_165 = arith.constant 0 : i32
    %249 = tpu.memref_slice %arg9[%c2_i32_161, %c1_i32_162, %c0_i32_165] : memref<8x8x128xf32, #tpu.memory_space<vmem>> -> memref<1x1x128xf32, #tpu.memory_space<vmem>>
    %250 = tpu.memref_squeeze %249 : memref<1x1x128xf32, #tpu.memory_space<vmem>> -> memref<128xf32, #tpu.memory_space<vmem>>
    %251 = tpu.memref_slice %arg10[%c0_i32_163] : memref<1x!tpu.dma_semaphore, #tpu.memory_space<semaphore_mem>> -> memref<1x!tpu.dma_semaphore, #tpu.memory_space<semaphore_mem>>
    %252 = tpu.memref_squeeze %251 : memref<1x!tpu.dma_semaphore, #tpu.memory_space<semaphore_mem>> -> memref<!tpu.dma_semaphore, #tpu.memory_space<semaphore_mem>>
    tpu.enqueue_dma source(%248 : memref<128xf32, #tpu.memory_space<any>>) target(%250 : memref<128xf32, #tpu.memory_space<vmem>>) target_semaphore(%252 : memref<!tpu.dma_semaphore, #tpu.memory_space<semaphore_mem>>)
    %c2_i32_166 = arith.constant 2 : i32
    %253 = arith.addi %0, %c2_i32_166 : i32
    %c8_i32_167 = arith.constant 8 : i32
    %254 = arith.muli %253, %c8_i32_167 : i32
    %c2_i32_168 = arith.constant 2 : i32
    %255 = arith.addi %254, %c2_i32_168 : i32
    %256 = arith.index_cast %255 : i32 to index
    %257 = memref.load %arg3[%256] : memref<128xi32, #tpu.memory_space<smem>>
    %c2_i32_169 = arith.constant 2 : i32
    %c2_i32_170 = arith.constant 2 : i32
    %c0_i32_171 = arith.constant 0 : i32
    %c0_i32_172 = arith.constant 0 : i32
    %258 = tpu.memref_slice %arg5[%257, %c0_i32_172] : memref<256x128xf32, #tpu.memory_space<any>> -> memref<1x128xf32, #tpu.memory_space<any>>
    %259 = tpu.memref_squeeze %258 : memref<1x128xf32, #tpu.memory_space<any>> -> memref<128xf32, #tpu.memory_space<any>>
    %c0_i32_173 = arith.constant 0 : i32
    %260 = tpu.memref_slice %arg9[%c2_i32_169, %c2_i32_170, %c0_i32_173] : memref<8x8x128xf32, #tpu.memory_space<vmem>> -> memref<1x1x128xf32, #tpu.memory_space<vmem>>
    %261 = tpu.memref_squeeze %260 : memref<1x1x128xf32, #tpu.memory_space<vmem>> -> memref<128xf32, #tpu.memory_space<vmem>>
    %262 = tpu.memref_slice %arg10[%c0_i32_171] : memref<1x!tpu.dma_semaphore, #tpu.memory_space<semaphore_mem>> -> memref<1x!tpu.dma_semaphore, #tpu.memory_space<semaphore_mem>>
    %263 = tpu.memref_squeeze %262 : memref<1x!tpu.dma_semaphore, #tpu.memory_space<semaphore_mem>> -> memref<!tpu.dma_semaphore, #tpu.memory_space<semaphore_mem>>
    tpu.enqueue_dma source(%259 : memref<128xf32, #tpu.memory_space<any>>) target(%261 : memref<128xf32, #tpu.memory_space<vmem>>) target_semaphore(%263 : memref<!tpu.dma_semaphore, #tpu.memory_space<semaphore_mem>>)
    %c2_i32_174 = arith.constant 2 : i32
    %264 = arith.addi %0, %c2_i32_174 : i32
    %c8_i32_175 = arith.constant 8 : i32
    %265 = arith.muli %264, %c8_i32_175 : i32
    %c3_i32_176 = arith.constant 3 : i32
    %266 = arith.addi %265, %c3_i32_176 : i32
    %267 = arith.index_cast %266 : i32 to index
    %268 = memref.load %arg3[%267] : memref<128xi32, #tpu.memory_space<smem>>
    %c2_i32_177 = arith.constant 2 : i32
    %c3_i32_178 = arith.constant 3 : i32
    %c0_i32_179 = arith.constant 0 : i32
    %c0_i32_180 = arith.constant 0 : i32
    %269 = tpu.memref_slice %arg5[%268, %c0_i32_180] : memref<256x128xf32, #tpu.memory_space<any>> -> memref<1x128xf32, #tpu.memory_space<any>>
    %270 = tpu.memref_squeeze %269 : memref<1x128xf32, #tpu.memory_space<any>> -> memref<128xf32, #tpu.memory_space<any>>
    %c0_i32_181 = arith.constant 0 : i32
    %271 = tpu.memref_slice %arg9[%c2_i32_177, %c3_i32_178, %c0_i32_181] : memref<8x8x128xf32, #tpu.memory_space<vmem>> -> memref<1x1x128xf32, #tpu.memory_space<vmem>>
    %272 = tpu.memref_squeeze %271 : memref<1x1x128xf32, #tpu.memory_space<vmem>> -> memref<128xf32, #tpu.memory_space<vmem>>
    %273 = tpu.memref_slice %arg10[%c0_i32_179] : memref<1x!tpu.dma_semaphore, #tpu.memory_space<semaphore_mem>> -> memref<1x!tpu.dma_semaphore, #tpu.memory_space<semaphore_mem>>
    %274 = tpu.memref_squeeze %273 : memref<1x!tpu.dma_semaphore, #tpu.memory_space<semaphore_mem>> -> memref<!tpu.dma_semaphore, #tpu.memory_space<semaphore_mem>>
    tpu.enqueue_dma source(%270 : memref<128xf32, #tpu.memory_space<any>>) target(%272 : memref<128xf32, #tpu.memory_space<vmem>>) target_semaphore(%274 : memref<!tpu.dma_semaphore, #tpu.memory_space<semaphore_mem>>)
    %c2_i32_182 = arith.constant 2 : i32
    %275 = arith.addi %0, %c2_i32_182 : i32
    %c8_i32_183 = arith.constant 8 : i32
    %276 = arith.muli %275, %c8_i32_183 : i32
    %c4_i32_184 = arith.constant 4 : i32
    %277 = arith.addi %276, %c4_i32_184 : i32
    %278 = arith.index_cast %277 : i32 to index
    %279 = memref.load %arg3[%278] : memref<128xi32, #tpu.memory_space<smem>>
    %c2_i32_185 = arith.constant 2 : i32
    %c4_i32_186 = arith.constant 4 : i32
    %c0_i32_187 = arith.constant 0 : i32
    %c0_i32_188 = arith.constant 0 : i32
    %280 = tpu.memref_slice %arg5[%279, %c0_i32_188] : memref<256x128xf32, #tpu.memory_space<any>> -> memref<1x128xf32, #tpu.memory_space<any>>
    %281 = tpu.memref_squeeze %280 : memref<1x128xf32, #tpu.memory_space<any>> -> memref<128xf32, #tpu.memory_space<any>>
    %c0_i32_189 = arith.constant 0 : i32
    %282 = tpu.memref_slice %arg9[%c2_i32_185, %c4_i32_186, %c0_i32_189] : memref<8x8x128xf32, #tpu.memory_space<vmem>> -> memref<1x1x128xf32, #tpu.memory_space<vmem>>
    %283 = tpu.memref_squeeze %282 : memref<1x1x128xf32, #tpu.memory_space<vmem>> -> memref<128xf32, #tpu.memory_space<vmem>>
    %284 = tpu.memref_slice %arg10[%c0_i32_187] : memref<1x!tpu.dma_semaphore, #tpu.memory_space<semaphore_mem>> -> memref<1x!tpu.dma_semaphore, #tpu.memory_space<semaphore_mem>>
    %285 = tpu.memref_squeeze %284 : memref<1x!tpu.dma_semaphore, #tpu.memory_space<semaphore_mem>> -> memref<!tpu.dma_semaphore, #tpu.memory_space<semaphore_mem>>
    tpu.enqueue_dma source(%281 : memref<128xf32, #tpu.memory_space<any>>) target(%283 : memref<128xf32, #tpu.memory_space<vmem>>) target_semaphore(%285 : memref<!tpu.dma_semaphore, #tpu.memory_space<semaphore_mem>>)
    %c2_i32_190 = arith.constant 2 : i32
    %286 = arith.addi %0, %c2_i32_190 : i32
    %c8_i32_191 = arith.constant 8 : i32
    %287 = arith.muli %286, %c8_i32_191 : i32
    %c5_i32_192 = arith.constant 5 : i32
    %288 = arith.addi %287, %c5_i32_192 : i32
    %289 = arith.index_cast %288 : i32 to index
    %290 = memref.load %arg3[%289] : memref<128xi32, #tpu.memory_space<smem>>
    %c2_i32_193 = arith.constant 2 : i32
    %c5_i32_194 = arith.constant 5 : i32
    %c0_i32_195 = arith.constant 0 : i32
    %c0_i32_196 = arith.constant 0 : i32
    %291 = tpu.memref_slice %arg5[%290, %c0_i32_196] : memref<256x128xf32, #tpu.memory_space<any>> -> memref<1x128xf32, #tpu.memory_space<any>>
    %292 = tpu.memref_squeeze %291 : memref<1x128xf32, #tpu.memory_space<any>> -> memref<128xf32, #tpu.memory_space<any>>
    %c0_i32_197 = arith.constant 0 : i32
    %293 = tpu.memref_slice %arg9[%c2_i32_193, %c5_i32_194, %c0_i32_197] : memref<8x8x128xf32, #tpu.memory_space<vmem>> -> memref<1x1x128xf32, #tpu.memory_space<vmem>>
    %294 = tpu.memref_squeeze %293 : memref<1x1x128xf32, #tpu.memory_space<vmem>> -> memref<128xf32, #tpu.memory_space<vmem>>
    %295 = tpu.memref_slice %arg10[%c0_i32_195] : memref<1x!tpu.dma_semaphore, #tpu.memory_space<semaphore_mem>> -> memref<1x!tpu.dma_semaphore, #tpu.memory_space<semaphore_mem>>
    %296 = tpu.memref_squeeze %295 : memref<1x!tpu.dma_semaphore, #tpu.memory_space<semaphore_mem>> -> memref<!tpu.dma_semaphore, #tpu.memory_space<semaphore_mem>>
    tpu.enqueue_dma source(%292 : memref<128xf32, #tpu.memory_space<any>>) target(%294 : memref<128xf32, #tpu.memory_space<vmem>>) target_semaphore(%296 : memref<!tpu.dma_semaphore, #tpu.memory_space<semaphore_mem>>)
    %c2_i32_198 = arith.constant 2 : i32
    %297 = arith.addi %0, %c2_i32_198 : i32
    %c8_i32_199 = arith.constant 8 : i32
    %298 = arith.muli %297, %c8_i32_199 : i32
    %c6_i32_200 = arith.constant 6 : i32
    %299 = arith.addi %298, %c6_i32_200 : i32
    %300 = arith.index_cast %299 : i32 to index
    %301 = memref.load %arg3[%300] : memref<128xi32, #tpu.memory_space<smem>>
    %c2_i32_201 = arith.constant 2 : i32
    %c6_i32_202 = arith.constant 6 : i32
    %c0_i32_203 = arith.constant 0 : i32
    %c0_i32_204 = arith.constant 0 : i32
    %302 = tpu.memref_slice %arg5[%301, %c0_i32_204] : memref<256x128xf32, #tpu.memory_space<any>> -> memref<1x128xf32, #tpu.memory_space<any>>
    %303 = tpu.memref_squeeze %302 : memref<1x128xf32, #tpu.memory_space<any>> -> memref<128xf32, #tpu.memory_space<any>>
    %c0_i32_205 = arith.constant 0 : i32
    %304 = tpu.memref_slice %arg9[%c2_i32_201, %c6_i32_202, %c0_i32_205] : memref<8x8x128xf32, #tpu.memory_space<vmem>> -> memref<1x1x128xf32, #tpu.memory_space<vmem>>
    %305 = tpu.memref_squeeze %304 : memref<1x1x128xf32, #tpu.memory_space<vmem>> -> memref<128xf32, #tpu.memory_space<vmem>>
    %306 = tpu.memref_slice %arg10[%c0_i32_203] : memref<1x!tpu.dma_semaphore, #tpu.memory_space<semaphore_mem>> -> memref<1x!tpu.dma_semaphore, #tpu.memory_space<semaphore_mem>>
    %307 = tpu.memref_squeeze %306 : memref<1x!tpu.dma_semaphore, #tpu.memory_space<semaphore_mem>> -> memref<!tpu.dma_semaphore, #tpu.memory_space<semaphore_mem>>
    tpu.enqueue_dma source(%303 : memref<128xf32, #tpu.memory_space<any>>) target(%305 : memref<128xf32, #tpu.memory_space<vmem>>) target_semaphore(%307 : memref<!tpu.dma_semaphore, #tpu.memory_space<semaphore_mem>>)
    %c2_i32_206 = arith.constant 2 : i32
    %308 = arith.addi %0, %c2_i32_206 : i32
    %c8_i32_207 = arith.constant 8 : i32
    %309 = arith.muli %308, %c8_i32_207 : i32
    %c7_i32_208 = arith.constant 7 : i32
    %310 = arith.addi %309, %c7_i32_208 : i32
    %311 = arith.index_cast %310 : i32 to index
    %312 = memref.load %arg3[%311] : memref<128xi32, #tpu.memory_space<smem>>
    %c2_i32_209 = arith.constant 2 : i32
    %c7_i32_210 = arith.constant 7 : i32
    %c0_i32_211 = arith.constant 0 : i32
    %c0_i32_212 = arith.constant 0 : i32
    %313 = tpu.memref_slice %arg5[%312, %c0_i32_212] : memref<256x128xf32, #tpu.memory_space<any>> -> memref<1x128xf32, #tpu.memory_space<any>>
    %314 = tpu.memref_squeeze %313 : memref<1x128xf32, #tpu.memory_space<any>> -> memref<128xf32, #tpu.memory_space<any>>
    %c0_i32_213 = arith.constant 0 : i32
    %315 = tpu.memref_slice %arg9[%c2_i32_209, %c7_i32_210, %c0_i32_213] : memref<8x8x128xf32, #tpu.memory_space<vmem>> -> memref<1x1x128xf32, #tpu.memory_space<vmem>>
    %316 = tpu.memref_squeeze %315 : memref<1x1x128xf32, #tpu.memory_space<vmem>> -> memref<128xf32, #tpu.memory_space<vmem>>
    %317 = tpu.memref_slice %arg10[%c0_i32_211] : memref<1x!tpu.dma_semaphore, #tpu.memory_space<semaphore_mem>> -> memref<1x!tpu.dma_semaphore, #tpu.memory_space<semaphore_mem>>
    %318 = tpu.memref_squeeze %317 : memref<1x!tpu.dma_semaphore, #tpu.memory_space<semaphore_mem>> -> memref<!tpu.dma_semaphore, #tpu.memory_space<semaphore_mem>>
    tpu.enqueue_dma source(%314 : memref<128xf32, #tpu.memory_space<any>>) target(%316 : memref<128xf32, #tpu.memory_space<vmem>>) target_semaphore(%318 : memref<!tpu.dma_semaphore, #tpu.memory_space<semaphore_mem>>)
    %c3_i32_214 = arith.constant 3 : i32
    %319 = arith.addi %0, %c3_i32_214 : i32
    %320 = arith.index_cast %319 : i32 to index
    %321 = memref.load %arg1[%320] : memref<16xi32, #tpu.memory_space<smem>>
    %c3_i32_215 = arith.constant 3 : i32
    %322 = arith.addi %0, %c3_i32_215 : i32
    %323 = arith.index_cast %322 : i32 to index
    %324 = memref.load %arg2[%323] : memref<16xi32, #tpu.memory_space<smem>>
    %c3_i32_216 = arith.constant 3 : i32
    %c0_i32_217 = arith.constant 0 : i32
    %c0_i32_218 = arith.constant 0 : i32
    %325 = tpu.memref_slice %arg4[%321, %c0_i32_218] : memref<256x128xf32, #tpu.memory_space<any>> -> memref<1x128xf32, #tpu.memory_space<any>>
    %326 = tpu.memref_squeeze %325 : memref<1x128xf32, #tpu.memory_space<any>> -> memref<128xf32, #tpu.memory_space<any>>
    %c0_i32_219 = arith.constant 0 : i32
    %327 = tpu.memref_slice %arg7[%c3_i32_216, %c0_i32_219] : memref<8x128xf32, #tpu.memory_space<vmem>> -> memref<1x128xf32, #tpu.memory_space<vmem>>
    %328 = tpu.memref_squeeze %327 : memref<1x128xf32, #tpu.memory_space<vmem>> -> memref<128xf32, #tpu.memory_space<vmem>>
    %329 = tpu.memref_slice %arg10[%c0_i32_217] : memref<1x!tpu.dma_semaphore, #tpu.memory_space<semaphore_mem>> -> memref<1x!tpu.dma_semaphore, #tpu.memory_space<semaphore_mem>>
    %330 = tpu.memref_squeeze %329 : memref<1x!tpu.dma_semaphore, #tpu.memory_space<semaphore_mem>> -> memref<!tpu.dma_semaphore, #tpu.memory_space<semaphore_mem>>
    tpu.enqueue_dma source(%326 : memref<128xf32, #tpu.memory_space<any>>) target(%328 : memref<128xf32, #tpu.memory_space<vmem>>) target_semaphore(%330 : memref<!tpu.dma_semaphore, #tpu.memory_space<semaphore_mem>>)
    %c3_i32_220 = arith.constant 3 : i32
    %c0_i32_221 = arith.constant 0 : i32
    %c0_i32_222 = arith.constant 0 : i32
    %331 = tpu.memref_slice %arg5[%324, %c0_i32_222] : memref<256x128xf32, #tpu.memory_space<any>> -> memref<1x128xf32, #tpu.memory_space<any>>
    %332 = tpu.memref_squeeze %331 : memref<1x128xf32, #tpu.memory_space<any>> -> memref<128xf32, #tpu.memory_space<any>>
    %c0_i32_223 = arith.constant 0 : i32
    %333 = tpu.memref_slice %arg8[%c3_i32_220, %c0_i32_223] : memref<8x128xf32, #tpu.memory_space<vmem>> -> memref<1x128xf32, #tpu.memory_space<vmem>>
    %334 = tpu.memref_squeeze %333 : memref<1x128xf32, #tpu.memory_space<vmem>> -> memref<128xf32, #tpu.memory_space<vmem>>
    %335 = tpu.memref_slice %arg10[%c0_i32_221] : memref<1x!tpu.dma_semaphore, #tpu.memory_space<semaphore_mem>> -> memref<1x!tpu.dma_semaphore, #tpu.memory_space<semaphore_mem>>
    %336 = tpu.memref_squeeze %335 : memref<1x!tpu.dma_semaphore, #tpu.memory_space<semaphore_mem>> -> memref<!tpu.dma_semaphore, #tpu.memory_space<semaphore_mem>>
    tpu.enqueue_dma source(%332 : memref<128xf32, #tpu.memory_space<any>>) target(%334 : memref<128xf32, #tpu.memory_space<vmem>>) target_semaphore(%336 : memref<!tpu.dma_semaphore, #tpu.memory_space<semaphore_mem>>)
    %c3_i32_224 = arith.constant 3 : i32
    %337 = arith.addi %0, %c3_i32_224 : i32
    %c8_i32_225 = arith.constant 8 : i32
    %338 = arith.muli %337, %c8_i32_225 : i32
    %c0_i32_226 = arith.constant 0 : i32
    %339 = arith.addi %338, %c0_i32_226 : i32
    %340 = arith.index_cast %339 : i32 to index
    %341 = memref.load %arg3[%340] : memref<128xi32, #tpu.memory_space<smem>>
    %c3_i32_227 = arith.constant 3 : i32
    %c0_i32_228 = arith.constant 0 : i32
    %c0_i32_229 = arith.constant 0 : i32
    %c0_i32_230 = arith.constant 0 : i32
    %342 = tpu.memref_slice %arg5[%341, %c0_i32_230] : memref<256x128xf32, #tpu.memory_space<any>> -> memref<1x128xf32, #tpu.memory_space<any>>
    %343 = tpu.memref_squeeze %342 : memref<1x128xf32, #tpu.memory_space<any>> -> memref<128xf32, #tpu.memory_space<any>>
    %c0_i32_231 = arith.constant 0 : i32
    %344 = tpu.memref_slice %arg9[%c3_i32_227, %c0_i32_228, %c0_i32_231] : memref<8x8x128xf32, #tpu.memory_space<vmem>> -> memref<1x1x128xf32, #tpu.memory_space<vmem>>
    %345 = tpu.memref_squeeze %344 : memref<1x1x128xf32, #tpu.memory_space<vmem>> -> memref<128xf32, #tpu.memory_space<vmem>>
    %346 = tpu.memref_slice %arg10[%c0_i32_229] : memref<1x!tpu.dma_semaphore, #tpu.memory_space<semaphore_mem>> -> memref<1x!tpu.dma_semaphore, #tpu.memory_space<semaphore_mem>>
    %347 = tpu.memref_squeeze %346 : memref<1x!tpu.dma_semaphore, #tpu.memory_space<semaphore_mem>> -> memref<!tpu.dma_semaphore, #tpu.memory_space<semaphore_mem>>
    tpu.enqueue_dma source(%343 : memref<128xf32, #tpu.memory_space<any>>) target(%345 : memref<128xf32, #tpu.memory_space<vmem>>) target_semaphore(%347 : memref<!tpu.dma_semaphore, #tpu.memory_space<semaphore_mem>>)
    %c3_i32_232 = arith.constant 3 : i32
    %348 = arith.addi %0, %c3_i32_232 : i32
    %c8_i32_233 = arith.constant 8 : i32
    %349 = arith.muli %348, %c8_i32_233 : i32
    %c1_i32_234 = arith.constant 1 : i32
    %350 = arith.addi %349, %c1_i32_234 : i32
    %351 = arith.index_cast %350 : i32 to index
    %352 = memref.load %arg3[%351] : memref<128xi32, #tpu.memory_space<smem>>
    %c3_i32_235 = arith.constant 3 : i32
    %c1_i32_236 = arith.constant 1 : i32
    %c0_i32_237 = arith.constant 0 : i32
    %c0_i32_238 = arith.constant 0 : i32
    %353 = tpu.memref_slice %arg5[%352, %c0_i32_238] : memref<256x128xf32, #tpu.memory_space<any>> -> memref<1x128xf32, #tpu.memory_space<any>>
    %354 = tpu.memref_squeeze %353 : memref<1x128xf32, #tpu.memory_space<any>> -> memref<128xf32, #tpu.memory_space<any>>
    %c0_i32_239 = arith.constant 0 : i32
    %355 = tpu.memref_slice %arg9[%c3_i32_235, %c1_i32_236, %c0_i32_239] : memref<8x8x128xf32, #tpu.memory_space<vmem>> -> memref<1x1x128xf32, #tpu.memory_space<vmem>>
    %356 = tpu.memref_squeeze %355 : memref<1x1x128xf32, #tpu.memory_space<vmem>> -> memref<128xf32, #tpu.memory_space<vmem>>
    %357 = tpu.memref_slice %arg10[%c0_i32_237] : memref<1x!tpu.dma_semaphore, #tpu.memory_space<semaphore_mem>> -> memref<1x!tpu.dma_semaphore, #tpu.memory_space<semaphore_mem>>
    %358 = tpu.memref_squeeze %357 : memref<1x!tpu.dma_semaphore, #tpu.memory_space<semaphore_mem>> -> memref<!tpu.dma_semaphore, #tpu.memory_space<semaphore_mem>>
    tpu.enqueue_dma source(%354 : memref<128xf32, #tpu.memory_space<any>>) target(%356 : memref<128xf32, #tpu.memory_space<vmem>>) target_semaphore(%358 : memref<!tpu.dma_semaphore, #tpu.memory_space<semaphore_mem>>)
    %c3_i32_240 = arith.constant 3 : i32
    %359 = arith.addi %0, %c3_i32_240 : i32
    %c8_i32_241 = arith.constant 8 : i32
    %360 = arith.muli %359, %c8_i32_241 : i32
    %c2_i32_242 = arith.constant 2 : i32
    %361 = arith.addi %360, %c2_i32_242 : i32
    %362 = arith.index_cast %361 : i32 to index
    %363 = memref.load %arg3[%362] : memref<128xi32, #tpu.memory_space<smem>>
    %c3_i32_243 = arith.constant 3 : i32
    %c2_i32_244 = arith.constant 2 : i32
    %c0_i32_245 = arith.constant 0 : i32
    %c0_i32_246 = arith.constant 0 : i32
    %364 = tpu.memref_slice %arg5[%363, %c0_i32_246] : memref<256x128xf32, #tpu.memory_space<any>> -> memref<1x128xf32, #tpu.memory_space<any>>
    %365 = tpu.memref_squeeze %364 : memref<1x128xf32, #tpu.memory_space<any>> -> memref<128xf32, #tpu.memory_space<any>>
    %c0_i32_247 = arith.constant 0 : i32
    %366 = tpu.memref_slice %arg9[%c3_i32_243, %c2_i32_244, %c0_i32_247] : memref<8x8x128xf32, #tpu.memory_space<vmem>> -> memref<1x1x128xf32, #tpu.memory_space<vmem>>
    %367 = tpu.memref_squeeze %366 : memref<1x1x128xf32, #tpu.memory_space<vmem>> -> memref<128xf32, #tpu.memory_space<vmem>>
    %368 = tpu.memref_slice %arg10[%c0_i32_245] : memref<1x!tpu.dma_semaphore, #tpu.memory_space<semaphore_mem>> -> memref<1x!tpu.dma_semaphore, #tpu.memory_space<semaphore_mem>>
    %369 = tpu.memref_squeeze %368 : memref<1x!tpu.dma_semaphore, #tpu.memory_space<semaphore_mem>> -> memref<!tpu.dma_semaphore, #tpu.memory_space<semaphore_mem>>
    tpu.enqueue_dma source(%365 : memref<128xf32, #tpu.memory_space<any>>) target(%367 : memref<128xf32, #tpu.memory_space<vmem>>) target_semaphore(%369 : memref<!tpu.dma_semaphore, #tpu.memory_space<semaphore_mem>>)
    %c3_i32_248 = arith.constant 3 : i32
    %370 = arith.addi %0, %c3_i32_248 : i32
    %c8_i32_249 = arith.constant 8 : i32
    %371 = arith.muli %370, %c8_i32_249 : i32
    %c3_i32_250 = arith.constant 3 : i32
    %372 = arith.addi %371, %c3_i32_250 : i32
    %373 = arith.index_cast %372 : i32 to index
    %374 = memref.load %arg3[%373] : memref<128xi32, #tpu.memory_space<smem>>
    %c3_i32_251 = arith.constant 3 : i32
    %c3_i32_252 = arith.constant 3 : i32
    %c0_i32_253 = arith.constant 0 : i32
    %c0_i32_254 = arith.constant 0 : i32
    %375 = tpu.memref_slice %arg5[%374, %c0_i32_254] : memref<256x128xf32, #tpu.memory_space<any>> -> memref<1x128xf32, #tpu.memory_space<any>>
    %376 = tpu.memref_squeeze %375 : memref<1x128xf32, #tpu.memory_space<any>> -> memref<128xf32, #tpu.memory_space<any>>
    %c0_i32_255 = arith.constant 0 : i32
    %377 = tpu.memref_slice %arg9[%c3_i32_251, %c3_i32_252, %c0_i32_255] : memref<8x8x128xf32, #tpu.memory_space<vmem>> -> memref<1x1x128xf32, #tpu.memory_space<vmem>>
    %378 = tpu.memref_squeeze %377 : memref<1x1x128xf32, #tpu.memory_space<vmem>> -> memref<128xf32, #tpu.memory_space<vmem>>
    %379 = tpu.memref_slice %arg10[%c0_i32_253] : memref<1x!tpu.dma_semaphore, #tpu.memory_space<semaphore_mem>> -> memref<1x!tpu.dma_semaphore, #tpu.memory_space<semaphore_mem>>
    %380 = tpu.memref_squeeze %379 : memref<1x!tpu.dma_semaphore, #tpu.memory_space<semaphore_mem>> -> memref<!tpu.dma_semaphore, #tpu.memory_space<semaphore_mem>>
    tpu.enqueue_dma source(%376 : memref<128xf32, #tpu.memory_space<any>>) target(%378 : memref<128xf32, #tpu.memory_space<vmem>>) target_semaphore(%380 : memref<!tpu.dma_semaphore, #tpu.memory_space<semaphore_mem>>)
    %c3_i32_256 = arith.constant 3 : i32
    %381 = arith.addi %0, %c3_i32_256 : i32
    %c8_i32_257 = arith.constant 8 : i32
    %382 = arith.muli %381, %c8_i32_257 : i32
    %c4_i32_258 = arith.constant 4 : i32
    %383 = arith.addi %382, %c4_i32_258 : i32
    %384 = arith.index_cast %383 : i32 to index
    %385 = memref.load %arg3[%384] : memref<128xi32, #tpu.memory_space<smem>>
    %c3_i32_259 = arith.constant 3 : i32
    %c4_i32_260 = arith.constant 4 : i32
    %c0_i32_261 = arith.constant 0 : i32
    %c0_i32_262 = arith.constant 0 : i32
    %386 = tpu.memref_slice %arg5[%385, %c0_i32_262] : memref<256x128xf32, #tpu.memory_space<any>> -> memref<1x128xf32, #tpu.memory_space<any>>
    %387 = tpu.memref_squeeze %386 : memref<1x128xf32, #tpu.memory_space<any>> -> memref<128xf32, #tpu.memory_space<any>>
    %c0_i32_263 = arith.constant 0 : i32
    %388 = tpu.memref_slice %arg9[%c3_i32_259, %c4_i32_260, %c0_i32_263] : memref<8x8x128xf32, #tpu.memory_space<vmem>> -> memref<1x1x128xf32, #tpu.memory_space<vmem>>
    %389 = tpu.memref_squeeze %388 : memref<1x1x128xf32, #tpu.memory_space<vmem>> -> memref<128xf32, #tpu.memory_space<vmem>>
    %390 = tpu.memref_slice %arg10[%c0_i32_261] : memref<1x!tpu.dma_semaphore, #tpu.memory_space<semaphore_mem>> -> memref<1x!tpu.dma_semaphore, #tpu.memory_space<semaphore_mem>>
    %391 = tpu.memref_squeeze %390 : memref<1x!tpu.dma_semaphore, #tpu.memory_space<semaphore_mem>> -> memref<!tpu.dma_semaphore, #tpu.memory_space<semaphore_mem>>
    tpu.enqueue_dma source(%387 : memref<128xf32, #tpu.memory_space<any>>) target(%389 : memref<128xf32, #tpu.memory_space<vmem>>) target_semaphore(%391 : memref<!tpu.dma_semaphore, #tpu.memory_space<semaphore_mem>>)
    %c3_i32_264 = arith.constant 3 : i32
    %392 = arith.addi %0, %c3_i32_264 : i32
    %c8_i32_265 = arith.constant 8 : i32
    %393 = arith.muli %392, %c8_i32_265 : i32
    %c5_i32_266 = arith.constant 5 : i32
    %394 = arith.addi %393, %c5_i32_266 : i32
    %395 = arith.index_cast %394 : i32 to index
    %396 = memref.load %arg3[%395] : memref<128xi32, #tpu.memory_space<smem>>
    %c3_i32_267 = arith.constant 3 : i32
    %c5_i32_268 = arith.constant 5 : i32
    %c0_i32_269 = arith.constant 0 : i32
    %c0_i32_270 = arith.constant 0 : i32
    %397 = tpu.memref_slice %arg5[%396, %c0_i32_270] : memref<256x128xf32, #tpu.memory_space<any>> -> memref<1x128xf32, #tpu.memory_space<any>>
    %398 = tpu.memref_squeeze %397 : memref<1x128xf32, #tpu.memory_space<any>> -> memref<128xf32, #tpu.memory_space<any>>
    %c0_i32_271 = arith.constant 0 : i32
    %399 = tpu.memref_slice %arg9[%c3_i32_267, %c5_i32_268, %c0_i32_271] : memref<8x8x128xf32, #tpu.memory_space<vmem>> -> memref<1x1x128xf32, #tpu.memory_space<vmem>>
    %400 = tpu.memref_squeeze %399 : memref<1x1x128xf32, #tpu.memory_space<vmem>> -> memref<128xf32, #tpu.memory_space<vmem>>
    %401 = tpu.memref_slice %arg10[%c0_i32_269] : memref<1x!tpu.dma_semaphore, #tpu.memory_space<semaphore_mem>> -> memref<1x!tpu.dma_semaphore, #tpu.memory_space<semaphore_mem>>
    %402 = tpu.memref_squeeze %401 : memref<1x!tpu.dma_semaphore, #tpu.memory_space<semaphore_mem>> -> memref<!tpu.dma_semaphore, #tpu.memory_space<semaphore_mem>>
    tpu.enqueue_dma source(%398 : memref<128xf32, #tpu.memory_space<any>>) target(%400 : memref<128xf32, #tpu.memory_space<vmem>>) target_semaphore(%402 : memref<!tpu.dma_semaphore, #tpu.memory_space<semaphore_mem>>)
    %c3_i32_272 = arith.constant 3 : i32
    %403 = arith.addi %0, %c3_i32_272 : i32
    %c8_i32_273 = arith.constant 8 : i32
    %404 = arith.muli %403, %c8_i32_273 : i32
    %c6_i32_274 = arith.constant 6 : i32
    %405 = arith.addi %404, %c6_i32_274 : i32
    %406 = arith.index_cast %405 : i32 to index
    %407 = memref.load %arg3[%406] : memref<128xi32, #tpu.memory_space<smem>>
    %c3_i32_275 = arith.constant 3 : i32
    %c6_i32_276 = arith.constant 6 : i32
    %c0_i32_277 = arith.constant 0 : i32
    %c0_i32_278 = arith.constant 0 : i32
    %408 = tpu.memref_slice %arg5[%407, %c0_i32_278] : memref<256x128xf32, #tpu.memory_space<any>> -> memref<1x128xf32, #tpu.memory_space<any>>
    %409 = tpu.memref_squeeze %408 : memref<1x128xf32, #tpu.memory_space<any>> -> memref<128xf32, #tpu.memory_space<any>>
    %c0_i32_279 = arith.constant 0 : i32
    %410 = tpu.memref_slice %arg9[%c3_i32_275, %c6_i32_276, %c0_i32_279] : memref<8x8x128xf32, #tpu.memory_space<vmem>> -> memref<1x1x128xf32, #tpu.memory_space<vmem>>
    %411 = tpu.memref_squeeze %410 : memref<1x1x128xf32, #tpu.memory_space<vmem>> -> memref<128xf32, #tpu.memory_space<vmem>>
    %412 = tpu.memref_slice %arg10[%c0_i32_277] : memref<1x!tpu.dma_semaphore, #tpu.memory_space<semaphore_mem>> -> memref<1x!tpu.dma_semaphore, #tpu.memory_space<semaphore_mem>>
    %413 = tpu.memref_squeeze %412 : memref<1x!tpu.dma_semaphore, #tpu.memory_space<semaphore_mem>> -> memref<!tpu.dma_semaphore, #tpu.memory_space<semaphore_mem>>
    tpu.enqueue_dma source(%409 : memref<128xf32, #tpu.memory_space<any>>) target(%411 : memref<128xf32, #tpu.memory_space<vmem>>) target_semaphore(%413 : memref<!tpu.dma_semaphore, #tpu.memory_space<semaphore_mem>>)
    %c3_i32_280 = arith.constant 3 : i32
    %414 = arith.addi %0, %c3_i32_280 : i32
    %c8_i32_281 = arith.constant 8 : i32
    %415 = arith.muli %414, %c8_i32_281 : i32
    %c7_i32_282 = arith.constant 7 : i32
    %416 = arith.addi %415, %c7_i32_282 : i32
    %417 = arith.index_cast %416 : i32 to index
    %418 = memref.load %arg3[%417] : memref<128xi32, #tpu.memory_space<smem>>
    %c3_i32_283 = arith.constant 3 : i32
    %c7_i32_284 = arith.constant 7 : i32
    %c0_i32_285 = arith.constant 0 : i32
    %c0_i32_286 = arith.constant 0 : i32
    %419 = tpu.memref_slice %arg5[%418, %c0_i32_286] : memref<256x128xf32, #tpu.memory_space<any>> -> memref<1x128xf32, #tpu.memory_space<any>>
    %420 = tpu.memref_squeeze %419 : memref<1x128xf32, #tpu.memory_space<any>> -> memref<128xf32, #tpu.memory_space<any>>
    %c0_i32_287 = arith.constant 0 : i32
    %421 = tpu.memref_slice %arg9[%c3_i32_283, %c7_i32_284, %c0_i32_287] : memref<8x8x128xf32, #tpu.memory_space<vmem>> -> memref<1x1x128xf32, #tpu.memory_space<vmem>>
    %422 = tpu.memref_squeeze %421 : memref<1x1x128xf32, #tpu.memory_space<vmem>> -> memref<128xf32, #tpu.memory_space<vmem>>
    %423 = tpu.memref_slice %arg10[%c0_i32_285] : memref<1x!tpu.dma_semaphore, #tpu.memory_space<semaphore_mem>> -> memref<1x!tpu.dma_semaphore, #tpu.memory_space<semaphore_mem>>
    %424 = tpu.memref_squeeze %423 : memref<1x!tpu.dma_semaphore, #tpu.memory_space<semaphore_mem>> -> memref<!tpu.dma_semaphore, #tpu.memory_space<semaphore_mem>>
    tpu.enqueue_dma source(%420 : memref<128xf32, #tpu.memory_space<any>>) target(%422 : memref<128xf32, #tpu.memory_space<vmem>>) target_semaphore(%424 : memref<!tpu.dma_semaphore, #tpu.memory_space<semaphore_mem>>)
    %c4_i32_288 = arith.constant 4 : i32
    %425 = arith.addi %0, %c4_i32_288 : i32
    %426 = arith.index_cast %425 : i32 to index
    %427 = memref.load %arg1[%426] : memref<16xi32, #tpu.memory_space<smem>>
    %c4_i32_289 = arith.constant 4 : i32
    %428 = arith.addi %0, %c4_i32_289 : i32
    %429 = arith.index_cast %428 : i32 to index
    %430 = memref.load %arg2[%429] : memref<16xi32, #tpu.memory_space<smem>>
    %c4_i32_290 = arith.constant 4 : i32
    %c0_i32_291 = arith.constant 0 : i32
    %c0_i32_292 = arith.constant 0 : i32
    %431 = tpu.memref_slice %arg4[%427, %c0_i32_292] : memref<256x128xf32, #tpu.memory_space<any>> -> memref<1x128xf32, #tpu.memory_space<any>>
    %432 = tpu.memref_squeeze %431 : memref<1x128xf32, #tpu.memory_space<any>> -> memref<128xf32, #tpu.memory_space<any>>
    %c0_i32_293 = arith.constant 0 : i32
    %433 = tpu.memref_slice %arg7[%c4_i32_290, %c0_i32_293] : memref<8x128xf32, #tpu.memory_space<vmem>> -> memref<1x128xf32, #tpu.memory_space<vmem>>
    %434 = tpu.memref_squeeze %433 : memref<1x128xf32, #tpu.memory_space<vmem>> -> memref<128xf32, #tpu.memory_space<vmem>>
    %435 = tpu.memref_slice %arg10[%c0_i32_291] : memref<1x!tpu.dma_semaphore, #tpu.memory_space<semaphore_mem>> -> memref<1x!tpu.dma_semaphore, #tpu.memory_space<semaphore_mem>>
    %436 = tpu.memref_squeeze %435 : memref<1x!tpu.dma_semaphore, #tpu.memory_space<semaphore_mem>> -> memref<!tpu.dma_semaphore, #tpu.memory_space<semaphore_mem>>
    tpu.enqueue_dma source(%432 : memref<128xf32, #tpu.memory_space<any>>) target(%434 : memref<128xf32, #tpu.memory_space<vmem>>) target_semaphore(%436 : memref<!tpu.dma_semaphore, #tpu.memory_space<semaphore_mem>>)
    %c4_i32_294 = arith.constant 4 : i32
    %c0_i32_295 = arith.constant 0 : i32
    %c0_i32_296 = arith.constant 0 : i32
    %437 = tpu.memref_slice %arg5[%430, %c0_i32_296] : memref<256x128xf32, #tpu.memory_space<any>> -> memref<1x128xf32, #tpu.memory_space<any>>
    %438 = tpu.memref_squeeze %437 : memref<1x128xf32, #tpu.memory_space<any>> -> memref<128xf32, #tpu.memory_space<any>>
    %c0_i32_297 = arith.constant 0 : i32
    %439 = tpu.memref_slice %arg8[%c4_i32_294, %c0_i32_297] : memref<8x128xf32, #tpu.memory_space<vmem>> -> memref<1x128xf32, #tpu.memory_space<vmem>>
    %440 = tpu.memref_squeeze %439 : memref<1x128xf32, #tpu.memory_space<vmem>> -> memref<128xf32, #tpu.memory_space<vmem>>
    %441 = tpu.memref_slice %arg10[%c0_i32_295] : memref<1x!tpu.dma_semaphore, #tpu.memory_space<semaphore_mem>> -> memref<1x!tpu.dma_semaphore, #tpu.memory_space<semaphore_mem>>
    %442 = tpu.memref_squeeze %441 : memref<1x!tpu.dma_semaphore, #tpu.memory_space<semaphore_mem>> -> memref<!tpu.dma_semaphore, #tpu.memory_space<semaphore_mem>>
    tpu.enqueue_dma source(%438 : memref<128xf32, #tpu.memory_space<any>>) target(%440 : memref<128xf32, #tpu.memory_space<vmem>>) target_semaphore(%442 : memref<!tpu.dma_semaphore, #tpu.memory_space<semaphore_mem>>)
    %c4_i32_298 = arith.constant 4 : i32
    %443 = arith.addi %0, %c4_i32_298 : i32
    %c8_i32_299 = arith.constant 8 : i32
    %444 = arith.muli %443, %c8_i32_299 : i32
    %c0_i32_300 = arith.constant 0 : i32
    %445 = arith.addi %444, %c0_i32_300 : i32
    %446 = arith.index_cast %445 : i32 to index
    %447 = memref.load %arg3[%446] : memref<128xi32, #tpu.memory_space<smem>>
    %c4_i32_301 = arith.constant 4 : i32
    %c0_i32_302 = arith.constant 0 : i32
    %c0_i32_303 = arith.constant 0 : i32
    %c0_i32_304 = arith.constant 0 : i32
    %448 = tpu.memref_slice %arg5[%447, %c0_i32_304] : memref<256x128xf32, #tpu.memory_space<any>> -> memref<1x128xf32, #tpu.memory_space<any>>
    %449 = tpu.memref_squeeze %448 : memref<1x128xf32, #tpu.memory_space<any>> -> memref<128xf32, #tpu.memory_space<any>>
    %c0_i32_305 = arith.constant 0 : i32
    %450 = tpu.memref_slice %arg9[%c4_i32_301, %c0_i32_302, %c0_i32_305] : memref<8x8x128xf32, #tpu.memory_space<vmem>> -> memref<1x1x128xf32, #tpu.memory_space<vmem>>
    %451 = tpu.memref_squeeze %450 : memref<1x1x128xf32, #tpu.memory_space<vmem>> -> memref<128xf32, #tpu.memory_space<vmem>>
    %452 = tpu.memref_slice %arg10[%c0_i32_303] : memref<1x!tpu.dma_semaphore, #tpu.memory_space<semaphore_mem>> -> memref<1x!tpu.dma_semaphore, #tpu.memory_space<semaphore_mem>>
    %453 = tpu.memref_squeeze %452 : memref<1x!tpu.dma_semaphore, #tpu.memory_space<semaphore_mem>> -> memref<!tpu.dma_semaphore, #tpu.memory_space<semaphore_mem>>
    tpu.enqueue_dma source(%449 : memref<128xf32, #tpu.memory_space<any>>) target(%451 : memref<128xf32, #tpu.memory_space<vmem>>) target_semaphore(%453 : memref<!tpu.dma_semaphore, #tpu.memory_space<semaphore_mem>>)
    %c4_i32_306 = arith.constant 4 : i32
    %454 = arith.addi %0, %c4_i32_306 : i32
    %c8_i32_307 = arith.constant 8 : i32
    %455 = arith.muli %454, %c8_i32_307 : i32
    %c1_i32_308 = arith.constant 1 : i32
    %456 = arith.addi %455, %c1_i32_308 : i32
    %457 = arith.index_cast %456 : i32 to index
    %458 = memref.load %arg3[%457] : memref<128xi32, #tpu.memory_space<smem>>
    %c4_i32_309 = arith.constant 4 : i32
    %c1_i32_310 = arith.constant 1 : i32
    %c0_i32_311 = arith.constant 0 : i32
    %c0_i32_312 = arith.constant 0 : i32
    %459 = tpu.memref_slice %arg5[%458, %c0_i32_312] : memref<256x128xf32, #tpu.memory_space<any>> -> memref<1x128xf32, #tpu.memory_space<any>>
    %460 = tpu.memref_squeeze %459 : memref<1x128xf32, #tpu.memory_space<any>> -> memref<128xf32, #tpu.memory_space<any>>
    %c0_i32_313 = arith.constant 0 : i32
    %461 = tpu.memref_slice %arg9[%c4_i32_309, %c1_i32_310, %c0_i32_313] : memref<8x8x128xf32, #tpu.memory_space<vmem>> -> memref<1x1x128xf32, #tpu.memory_space<vmem>>
    %462 = tpu.memref_squeeze %461 : memref<1x1x128xf32, #tpu.memory_space<vmem>> -> memref<128xf32, #tpu.memory_space<vmem>>
    %463 = tpu.memref_slice %arg10[%c0_i32_311] : memref<1x!tpu.dma_semaphore, #tpu.memory_space<semaphore_mem>> -> memref<1x!tpu.dma_semaphore, #tpu.memory_space<semaphore_mem>>
    %464 = tpu.memref_squeeze %463 : memref<1x!tpu.dma_semaphore, #tpu.memory_space<semaphore_mem>> -> memref<!tpu.dma_semaphore, #tpu.memory_space<semaphore_mem>>
    tpu.enqueue_dma source(%460 : memref<128xf32, #tpu.memory_space<any>>) target(%462 : memref<128xf32, #tpu.memory_space<vmem>>) target_semaphore(%464 : memref<!tpu.dma_semaphore, #tpu.memory_space<semaphore_mem>>)
    %c4_i32_314 = arith.constant 4 : i32
    %465 = arith.addi %0, %c4_i32_314 : i32
    %c8_i32_315 = arith.constant 8 : i32
    %466 = arith.muli %465, %c8_i32_315 : i32
    %c2_i32_316 = arith.constant 2 : i32
    %467 = arith.addi %466, %c2_i32_316 : i32
    %468 = arith.index_cast %467 : i32 to index
    %469 = memref.load %arg3[%468] : memref<128xi32, #tpu.memory_space<smem>>
    %c4_i32_317 = arith.constant 4 : i32
    %c2_i32_318 = arith.constant 2 : i32
    %c0_i32_319 = arith.constant 0 : i32
    %c0_i32_320 = arith.constant 0 : i32
    %470 = tpu.memref_slice %arg5[%469, %c0_i32_320] : memref<256x128xf32, #tpu.memory_space<any>> -> memref<1x128xf32, #tpu.memory_space<any>>
    %471 = tpu.memref_squeeze %470 : memref<1x128xf32, #tpu.memory_space<any>> -> memref<128xf32, #tpu.memory_space<any>>
    %c0_i32_321 = arith.constant 0 : i32
    %472 = tpu.memref_slice %arg9[%c4_i32_317, %c2_i32_318, %c0_i32_321] : memref<8x8x128xf32, #tpu.memory_space<vmem>> -> memref<1x1x128xf32, #tpu.memory_space<vmem>>
    %473 = tpu.memref_squeeze %472 : memref<1x1x128xf32, #tpu.memory_space<vmem>> -> memref<128xf32, #tpu.memory_space<vmem>>
    %474 = tpu.memref_slice %arg10[%c0_i32_319] : memref<1x!tpu.dma_semaphore, #tpu.memory_space<semaphore_mem>> -> memref<1x!tpu.dma_semaphore, #tpu.memory_space<semaphore_mem>>
    %475 = tpu.memref_squeeze %474 : memref<1x!tpu.dma_semaphore, #tpu.memory_space<semaphore_mem>> -> memref<!tpu.dma_semaphore, #tpu.memory_space<semaphore_mem>>
    tpu.enqueue_dma source(%471 : memref<128xf32, #tpu.memory_space<any>>) target(%473 : memref<128xf32, #tpu.memory_space<vmem>>) target_semaphore(%475 : memref<!tpu.dma_semaphore, #tpu.memory_space<semaphore_mem>>)
    %c4_i32_322 = arith.constant 4 : i32
    %476 = arith.addi %0, %c4_i32_322 : i32
    %c8_i32_323 = arith.constant 8 : i32
    %477 = arith.muli %476, %c8_i32_323 : i32
    %c3_i32_324 = arith.constant 3 : i32
    %478 = arith.addi %477, %c3_i32_324 : i32
    %479 = arith.index_cast %478 : i32 to index
    %480 = memref.load %arg3[%479] : memref<128xi32, #tpu.memory_space<smem>>
    %c4_i32_325 = arith.constant 4 : i32
    %c3_i32_326 = arith.constant 3 : i32
    %c0_i32_327 = arith.constant 0 : i32
    %c0_i32_328 = arith.constant 0 : i32
    %481 = tpu.memref_slice %arg5[%480, %c0_i32_328] : memref<256x128xf32, #tpu.memory_space<any>> -> memref<1x128xf32, #tpu.memory_space<any>>
    %482 = tpu.memref_squeeze %481 : memref<1x128xf32, #tpu.memory_space<any>> -> memref<128xf32, #tpu.memory_space<any>>
    %c0_i32_329 = arith.constant 0 : i32
    %483 = tpu.memref_slice %arg9[%c4_i32_325, %c3_i32_326, %c0_i32_329] : memref<8x8x128xf32, #tpu.memory_space<vmem>> -> memref<1x1x128xf32, #tpu.memory_space<vmem>>
    %484 = tpu.memref_squeeze %483 : memref<1x1x128xf32, #tpu.memory_space<vmem>> -> memref<128xf32, #tpu.memory_space<vmem>>
    %485 = tpu.memref_slice %arg10[%c0_i32_327] : memref<1x!tpu.dma_semaphore, #tpu.memory_space<semaphore_mem>> -> memref<1x!tpu.dma_semaphore, #tpu.memory_space<semaphore_mem>>
    %486 = tpu.memref_squeeze %485 : memref<1x!tpu.dma_semaphore, #tpu.memory_space<semaphore_mem>> -> memref<!tpu.dma_semaphore, #tpu.memory_space<semaphore_mem>>
    tpu.enqueue_dma source(%482 : memref<128xf32, #tpu.memory_space<any>>) target(%484 : memref<128xf32, #tpu.memory_space<vmem>>) target_semaphore(%486 : memref<!tpu.dma_semaphore, #tpu.memory_space<semaphore_mem>>)
    %c4_i32_330 = arith.constant 4 : i32
    %487 = arith.addi %0, %c4_i32_330 : i32
    %c8_i32_331 = arith.constant 8 : i32
    %488 = arith.muli %487, %c8_i32_331 : i32
    %c4_i32_332 = arith.constant 4 : i32
    %489 = arith.addi %488, %c4_i32_332 : i32
    %490 = arith.index_cast %489 : i32 to index
    %491 = memref.load %arg3[%490] : memref<128xi32, #tpu.memory_space<smem>>
    %c4_i32_333 = arith.constant 4 : i32
    %c4_i32_334 = arith.constant 4 : i32
    %c0_i32_335 = arith.constant 0 : i32
    %c0_i32_336 = arith.constant 0 : i32
    %492 = tpu.memref_slice %arg5[%491, %c0_i32_336] : memref<256x128xf32, #tpu.memory_space<any>> -> memref<1x128xf32, #tpu.memory_space<any>>
    %493 = tpu.memref_squeeze %492 : memref<1x128xf32, #tpu.memory_space<any>> -> memref<128xf32, #tpu.memory_space<any>>
    %c0_i32_337 = arith.constant 0 : i32
    %494 = tpu.memref_slice %arg9[%c4_i32_333, %c4_i32_334, %c0_i32_337] : memref<8x8x128xf32, #tpu.memory_space<vmem>> -> memref<1x1x128xf32, #tpu.memory_space<vmem>>
    %495 = tpu.memref_squeeze %494 : memref<1x1x128xf32, #tpu.memory_space<vmem>> -> memref<128xf32, #tpu.memory_space<vmem>>
    %496 = tpu.memref_slice %arg10[%c0_i32_335] : memref<1x!tpu.dma_semaphore, #tpu.memory_space<semaphore_mem>> -> memref<1x!tpu.dma_semaphore, #tpu.memory_space<semaphore_mem>>
    %497 = tpu.memref_squeeze %496 : memref<1x!tpu.dma_semaphore, #tpu.memory_space<semaphore_mem>> -> memref<!tpu.dma_semaphore, #tpu.memory_space<semaphore_mem>>
    tpu.enqueue_dma source(%493 : memref<128xf32, #tpu.memory_space<any>>) target(%495 : memref<128xf32, #tpu.memory_space<vmem>>) target_semaphore(%497 : memref<!tpu.dma_semaphore, #tpu.memory_space<semaphore_mem>>)
    %c4_i32_338 = arith.constant 4 : i32
    %498 = arith.addi %0, %c4_i32_338 : i32
    %c8_i32_339 = arith.constant 8 : i32
    %499 = arith.muli %498, %c8_i32_339 : i32
    %c5_i32_340 = arith.constant 5 : i32
    %500 = arith.addi %499, %c5_i32_340 : i32
    %501 = arith.index_cast %500 : i32 to index
    %502 = memref.load %arg3[%501] : memref<128xi32, #tpu.memory_space<smem>>
    %c4_i32_341 = arith.constant 4 : i32
    %c5_i32_342 = arith.constant 5 : i32
    %c0_i32_343 = arith.constant 0 : i32
    %c0_i32_344 = arith.constant 0 : i32
    %503 = tpu.memref_slice %arg5[%502, %c0_i32_344] : memref<256x128xf32, #tpu.memory_space<any>> -> memref<1x128xf32, #tpu.memory_space<any>>
    %504 = tpu.memref_squeeze %503 : memref<1x128xf32, #tpu.memory_space<any>> -> memref<128xf32, #tpu.memory_space<any>>
    %c0_i32_345 = arith.constant 0 : i32
    %505 = tpu.memref_slice %arg9[%c4_i32_341, %c5_i32_342, %c0_i32_345] : memref<8x8x128xf32, #tpu.memory_space<vmem>> -> memref<1x1x128xf32, #tpu.memory_space<vmem>>
    %506 = tpu.memref_squeeze %505 : memref<1x1x128xf32, #tpu.memory_space<vmem>> -> memref<128xf32, #tpu.memory_space<vmem>>
    %507 = tpu.memref_slice %arg10[%c0_i32_343] : memref<1x!tpu.dma_semaphore, #tpu.memory_space<semaphore_mem>> -> memref<1x!tpu.dma_semaphore, #tpu.memory_space<semaphore_mem>>
    %508 = tpu.memref_squeeze %507 : memref<1x!tpu.dma_semaphore, #tpu.memory_space<semaphore_mem>> -> memref<!tpu.dma_semaphore, #tpu.memory_space<semaphore_mem>>
    tpu.enqueue_dma source(%504 : memref<128xf32, #tpu.memory_space<any>>) target(%506 : memref<128xf32, #tpu.memory_space<vmem>>) target_semaphore(%508 : memref<!tpu.dma_semaphore, #tpu.memory_space<semaphore_mem>>)
    %c4_i32_346 = arith.constant 4 : i32
    %509 = arith.addi %0, %c4_i32_346 : i32
    %c8_i32_347 = arith.constant 8 : i32
    %510 = arith.muli %509, %c8_i32_347 : i32
    %c6_i32_348 = arith.constant 6 : i32
    %511 = arith.addi %510, %c6_i32_348 : i32
    %512 = arith.index_cast %511 : i32 to index
    %513 = memref.load %arg3[%512] : memref<128xi32, #tpu.memory_space<smem>>
    %c4_i32_349 = arith.constant 4 : i32
    %c6_i32_350 = arith.constant 6 : i32
    %c0_i32_351 = arith.constant 0 : i32
    %c0_i32_352 = arith.constant 0 : i32
    %514 = tpu.memref_slice %arg5[%513, %c0_i32_352] : memref<256x128xf32, #tpu.memory_space<any>> -> memref<1x128xf32, #tpu.memory_space<any>>
    %515 = tpu.memref_squeeze %514 : memref<1x128xf32, #tpu.memory_space<any>> -> memref<128xf32, #tpu.memory_space<any>>
    %c0_i32_353 = arith.constant 0 : i32
    %516 = tpu.memref_slice %arg9[%c4_i32_349, %c6_i32_350, %c0_i32_353] : memref<8x8x128xf32, #tpu.memory_space<vmem>> -> memref<1x1x128xf32, #tpu.memory_space<vmem>>
    %517 = tpu.memref_squeeze %516 : memref<1x1x128xf32, #tpu.memory_space<vmem>> -> memref<128xf32, #tpu.memory_space<vmem>>
    %518 = tpu.memref_slice %arg10[%c0_i32_351] : memref<1x!tpu.dma_semaphore, #tpu.memory_space<semaphore_mem>> -> memref<1x!tpu.dma_semaphore, #tpu.memory_space<semaphore_mem>>
    %519 = tpu.memref_squeeze %518 : memref<1x!tpu.dma_semaphore, #tpu.memory_space<semaphore_mem>> -> memref<!tpu.dma_semaphore, #tpu.memory_space<semaphore_mem>>
    tpu.enqueue_dma source(%515 : memref<128xf32, #tpu.memory_space<any>>) target(%517 : memref<128xf32, #tpu.memory_space<vmem>>) target_semaphore(%519 : memref<!tpu.dma_semaphore, #tpu.memory_space<semaphore_mem>>)
    %c4_i32_354 = arith.constant 4 : i32
    %520 = arith.addi %0, %c4_i32_354 : i32
    %c8_i32_355 = arith.constant 8 : i32
    %521 = arith.muli %520, %c8_i32_355 : i32
    %c7_i32_356 = arith.constant 7 : i32
    %522 = arith.addi %521, %c7_i32_356 : i32
    %523 = arith.index_cast %522 : i32 to index
    %524 = memref.load %arg3[%523] : memref<128xi32, #tpu.memory_space<smem>>
    %c4_i32_357 = arith.constant 4 : i32
    %c7_i32_358 = arith.constant 7 : i32
    %c0_i32_359 = arith.constant 0 : i32
    %c0_i32_360 = arith.constant 0 : i32
    %525 = tpu.memref_slice %arg5[%524, %c0_i32_360] : memref<256x128xf32, #tpu.memory_space<any>> -> memref<1x128xf32, #tpu.memory_space<any>>
    %526 = tpu.memref_squeeze %525 : memref<1x128xf32, #tpu.memory_space<any>> -> memref<128xf32, #tpu.memory_space<any>>
    %c0_i32_361 = arith.constant 0 : i32
    %527 = tpu.memref_slice %arg9[%c4_i32_357, %c7_i32_358, %c0_i32_361] : memref<8x8x128xf32, #tpu.memory_space<vmem>> -> memref<1x1x128xf32, #tpu.memory_space<vmem>>
    %528 = tpu.memref_squeeze %527 : memref<1x1x128xf32, #tpu.memory_space<vmem>> -> memref<128xf32, #tpu.memory_space<vmem>>
    %529 = tpu.memref_slice %arg10[%c0_i32_359] : memref<1x!tpu.dma_semaphore, #tpu.memory_space<semaphore_mem>> -> memref<1x!tpu.dma_semaphore, #tpu.memory_space<semaphore_mem>>
    %530 = tpu.memref_squeeze %529 : memref<1x!tpu.dma_semaphore, #tpu.memory_space<semaphore_mem>> -> memref<!tpu.dma_semaphore, #tpu.memory_space<semaphore_mem>>
    tpu.enqueue_dma source(%526 : memref<128xf32, #tpu.memory_space<any>>) target(%528 : memref<128xf32, #tpu.memory_space<vmem>>) target_semaphore(%530 : memref<!tpu.dma_semaphore, #tpu.memory_space<semaphore_mem>>)
    %c5_i32_362 = arith.constant 5 : i32
    %531 = arith.addi %0, %c5_i32_362 : i32
    %532 = arith.index_cast %531 : i32 to index
    %533 = memref.load %arg1[%532] : memref<16xi32, #tpu.memory_space<smem>>
    %c5_i32_363 = arith.constant 5 : i32
    %534 = arith.addi %0, %c5_i32_363 : i32
    %535 = arith.index_cast %534 : i32 to index
    %536 = memref.load %arg2[%535] : memref<16xi32, #tpu.memory_space<smem>>
    %c5_i32_364 = arith.constant 5 : i32
    %c0_i32_365 = arith.constant 0 : i32
    %c0_i32_366 = arith.constant 0 : i32
    %537 = tpu.memref_slice %arg4[%533, %c0_i32_366] : memref<256x128xf32, #tpu.memory_space<any>> -> memref<1x128xf32, #tpu.memory_space<any>>
    %538 = tpu.memref_squeeze %537 : memref<1x128xf32, #tpu.memory_space<any>> -> memref<128xf32, #tpu.memory_space<any>>
    %c0_i32_367 = arith.constant 0 : i32
    %539 = tpu.memref_slice %arg7[%c5_i32_364, %c0_i32_367] : memref<8x128xf32, #tpu.memory_space<vmem>> -> memref<1x128xf32, #tpu.memory_space<vmem>>
    %540 = tpu.memref_squeeze %539 : memref<1x128xf32, #tpu.memory_space<vmem>> -> memref<128xf32, #tpu.memory_space<vmem>>
    %541 = tpu.memref_slice %arg10[%c0_i32_365] : memref<1x!tpu.dma_semaphore, #tpu.memory_space<semaphore_mem>> -> memref<1x!tpu.dma_semaphore, #tpu.memory_space<semaphore_mem>>
    %542 = tpu.memref_squeeze %541 : memref<1x!tpu.dma_semaphore, #tpu.memory_space<semaphore_mem>> -> memref<!tpu.dma_semaphore, #tpu.memory_space<semaphore_mem>>
    tpu.enqueue_dma source(%538 : memref<128xf32, #tpu.memory_space<any>>) target(%540 : memref<128xf32, #tpu.memory_space<vmem>>) target_semaphore(%542 : memref<!tpu.dma_semaphore, #tpu.memory_space<semaphore_mem>>)
    %c5_i32_368 = arith.constant 5 : i32
    %c0_i32_369 = arith.constant 0 : i32
    %c0_i32_370 = arith.constant 0 : i32
    %543 = tpu.memref_slice %arg5[%536, %c0_i32_370] : memref<256x128xf32, #tpu.memory_space<any>> -> memref<1x128xf32, #tpu.memory_space<any>>
    %544 = tpu.memref_squeeze %543 : memref<1x128xf32, #tpu.memory_space<any>> -> memref<128xf32, #tpu.memory_space<any>>
    %c0_i32_371 = arith.constant 0 : i32
    %545 = tpu.memref_slice %arg8[%c5_i32_368, %c0_i32_371] : memref<8x128xf32, #tpu.memory_space<vmem>> -> memref<1x128xf32, #tpu.memory_space<vmem>>
    %546 = tpu.memref_squeeze %545 : memref<1x128xf32, #tpu.memory_space<vmem>> -> memref<128xf32, #tpu.memory_space<vmem>>
    %547 = tpu.memref_slice %arg10[%c0_i32_369] : memref<1x!tpu.dma_semaphore, #tpu.memory_space<semaphore_mem>> -> memref<1x!tpu.dma_semaphore, #tpu.memory_space<semaphore_mem>>
    %548 = tpu.memref_squeeze %547 : memref<1x!tpu.dma_semaphore, #tpu.memory_space<semaphore_mem>> -> memref<!tpu.dma_semaphore, #tpu.memory_space<semaphore_mem>>
    tpu.enqueue_dma source(%544 : memref<128xf32, #tpu.memory_space<any>>) target(%546 : memref<128xf32, #tpu.memory_space<vmem>>) target_semaphore(%548 : memref<!tpu.dma_semaphore, #tpu.memory_space<semaphore_mem>>)
    %c5_i32_372 = arith.constant 5 : i32
    %549 = arith.addi %0, %c5_i32_372 : i32
    %c8_i32_373 = arith.constant 8 : i32
    %550 = arith.muli %549, %c8_i32_373 : i32
    %c0_i32_374 = arith.constant 0 : i32
    %551 = arith.addi %550, %c0_i32_374 : i32
    %552 = arith.index_cast %551 : i32 to index
    %553 = memref.load %arg3[%552] : memref<128xi32, #tpu.memory_space<smem>>
    %c5_i32_375 = arith.constant 5 : i32
    %c0_i32_376 = arith.constant 0 : i32
    %c0_i32_377 = arith.constant 0 : i32
    %c0_i32_378 = arith.constant 0 : i32
    %554 = tpu.memref_slice %arg5[%553, %c0_i32_378] : memref<256x128xf32, #tpu.memory_space<any>> -> memref<1x128xf32, #tpu.memory_space<any>>
    %555 = tpu.memref_squeeze %554 : memref<1x128xf32, #tpu.memory_space<any>> -> memref<128xf32, #tpu.memory_space<any>>
    %c0_i32_379 = arith.constant 0 : i32
    %556 = tpu.memref_slice %arg9[%c5_i32_375, %c0_i32_376, %c0_i32_379] : memref<8x8x128xf32, #tpu.memory_space<vmem>> -> memref<1x1x128xf32, #tpu.memory_space<vmem>>
    %557 = tpu.memref_squeeze %556 : memref<1x1x128xf32, #tpu.memory_space<vmem>> -> memref<128xf32, #tpu.memory_space<vmem>>
    %558 = tpu.memref_slice %arg10[%c0_i32_377] : memref<1x!tpu.dma_semaphore, #tpu.memory_space<semaphore_mem>> -> memref<1x!tpu.dma_semaphore, #tpu.memory_space<semaphore_mem>>
    %559 = tpu.memref_squeeze %558 : memref<1x!tpu.dma_semaphore, #tpu.memory_space<semaphore_mem>> -> memref<!tpu.dma_semaphore, #tpu.memory_space<semaphore_mem>>
    tpu.enqueue_dma source(%555 : memref<128xf32, #tpu.memory_space<any>>) target(%557 : memref<128xf32, #tpu.memory_space<vmem>>) target_semaphore(%559 : memref<!tpu.dma_semaphore, #tpu.memory_space<semaphore_mem>>)
    %c5_i32_380 = arith.constant 5 : i32
    %560 = arith.addi %0, %c5_i32_380 : i32
    %c8_i32_381 = arith.constant 8 : i32
    %561 = arith.muli %560, %c8_i32_381 : i32
    %c1_i32_382 = arith.constant 1 : i32
    %562 = arith.addi %561, %c1_i32_382 : i32
    %563 = arith.index_cast %562 : i32 to index
    %564 = memref.load %arg3[%563] : memref<128xi32, #tpu.memory_space<smem>>
    %c5_i32_383 = arith.constant 5 : i32
    %c1_i32_384 = arith.constant 1 : i32
    %c0_i32_385 = arith.constant 0 : i32
    %c0_i32_386 = arith.constant 0 : i32
    %565 = tpu.memref_slice %arg5[%564, %c0_i32_386] : memref<256x128xf32, #tpu.memory_space<any>> -> memref<1x128xf32, #tpu.memory_space<any>>
    %566 = tpu.memref_squeeze %565 : memref<1x128xf32, #tpu.memory_space<any>> -> memref<128xf32, #tpu.memory_space<any>>
    %c0_i32_387 = arith.constant 0 : i32
    %567 = tpu.memref_slice %arg9[%c5_i32_383, %c1_i32_384, %c0_i32_387] : memref<8x8x128xf32, #tpu.memory_space<vmem>> -> memref<1x1x128xf32, #tpu.memory_space<vmem>>
    %568 = tpu.memref_squeeze %567 : memref<1x1x128xf32, #tpu.memory_space<vmem>> -> memref<128xf32, #tpu.memory_space<vmem>>
    %569 = tpu.memref_slice %arg10[%c0_i32_385] : memref<1x!tpu.dma_semaphore, #tpu.memory_space<semaphore_mem>> -> memref<1x!tpu.dma_semaphore, #tpu.memory_space<semaphore_mem>>
    %570 = tpu.memref_squeeze %569 : memref<1x!tpu.dma_semaphore, #tpu.memory_space<semaphore_mem>> -> memref<!tpu.dma_semaphore, #tpu.memory_space<semaphore_mem>>
    tpu.enqueue_dma source(%566 : memref<128xf32, #tpu.memory_space<any>>) target(%568 : memref<128xf32, #tpu.memory_space<vmem>>) target_semaphore(%570 : memref<!tpu.dma_semaphore, #tpu.memory_space<semaphore_mem>>)
    %c5_i32_388 = arith.constant 5 : i32
    %571 = arith.addi %0, %c5_i32_388 : i32
    %c8_i32_389 = arith.constant 8 : i32
    %572 = arith.muli %571, %c8_i32_389 : i32
    %c2_i32_390 = arith.constant 2 : i32
    %573 = arith.addi %572, %c2_i32_390 : i32
    %574 = arith.index_cast %573 : i32 to index
    %575 = memref.load %arg3[%574] : memref<128xi32, #tpu.memory_space<smem>>
    %c5_i32_391 = arith.constant 5 : i32
    %c2_i32_392 = arith.constant 2 : i32
    %c0_i32_393 = arith.constant 0 : i32
    %c0_i32_394 = arith.constant 0 : i32
    %576 = tpu.memref_slice %arg5[%575, %c0_i32_394] : memref<256x128xf32, #tpu.memory_space<any>> -> memref<1x128xf32, #tpu.memory_space<any>>
    %577 = tpu.memref_squeeze %576 : memref<1x128xf32, #tpu.memory_space<any>> -> memref<128xf32, #tpu.memory_space<any>>
    %c0_i32_395 = arith.constant 0 : i32
    %578 = tpu.memref_slice %arg9[%c5_i32_391, %c2_i32_392, %c0_i32_395] : memref<8x8x128xf32, #tpu.memory_space<vmem>> -> memref<1x1x128xf32, #tpu.memory_space<vmem>>
    %579 = tpu.memref_squeeze %578 : memref<1x1x128xf32, #tpu.memory_space<vmem>> -> memref<128xf32, #tpu.memory_space<vmem>>
    %580 = tpu.memref_slice %arg10[%c0_i32_393] : memref<1x!tpu.dma_semaphore, #tpu.memory_space<semaphore_mem>> -> memref<1x!tpu.dma_semaphore, #tpu.memory_space<semaphore_mem>>
    %581 = tpu.memref_squeeze %580 : memref<1x!tpu.dma_semaphore, #tpu.memory_space<semaphore_mem>> -> memref<!tpu.dma_semaphore, #tpu.memory_space<semaphore_mem>>
    tpu.enqueue_dma source(%577 : memref<128xf32, #tpu.memory_space<any>>) target(%579 : memref<128xf32, #tpu.memory_space<vmem>>) target_semaphore(%581 : memref<!tpu.dma_semaphore, #tpu.memory_space<semaphore_mem>>)
    %c5_i32_396 = arith.constant 5 : i32
    %582 = arith.addi %0, %c5_i32_396 : i32
    %c8_i32_397 = arith.constant 8 : i32
    %583 = arith.muli %582, %c8_i32_397 : i32
    %c3_i32_398 = arith.constant 3 : i32
    %584 = arith.addi %583, %c3_i32_398 : i32
    %585 = arith.index_cast %584 : i32 to index
    %586 = memref.load %arg3[%585] : memref<128xi32, #tpu.memory_space<smem>>
    %c5_i32_399 = arith.constant 5 : i32
    %c3_i32_400 = arith.constant 3 : i32
    %c0_i32_401 = arith.constant 0 : i32
    %c0_i32_402 = arith.constant 0 : i32
    %587 = tpu.memref_slice %arg5[%586, %c0_i32_402] : memref<256x128xf32, #tpu.memory_space<any>> -> memref<1x128xf32, #tpu.memory_space<any>>
    %588 = tpu.memref_squeeze %587 : memref<1x128xf32, #tpu.memory_space<any>> -> memref<128xf32, #tpu.memory_space<any>>
    %c0_i32_403 = arith.constant 0 : i32
    %589 = tpu.memref_slice %arg9[%c5_i32_399, %c3_i32_400, %c0_i32_403] : memref<8x8x128xf32, #tpu.memory_space<vmem>> -> memref<1x1x128xf32, #tpu.memory_space<vmem>>
    %590 = tpu.memref_squeeze %589 : memref<1x1x128xf32, #tpu.memory_space<vmem>> -> memref<128xf32, #tpu.memory_space<vmem>>
    %591 = tpu.memref_slice %arg10[%c0_i32_401] : memref<1x!tpu.dma_semaphore, #tpu.memory_space<semaphore_mem>> -> memref<1x!tpu.dma_semaphore, #tpu.memory_space<semaphore_mem>>
    %592 = tpu.memref_squeeze %591 : memref<1x!tpu.dma_semaphore, #tpu.memory_space<semaphore_mem>> -> memref<!tpu.dma_semaphore, #tpu.memory_space<semaphore_mem>>
    tpu.enqueue_dma source(%588 : memref<128xf32, #tpu.memory_space<any>>) target(%590 : memref<128xf32, #tpu.memory_space<vmem>>) target_semaphore(%592 : memref<!tpu.dma_semaphore, #tpu.memory_space<semaphore_mem>>)
    %c5_i32_404 = arith.constant 5 : i32
    %593 = arith.addi %0, %c5_i32_404 : i32
    %c8_i32_405 = arith.constant 8 : i32
    %594 = arith.muli %593, %c8_i32_405 : i32
    %c4_i32_406 = arith.constant 4 : i32
    %595 = arith.addi %594, %c4_i32_406 : i32
    %596 = arith.index_cast %595 : i32 to index
    %597 = memref.load %arg3[%596] : memref<128xi32, #tpu.memory_space<smem>>
    %c5_i32_407 = arith.constant 5 : i32
    %c4_i32_408 = arith.constant 4 : i32
    %c0_i32_409 = arith.constant 0 : i32
    %c0_i32_410 = arith.constant 0 : i32
    %598 = tpu.memref_slice %arg5[%597, %c0_i32_410] : memref<256x128xf32, #tpu.memory_space<any>> -> memref<1x128xf32, #tpu.memory_space<any>>
    %599 = tpu.memref_squeeze %598 : memref<1x128xf32, #tpu.memory_space<any>> -> memref<128xf32, #tpu.memory_space<any>>
    %c0_i32_411 = arith.constant 0 : i32
    %600 = tpu.memref_slice %arg9[%c5_i32_407, %c4_i32_408, %c0_i32_411] : memref<8x8x128xf32, #tpu.memory_space<vmem>> -> memref<1x1x128xf32, #tpu.memory_space<vmem>>
    %601 = tpu.memref_squeeze %600 : memref<1x1x128xf32, #tpu.memory_space<vmem>> -> memref<128xf32, #tpu.memory_space<vmem>>
    %602 = tpu.memref_slice %arg10[%c0_i32_409] : memref<1x!tpu.dma_semaphore, #tpu.memory_space<semaphore_mem>> -> memref<1x!tpu.dma_semaphore, #tpu.memory_space<semaphore_mem>>
    %603 = tpu.memref_squeeze %602 : memref<1x!tpu.dma_semaphore, #tpu.memory_space<semaphore_mem>> -> memref<!tpu.dma_semaphore, #tpu.memory_space<semaphore_mem>>
    tpu.enqueue_dma source(%599 : memref<128xf32, #tpu.memory_space<any>>) target(%601 : memref<128xf32, #tpu.memory_space<vmem>>) target_semaphore(%603 : memref<!tpu.dma_semaphore, #tpu.memory_space<semaphore_mem>>)
    %c5_i32_412 = arith.constant 5 : i32
    %604 = arith.addi %0, %c5_i32_412 : i32
    %c8_i32_413 = arith.constant 8 : i32
    %605 = arith.muli %604, %c8_i32_413 : i32
    %c5_i32_414 = arith.constant 5 : i32
    %606 = arith.addi %605, %c5_i32_414 : i32
    %607 = arith.index_cast %606 : i32 to index
    %608 = memref.load %arg3[%607] : memref<128xi32, #tpu.memory_space<smem>>
    %c5_i32_415 = arith.constant 5 : i32
    %c5_i32_416 = arith.constant 5 : i32
    %c0_i32_417 = arith.constant 0 : i32
    %c0_i32_418 = arith.constant 0 : i32
    %609 = tpu.memref_slice %arg5[%608, %c0_i32_418] : memref<256x128xf32, #tpu.memory_space<any>> -> memref<1x128xf32, #tpu.memory_space<any>>
    %610 = tpu.memref_squeeze %609 : memref<1x128xf32, #tpu.memory_space<any>> -> memref<128xf32, #tpu.memory_space<any>>
    %c0_i32_419 = arith.constant 0 : i32
    %611 = tpu.memref_slice %arg9[%c5_i32_415, %c5_i32_416, %c0_i32_419] : memref<8x8x128xf32, #tpu.memory_space<vmem>> -> memref<1x1x128xf32, #tpu.memory_space<vmem>>
    %612 = tpu.memref_squeeze %611 : memref<1x1x128xf32, #tpu.memory_space<vmem>> -> memref<128xf32, #tpu.memory_space<vmem>>
    %613 = tpu.memref_slice %arg10[%c0_i32_417] : memref<1x!tpu.dma_semaphore, #tpu.memory_space<semaphore_mem>> -> memref<1x!tpu.dma_semaphore, #tpu.memory_space<semaphore_mem>>
    %614 = tpu.memref_squeeze %613 : memref<1x!tpu.dma_semaphore, #tpu.memory_space<semaphore_mem>> -> memref<!tpu.dma_semaphore, #tpu.memory_space<semaphore_mem>>
    tpu.enqueue_dma source(%610 : memref<128xf32, #tpu.memory_space<any>>) target(%612 : memref<128xf32, #tpu.memory_space<vmem>>) target_semaphore(%614 : memref<!tpu.dma_semaphore, #tpu.memory_space<semaphore_mem>>)
    %c5_i32_420 = arith.constant 5 : i32
    %615 = arith.addi %0, %c5_i32_420 : i32
    %c8_i32_421 = arith.constant 8 : i32
    %616 = arith.muli %615, %c8_i32_421 : i32
    %c6_i32_422 = arith.constant 6 : i32
    %617 = arith.addi %616, %c6_i32_422 : i32
    %618 = arith.index_cast %617 : i32 to index
    %619 = memref.load %arg3[%618] : memref<128xi32, #tpu.memory_space<smem>>
    %c5_i32_423 = arith.constant 5 : i32
    %c6_i32_424 = arith.constant 6 : i32
    %c0_i32_425 = arith.constant 0 : i32
    %c0_i32_426 = arith.constant 0 : i32
    %620 = tpu.memref_slice %arg5[%619, %c0_i32_426] : memref<256x128xf32, #tpu.memory_space<any>> -> memref<1x128xf32, #tpu.memory_space<any>>
    %621 = tpu.memref_squeeze %620 : memref<1x128xf32, #tpu.memory_space<any>> -> memref<128xf32, #tpu.memory_space<any>>
    %c0_i32_427 = arith.constant 0 : i32
    %622 = tpu.memref_slice %arg9[%c5_i32_423, %c6_i32_424, %c0_i32_427] : memref<8x8x128xf32, #tpu.memory_space<vmem>> -> memref<1x1x128xf32, #tpu.memory_space<vmem>>
    %623 = tpu.memref_squeeze %622 : memref<1x1x128xf32, #tpu.memory_space<vmem>> -> memref<128xf32, #tpu.memory_space<vmem>>
    %624 = tpu.memref_slice %arg10[%c0_i32_425] : memref<1x!tpu.dma_semaphore, #tpu.memory_space<semaphore_mem>> -> memref<1x!tpu.dma_semaphore, #tpu.memory_space<semaphore_mem>>
    %625 = tpu.memref_squeeze %624 : memref<1x!tpu.dma_semaphore, #tpu.memory_space<semaphore_mem>> -> memref<!tpu.dma_semaphore, #tpu.memory_space<semaphore_mem>>
    tpu.enqueue_dma source(%621 : memref<128xf32, #tpu.memory_space<any>>) target(%623 : memref<128xf32, #tpu.memory_space<vmem>>) target_semaphore(%625 : memref<!tpu.dma_semaphore, #tpu.memory_space<semaphore_mem>>)
    %c5_i32_428 = arith.constant 5 : i32
    %626 = arith.addi %0, %c5_i32_428 : i32
    %c8_i32_429 = arith.constant 8 : i32
    %627 = arith.muli %626, %c8_i32_429 : i32
    %c7_i32_430 = arith.constant 7 : i32
    %628 = arith.addi %627, %c7_i32_430 : i32
    %629 = arith.index_cast %628 : i32 to index
    %630 = memref.load %arg3[%629] : memref<128xi32, #tpu.memory_space<smem>>
    %c5_i32_431 = arith.constant 5 : i32
    %c7_i32_432 = arith.constant 7 : i32
    %c0_i32_433 = arith.constant 0 : i32
    %c0_i32_434 = arith.constant 0 : i32
    %631 = tpu.memref_slice %arg5[%630, %c0_i32_434] : memref<256x128xf32, #tpu.memory_space<any>> -> memref<1x128xf32, #tpu.memory_space<any>>
    %632 = tpu.memref_squeeze %631 : memref<1x128xf32, #tpu.memory_space<any>> -> memref<128xf32, #tpu.memory_space<any>>
    %c0_i32_435 = arith.constant 0 : i32
    %633 = tpu.memref_slice %arg9[%c5_i32_431, %c7_i32_432, %c0_i32_435] : memref<8x8x128xf32, #tpu.memory_space<vmem>> -> memref<1x1x128xf32, #tpu.memory_space<vmem>>
    %634 = tpu.memref_squeeze %633 : memref<1x1x128xf32, #tpu.memory_space<vmem>> -> memref<128xf32, #tpu.memory_space<vmem>>
    %635 = tpu.memref_slice %arg10[%c0_i32_433] : memref<1x!tpu.dma_semaphore, #tpu.memory_space<semaphore_mem>> -> memref<1x!tpu.dma_semaphore, #tpu.memory_space<semaphore_mem>>
    %636 = tpu.memref_squeeze %635 : memref<1x!tpu.dma_semaphore, #tpu.memory_space<semaphore_mem>> -> memref<!tpu.dma_semaphore, #tpu.memory_space<semaphore_mem>>
    tpu.enqueue_dma source(%632 : memref<128xf32, #tpu.memory_space<any>>) target(%634 : memref<128xf32, #tpu.memory_space<vmem>>) target_semaphore(%636 : memref<!tpu.dma_semaphore, #tpu.memory_space<semaphore_mem>>)
    %c6_i32_436 = arith.constant 6 : i32
    %637 = arith.addi %0, %c6_i32_436 : i32
    %638 = arith.index_cast %637 : i32 to index
    %639 = memref.load %arg1[%638] : memref<16xi32, #tpu.memory_space<smem>>
    %c6_i32_437 = arith.constant 6 : i32
    %640 = arith.addi %0, %c6_i32_437 : i32
    %641 = arith.index_cast %640 : i32 to index
    %642 = memref.load %arg2[%641] : memref<16xi32, #tpu.memory_space<smem>>
    %c6_i32_438 = arith.constant 6 : i32
    %c0_i32_439 = arith.constant 0 : i32
    %c0_i32_440 = arith.constant 0 : i32
    %643 = tpu.memref_slice %arg4[%639, %c0_i32_440] : memref<256x128xf32, #tpu.memory_space<any>> -> memref<1x128xf32, #tpu.memory_space<any>>
    %644 = tpu.memref_squeeze %643 : memref<1x128xf32, #tpu.memory_space<any>> -> memref<128xf32, #tpu.memory_space<any>>
    %c0_i32_441 = arith.constant 0 : i32
    %645 = tpu.memref_slice %arg7[%c6_i32_438, %c0_i32_441] : memref<8x128xf32, #tpu.memory_space<vmem>> -> memref<1x128xf32, #tpu.memory_space<vmem>>
    %646 = tpu.memref_squeeze %645 : memref<1x128xf32, #tpu.memory_space<vmem>> -> memref<128xf32, #tpu.memory_space<vmem>>
    %647 = tpu.memref_slice %arg10[%c0_i32_439] : memref<1x!tpu.dma_semaphore, #tpu.memory_space<semaphore_mem>> -> memref<1x!tpu.dma_semaphore, #tpu.memory_space<semaphore_mem>>
    %648 = tpu.memref_squeeze %647 : memref<1x!tpu.dma_semaphore, #tpu.memory_space<semaphore_mem>> -> memref<!tpu.dma_semaphore, #tpu.memory_space<semaphore_mem>>
    tpu.enqueue_dma source(%644 : memref<128xf32, #tpu.memory_space<any>>) target(%646 : memref<128xf32, #tpu.memory_space<vmem>>) target_semaphore(%648 : memref<!tpu.dma_semaphore, #tpu.memory_space<semaphore_mem>>)
    %c6_i32_442 = arith.constant 6 : i32
    %c0_i32_443 = arith.constant 0 : i32
    %c0_i32_444 = arith.constant 0 : i32
    %649 = tpu.memref_slice %arg5[%642, %c0_i32_444] : memref<256x128xf32, #tpu.memory_space<any>> -> memref<1x128xf32, #tpu.memory_space<any>>
    %650 = tpu.memref_squeeze %649 : memref<1x128xf32, #tpu.memory_space<any>> -> memref<128xf32, #tpu.memory_space<any>>
    %c0_i32_445 = arith.constant 0 : i32
    %651 = tpu.memref_slice %arg8[%c6_i32_442, %c0_i32_445] : memref<8x128xf32, #tpu.memory_space<vmem>> -> memref<1x128xf32, #tpu.memory_space<vmem>>
    %652 = tpu.memref_squeeze %651 : memref<1x128xf32, #tpu.memory_space<vmem>> -> memref<128xf32, #tpu.memory_space<vmem>>
    %653 = tpu.memref_slice %arg10[%c0_i32_443] : memref<1x!tpu.dma_semaphore, #tpu.memory_space<semaphore_mem>> -> memref<1x!tpu.dma_semaphore, #tpu.memory_space<semaphore_mem>>
    %654 = tpu.memref_squeeze %653 : memref<1x!tpu.dma_semaphore, #tpu.memory_space<semaphore_mem>> -> memref<!tpu.dma_semaphore, #tpu.memory_space<semaphore_mem>>
    tpu.enqueue_dma source(%650 : memref<128xf32, #tpu.memory_space<any>>) target(%652 : memref<128xf32, #tpu.memory_space<vmem>>) target_semaphore(%654 : memref<!tpu.dma_semaphore, #tpu.memory_space<semaphore_mem>>)
    %c6_i32_446 = arith.constant 6 : i32
    %655 = arith.addi %0, %c6_i32_446 : i32
    %c8_i32_447 = arith.constant 8 : i32
    %656 = arith.muli %655, %c8_i32_447 : i32
    %c0_i32_448 = arith.constant 0 : i32
    %657 = arith.addi %656, %c0_i32_448 : i32
    %658 = arith.index_cast %657 : i32 to index
    %659 = memref.load %arg3[%658] : memref<128xi32, #tpu.memory_space<smem>>
    %c6_i32_449 = arith.constant 6 : i32
    %c0_i32_450 = arith.constant 0 : i32
    %c0_i32_451 = arith.constant 0 : i32
    %c0_i32_452 = arith.constant 0 : i32
    %660 = tpu.memref_slice %arg5[%659, %c0_i32_452] : memref<256x128xf32, #tpu.memory_space<any>> -> memref<1x128xf32, #tpu.memory_space<any>>
    %661 = tpu.memref_squeeze %660 : memref<1x128xf32, #tpu.memory_space<any>> -> memref<128xf32, #tpu.memory_space<any>>
    %c0_i32_453 = arith.constant 0 : i32
    %662 = tpu.memref_slice %arg9[%c6_i32_449, %c0_i32_450, %c0_i32_453] : memref<8x8x128xf32, #tpu.memory_space<vmem>> -> memref<1x1x128xf32, #tpu.memory_space<vmem>>
    %663 = tpu.memref_squeeze %662 : memref<1x1x128xf32, #tpu.memory_space<vmem>> -> memref<128xf32, #tpu.memory_space<vmem>>
    %664 = tpu.memref_slice %arg10[%c0_i32_451] : memref<1x!tpu.dma_semaphore, #tpu.memory_space<semaphore_mem>> -> memref<1x!tpu.dma_semaphore, #tpu.memory_space<semaphore_mem>>
    %665 = tpu.memref_squeeze %664 : memref<1x!tpu.dma_semaphore, #tpu.memory_space<semaphore_mem>> -> memref<!tpu.dma_semaphore, #tpu.memory_space<semaphore_mem>>
    tpu.enqueue_dma source(%661 : memref<128xf32, #tpu.memory_space<any>>) target(%663 : memref<128xf32, #tpu.memory_space<vmem>>) target_semaphore(%665 : memref<!tpu.dma_semaphore, #tpu.memory_space<semaphore_mem>>)
    %c6_i32_454 = arith.constant 6 : i32
    %666 = arith.addi %0, %c6_i32_454 : i32
    %c8_i32_455 = arith.constant 8 : i32
    %667 = arith.muli %666, %c8_i32_455 : i32
    %c1_i32_456 = arith.constant 1 : i32
    %668 = arith.addi %667, %c1_i32_456 : i32
    %669 = arith.index_cast %668 : i32 to index
    %670 = memref.load %arg3[%669] : memref<128xi32, #tpu.memory_space<smem>>
    %c6_i32_457 = arith.constant 6 : i32
    %c1_i32_458 = arith.constant 1 : i32
    %c0_i32_459 = arith.constant 0 : i32
    %c0_i32_460 = arith.constant 0 : i32
    %671 = tpu.memref_slice %arg5[%670, %c0_i32_460] : memref<256x128xf32, #tpu.memory_space<any>> -> memref<1x128xf32, #tpu.memory_space<any>>
    %672 = tpu.memref_squeeze %671 : memref<1x128xf32, #tpu.memory_space<any>> -> memref<128xf32, #tpu.memory_space<any>>
    %c0_i32_461 = arith.constant 0 : i32
    %673 = tpu.memref_slice %arg9[%c6_i32_457, %c1_i32_458, %c0_i32_461] : memref<8x8x128xf32, #tpu.memory_space<vmem>> -> memref<1x1x128xf32, #tpu.memory_space<vmem>>
    %674 = tpu.memref_squeeze %673 : memref<1x1x128xf32, #tpu.memory_space<vmem>> -> memref<128xf32, #tpu.memory_space<vmem>>
    %675 = tpu.memref_slice %arg10[%c0_i32_459] : memref<1x!tpu.dma_semaphore, #tpu.memory_space<semaphore_mem>> -> memref<1x!tpu.dma_semaphore, #tpu.memory_space<semaphore_mem>>
    %676 = tpu.memref_squeeze %675 : memref<1x!tpu.dma_semaphore, #tpu.memory_space<semaphore_mem>> -> memref<!tpu.dma_semaphore, #tpu.memory_space<semaphore_mem>>
    tpu.enqueue_dma source(%672 : memref<128xf32, #tpu.memory_space<any>>) target(%674 : memref<128xf32, #tpu.memory_space<vmem>>) target_semaphore(%676 : memref<!tpu.dma_semaphore, #tpu.memory_space<semaphore_mem>>)
    %c6_i32_462 = arith.constant 6 : i32
    %677 = arith.addi %0, %c6_i32_462 : i32
    %c8_i32_463 = arith.constant 8 : i32
    %678 = arith.muli %677, %c8_i32_463 : i32
    %c2_i32_464 = arith.constant 2 : i32
    %679 = arith.addi %678, %c2_i32_464 : i32
    %680 = arith.index_cast %679 : i32 to index
    %681 = memref.load %arg3[%680] : memref<128xi32, #tpu.memory_space<smem>>
    %c6_i32_465 = arith.constant 6 : i32
    %c2_i32_466 = arith.constant 2 : i32
    %c0_i32_467 = arith.constant 0 : i32
    %c0_i32_468 = arith.constant 0 : i32
    %682 = tpu.memref_slice %arg5[%681, %c0_i32_468] : memref<256x128xf32, #tpu.memory_space<any>> -> memref<1x128xf32, #tpu.memory_space<any>>
    %683 = tpu.memref_squeeze %682 : memref<1x128xf32, #tpu.memory_space<any>> -> memref<128xf32, #tpu.memory_space<any>>
    %c0_i32_469 = arith.constant 0 : i32
    %684 = tpu.memref_slice %arg9[%c6_i32_465, %c2_i32_466, %c0_i32_469] : memref<8x8x128xf32, #tpu.memory_space<vmem>> -> memref<1x1x128xf32, #tpu.memory_space<vmem>>
    %685 = tpu.memref_squeeze %684 : memref<1x1x128xf32, #tpu.memory_space<vmem>> -> memref<128xf32, #tpu.memory_space<vmem>>
    %686 = tpu.memref_slice %arg10[%c0_i32_467] : memref<1x!tpu.dma_semaphore, #tpu.memory_space<semaphore_mem>> -> memref<1x!tpu.dma_semaphore, #tpu.memory_space<semaphore_mem>>
    %687 = tpu.memref_squeeze %686 : memref<1x!tpu.dma_semaphore, #tpu.memory_space<semaphore_mem>> -> memref<!tpu.dma_semaphore, #tpu.memory_space<semaphore_mem>>
    tpu.enqueue_dma source(%683 : memref<128xf32, #tpu.memory_space<any>>) target(%685 : memref<128xf32, #tpu.memory_space<vmem>>) target_semaphore(%687 : memref<!tpu.dma_semaphore, #tpu.memory_space<semaphore_mem>>)
    %c6_i32_470 = arith.constant 6 : i32
    %688 = arith.addi %0, %c6_i32_470 : i32
    %c8_i32_471 = arith.constant 8 : i32
    %689 = arith.muli %688, %c8_i32_471 : i32
    %c3_i32_472 = arith.constant 3 : i32
    %690 = arith.addi %689, %c3_i32_472 : i32
    %691 = arith.index_cast %690 : i32 to index
    %692 = memref.load %arg3[%691] : memref<128xi32, #tpu.memory_space<smem>>
    %c6_i32_473 = arith.constant 6 : i32
    %c3_i32_474 = arith.constant 3 : i32
    %c0_i32_475 = arith.constant 0 : i32
    %c0_i32_476 = arith.constant 0 : i32
    %693 = tpu.memref_slice %arg5[%692, %c0_i32_476] : memref<256x128xf32, #tpu.memory_space<any>> -> memref<1x128xf32, #tpu.memory_space<any>>
    %694 = tpu.memref_squeeze %693 : memref<1x128xf32, #tpu.memory_space<any>> -> memref<128xf32, #tpu.memory_space<any>>
    %c0_i32_477 = arith.constant 0 : i32
    %695 = tpu.memref_slice %arg9[%c6_i32_473, %c3_i32_474, %c0_i32_477] : memref<8x8x128xf32, #tpu.memory_space<vmem>> -> memref<1x1x128xf32, #tpu.memory_space<vmem>>
    %696 = tpu.memref_squeeze %695 : memref<1x1x128xf32, #tpu.memory_space<vmem>> -> memref<128xf32, #tpu.memory_space<vmem>>
    %697 = tpu.memref_slice %arg10[%c0_i32_475] : memref<1x!tpu.dma_semaphore, #tpu.memory_space<semaphore_mem>> -> memref<1x!tpu.dma_semaphore, #tpu.memory_space<semaphore_mem>>
    %698 = tpu.memref_squeeze %697 : memref<1x!tpu.dma_semaphore, #tpu.memory_space<semaphore_mem>> -> memref<!tpu.dma_semaphore, #tpu.memory_space<semaphore_mem>>
    tpu.enqueue_dma source(%694 : memref<128xf32, #tpu.memory_space<any>>) target(%696 : memref<128xf32, #tpu.memory_space<vmem>>) target_semaphore(%698 : memref<!tpu.dma_semaphore, #tpu.memory_space<semaphore_mem>>)
    %c6_i32_478 = arith.constant 6 : i32
    %699 = arith.addi %0, %c6_i32_478 : i32
    %c8_i32_479 = arith.constant 8 : i32
    %700 = arith.muli %699, %c8_i32_479 : i32
    %c4_i32_480 = arith.constant 4 : i32
    %701 = arith.addi %700, %c4_i32_480 : i32
    %702 = arith.index_cast %701 : i32 to index
    %703 = memref.load %arg3[%702] : memref<128xi32, #tpu.memory_space<smem>>
    %c6_i32_481 = arith.constant 6 : i32
    %c4_i32_482 = arith.constant 4 : i32
    %c0_i32_483 = arith.constant 0 : i32
    %c0_i32_484 = arith.constant 0 : i32
    %704 = tpu.memref_slice %arg5[%703, %c0_i32_484] : memref<256x128xf32, #tpu.memory_space<any>> -> memref<1x128xf32, #tpu.memory_space<any>>
    %705 = tpu.memref_squeeze %704 : memref<1x128xf32, #tpu.memory_space<any>> -> memref<128xf32, #tpu.memory_space<any>>
    %c0_i32_485 = arith.constant 0 : i32
    %706 = tpu.memref_slice %arg9[%c6_i32_481, %c4_i32_482, %c0_i32_485] : memref<8x8x128xf32, #tpu.memory_space<vmem>> -> memref<1x1x128xf32, #tpu.memory_space<vmem>>
    %707 = tpu.memref_squeeze %706 : memref<1x1x128xf32, #tpu.memory_space<vmem>> -> memref<128xf32, #tpu.memory_space<vmem>>
    %708 = tpu.memref_slice %arg10[%c0_i32_483] : memref<1x!tpu.dma_semaphore, #tpu.memory_space<semaphore_mem>> -> memref<1x!tpu.dma_semaphore, #tpu.memory_space<semaphore_mem>>
    %709 = tpu.memref_squeeze %708 : memref<1x!tpu.dma_semaphore, #tpu.memory_space<semaphore_mem>> -> memref<!tpu.dma_semaphore, #tpu.memory_space<semaphore_mem>>
    tpu.enqueue_dma source(%705 : memref<128xf32, #tpu.memory_space<any>>) target(%707 : memref<128xf32, #tpu.memory_space<vmem>>) target_semaphore(%709 : memref<!tpu.dma_semaphore, #tpu.memory_space<semaphore_mem>>)
    %c6_i32_486 = arith.constant 6 : i32
    %710 = arith.addi %0, %c6_i32_486 : i32
    %c8_i32_487 = arith.constant 8 : i32
    %711 = arith.muli %710, %c8_i32_487 : i32
    %c5_i32_488 = arith.constant 5 : i32
    %712 = arith.addi %711, %c5_i32_488 : i32
    %713 = arith.index_cast %712 : i32 to index
    %714 = memref.load %arg3[%713] : memref<128xi32, #tpu.memory_space<smem>>
    %c6_i32_489 = arith.constant 6 : i32
    %c5_i32_490 = arith.constant 5 : i32
    %c0_i32_491 = arith.constant 0 : i32
    %c0_i32_492 = arith.constant 0 : i32
    %715 = tpu.memref_slice %arg5[%714, %c0_i32_492] : memref<256x128xf32, #tpu.memory_space<any>> -> memref<1x128xf32, #tpu.memory_space<any>>
    %716 = tpu.memref_squeeze %715 : memref<1x128xf32, #tpu.memory_space<any>> -> memref<128xf32, #tpu.memory_space<any>>
    %c0_i32_493 = arith.constant 0 : i32
    %717 = tpu.memref_slice %arg9[%c6_i32_489, %c5_i32_490, %c0_i32_493] : memref<8x8x128xf32, #tpu.memory_space<vmem>> -> memref<1x1x128xf32, #tpu.memory_space<vmem>>
    %718 = tpu.memref_squeeze %717 : memref<1x1x128xf32, #tpu.memory_space<vmem>> -> memref<128xf32, #tpu.memory_space<vmem>>
    %719 = tpu.memref_slice %arg10[%c0_i32_491] : memref<1x!tpu.dma_semaphore, #tpu.memory_space<semaphore_mem>> -> memref<1x!tpu.dma_semaphore, #tpu.memory_space<semaphore_mem>>
    %720 = tpu.memref_squeeze %719 : memref<1x!tpu.dma_semaphore, #tpu.memory_space<semaphore_mem>> -> memref<!tpu.dma_semaphore, #tpu.memory_space<semaphore_mem>>
    tpu.enqueue_dma source(%716 : memref<128xf32, #tpu.memory_space<any>>) target(%718 : memref<128xf32, #tpu.memory_space<vmem>>) target_semaphore(%720 : memref<!tpu.dma_semaphore, #tpu.memory_space<semaphore_mem>>)
    %c6_i32_494 = arith.constant 6 : i32
    %721 = arith.addi %0, %c6_i32_494 : i32
    %c8_i32_495 = arith.constant 8 : i32
    %722 = arith.muli %721, %c8_i32_495 : i32
    %c6_i32_496 = arith.constant 6 : i32
    %723 = arith.addi %722, %c6_i32_496 : i32
    %724 = arith.index_cast %723 : i32 to index
    %725 = memref.load %arg3[%724] : memref<128xi32, #tpu.memory_space<smem>>
    %c6_i32_497 = arith.constant 6 : i32
    %c6_i32_498 = arith.constant 6 : i32
    %c0_i32_499 = arith.constant 0 : i32
    %c0_i32_500 = arith.constant 0 : i32
    %726 = tpu.memref_slice %arg5[%725, %c0_i32_500] : memref<256x128xf32, #tpu.memory_space<any>> -> memref<1x128xf32, #tpu.memory_space<any>>
    %727 = tpu.memref_squeeze %726 : memref<1x128xf32, #tpu.memory_space<any>> -> memref<128xf32, #tpu.memory_space<any>>
    %c0_i32_501 = arith.constant 0 : i32
    %728 = tpu.memref_slice %arg9[%c6_i32_497, %c6_i32_498, %c0_i32_501] : memref<8x8x128xf32, #tpu.memory_space<vmem>> -> memref<1x1x128xf32, #tpu.memory_space<vmem>>
    %729 = tpu.memref_squeeze %728 : memref<1x1x128xf32, #tpu.memory_space<vmem>> -> memref<128xf32, #tpu.memory_space<vmem>>
    %730 = tpu.memref_slice %arg10[%c0_i32_499] : memref<1x!tpu.dma_semaphore, #tpu.memory_space<semaphore_mem>> -> memref<1x!tpu.dma_semaphore, #tpu.memory_space<semaphore_mem>>
    %731 = tpu.memref_squeeze %730 : memref<1x!tpu.dma_semaphore, #tpu.memory_space<semaphore_mem>> -> memref<!tpu.dma_semaphore, #tpu.memory_space<semaphore_mem>>
    tpu.enqueue_dma source(%727 : memref<128xf32, #tpu.memory_space<any>>) target(%729 : memref<128xf32, #tpu.memory_space<vmem>>) target_semaphore(%731 : memref<!tpu.dma_semaphore, #tpu.memory_space<semaphore_mem>>)
    %c6_i32_502 = arith.constant 6 : i32
    %732 = arith.addi %0, %c6_i32_502 : i32
    %c8_i32_503 = arith.constant 8 : i32
    %733 = arith.muli %732, %c8_i32_503 : i32
    %c7_i32_504 = arith.constant 7 : i32
    %734 = arith.addi %733, %c7_i32_504 : i32
    %735 = arith.index_cast %734 : i32 to index
    %736 = memref.load %arg3[%735] : memref<128xi32, #tpu.memory_space<smem>>
    %c6_i32_505 = arith.constant 6 : i32
    %c7_i32_506 = arith.constant 7 : i32
    %c0_i32_507 = arith.constant 0 : i32
    %c0_i32_508 = arith.constant 0 : i32
    %737 = tpu.memref_slice %arg5[%736, %c0_i32_508] : memref<256x128xf32, #tpu.memory_space<any>> -> memref<1x128xf32, #tpu.memory_space<any>>
    %738 = tpu.memref_squeeze %737 : memref<1x128xf32, #tpu.memory_space<any>> -> memref<128xf32, #tpu.memory_space<any>>
    %c0_i32_509 = arith.constant 0 : i32
    %739 = tpu.memref_slice %arg9[%c6_i32_505, %c7_i32_506, %c0_i32_509] : memref<8x8x128xf32, #tpu.memory_space<vmem>> -> memref<1x1x128xf32, #tpu.memory_space<vmem>>
    %740 = tpu.memref_squeeze %739 : memref<1x1x128xf32, #tpu.memory_space<vmem>> -> memref<128xf32, #tpu.memory_space<vmem>>
    %741 = tpu.memref_slice %arg10[%c0_i32_507] : memref<1x!tpu.dma_semaphore, #tpu.memory_space<semaphore_mem>> -> memref<1x!tpu.dma_semaphore, #tpu.memory_space<semaphore_mem>>
    %742 = tpu.memref_squeeze %741 : memref<1x!tpu.dma_semaphore, #tpu.memory_space<semaphore_mem>> -> memref<!tpu.dma_semaphore, #tpu.memory_space<semaphore_mem>>
    tpu.enqueue_dma source(%738 : memref<128xf32, #tpu.memory_space<any>>) target(%740 : memref<128xf32, #tpu.memory_space<vmem>>) target_semaphore(%742 : memref<!tpu.dma_semaphore, #tpu.memory_space<semaphore_mem>>)
    %c7_i32_510 = arith.constant 7 : i32
    %743 = arith.addi %0, %c7_i32_510 : i32
    %744 = arith.index_cast %743 : i32 to index
    %745 = memref.load %arg1[%744] : memref<16xi32, #tpu.memory_space<smem>>
    %c7_i32_511 = arith.constant 7 : i32
    %746 = arith.addi %0, %c7_i32_511 : i32
    %747 = arith.index_cast %746 : i32 to index
    %748 = memref.load %arg2[%747] : memref<16xi32, #tpu.memory_space<smem>>
    %c7_i32_512 = arith.constant 7 : i32
    %c0_i32_513 = arith.constant 0 : i32
    %c0_i32_514 = arith.constant 0 : i32
    %749 = tpu.memref_slice %arg4[%745, %c0_i32_514] : memref<256x128xf32, #tpu.memory_space<any>> -> memref<1x128xf32, #tpu.memory_space<any>>
    %750 = tpu.memref_squeeze %749 : memref<1x128xf32, #tpu.memory_space<any>> -> memref<128xf32, #tpu.memory_space<any>>
    %c0_i32_515 = arith.constant 0 : i32
    %751 = tpu.memref_slice %arg7[%c7_i32_512, %c0_i32_515] : memref<8x128xf32, #tpu.memory_space<vmem>> -> memref<1x128xf32, #tpu.memory_space<vmem>>
    %752 = tpu.memref_squeeze %751 : memref<1x128xf32, #tpu.memory_space<vmem>> -> memref<128xf32, #tpu.memory_space<vmem>>
    %753 = tpu.memref_slice %arg10[%c0_i32_513] : memref<1x!tpu.dma_semaphore, #tpu.memory_space<semaphore_mem>> -> memref<1x!tpu.dma_semaphore, #tpu.memory_space<semaphore_mem>>
    %754 = tpu.memref_squeeze %753 : memref<1x!tpu.dma_semaphore, #tpu.memory_space<semaphore_mem>> -> memref<!tpu.dma_semaphore, #tpu.memory_space<semaphore_mem>>
    tpu.enqueue_dma source(%750 : memref<128xf32, #tpu.memory_space<any>>) target(%752 : memref<128xf32, #tpu.memory_space<vmem>>) target_semaphore(%754 : memref<!tpu.dma_semaphore, #tpu.memory_space<semaphore_mem>>)
    %c7_i32_516 = arith.constant 7 : i32
    %c0_i32_517 = arith.constant 0 : i32
    %c0_i32_518 = arith.constant 0 : i32
    %755 = tpu.memref_slice %arg5[%748, %c0_i32_518] : memref<256x128xf32, #tpu.memory_space<any>> -> memref<1x128xf32, #tpu.memory_space<any>>
    %756 = tpu.memref_squeeze %755 : memref<1x128xf32, #tpu.memory_space<any>> -> memref<128xf32, #tpu.memory_space<any>>
    %c0_i32_519 = arith.constant 0 : i32
    %757 = tpu.memref_slice %arg8[%c7_i32_516, %c0_i32_519] : memref<8x128xf32, #tpu.memory_space<vmem>> -> memref<1x128xf32, #tpu.memory_space<vmem>>
    %758 = tpu.memref_squeeze %757 : memref<1x128xf32, #tpu.memory_space<vmem>> -> memref<128xf32, #tpu.memory_space<vmem>>
    %759 = tpu.memref_slice %arg10[%c0_i32_517] : memref<1x!tpu.dma_semaphore, #tpu.memory_space<semaphore_mem>> -> memref<1x!tpu.dma_semaphore, #tpu.memory_space<semaphore_mem>>
    %760 = tpu.memref_squeeze %759 : memref<1x!tpu.dma_semaphore, #tpu.memory_space<semaphore_mem>> -> memref<!tpu.dma_semaphore, #tpu.memory_space<semaphore_mem>>
    tpu.enqueue_dma source(%756 : memref<128xf32, #tpu.memory_space<any>>) target(%758 : memref<128xf32, #tpu.memory_space<vmem>>) target_semaphore(%760 : memref<!tpu.dma_semaphore, #tpu.memory_space<semaphore_mem>>)
    %c7_i32_520 = arith.constant 7 : i32
    %761 = arith.addi %0, %c7_i32_520 : i32
    %c8_i32_521 = arith.constant 8 : i32
    %762 = arith.muli %761, %c8_i32_521 : i32
    %c0_i32_522 = arith.constant 0 : i32
    %763 = arith.addi %762, %c0_i32_522 : i32
    %764 = arith.index_cast %763 : i32 to index
    %765 = memref.load %arg3[%764] : memref<128xi32, #tpu.memory_space<smem>>
    %c7_i32_523 = arith.constant 7 : i32
    %c0_i32_524 = arith.constant 0 : i32
    %c0_i32_525 = arith.constant 0 : i32
    %c0_i32_526 = arith.constant 0 : i32
    %766 = tpu.memref_slice %arg5[%765, %c0_i32_526] : memref<256x128xf32, #tpu.memory_space<any>> -> memref<1x128xf32, #tpu.memory_space<any>>
    %767 = tpu.memref_squeeze %766 : memref<1x128xf32, #tpu.memory_space<any>> -> memref<128xf32, #tpu.memory_space<any>>
    %c0_i32_527 = arith.constant 0 : i32
    %768 = tpu.memref_slice %arg9[%c7_i32_523, %c0_i32_524, %c0_i32_527] : memref<8x8x128xf32, #tpu.memory_space<vmem>> -> memref<1x1x128xf32, #tpu.memory_space<vmem>>
    %769 = tpu.memref_squeeze %768 : memref<1x1x128xf32, #tpu.memory_space<vmem>> -> memref<128xf32, #tpu.memory_space<vmem>>
    %770 = tpu.memref_slice %arg10[%c0_i32_525] : memref<1x!tpu.dma_semaphore, #tpu.memory_space<semaphore_mem>> -> memref<1x!tpu.dma_semaphore, #tpu.memory_space<semaphore_mem>>
    %771 = tpu.memref_squeeze %770 : memref<1x!tpu.dma_semaphore, #tpu.memory_space<semaphore_mem>> -> memref<!tpu.dma_semaphore, #tpu.memory_space<semaphore_mem>>
    tpu.enqueue_dma source(%767 : memref<128xf32, #tpu.memory_space<any>>) target(%769 : memref<128xf32, #tpu.memory_space<vmem>>) target_semaphore(%771 : memref<!tpu.dma_semaphore, #tpu.memory_space<semaphore_mem>>)
    %c7_i32_528 = arith.constant 7 : i32
    %772 = arith.addi %0, %c7_i32_528 : i32
    %c8_i32_529 = arith.constant 8 : i32
    %773 = arith.muli %772, %c8_i32_529 : i32
    %c1_i32_530 = arith.constant 1 : i32
    %774 = arith.addi %773, %c1_i32_530 : i32
    %775 = arith.index_cast %774 : i32 to index
    %776 = memref.load %arg3[%775] : memref<128xi32, #tpu.memory_space<smem>>
    %c7_i32_531 = arith.constant 7 : i32
    %c1_i32_532 = arith.constant 1 : i32
    %c0_i32_533 = arith.constant 0 : i32
    %c0_i32_534 = arith.constant 0 : i32
    %777 = tpu.memref_slice %arg5[%776, %c0_i32_534] : memref<256x128xf32, #tpu.memory_space<any>> -> memref<1x128xf32, #tpu.memory_space<any>>
    %778 = tpu.memref_squeeze %777 : memref<1x128xf32, #tpu.memory_space<any>> -> memref<128xf32, #tpu.memory_space<any>>
    %c0_i32_535 = arith.constant 0 : i32
    %779 = tpu.memref_slice %arg9[%c7_i32_531, %c1_i32_532, %c0_i32_535] : memref<8x8x128xf32, #tpu.memory_space<vmem>> -> memref<1x1x128xf32, #tpu.memory_space<vmem>>
    %780 = tpu.memref_squeeze %779 : memref<1x1x128xf32, #tpu.memory_space<vmem>> -> memref<128xf32, #tpu.memory_space<vmem>>
    %781 = tpu.memref_slice %arg10[%c0_i32_533] : memref<1x!tpu.dma_semaphore, #tpu.memory_space<semaphore_mem>> -> memref<1x!tpu.dma_semaphore, #tpu.memory_space<semaphore_mem>>
    %782 = tpu.memref_squeeze %781 : memref<1x!tpu.dma_semaphore, #tpu.memory_space<semaphore_mem>> -> memref<!tpu.dma_semaphore, #tpu.memory_space<semaphore_mem>>
    tpu.enqueue_dma source(%778 : memref<128xf32, #tpu.memory_space<any>>) target(%780 : memref<128xf32, #tpu.memory_space<vmem>>) target_semaphore(%782 : memref<!tpu.dma_semaphore, #tpu.memory_space<semaphore_mem>>)
    %c7_i32_536 = arith.constant 7 : i32
    %783 = arith.addi %0, %c7_i32_536 : i32
    %c8_i32_537 = arith.constant 8 : i32
    %784 = arith.muli %783, %c8_i32_537 : i32
    %c2_i32_538 = arith.constant 2 : i32
    %785 = arith.addi %784, %c2_i32_538 : i32
    %786 = arith.index_cast %785 : i32 to index
    %787 = memref.load %arg3[%786] : memref<128xi32, #tpu.memory_space<smem>>
    %c7_i32_539 = arith.constant 7 : i32
    %c2_i32_540 = arith.constant 2 : i32
    %c0_i32_541 = arith.constant 0 : i32
    %c0_i32_542 = arith.constant 0 : i32
    %788 = tpu.memref_slice %arg5[%787, %c0_i32_542] : memref<256x128xf32, #tpu.memory_space<any>> -> memref<1x128xf32, #tpu.memory_space<any>>
    %789 = tpu.memref_squeeze %788 : memref<1x128xf32, #tpu.memory_space<any>> -> memref<128xf32, #tpu.memory_space<any>>
    %c0_i32_543 = arith.constant 0 : i32
    %790 = tpu.memref_slice %arg9[%c7_i32_539, %c2_i32_540, %c0_i32_543] : memref<8x8x128xf32, #tpu.memory_space<vmem>> -> memref<1x1x128xf32, #tpu.memory_space<vmem>>
    %791 = tpu.memref_squeeze %790 : memref<1x1x128xf32, #tpu.memory_space<vmem>> -> memref<128xf32, #tpu.memory_space<vmem>>
    %792 = tpu.memref_slice %arg10[%c0_i32_541] : memref<1x!tpu.dma_semaphore, #tpu.memory_space<semaphore_mem>> -> memref<1x!tpu.dma_semaphore, #tpu.memory_space<semaphore_mem>>
    %793 = tpu.memref_squeeze %792 : memref<1x!tpu.dma_semaphore, #tpu.memory_space<semaphore_mem>> -> memref<!tpu.dma_semaphore, #tpu.memory_space<semaphore_mem>>
    tpu.enqueue_dma source(%789 : memref<128xf32, #tpu.memory_space<any>>) target(%791 : memref<128xf32, #tpu.memory_space<vmem>>) target_semaphore(%793 : memref<!tpu.dma_semaphore, #tpu.memory_space<semaphore_mem>>)
    %c7_i32_544 = arith.constant 7 : i32
    %794 = arith.addi %0, %c7_i32_544 : i32
    %c8_i32_545 = arith.constant 8 : i32
    %795 = arith.muli %794, %c8_i32_545 : i32
    %c3_i32_546 = arith.constant 3 : i32
    %796 = arith.addi %795, %c3_i32_546 : i32
    %797 = arith.index_cast %796 : i32 to index
    %798 = memref.load %arg3[%797] : memref<128xi32, #tpu.memory_space<smem>>
    %c7_i32_547 = arith.constant 7 : i32
    %c3_i32_548 = arith.constant 3 : i32
    %c0_i32_549 = arith.constant 0 : i32
    %c0_i32_550 = arith.constant 0 : i32
    %799 = tpu.memref_slice %arg5[%798, %c0_i32_550] : memref<256x128xf32, #tpu.memory_space<any>> -> memref<1x128xf32, #tpu.memory_space<any>>
    %800 = tpu.memref_squeeze %799 : memref<1x128xf32, #tpu.memory_space<any>> -> memref<128xf32, #tpu.memory_space<any>>
    %c0_i32_551 = arith.constant 0 : i32
    %801 = tpu.memref_slice %arg9[%c7_i32_547, %c3_i32_548, %c0_i32_551] : memref<8x8x128xf32, #tpu.memory_space<vmem>> -> memref<1x1x128xf32, #tpu.memory_space<vmem>>
    %802 = tpu.memref_squeeze %801 : memref<1x1x128xf32, #tpu.memory_space<vmem>> -> memref<128xf32, #tpu.memory_space<vmem>>
    %803 = tpu.memref_slice %arg10[%c0_i32_549] : memref<1x!tpu.dma_semaphore, #tpu.memory_space<semaphore_mem>> -> memref<1x!tpu.dma_semaphore, #tpu.memory_space<semaphore_mem>>
    %804 = tpu.memref_squeeze %803 : memref<1x!tpu.dma_semaphore, #tpu.memory_space<semaphore_mem>> -> memref<!tpu.dma_semaphore, #tpu.memory_space<semaphore_mem>>
    tpu.enqueue_dma source(%800 : memref<128xf32, #tpu.memory_space<any>>) target(%802 : memref<128xf32, #tpu.memory_space<vmem>>) target_semaphore(%804 : memref<!tpu.dma_semaphore, #tpu.memory_space<semaphore_mem>>)
    %c7_i32_552 = arith.constant 7 : i32
    %805 = arith.addi %0, %c7_i32_552 : i32
    %c8_i32_553 = arith.constant 8 : i32
    %806 = arith.muli %805, %c8_i32_553 : i32
    %c4_i32_554 = arith.constant 4 : i32
    %807 = arith.addi %806, %c4_i32_554 : i32
    %808 = arith.index_cast %807 : i32 to index
    %809 = memref.load %arg3[%808] : memref<128xi32, #tpu.memory_space<smem>>
    %c7_i32_555 = arith.constant 7 : i32
    %c4_i32_556 = arith.constant 4 : i32
    %c0_i32_557 = arith.constant 0 : i32
    %c0_i32_558 = arith.constant 0 : i32
    %810 = tpu.memref_slice %arg5[%809, %c0_i32_558] : memref<256x128xf32, #tpu.memory_space<any>> -> memref<1x128xf32, #tpu.memory_space<any>>
    %811 = tpu.memref_squeeze %810 : memref<1x128xf32, #tpu.memory_space<any>> -> memref<128xf32, #tpu.memory_space<any>>
    %c0_i32_559 = arith.constant 0 : i32
    %812 = tpu.memref_slice %arg9[%c7_i32_555, %c4_i32_556, %c0_i32_559] : memref<8x8x128xf32, #tpu.memory_space<vmem>> -> memref<1x1x128xf32, #tpu.memory_space<vmem>>
    %813 = tpu.memref_squeeze %812 : memref<1x1x128xf32, #tpu.memory_space<vmem>> -> memref<128xf32, #tpu.memory_space<vmem>>
    %814 = tpu.memref_slice %arg10[%c0_i32_557] : memref<1x!tpu.dma_semaphore, #tpu.memory_space<semaphore_mem>> -> memref<1x!tpu.dma_semaphore, #tpu.memory_space<semaphore_mem>>
    %815 = tpu.memref_squeeze %814 : memref<1x!tpu.dma_semaphore, #tpu.memory_space<semaphore_mem>> -> memref<!tpu.dma_semaphore, #tpu.memory_space<semaphore_mem>>
    tpu.enqueue_dma source(%811 : memref<128xf32, #tpu.memory_space<any>>) target(%813 : memref<128xf32, #tpu.memory_space<vmem>>) target_semaphore(%815 : memref<!tpu.dma_semaphore, #tpu.memory_space<semaphore_mem>>)
    %c7_i32_560 = arith.constant 7 : i32
    %816 = arith.addi %0, %c7_i32_560 : i32
    %c8_i32_561 = arith.constant 8 : i32
    %817 = arith.muli %816, %c8_i32_561 : i32
    %c5_i32_562 = arith.constant 5 : i32
    %818 = arith.addi %817, %c5_i32_562 : i32
    %819 = arith.index_cast %818 : i32 to index
    %820 = memref.load %arg3[%819] : memref<128xi32, #tpu.memory_space<smem>>
    %c7_i32_563 = arith.constant 7 : i32
    %c5_i32_564 = arith.constant 5 : i32
    %c0_i32_565 = arith.constant 0 : i32
    %c0_i32_566 = arith.constant 0 : i32
    %821 = tpu.memref_slice %arg5[%820, %c0_i32_566] : memref<256x128xf32, #tpu.memory_space<any>> -> memref<1x128xf32, #tpu.memory_space<any>>
    %822 = tpu.memref_squeeze %821 : memref<1x128xf32, #tpu.memory_space<any>> -> memref<128xf32, #tpu.memory_space<any>>
    %c0_i32_567 = arith.constant 0 : i32
    %823 = tpu.memref_slice %arg9[%c7_i32_563, %c5_i32_564, %c0_i32_567] : memref<8x8x128xf32, #tpu.memory_space<vmem>> -> memref<1x1x128xf32, #tpu.memory_space<vmem>>
    %824 = tpu.memref_squeeze %823 : memref<1x1x128xf32, #tpu.memory_space<vmem>> -> memref<128xf32, #tpu.memory_space<vmem>>
    %825 = tpu.memref_slice %arg10[%c0_i32_565] : memref<1x!tpu.dma_semaphore, #tpu.memory_space<semaphore_mem>> -> memref<1x!tpu.dma_semaphore, #tpu.memory_space<semaphore_mem>>
    %826 = tpu.memref_squeeze %825 : memref<1x!tpu.dma_semaphore, #tpu.memory_space<semaphore_mem>> -> memref<!tpu.dma_semaphore, #tpu.memory_space<semaphore_mem>>
    tpu.enqueue_dma source(%822 : memref<128xf32, #tpu.memory_space<any>>) target(%824 : memref<128xf32, #tpu.memory_space<vmem>>) target_semaphore(%826 : memref<!tpu.dma_semaphore, #tpu.memory_space<semaphore_mem>>)
    %c7_i32_568 = arith.constant 7 : i32
    %827 = arith.addi %0, %c7_i32_568 : i32
    %c8_i32_569 = arith.constant 8 : i32
    %828 = arith.muli %827, %c8_i32_569 : i32
    %c6_i32_570 = arith.constant 6 : i32
    %829 = arith.addi %828, %c6_i32_570 : i32
    %830 = arith.index_cast %829 : i32 to index
    %831 = memref.load %arg3[%830] : memref<128xi32, #tpu.memory_space<smem>>
    %c7_i32_571 = arith.constant 7 : i32
    %c6_i32_572 = arith.constant 6 : i32
    %c0_i32_573 = arith.constant 0 : i32
    %c0_i32_574 = arith.constant 0 : i32
    %832 = tpu.memref_slice %arg5[%831, %c0_i32_574] : memref<256x128xf32, #tpu.memory_space<any>> -> memref<1x128xf32, #tpu.memory_space<any>>
    %833 = tpu.memref_squeeze %832 : memref<1x128xf32, #tpu.memory_space<any>> -> memref<128xf32, #tpu.memory_space<any>>
    %c0_i32_575 = arith.constant 0 : i32
    %834 = tpu.memref_slice %arg9[%c7_i32_571, %c6_i32_572, %c0_i32_575] : memref<8x8x128xf32, #tpu.memory_space<vmem>> -> memref<1x1x128xf32, #tpu.memory_space<vmem>>
    %835 = tpu.memref_squeeze %834 : memref<1x1x128xf32, #tpu.memory_space<vmem>> -> memref<128xf32, #tpu.memory_space<vmem>>
    %836 = tpu.memref_slice %arg10[%c0_i32_573] : memref<1x!tpu.dma_semaphore, #tpu.memory_space<semaphore_mem>> -> memref<1x!tpu.dma_semaphore, #tpu.memory_space<semaphore_mem>>
    %837 = tpu.memref_squeeze %836 : memref<1x!tpu.dma_semaphore, #tpu.memory_space<semaphore_mem>> -> memref<!tpu.dma_semaphore, #tpu.memory_space<semaphore_mem>>
    tpu.enqueue_dma source(%833 : memref<128xf32, #tpu.memory_space<any>>) target(%835 : memref<128xf32, #tpu.memory_space<vmem>>) target_semaphore(%837 : memref<!tpu.dma_semaphore, #tpu.memory_space<semaphore_mem>>)
    %c7_i32_576 = arith.constant 7 : i32
    %838 = arith.addi %0, %c7_i32_576 : i32
    %c8_i32_577 = arith.constant 8 : i32
    %839 = arith.muli %838, %c8_i32_577 : i32
    %c7_i32_578 = arith.constant 7 : i32
    %840 = arith.addi %839, %c7_i32_578 : i32
    %841 = arith.index_cast %840 : i32 to index
    %842 = memref.load %arg3[%841] : memref<128xi32, #tpu.memory_space<smem>>
    %c7_i32_579 = arith.constant 7 : i32
    %c7_i32_580 = arith.constant 7 : i32
    %c0_i32_581 = arith.constant 0 : i32
    %c0_i32_582 = arith.constant 0 : i32
    %843 = tpu.memref_slice %arg5[%842, %c0_i32_582] : memref<256x128xf32, #tpu.memory_space<any>> -> memref<1x128xf32, #tpu.memory_space<any>>
    %844 = tpu.memref_squeeze %843 : memref<1x128xf32, #tpu.memory_space<any>> -> memref<128xf32, #tpu.memory_space<any>>
    %c0_i32_583 = arith.constant 0 : i32
    %845 = tpu.memref_slice %arg9[%c7_i32_579, %c7_i32_580, %c0_i32_583] : memref<8x8x128xf32, #tpu.memory_space<vmem>> -> memref<1x1x128xf32, #tpu.memory_space<vmem>>
    %846 = tpu.memref_squeeze %845 : memref<1x1x128xf32, #tpu.memory_space<vmem>> -> memref<128xf32, #tpu.memory_space<vmem>>
    %847 = tpu.memref_slice %arg10[%c0_i32_581] : memref<1x!tpu.dma_semaphore, #tpu.memory_space<semaphore_mem>> -> memref<1x!tpu.dma_semaphore, #tpu.memory_space<semaphore_mem>>
    %848 = tpu.memref_squeeze %847 : memref<1x!tpu.dma_semaphore, #tpu.memory_space<semaphore_mem>> -> memref<!tpu.dma_semaphore, #tpu.memory_space<semaphore_mem>>
    tpu.enqueue_dma source(%844 : memref<128xf32, #tpu.memory_space<any>>) target(%846 : memref<128xf32, #tpu.memory_space<vmem>>) target_semaphore(%848 : memref<!tpu.dma_semaphore, #tpu.memory_space<semaphore_mem>>)
    %c0_i32_584 = arith.constant 0 : i32
    %c0_i32_585 = arith.constant 0 : i32
    %c0_i32_586 = arith.constant 0 : i32
    %849 = tpu.memref_slice %arg4[%3, %c0_i32_586] : memref<256x128xf32, #tpu.memory_space<any>> -> memref<1x128xf32, #tpu.memory_space<any>>
    %850 = tpu.memref_squeeze %849 : memref<1x128xf32, #tpu.memory_space<any>> -> memref<128xf32, #tpu.memory_space<any>>
    %c0_i32_587 = arith.constant 0 : i32
    %851 = tpu.memref_slice %arg7[%c0_i32_584, %c0_i32_587] : memref<8x128xf32, #tpu.memory_space<vmem>> -> memref<1x128xf32, #tpu.memory_space<vmem>>
    %852 = tpu.memref_squeeze %851 : memref<1x128xf32, #tpu.memory_space<vmem>> -> memref<128xf32, #tpu.memory_space<vmem>>
    %853 = tpu.memref_slice %arg10[%c0_i32_585] : memref<1x!tpu.dma_semaphore, #tpu.memory_space<semaphore_mem>> -> memref<1x!tpu.dma_semaphore, #tpu.memory_space<semaphore_mem>>
    %854 = tpu.memref_squeeze %853 : memref<1x!tpu.dma_semaphore, #tpu.memory_space<semaphore_mem>> -> memref<!tpu.dma_semaphore, #tpu.memory_space<semaphore_mem>>
    tpu.wait_dma2 semaphore(%854 : memref<!tpu.dma_semaphore, #tpu.memory_space<semaphore_mem>>) src(%850 : memref<128xf32, #tpu.memory_space<any>>) dst(%852 : memref<128xf32, #tpu.memory_space<vmem>>)
    %c0_i32_588 = arith.constant 0 : i32
    %c0_i32_589 = arith.constant 0 : i32
    %c0_i32_590 = arith.constant 0 : i32
    %855 = tpu.memref_slice %arg5[%6, %c0_i32_590] : memref<256x128xf32, #tpu.memory_space<any>> -> memref<1x128xf32, #tpu.memory_space<any>>
    %856 = tpu.memref_squeeze %855 : memref<1x128xf32, #tpu.memory_space<any>> -> memref<128xf32, #tpu.memory_space<any>>
    %c0_i32_591 = arith.constant 0 : i32
    %857 = tpu.memref_slice %arg8[%c0_i32_588, %c0_i32_591] : memref<8x128xf32, #tpu.memory_space<vmem>> -> memref<1x128xf32, #tpu.memory_space<vmem>>
    %858 = tpu.memref_squeeze %857 : memref<1x128xf32, #tpu.memory_space<vmem>> -> memref<128xf32, #tpu.memory_space<vmem>>
    %859 = tpu.memref_slice %arg10[%c0_i32_589] : memref<1x!tpu.dma_semaphore, #tpu.memory_space<semaphore_mem>> -> memref<1x!tpu.dma_semaphore, #tpu.memory_space<semaphore_mem>>
    %860 = tpu.memref_squeeze %859 : memref<1x!tpu.dma_semaphore, #tpu.memory_space<semaphore_mem>> -> memref<!tpu.dma_semaphore, #tpu.memory_space<semaphore_mem>>
    tpu.wait_dma2 semaphore(%860 : memref<!tpu.dma_semaphore, #tpu.memory_space<semaphore_mem>>) src(%856 : memref<128xf32, #tpu.memory_space<any>>) dst(%858 : memref<128xf32, #tpu.memory_space<vmem>>)
    %c0_i32_592 = arith.constant 0 : i32
    %c0_i32_593 = arith.constant 0 : i32
    %c0_i32_594 = arith.constant 0 : i32
    %c0_i32_595 = arith.constant 0 : i32
    %861 = tpu.memref_slice %arg5[%23, %c0_i32_595] : memref<256x128xf32, #tpu.memory_space<any>> -> memref<1x128xf32, #tpu.memory_space<any>>
    %862 = tpu.memref_squeeze %861 : memref<1x128xf32, #tpu.memory_space<any>> -> memref<128xf32, #tpu.memory_space<any>>
    %c0_i32_596 = arith.constant 0 : i32
    %863 = tpu.memref_slice %arg9[%c0_i32_592, %c0_i32_593, %c0_i32_596] : memref<8x8x128xf32, #tpu.memory_space<vmem>> -> memref<1x1x128xf32, #tpu.memory_space<vmem>>
    %864 = tpu.memref_squeeze %863 : memref<1x1x128xf32, #tpu.memory_space<vmem>> -> memref<128xf32, #tpu.memory_space<vmem>>
    %865 = tpu.memref_slice %arg10[%c0_i32_594] : memref<1x!tpu.dma_semaphore, #tpu.memory_space<semaphore_mem>> -> memref<1x!tpu.dma_semaphore, #tpu.memory_space<semaphore_mem>>
    %866 = tpu.memref_squeeze %865 : memref<1x!tpu.dma_semaphore, #tpu.memory_space<semaphore_mem>> -> memref<!tpu.dma_semaphore, #tpu.memory_space<semaphore_mem>>
    tpu.wait_dma2 semaphore(%866 : memref<!tpu.dma_semaphore, #tpu.memory_space<semaphore_mem>>) src(%862 : memref<128xf32, #tpu.memory_space<any>>) dst(%864 : memref<128xf32, #tpu.memory_space<vmem>>)
    %c0_i32_597 = arith.constant 0 : i32
    %c1_i32_598 = arith.constant 1 : i32
    %c0_i32_599 = arith.constant 0 : i32
    %c0_i32_600 = arith.constant 0 : i32
    %867 = tpu.memref_slice %arg5[%34, %c0_i32_600] : memref<256x128xf32, #tpu.memory_space<any>> -> memref<1x128xf32, #tpu.memory_space<any>>
    %868 = tpu.memref_squeeze %867 : memref<1x128xf32, #tpu.memory_space<any>> -> memref<128xf32, #tpu.memory_space<any>>
    %c0_i32_601 = arith.constant 0 : i32
    %869 = tpu.memref_slice %arg9[%c0_i32_597, %c1_i32_598, %c0_i32_601] : memref<8x8x128xf32, #tpu.memory_space<vmem>> -> memref<1x1x128xf32, #tpu.memory_space<vmem>>
    %870 = tpu.memref_squeeze %869 : memref<1x1x128xf32, #tpu.memory_space<vmem>> -> memref<128xf32, #tpu.memory_space<vmem>>
    %871 = tpu.memref_slice %arg10[%c0_i32_599] : memref<1x!tpu.dma_semaphore, #tpu.memory_space<semaphore_mem>> -> memref<1x!tpu.dma_semaphore, #tpu.memory_space<semaphore_mem>>
    %872 = tpu.memref_squeeze %871 : memref<1x!tpu.dma_semaphore, #tpu.memory_space<semaphore_mem>> -> memref<!tpu.dma_semaphore, #tpu.memory_space<semaphore_mem>>
    tpu.wait_dma2 semaphore(%872 : memref<!tpu.dma_semaphore, #tpu.memory_space<semaphore_mem>>) src(%868 : memref<128xf32, #tpu.memory_space<any>>) dst(%870 : memref<128xf32, #tpu.memory_space<vmem>>)
    %c0_i32_602 = arith.constant 0 : i32
    %c2_i32_603 = arith.constant 2 : i32
    %c0_i32_604 = arith.constant 0 : i32
    %c0_i32_605 = arith.constant 0 : i32
    %873 = tpu.memref_slice %arg5[%45, %c0_i32_605] : memref<256x128xf32, #tpu.memory_space<any>> -> memref<1x128xf32, #tpu.memory_space<any>>
    %874 = tpu.memref_squeeze %873 : memref<1x128xf32, #tpu.memory_space<any>> -> memref<128xf32, #tpu.memory_space<any>>
    %c0_i32_606 = arith.constant 0 : i32
    %875 = tpu.memref_slice %arg9[%c0_i32_602, %c2_i32_603, %c0_i32_606] : memref<8x8x128xf32, #tpu.memory_space<vmem>> -> memref<1x1x128xf32, #tpu.memory_space<vmem>>
    %876 = tpu.memref_squeeze %875 : memref<1x1x128xf32, #tpu.memory_space<vmem>> -> memref<128xf32, #tpu.memory_space<vmem>>
    %877 = tpu.memref_slice %arg10[%c0_i32_604] : memref<1x!tpu.dma_semaphore, #tpu.memory_space<semaphore_mem>> -> memref<1x!tpu.dma_semaphore, #tpu.memory_space<semaphore_mem>>
    %878 = tpu.memref_squeeze %877 : memref<1x!tpu.dma_semaphore, #tpu.memory_space<semaphore_mem>> -> memref<!tpu.dma_semaphore, #tpu.memory_space<semaphore_mem>>
    tpu.wait_dma2 semaphore(%878 : memref<!tpu.dma_semaphore, #tpu.memory_space<semaphore_mem>>) src(%874 : memref<128xf32, #tpu.memory_space<any>>) dst(%876 : memref<128xf32, #tpu.memory_space<vmem>>)
    %c0_i32_607 = arith.constant 0 : i32
    %c3_i32_608 = arith.constant 3 : i32
    %c0_i32_609 = arith.constant 0 : i32
    %c0_i32_610 = arith.constant 0 : i32
    %879 = tpu.memref_slice %arg5[%56, %c0_i32_610] : memref<256x128xf32, #tpu.memory_space<any>> -> memref<1x128xf32, #tpu.memory_space<any>>
    %880 = tpu.memref_squeeze %879 : memref<1x128xf32, #tpu.memory_space<any>> -> memref<128xf32, #tpu.memory_space<any>>
    %c0_i32_611 = arith.constant 0 : i32
    %881 = tpu.memref_slice %arg9[%c0_i32_607, %c3_i32_608, %c0_i32_611] : memref<8x8x128xf32, #tpu.memory_space<vmem>> -> memref<1x1x128xf32, #tpu.memory_space<vmem>>
    %882 = tpu.memref_squeeze %881 : memref<1x1x128xf32, #tpu.memory_space<vmem>> -> memref<128xf32, #tpu.memory_space<vmem>>
    %883 = tpu.memref_slice %arg10[%c0_i32_609] : memref<1x!tpu.dma_semaphore, #tpu.memory_space<semaphore_mem>> -> memref<1x!tpu.dma_semaphore, #tpu.memory_space<semaphore_mem>>
    %884 = tpu.memref_squeeze %883 : memref<1x!tpu.dma_semaphore, #tpu.memory_space<semaphore_mem>> -> memref<!tpu.dma_semaphore, #tpu.memory_space<semaphore_mem>>
    tpu.wait_dma2 semaphore(%884 : memref<!tpu.dma_semaphore, #tpu.memory_space<semaphore_mem>>) src(%880 : memref<128xf32, #tpu.memory_space<any>>) dst(%882 : memref<128xf32, #tpu.memory_space<vmem>>)
    %c0_i32_612 = arith.constant 0 : i32
    %c4_i32_613 = arith.constant 4 : i32
    %c0_i32_614 = arith.constant 0 : i32
    %c0_i32_615 = arith.constant 0 : i32
    %885 = tpu.memref_slice %arg5[%67, %c0_i32_615] : memref<256x128xf32, #tpu.memory_space<any>> -> memref<1x128xf32, #tpu.memory_space<any>>
    %886 = tpu.memref_squeeze %885 : memref<1x128xf32, #tpu.memory_space<any>> -> memref<128xf32, #tpu.memory_space<any>>
    %c0_i32_616 = arith.constant 0 : i32
    %887 = tpu.memref_slice %arg9[%c0_i32_612, %c4_i32_613, %c0_i32_616] : memref<8x8x128xf32, #tpu.memory_space<vmem>> -> memref<1x1x128xf32, #tpu.memory_space<vmem>>
    %888 = tpu.memref_squeeze %887 : memref<1x1x128xf32, #tpu.memory_space<vmem>> -> memref<128xf32, #tpu.memory_space<vmem>>
    %889 = tpu.memref_slice %arg10[%c0_i32_614] : memref<1x!tpu.dma_semaphore, #tpu.memory_space<semaphore_mem>> -> memref<1x!tpu.dma_semaphore, #tpu.memory_space<semaphore_mem>>
    %890 = tpu.memref_squeeze %889 : memref<1x!tpu.dma_semaphore, #tpu.memory_space<semaphore_mem>> -> memref<!tpu.dma_semaphore, #tpu.memory_space<semaphore_mem>>
    tpu.wait_dma2 semaphore(%890 : memref<!tpu.dma_semaphore, #tpu.memory_space<semaphore_mem>>) src(%886 : memref<128xf32, #tpu.memory_space<any>>) dst(%888 : memref<128xf32, #tpu.memory_space<vmem>>)
    %c0_i32_617 = arith.constant 0 : i32
    %c5_i32_618 = arith.constant 5 : i32
    %c0_i32_619 = arith.constant 0 : i32
    %c0_i32_620 = arith.constant 0 : i32
    %891 = tpu.memref_slice %arg5[%78, %c0_i32_620] : memref<256x128xf32, #tpu.memory_space<any>> -> memref<1x128xf32, #tpu.memory_space<any>>
    %892 = tpu.memref_squeeze %891 : memref<1x128xf32, #tpu.memory_space<any>> -> memref<128xf32, #tpu.memory_space<any>>
    %c0_i32_621 = arith.constant 0 : i32
    %893 = tpu.memref_slice %arg9[%c0_i32_617, %c5_i32_618, %c0_i32_621] : memref<8x8x128xf32, #tpu.memory_space<vmem>> -> memref<1x1x128xf32, #tpu.memory_space<vmem>>
    %894 = tpu.memref_squeeze %893 : memref<1x1x128xf32, #tpu.memory_space<vmem>> -> memref<128xf32, #tpu.memory_space<vmem>>
    %895 = tpu.memref_slice %arg10[%c0_i32_619] : memref<1x!tpu.dma_semaphore, #tpu.memory_space<semaphore_mem>> -> memref<1x!tpu.dma_semaphore, #tpu.memory_space<semaphore_mem>>
    %896 = tpu.memref_squeeze %895 : memref<1x!tpu.dma_semaphore, #tpu.memory_space<semaphore_mem>> -> memref<!tpu.dma_semaphore, #tpu.memory_space<semaphore_mem>>
    tpu.wait_dma2 semaphore(%896 : memref<!tpu.dma_semaphore, #tpu.memory_space<semaphore_mem>>) src(%892 : memref<128xf32, #tpu.memory_space<any>>) dst(%894 : memref<128xf32, #tpu.memory_space<vmem>>)
    %c0_i32_622 = arith.constant 0 : i32
    %c6_i32_623 = arith.constant 6 : i32
    %c0_i32_624 = arith.constant 0 : i32
    %c0_i32_625 = arith.constant 0 : i32
    %897 = tpu.memref_slice %arg5[%89, %c0_i32_625] : memref<256x128xf32, #tpu.memory_space<any>> -> memref<1x128xf32, #tpu.memory_space<any>>
    %898 = tpu.memref_squeeze %897 : memref<1x128xf32, #tpu.memory_space<any>> -> memref<128xf32, #tpu.memory_space<any>>
    %c0_i32_626 = arith.constant 0 : i32
    %899 = tpu.memref_slice %arg9[%c0_i32_622, %c6_i32_623, %c0_i32_626] : memref<8x8x128xf32, #tpu.memory_space<vmem>> -> memref<1x1x128xf32, #tpu.memory_space<vmem>>
    %900 = tpu.memref_squeeze %899 : memref<1x1x128xf32, #tpu.memory_space<vmem>> -> memref<128xf32, #tpu.memory_space<vmem>>
    %901 = tpu.memref_slice %arg10[%c0_i32_624] : memref<1x!tpu.dma_semaphore, #tpu.memory_space<semaphore_mem>> -> memref<1x!tpu.dma_semaphore, #tpu.memory_space<semaphore_mem>>
    %902 = tpu.memref_squeeze %901 : memref<1x!tpu.dma_semaphore, #tpu.memory_space<semaphore_mem>> -> memref<!tpu.dma_semaphore, #tpu.memory_space<semaphore_mem>>
    tpu.wait_dma2 semaphore(%902 : memref<!tpu.dma_semaphore, #tpu.memory_space<semaphore_mem>>) src(%898 : memref<128xf32, #tpu.memory_space<any>>) dst(%900 : memref<128xf32, #tpu.memory_space<vmem>>)
    %c0_i32_627 = arith.constant 0 : i32
    %c7_i32_628 = arith.constant 7 : i32
    %c0_i32_629 = arith.constant 0 : i32
    %c0_i32_630 = arith.constant 0 : i32
    %903 = tpu.memref_slice %arg5[%100, %c0_i32_630] : memref<256x128xf32, #tpu.memory_space<any>> -> memref<1x128xf32, #tpu.memory_space<any>>
    %904 = tpu.memref_squeeze %903 : memref<1x128xf32, #tpu.memory_space<any>> -> memref<128xf32, #tpu.memory_space<any>>
    %c0_i32_631 = arith.constant 0 : i32
    %905 = tpu.memref_slice %arg9[%c0_i32_627, %c7_i32_628, %c0_i32_631] : memref<8x8x128xf32, #tpu.memory_space<vmem>> -> memref<1x1x128xf32, #tpu.memory_space<vmem>>
    %906 = tpu.memref_squeeze %905 : memref<1x1x128xf32, #tpu.memory_space<vmem>> -> memref<128xf32, #tpu.memory_space<vmem>>
    %907 = tpu.memref_slice %arg10[%c0_i32_629] : memref<1x!tpu.dma_semaphore, #tpu.memory_space<semaphore_mem>> -> memref<1x!tpu.dma_semaphore, #tpu.memory_space<semaphore_mem>>
    %908 = tpu.memref_squeeze %907 : memref<1x!tpu.dma_semaphore, #tpu.memory_space<semaphore_mem>> -> memref<!tpu.dma_semaphore, #tpu.memory_space<semaphore_mem>>
    tpu.wait_dma2 semaphore(%908 : memref<!tpu.dma_semaphore, #tpu.memory_space<semaphore_mem>>) src(%904 : memref<128xf32, #tpu.memory_space<any>>) dst(%906 : memref<128xf32, #tpu.memory_space<vmem>>)
    %c1_i32_632 = arith.constant 1 : i32
    %c0_i32_633 = arith.constant 0 : i32
    %c0_i32_634 = arith.constant 0 : i32
    %909 = tpu.memref_slice %arg4[%109, %c0_i32_634] : memref<256x128xf32, #tpu.memory_space<any>> -> memref<1x128xf32, #tpu.memory_space<any>>
    %910 = tpu.memref_squeeze %909 : memref<1x128xf32, #tpu.memory_space<any>> -> memref<128xf32, #tpu.memory_space<any>>
    %c0_i32_635 = arith.constant 0 : i32
    %911 = tpu.memref_slice %arg7[%c1_i32_632, %c0_i32_635] : memref<8x128xf32, #tpu.memory_space<vmem>> -> memref<1x128xf32, #tpu.memory_space<vmem>>
    %912 = tpu.memref_squeeze %911 : memref<1x128xf32, #tpu.memory_space<vmem>> -> memref<128xf32, #tpu.memory_space<vmem>>
    %913 = tpu.memref_slice %arg10[%c0_i32_633] : memref<1x!tpu.dma_semaphore, #tpu.memory_space<semaphore_mem>> -> memref<1x!tpu.dma_semaphore, #tpu.memory_space<semaphore_mem>>
    %914 = tpu.memref_squeeze %913 : memref<1x!tpu.dma_semaphore, #tpu.memory_space<semaphore_mem>> -> memref<!tpu.dma_semaphore, #tpu.memory_space<semaphore_mem>>
    tpu.wait_dma2 semaphore(%914 : memref<!tpu.dma_semaphore, #tpu.memory_space<semaphore_mem>>) src(%910 : memref<128xf32, #tpu.memory_space<any>>) dst(%912 : memref<128xf32, #tpu.memory_space<vmem>>)
    %c1_i32_636 = arith.constant 1 : i32
    %c0_i32_637 = arith.constant 0 : i32
    %c0_i32_638 = arith.constant 0 : i32
    %915 = tpu.memref_slice %arg5[%112, %c0_i32_638] : memref<256x128xf32, #tpu.memory_space<any>> -> memref<1x128xf32, #tpu.memory_space<any>>
    %916 = tpu.memref_squeeze %915 : memref<1x128xf32, #tpu.memory_space<any>> -> memref<128xf32, #tpu.memory_space<any>>
    %c0_i32_639 = arith.constant 0 : i32
    %917 = tpu.memref_slice %arg8[%c1_i32_636, %c0_i32_639] : memref<8x128xf32, #tpu.memory_space<vmem>> -> memref<1x128xf32, #tpu.memory_space<vmem>>
    %918 = tpu.memref_squeeze %917 : memref<1x128xf32, #tpu.memory_space<vmem>> -> memref<128xf32, #tpu.memory_space<vmem>>
    %919 = tpu.memref_slice %arg10[%c0_i32_637] : memref<1x!tpu.dma_semaphore, #tpu.memory_space<semaphore_mem>> -> memref<1x!tpu.dma_semaphore, #tpu.memory_space<semaphore_mem>>
    %920 = tpu.memref_squeeze %919 : memref<1x!tpu.dma_semaphore, #tpu.memory_space<semaphore_mem>> -> memref<!tpu.dma_semaphore, #tpu.memory_space<semaphore_mem>>
    tpu.wait_dma2 semaphore(%920 : memref<!tpu.dma_semaphore, #tpu.memory_space<semaphore_mem>>) src(%916 : memref<128xf32, #tpu.memory_space<any>>) dst(%918 : memref<128xf32, #tpu.memory_space<vmem>>)
    %c1_i32_640 = arith.constant 1 : i32
    %c0_i32_641 = arith.constant 0 : i32
    %c0_i32_642 = arith.constant 0 : i32
    %c0_i32_643 = arith.constant 0 : i32
    %921 = tpu.memref_slice %arg5[%129, %c0_i32_643] : memref<256x128xf32, #tpu.memory_space<any>> -> memref<1x128xf32, #tpu.memory_space<any>>
    %922 = tpu.memref_squeeze %921 : memref<1x128xf32, #tpu.memory_space<any>> -> memref<128xf32, #tpu.memory_space<any>>
    %c0_i32_644 = arith.constant 0 : i32
    %923 = tpu.memref_slice %arg9[%c1_i32_640, %c0_i32_641, %c0_i32_644] : memref<8x8x128xf32, #tpu.memory_space<vmem>> -> memref<1x1x128xf32, #tpu.memory_space<vmem>>
    %924 = tpu.memref_squeeze %923 : memref<1x1x128xf32, #tpu.memory_space<vmem>> -> memref<128xf32, #tpu.memory_space<vmem>>
    %925 = tpu.memref_slice %arg10[%c0_i32_642] : memref<1x!tpu.dma_semaphore, #tpu.memory_space<semaphore_mem>> -> memref<1x!tpu.dma_semaphore, #tpu.memory_space<semaphore_mem>>
    %926 = tpu.memref_squeeze %925 : memref<1x!tpu.dma_semaphore, #tpu.memory_space<semaphore_mem>> -> memref<!tpu.dma_semaphore, #tpu.memory_space<semaphore_mem>>
    tpu.wait_dma2 semaphore(%926 : memref<!tpu.dma_semaphore, #tpu.memory_space<semaphore_mem>>) src(%922 : memref<128xf32, #tpu.memory_space<any>>) dst(%924 : memref<128xf32, #tpu.memory_space<vmem>>)
    %c1_i32_645 = arith.constant 1 : i32
    %c1_i32_646 = arith.constant 1 : i32
    %c0_i32_647 = arith.constant 0 : i32
    %c0_i32_648 = arith.constant 0 : i32
    %927 = tpu.memref_slice %arg5[%140, %c0_i32_648] : memref<256x128xf32, #tpu.memory_space<any>> -> memref<1x128xf32, #tpu.memory_space<any>>
    %928 = tpu.memref_squeeze %927 : memref<1x128xf32, #tpu.memory_space<any>> -> memref<128xf32, #tpu.memory_space<any>>
    %c0_i32_649 = arith.constant 0 : i32
    %929 = tpu.memref_slice %arg9[%c1_i32_645, %c1_i32_646, %c0_i32_649] : memref<8x8x128xf32, #tpu.memory_space<vmem>> -> memref<1x1x128xf32, #tpu.memory_space<vmem>>
    %930 = tpu.memref_squeeze %929 : memref<1x1x128xf32, #tpu.memory_space<vmem>> -> memref<128xf32, #tpu.memory_space<vmem>>
    %931 = tpu.memref_slice %arg10[%c0_i32_647] : memref<1x!tpu.dma_semaphore, #tpu.memory_space<semaphore_mem>> -> memref<1x!tpu.dma_semaphore, #tpu.memory_space<semaphore_mem>>
    %932 = tpu.memref_squeeze %931 : memref<1x!tpu.dma_semaphore, #tpu.memory_space<semaphore_mem>> -> memref<!tpu.dma_semaphore, #tpu.memory_space<semaphore_mem>>
    tpu.wait_dma2 semaphore(%932 : memref<!tpu.dma_semaphore, #tpu.memory_space<semaphore_mem>>) src(%928 : memref<128xf32, #tpu.memory_space<any>>) dst(%930 : memref<128xf32, #tpu.memory_space<vmem>>)
    %c1_i32_650 = arith.constant 1 : i32
    %c2_i32_651 = arith.constant 2 : i32
    %c0_i32_652 = arith.constant 0 : i32
    %c0_i32_653 = arith.constant 0 : i32
    %933 = tpu.memref_slice %arg5[%151, %c0_i32_653] : memref<256x128xf32, #tpu.memory_space<any>> -> memref<1x128xf32, #tpu.memory_space<any>>
    %934 = tpu.memref_squeeze %933 : memref<1x128xf32, #tpu.memory_space<any>> -> memref<128xf32, #tpu.memory_space<any>>
    %c0_i32_654 = arith.constant 0 : i32
    %935 = tpu.memref_slice %arg9[%c1_i32_650, %c2_i32_651, %c0_i32_654] : memref<8x8x128xf32, #tpu.memory_space<vmem>> -> memref<1x1x128xf32, #tpu.memory_space<vmem>>
    %936 = tpu.memref_squeeze %935 : memref<1x1x128xf32, #tpu.memory_space<vmem>> -> memref<128xf32, #tpu.memory_space<vmem>>
    %937 = tpu.memref_slice %arg10[%c0_i32_652] : memref<1x!tpu.dma_semaphore, #tpu.memory_space<semaphore_mem>> -> memref<1x!tpu.dma_semaphore, #tpu.memory_space<semaphore_mem>>
    %938 = tpu.memref_squeeze %937 : memref<1x!tpu.dma_semaphore, #tpu.memory_space<semaphore_mem>> -> memref<!tpu.dma_semaphore, #tpu.memory_space<semaphore_mem>>
    tpu.wait_dma2 semaphore(%938 : memref<!tpu.dma_semaphore, #tpu.memory_space<semaphore_mem>>) src(%934 : memref<128xf32, #tpu.memory_space<any>>) dst(%936 : memref<128xf32, #tpu.memory_space<vmem>>)
    %c1_i32_655 = arith.constant 1 : i32
    %c3_i32_656 = arith.constant 3 : i32
    %c0_i32_657 = arith.constant 0 : i32
    %c0_i32_658 = arith.constant 0 : i32
    %939 = tpu.memref_slice %arg5[%162, %c0_i32_658] : memref<256x128xf32, #tpu.memory_space<any>> -> memref<1x128xf32, #tpu.memory_space<any>>
    %940 = tpu.memref_squeeze %939 : memref<1x128xf32, #tpu.memory_space<any>> -> memref<128xf32, #tpu.memory_space<any>>
    %c0_i32_659 = arith.constant 0 : i32
    %941 = tpu.memref_slice %arg9[%c1_i32_655, %c3_i32_656, %c0_i32_659] : memref<8x8x128xf32, #tpu.memory_space<vmem>> -> memref<1x1x128xf32, #tpu.memory_space<vmem>>
    %942 = tpu.memref_squeeze %941 : memref<1x1x128xf32, #tpu.memory_space<vmem>> -> memref<128xf32, #tpu.memory_space<vmem>>
    %943 = tpu.memref_slice %arg10[%c0_i32_657] : memref<1x!tpu.dma_semaphore, #tpu.memory_space<semaphore_mem>> -> memref<1x!tpu.dma_semaphore, #tpu.memory_space<semaphore_mem>>
    %944 = tpu.memref_squeeze %943 : memref<1x!tpu.dma_semaphore, #tpu.memory_space<semaphore_mem>> -> memref<!tpu.dma_semaphore, #tpu.memory_space<semaphore_mem>>
    tpu.wait_dma2 semaphore(%944 : memref<!tpu.dma_semaphore, #tpu.memory_space<semaphore_mem>>) src(%940 : memref<128xf32, #tpu.memory_space<any>>) dst(%942 : memref<128xf32, #tpu.memory_space<vmem>>)
    %c1_i32_660 = arith.constant 1 : i32
    %c4_i32_661 = arith.constant 4 : i32
    %c0_i32_662 = arith.constant 0 : i32
    %c0_i32_663 = arith.constant 0 : i32
    %945 = tpu.memref_slice %arg5[%173, %c0_i32_663] : memref<256x128xf32, #tpu.memory_space<any>> -> memref<1x128xf32, #tpu.memory_space<any>>
    %946 = tpu.memref_squeeze %945 : memref<1x128xf32, #tpu.memory_space<any>> -> memref<128xf32, #tpu.memory_space<any>>
    %c0_i32_664 = arith.constant 0 : i32
    %947 = tpu.memref_slice %arg9[%c1_i32_660, %c4_i32_661, %c0_i32_664] : memref<8x8x128xf32, #tpu.memory_space<vmem>> -> memref<1x1x128xf32, #tpu.memory_space<vmem>>
    %948 = tpu.memref_squeeze %947 : memref<1x1x128xf32, #tpu.memory_space<vmem>> -> memref<128xf32, #tpu.memory_space<vmem>>
    %949 = tpu.memref_slice %arg10[%c0_i32_662] : memref<1x!tpu.dma_semaphore, #tpu.memory_space<semaphore_mem>> -> memref<1x!tpu.dma_semaphore, #tpu.memory_space<semaphore_mem>>
    %950 = tpu.memref_squeeze %949 : memref<1x!tpu.dma_semaphore, #tpu.memory_space<semaphore_mem>> -> memref<!tpu.dma_semaphore, #tpu.memory_space<semaphore_mem>>
    tpu.wait_dma2 semaphore(%950 : memref<!tpu.dma_semaphore, #tpu.memory_space<semaphore_mem>>) src(%946 : memref<128xf32, #tpu.memory_space<any>>) dst(%948 : memref<128xf32, #tpu.memory_space<vmem>>)
    %c1_i32_665 = arith.constant 1 : i32
    %c5_i32_666 = arith.constant 5 : i32
    %c0_i32_667 = arith.constant 0 : i32
    %c0_i32_668 = arith.constant 0 : i32
    %951 = tpu.memref_slice %arg5[%184, %c0_i32_668] : memref<256x128xf32, #tpu.memory_space<any>> -> memref<1x128xf32, #tpu.memory_space<any>>
    %952 = tpu.memref_squeeze %951 : memref<1x128xf32, #tpu.memory_space<any>> -> memref<128xf32, #tpu.memory_space<any>>
    %c0_i32_669 = arith.constant 0 : i32
    %953 = tpu.memref_slice %arg9[%c1_i32_665, %c5_i32_666, %c0_i32_669] : memref<8x8x128xf32, #tpu.memory_space<vmem>> -> memref<1x1x128xf32, #tpu.memory_space<vmem>>
    %954 = tpu.memref_squeeze %953 : memref<1x1x128xf32, #tpu.memory_space<vmem>> -> memref<128xf32, #tpu.memory_space<vmem>>
    %955 = tpu.memref_slice %arg10[%c0_i32_667] : memref<1x!tpu.dma_semaphore, #tpu.memory_space<semaphore_mem>> -> memref<1x!tpu.dma_semaphore, #tpu.memory_space<semaphore_mem>>
    %956 = tpu.memref_squeeze %955 : memref<1x!tpu.dma_semaphore, #tpu.memory_space<semaphore_mem>> -> memref<!tpu.dma_semaphore, #tpu.memory_space<semaphore_mem>>
    tpu.wait_dma2 semaphore(%956 : memref<!tpu.dma_semaphore, #tpu.memory_space<semaphore_mem>>) src(%952 : memref<128xf32, #tpu.memory_space<any>>) dst(%954 : memref<128xf32, #tpu.memory_space<vmem>>)
    %c1_i32_670 = arith.constant 1 : i32
    %c6_i32_671 = arith.constant 6 : i32
    %c0_i32_672 = arith.constant 0 : i32
    %c0_i32_673 = arith.constant 0 : i32
    %957 = tpu.memref_slice %arg5[%195, %c0_i32_673] : memref<256x128xf32, #tpu.memory_space<any>> -> memref<1x128xf32, #tpu.memory_space<any>>
    %958 = tpu.memref_squeeze %957 : memref<1x128xf32, #tpu.memory_space<any>> -> memref<128xf32, #tpu.memory_space<any>>
    %c0_i32_674 = arith.constant 0 : i32
    %959 = tpu.memref_slice %arg9[%c1_i32_670, %c6_i32_671, %c0_i32_674] : memref<8x8x128xf32, #tpu.memory_space<vmem>> -> memref<1x1x128xf32, #tpu.memory_space<vmem>>
    %960 = tpu.memref_squeeze %959 : memref<1x1x128xf32, #tpu.memory_space<vmem>> -> memref<128xf32, #tpu.memory_space<vmem>>
    %961 = tpu.memref_slice %arg10[%c0_i32_672] : memref<1x!tpu.dma_semaphore, #tpu.memory_space<semaphore_mem>> -> memref<1x!tpu.dma_semaphore, #tpu.memory_space<semaphore_mem>>
    %962 = tpu.memref_squeeze %961 : memref<1x!tpu.dma_semaphore, #tpu.memory_space<semaphore_mem>> -> memref<!tpu.dma_semaphore, #tpu.memory_space<semaphore_mem>>
    tpu.wait_dma2 semaphore(%962 : memref<!tpu.dma_semaphore, #tpu.memory_space<semaphore_mem>>) src(%958 : memref<128xf32, #tpu.memory_space<any>>) dst(%960 : memref<128xf32, #tpu.memory_space<vmem>>)
    %c1_i32_675 = arith.constant 1 : i32
    %c7_i32_676 = arith.constant 7 : i32
    %c0_i32_677 = arith.constant 0 : i32
    %c0_i32_678 = arith.constant 0 : i32
    %963 = tpu.memref_slice %arg5[%206, %c0_i32_678] : memref<256x128xf32, #tpu.memory_space<any>> -> memref<1x128xf32, #tpu.memory_space<any>>
    %964 = tpu.memref_squeeze %963 : memref<1x128xf32, #tpu.memory_space<any>> -> memref<128xf32, #tpu.memory_space<any>>
    %c0_i32_679 = arith.constant 0 : i32
    %965 = tpu.memref_slice %arg9[%c1_i32_675, %c7_i32_676, %c0_i32_679] : memref<8x8x128xf32, #tpu.memory_space<vmem>> -> memref<1x1x128xf32, #tpu.memory_space<vmem>>
    %966 = tpu.memref_squeeze %965 : memref<1x1x128xf32, #tpu.memory_space<vmem>> -> memref<128xf32, #tpu.memory_space<vmem>>
    %967 = tpu.memref_slice %arg10[%c0_i32_677] : memref<1x!tpu.dma_semaphore, #tpu.memory_space<semaphore_mem>> -> memref<1x!tpu.dma_semaphore, #tpu.memory_space<semaphore_mem>>
    %968 = tpu.memref_squeeze %967 : memref<1x!tpu.dma_semaphore, #tpu.memory_space<semaphore_mem>> -> memref<!tpu.dma_semaphore, #tpu.memory_space<semaphore_mem>>
    tpu.wait_dma2 semaphore(%968 : memref<!tpu.dma_semaphore, #tpu.memory_space<semaphore_mem>>) src(%964 : memref<128xf32, #tpu.memory_space<any>>) dst(%966 : memref<128xf32, #tpu.memory_space<vmem>>)
    %c2_i32_680 = arith.constant 2 : i32
    %c0_i32_681 = arith.constant 0 : i32
    %c0_i32_682 = arith.constant 0 : i32
    %969 = tpu.memref_slice %arg4[%215, %c0_i32_682] : memref<256x128xf32, #tpu.memory_space<any>> -> memref<1x128xf32, #tpu.memory_space<any>>
    %970 = tpu.memref_squeeze %969 : memref<1x128xf32, #tpu.memory_space<any>> -> memref<128xf32, #tpu.memory_space<any>>
    %c0_i32_683 = arith.constant 0 : i32
    %971 = tpu.memref_slice %arg7[%c2_i32_680, %c0_i32_683] : memref<8x128xf32, #tpu.memory_space<vmem>> -> memref<1x128xf32, #tpu.memory_space<vmem>>
    %972 = tpu.memref_squeeze %971 : memref<1x128xf32, #tpu.memory_space<vmem>> -> memref<128xf32, #tpu.memory_space<vmem>>
    %973 = tpu.memref_slice %arg10[%c0_i32_681] : memref<1x!tpu.dma_semaphore, #tpu.memory_space<semaphore_mem>> -> memref<1x!tpu.dma_semaphore, #tpu.memory_space<semaphore_mem>>
    %974 = tpu.memref_squeeze %973 : memref<1x!tpu.dma_semaphore, #tpu.memory_space<semaphore_mem>> -> memref<!tpu.dma_semaphore, #tpu.memory_space<semaphore_mem>>
    tpu.wait_dma2 semaphore(%974 : memref<!tpu.dma_semaphore, #tpu.memory_space<semaphore_mem>>) src(%970 : memref<128xf32, #tpu.memory_space<any>>) dst(%972 : memref<128xf32, #tpu.memory_space<vmem>>)
    %c2_i32_684 = arith.constant 2 : i32
    %c0_i32_685 = arith.constant 0 : i32
    %c0_i32_686 = arith.constant 0 : i32
    %975 = tpu.memref_slice %arg5[%218, %c0_i32_686] : memref<256x128xf32, #tpu.memory_space<any>> -> memref<1x128xf32, #tpu.memory_space<any>>
    %976 = tpu.memref_squeeze %975 : memref<1x128xf32, #tpu.memory_space<any>> -> memref<128xf32, #tpu.memory_space<any>>
    %c0_i32_687 = arith.constant 0 : i32
    %977 = tpu.memref_slice %arg8[%c2_i32_684, %c0_i32_687] : memref<8x128xf32, #tpu.memory_space<vmem>> -> memref<1x128xf32, #tpu.memory_space<vmem>>
    %978 = tpu.memref_squeeze %977 : memref<1x128xf32, #tpu.memory_space<vmem>> -> memref<128xf32, #tpu.memory_space<vmem>>
    %979 = tpu.memref_slice %arg10[%c0_i32_685] : memref<1x!tpu.dma_semaphore, #tpu.memory_space<semaphore_mem>> -> memref<1x!tpu.dma_semaphore, #tpu.memory_space<semaphore_mem>>
    %980 = tpu.memref_squeeze %979 : memref<1x!tpu.dma_semaphore, #tpu.memory_space<semaphore_mem>> -> memref<!tpu.dma_semaphore, #tpu.memory_space<semaphore_mem>>
    tpu.wait_dma2 semaphore(%980 : memref<!tpu.dma_semaphore, #tpu.memory_space<semaphore_mem>>) src(%976 : memref<128xf32, #tpu.memory_space<any>>) dst(%978 : memref<128xf32, #tpu.memory_space<vmem>>)
    %c2_i32_688 = arith.constant 2 : i32
    %c0_i32_689 = arith.constant 0 : i32
    %c0_i32_690 = arith.constant 0 : i32
    %c0_i32_691 = arith.constant 0 : i32
    %981 = tpu.memref_slice %arg5[%235, %c0_i32_691] : memref<256x128xf32, #tpu.memory_space<any>> -> memref<1x128xf32, #tpu.memory_space<any>>
    %982 = tpu.memref_squeeze %981 : memref<1x128xf32, #tpu.memory_space<any>> -> memref<128xf32, #tpu.memory_space<any>>
    %c0_i32_692 = arith.constant 0 : i32
    %983 = tpu.memref_slice %arg9[%c2_i32_688, %c0_i32_689, %c0_i32_692] : memref<8x8x128xf32, #tpu.memory_space<vmem>> -> memref<1x1x128xf32, #tpu.memory_space<vmem>>
    %984 = tpu.memref_squeeze %983 : memref<1x1x128xf32, #tpu.memory_space<vmem>> -> memref<128xf32, #tpu.memory_space<vmem>>
    %985 = tpu.memref_slice %arg10[%c0_i32_690] : memref<1x!tpu.dma_semaphore, #tpu.memory_space<semaphore_mem>> -> memref<1x!tpu.dma_semaphore, #tpu.memory_space<semaphore_mem>>
    %986 = tpu.memref_squeeze %985 : memref<1x!tpu.dma_semaphore, #tpu.memory_space<semaphore_mem>> -> memref<!tpu.dma_semaphore, #tpu.memory_space<semaphore_mem>>
    tpu.wait_dma2 semaphore(%986 : memref<!tpu.dma_semaphore, #tpu.memory_space<semaphore_mem>>) src(%982 : memref<128xf32, #tpu.memory_space<any>>) dst(%984 : memref<128xf32, #tpu.memory_space<vmem>>)
    %c2_i32_693 = arith.constant 2 : i32
    %c1_i32_694 = arith.constant 1 : i32
    %c0_i32_695 = arith.constant 0 : i32
    %c0_i32_696 = arith.constant 0 : i32
    %987 = tpu.memref_slice %arg5[%246, %c0_i32_696] : memref<256x128xf32, #tpu.memory_space<any>> -> memref<1x128xf32, #tpu.memory_space<any>>
    %988 = tpu.memref_squeeze %987 : memref<1x128xf32, #tpu.memory_space<any>> -> memref<128xf32, #tpu.memory_space<any>>
    %c0_i32_697 = arith.constant 0 : i32
    %989 = tpu.memref_slice %arg9[%c2_i32_693, %c1_i32_694, %c0_i32_697] : memref<8x8x128xf32, #tpu.memory_space<vmem>> -> memref<1x1x128xf32, #tpu.memory_space<vmem>>
    %990 = tpu.memref_squeeze %989 : memref<1x1x128xf32, #tpu.memory_space<vmem>> -> memref<128xf32, #tpu.memory_space<vmem>>
    %991 = tpu.memref_slice %arg10[%c0_i32_695] : memref<1x!tpu.dma_semaphore, #tpu.memory_space<semaphore_mem>> -> memref<1x!tpu.dma_semaphore, #tpu.memory_space<semaphore_mem>>
    %992 = tpu.memref_squeeze %991 : memref<1x!tpu.dma_semaphore, #tpu.memory_space<semaphore_mem>> -> memref<!tpu.dma_semaphore, #tpu.memory_space<semaphore_mem>>
    tpu.wait_dma2 semaphore(%992 : memref<!tpu.dma_semaphore, #tpu.memory_space<semaphore_mem>>) src(%988 : memref<128xf32, #tpu.memory_space<any>>) dst(%990 : memref<128xf32, #tpu.memory_space<vmem>>)
    %c2_i32_698 = arith.constant 2 : i32
    %c2_i32_699 = arith.constant 2 : i32
    %c0_i32_700 = arith.constant 0 : i32
    %c0_i32_701 = arith.constant 0 : i32
    %993 = tpu.memref_slice %arg5[%257, %c0_i32_701] : memref<256x128xf32, #tpu.memory_space<any>> -> memref<1x128xf32, #tpu.memory_space<any>>
    %994 = tpu.memref_squeeze %993 : memref<1x128xf32, #tpu.memory_space<any>> -> memref<128xf32, #tpu.memory_space<any>>
    %c0_i32_702 = arith.constant 0 : i32
    %995 = tpu.memref_slice %arg9[%c2_i32_698, %c2_i32_699, %c0_i32_702] : memref<8x8x128xf32, #tpu.memory_space<vmem>> -> memref<1x1x128xf32, #tpu.memory_space<vmem>>
    %996 = tpu.memref_squeeze %995 : memref<1x1x128xf32, #tpu.memory_space<vmem>> -> memref<128xf32, #tpu.memory_space<vmem>>
    %997 = tpu.memref_slice %arg10[%c0_i32_700] : memref<1x!tpu.dma_semaphore, #tpu.memory_space<semaphore_mem>> -> memref<1x!tpu.dma_semaphore, #tpu.memory_space<semaphore_mem>>
    %998 = tpu.memref_squeeze %997 : memref<1x!tpu.dma_semaphore, #tpu.memory_space<semaphore_mem>> -> memref<!tpu.dma_semaphore, #tpu.memory_space<semaphore_mem>>
    tpu.wait_dma2 semaphore(%998 : memref<!tpu.dma_semaphore, #tpu.memory_space<semaphore_mem>>) src(%994 : memref<128xf32, #tpu.memory_space<any>>) dst(%996 : memref<128xf32, #tpu.memory_space<vmem>>)
    %c2_i32_703 = arith.constant 2 : i32
    %c3_i32_704 = arith.constant 3 : i32
    %c0_i32_705 = arith.constant 0 : i32
    %c0_i32_706 = arith.constant 0 : i32
    %999 = tpu.memref_slice %arg5[%268, %c0_i32_706] : memref<256x128xf32, #tpu.memory_space<any>> -> memref<1x128xf32, #tpu.memory_space<any>>
    %1000 = tpu.memref_squeeze %999 : memref<1x128xf32, #tpu.memory_space<any>> -> memref<128xf32, #tpu.memory_space<any>>
    %c0_i32_707 = arith.constant 0 : i32
    %1001 = tpu.memref_slice %arg9[%c2_i32_703, %c3_i32_704, %c0_i32_707] : memref<8x8x128xf32, #tpu.memory_space<vmem>> -> memref<1x1x128xf32, #tpu.memory_space<vmem>>
    %1002 = tpu.memref_squeeze %1001 : memref<1x1x128xf32, #tpu.memory_space<vmem>> -> memref<128xf32, #tpu.memory_space<vmem>>
    %1003 = tpu.memref_slice %arg10[%c0_i32_705] : memref<1x!tpu.dma_semaphore, #tpu.memory_space<semaphore_mem>> -> memref<1x!tpu.dma_semaphore, #tpu.memory_space<semaphore_mem>>
    %1004 = tpu.memref_squeeze %1003 : memref<1x!tpu.dma_semaphore, #tpu.memory_space<semaphore_mem>> -> memref<!tpu.dma_semaphore, #tpu.memory_space<semaphore_mem>>
    tpu.wait_dma2 semaphore(%1004 : memref<!tpu.dma_semaphore, #tpu.memory_space<semaphore_mem>>) src(%1000 : memref<128xf32, #tpu.memory_space<any>>) dst(%1002 : memref<128xf32, #tpu.memory_space<vmem>>)
    %c2_i32_708 = arith.constant 2 : i32
    %c4_i32_709 = arith.constant 4 : i32
    %c0_i32_710 = arith.constant 0 : i32
    %c0_i32_711 = arith.constant 0 : i32
    %1005 = tpu.memref_slice %arg5[%279, %c0_i32_711] : memref<256x128xf32, #tpu.memory_space<any>> -> memref<1x128xf32, #tpu.memory_space<any>>
    %1006 = tpu.memref_squeeze %1005 : memref<1x128xf32, #tpu.memory_space<any>> -> memref<128xf32, #tpu.memory_space<any>>
    %c0_i32_712 = arith.constant 0 : i32
    %1007 = tpu.memref_slice %arg9[%c2_i32_708, %c4_i32_709, %c0_i32_712] : memref<8x8x128xf32, #tpu.memory_space<vmem>> -> memref<1x1x128xf32, #tpu.memory_space<vmem>>
    %1008 = tpu.memref_squeeze %1007 : memref<1x1x128xf32, #tpu.memory_space<vmem>> -> memref<128xf32, #tpu.memory_space<vmem>>
    %1009 = tpu.memref_slice %arg10[%c0_i32_710] : memref<1x!tpu.dma_semaphore, #tpu.memory_space<semaphore_mem>> -> memref<1x!tpu.dma_semaphore, #tpu.memory_space<semaphore_mem>>
    %1010 = tpu.memref_squeeze %1009 : memref<1x!tpu.dma_semaphore, #tpu.memory_space<semaphore_mem>> -> memref<!tpu.dma_semaphore, #tpu.memory_space<semaphore_mem>>
    tpu.wait_dma2 semaphore(%1010 : memref<!tpu.dma_semaphore, #tpu.memory_space<semaphore_mem>>) src(%1006 : memref<128xf32, #tpu.memory_space<any>>) dst(%1008 : memref<128xf32, #tpu.memory_space<vmem>>)
    %c2_i32_713 = arith.constant 2 : i32
    %c5_i32_714 = arith.constant 5 : i32
    %c0_i32_715 = arith.constant 0 : i32
    %c0_i32_716 = arith.constant 0 : i32
    %1011 = tpu.memref_slice %arg5[%290, %c0_i32_716] : memref<256x128xf32, #tpu.memory_space<any>> -> memref<1x128xf32, #tpu.memory_space<any>>
    %1012 = tpu.memref_squeeze %1011 : memref<1x128xf32, #tpu.memory_space<any>> -> memref<128xf32, #tpu.memory_space<any>>
    %c0_i32_717 = arith.constant 0 : i32
    %1013 = tpu.memref_slice %arg9[%c2_i32_713, %c5_i32_714, %c0_i32_717] : memref<8x8x128xf32, #tpu.memory_space<vmem>> -> memref<1x1x128xf32, #tpu.memory_space<vmem>>
    %1014 = tpu.memref_squeeze %1013 : memref<1x1x128xf32, #tpu.memory_space<vmem>> -> memref<128xf32, #tpu.memory_space<vmem>>
    %1015 = tpu.memref_slice %arg10[%c0_i32_715] : memref<1x!tpu.dma_semaphore, #tpu.memory_space<semaphore_mem>> -> memref<1x!tpu.dma_semaphore, #tpu.memory_space<semaphore_mem>>
    %1016 = tpu.memref_squeeze %1015 : memref<1x!tpu.dma_semaphore, #tpu.memory_space<semaphore_mem>> -> memref<!tpu.dma_semaphore, #tpu.memory_space<semaphore_mem>>
    tpu.wait_dma2 semaphore(%1016 : memref<!tpu.dma_semaphore, #tpu.memory_space<semaphore_mem>>) src(%1012 : memref<128xf32, #tpu.memory_space<any>>) dst(%1014 : memref<128xf32, #tpu.memory_space<vmem>>)
    %c2_i32_718 = arith.constant 2 : i32
    %c6_i32_719 = arith.constant 6 : i32
    %c0_i32_720 = arith.constant 0 : i32
    %c0_i32_721 = arith.constant 0 : i32
    %1017 = tpu.memref_slice %arg5[%301, %c0_i32_721] : memref<256x128xf32, #tpu.memory_space<any>> -> memref<1x128xf32, #tpu.memory_space<any>>
    %1018 = tpu.memref_squeeze %1017 : memref<1x128xf32, #tpu.memory_space<any>> -> memref<128xf32, #tpu.memory_space<any>>
    %c0_i32_722 = arith.constant 0 : i32
    %1019 = tpu.memref_slice %arg9[%c2_i32_718, %c6_i32_719, %c0_i32_722] : memref<8x8x128xf32, #tpu.memory_space<vmem>> -> memref<1x1x128xf32, #tpu.memory_space<vmem>>
    %1020 = tpu.memref_squeeze %1019 : memref<1x1x128xf32, #tpu.memory_space<vmem>> -> memref<128xf32, #tpu.memory_space<vmem>>
    %1021 = tpu.memref_slice %arg10[%c0_i32_720] : memref<1x!tpu.dma_semaphore, #tpu.memory_space<semaphore_mem>> -> memref<1x!tpu.dma_semaphore, #tpu.memory_space<semaphore_mem>>
    %1022 = tpu.memref_squeeze %1021 : memref<1x!tpu.dma_semaphore, #tpu.memory_space<semaphore_mem>> -> memref<!tpu.dma_semaphore, #tpu.memory_space<semaphore_mem>>
    tpu.wait_dma2 semaphore(%1022 : memref<!tpu.dma_semaphore, #tpu.memory_space<semaphore_mem>>) src(%1018 : memref<128xf32, #tpu.memory_space<any>>) dst(%1020 : memref<128xf32, #tpu.memory_space<vmem>>)
    %c2_i32_723 = arith.constant 2 : i32
    %c7_i32_724 = arith.constant 7 : i32
    %c0_i32_725 = arith.constant 0 : i32
    %c0_i32_726 = arith.constant 0 : i32
    %1023 = tpu.memref_slice %arg5[%312, %c0_i32_726] : memref<256x128xf32, #tpu.memory_space<any>> -> memref<1x128xf32, #tpu.memory_space<any>>
    %1024 = tpu.memref_squeeze %1023 : memref<1x128xf32, #tpu.memory_space<any>> -> memref<128xf32, #tpu.memory_space<any>>
    %c0_i32_727 = arith.constant 0 : i32
    %1025 = tpu.memref_slice %arg9[%c2_i32_723, %c7_i32_724, %c0_i32_727] : memref<8x8x128xf32, #tpu.memory_space<vmem>> -> memref<1x1x128xf32, #tpu.memory_space<vmem>>
    %1026 = tpu.memref_squeeze %1025 : memref<1x1x128xf32, #tpu.memory_space<vmem>> -> memref<128xf32, #tpu.memory_space<vmem>>
    %1027 = tpu.memref_slice %arg10[%c0_i32_725] : memref<1x!tpu.dma_semaphore, #tpu.memory_space<semaphore_mem>> -> memref<1x!tpu.dma_semaphore, #tpu.memory_space<semaphore_mem>>
    %1028 = tpu.memref_squeeze %1027 : memref<1x!tpu.dma_semaphore, #tpu.memory_space<semaphore_mem>> -> memref<!tpu.dma_semaphore, #tpu.memory_space<semaphore_mem>>
    tpu.wait_dma2 semaphore(%1028 : memref<!tpu.dma_semaphore, #tpu.memory_space<semaphore_mem>>) src(%1024 : memref<128xf32, #tpu.memory_space<any>>) dst(%1026 : memref<128xf32, #tpu.memory_space<vmem>>)
    %c3_i32_728 = arith.constant 3 : i32
    %c0_i32_729 = arith.constant 0 : i32
    %c0_i32_730 = arith.constant 0 : i32
    %1029 = tpu.memref_slice %arg4[%321, %c0_i32_730] : memref<256x128xf32, #tpu.memory_space<any>> -> memref<1x128xf32, #tpu.memory_space<any>>
    %1030 = tpu.memref_squeeze %1029 : memref<1x128xf32, #tpu.memory_space<any>> -> memref<128xf32, #tpu.memory_space<any>>
    %c0_i32_731 = arith.constant 0 : i32
    %1031 = tpu.memref_slice %arg7[%c3_i32_728, %c0_i32_731] : memref<8x128xf32, #tpu.memory_space<vmem>> -> memref<1x128xf32, #tpu.memory_space<vmem>>
    %1032 = tpu.memref_squeeze %1031 : memref<1x128xf32, #tpu.memory_space<vmem>> -> memref<128xf32, #tpu.memory_space<vmem>>
    %1033 = tpu.memref_slice %arg10[%c0_i32_729] : memref<1x!tpu.dma_semaphore, #tpu.memory_space<semaphore_mem>> -> memref<1x!tpu.dma_semaphore, #tpu.memory_space<semaphore_mem>>
    %1034 = tpu.memref_squeeze %1033 : memref<1x!tpu.dma_semaphore, #tpu.memory_space<semaphore_mem>> -> memref<!tpu.dma_semaphore, #tpu.memory_space<semaphore_mem>>
    tpu.wait_dma2 semaphore(%1034 : memref<!tpu.dma_semaphore, #tpu.memory_space<semaphore_mem>>) src(%1030 : memref<128xf32, #tpu.memory_space<any>>) dst(%1032 : memref<128xf32, #tpu.memory_space<vmem>>)
    %c3_i32_732 = arith.constant 3 : i32
    %c0_i32_733 = arith.constant 0 : i32
    %c0_i32_734 = arith.constant 0 : i32
    %1035 = tpu.memref_slice %arg5[%324, %c0_i32_734] : memref<256x128xf32, #tpu.memory_space<any>> -> memref<1x128xf32, #tpu.memory_space<any>>
    %1036 = tpu.memref_squeeze %1035 : memref<1x128xf32, #tpu.memory_space<any>> -> memref<128xf32, #tpu.memory_space<any>>
    %c0_i32_735 = arith.constant 0 : i32
    %1037 = tpu.memref_slice %arg8[%c3_i32_732, %c0_i32_735] : memref<8x128xf32, #tpu.memory_space<vmem>> -> memref<1x128xf32, #tpu.memory_space<vmem>>
    %1038 = tpu.memref_squeeze %1037 : memref<1x128xf32, #tpu.memory_space<vmem>> -> memref<128xf32, #tpu.memory_space<vmem>>
    %1039 = tpu.memref_slice %arg10[%c0_i32_733] : memref<1x!tpu.dma_semaphore, #tpu.memory_space<semaphore_mem>> -> memref<1x!tpu.dma_semaphore, #tpu.memory_space<semaphore_mem>>
    %1040 = tpu.memref_squeeze %1039 : memref<1x!tpu.dma_semaphore, #tpu.memory_space<semaphore_mem>> -> memref<!tpu.dma_semaphore, #tpu.memory_space<semaphore_mem>>
    tpu.wait_dma2 semaphore(%1040 : memref<!tpu.dma_semaphore, #tpu.memory_space<semaphore_mem>>) src(%1036 : memref<128xf32, #tpu.memory_space<any>>) dst(%1038 : memref<128xf32, #tpu.memory_space<vmem>>)
    %c3_i32_736 = arith.constant 3 : i32
    %c0_i32_737 = arith.constant 0 : i32
    %c0_i32_738 = arith.constant 0 : i32
    %c0_i32_739 = arith.constant 0 : i32
    %1041 = tpu.memref_slice %arg5[%341, %c0_i32_739] : memref<256x128xf32, #tpu.memory_space<any>> -> memref<1x128xf32, #tpu.memory_space<any>>
    %1042 = tpu.memref_squeeze %1041 : memref<1x128xf32, #tpu.memory_space<any>> -> memref<128xf32, #tpu.memory_space<any>>
    %c0_i32_740 = arith.constant 0 : i32
    %1043 = tpu.memref_slice %arg9[%c3_i32_736, %c0_i32_737, %c0_i32_740] : memref<8x8x128xf32, #tpu.memory_space<vmem>> -> memref<1x1x128xf32, #tpu.memory_space<vmem>>
    %1044 = tpu.memref_squeeze %1043 : memref<1x1x128xf32, #tpu.memory_space<vmem>> -> memref<128xf32, #tpu.memory_space<vmem>>
    %1045 = tpu.memref_slice %arg10[%c0_i32_738] : memref<1x!tpu.dma_semaphore, #tpu.memory_space<semaphore_mem>> -> memref<1x!tpu.dma_semaphore, #tpu.memory_space<semaphore_mem>>
    %1046 = tpu.memref_squeeze %1045 : memref<1x!tpu.dma_semaphore, #tpu.memory_space<semaphore_mem>> -> memref<!tpu.dma_semaphore, #tpu.memory_space<semaphore_mem>>
    tpu.wait_dma2 semaphore(%1046 : memref<!tpu.dma_semaphore, #tpu.memory_space<semaphore_mem>>) src(%1042 : memref<128xf32, #tpu.memory_space<any>>) dst(%1044 : memref<128xf32, #tpu.memory_space<vmem>>)
    %c3_i32_741 = arith.constant 3 : i32
    %c1_i32_742 = arith.constant 1 : i32
    %c0_i32_743 = arith.constant 0 : i32
    %c0_i32_744 = arith.constant 0 : i32
    %1047 = tpu.memref_slice %arg5[%352, %c0_i32_744] : memref<256x128xf32, #tpu.memory_space<any>> -> memref<1x128xf32, #tpu.memory_space<any>>
    %1048 = tpu.memref_squeeze %1047 : memref<1x128xf32, #tpu.memory_space<any>> -> memref<128xf32, #tpu.memory_space<any>>
    %c0_i32_745 = arith.constant 0 : i32
    %1049 = tpu.memref_slice %arg9[%c3_i32_741, %c1_i32_742, %c0_i32_745] : memref<8x8x128xf32, #tpu.memory_space<vmem>> -> memref<1x1x128xf32, #tpu.memory_space<vmem>>
    %1050 = tpu.memref_squeeze %1049 : memref<1x1x128xf32, #tpu.memory_space<vmem>> -> memref<128xf32, #tpu.memory_space<vmem>>
    %1051 = tpu.memref_slice %arg10[%c0_i32_743] : memref<1x!tpu.dma_semaphore, #tpu.memory_space<semaphore_mem>> -> memref<1x!tpu.dma_semaphore, #tpu.memory_space<semaphore_mem>>
    %1052 = tpu.memref_squeeze %1051 : memref<1x!tpu.dma_semaphore, #tpu.memory_space<semaphore_mem>> -> memref<!tpu.dma_semaphore, #tpu.memory_space<semaphore_mem>>
    tpu.wait_dma2 semaphore(%1052 : memref<!tpu.dma_semaphore, #tpu.memory_space<semaphore_mem>>) src(%1048 : memref<128xf32, #tpu.memory_space<any>>) dst(%1050 : memref<128xf32, #tpu.memory_space<vmem>>)
    %c3_i32_746 = arith.constant 3 : i32
    %c2_i32_747 = arith.constant 2 : i32
    %c0_i32_748 = arith.constant 0 : i32
    %c0_i32_749 = arith.constant 0 : i32
    %1053 = tpu.memref_slice %arg5[%363, %c0_i32_749] : memref<256x128xf32, #tpu.memory_space<any>> -> memref<1x128xf32, #tpu.memory_space<any>>
    %1054 = tpu.memref_squeeze %1053 : memref<1x128xf32, #tpu.memory_space<any>> -> memref<128xf32, #tpu.memory_space<any>>
    %c0_i32_750 = arith.constant 0 : i32
    %1055 = tpu.memref_slice %arg9[%c3_i32_746, %c2_i32_747, %c0_i32_750] : memref<8x8x128xf32, #tpu.memory_space<vmem>> -> memref<1x1x128xf32, #tpu.memory_space<vmem>>
    %1056 = tpu.memref_squeeze %1055 : memref<1x1x128xf32, #tpu.memory_space<vmem>> -> memref<128xf32, #tpu.memory_space<vmem>>
    %1057 = tpu.memref_slice %arg10[%c0_i32_748] : memref<1x!tpu.dma_semaphore, #tpu.memory_space<semaphore_mem>> -> memref<1x!tpu.dma_semaphore, #tpu.memory_space<semaphore_mem>>
    %1058 = tpu.memref_squeeze %1057 : memref<1x!tpu.dma_semaphore, #tpu.memory_space<semaphore_mem>> -> memref<!tpu.dma_semaphore, #tpu.memory_space<semaphore_mem>>
    tpu.wait_dma2 semaphore(%1058 : memref<!tpu.dma_semaphore, #tpu.memory_space<semaphore_mem>>) src(%1054 : memref<128xf32, #tpu.memory_space<any>>) dst(%1056 : memref<128xf32, #tpu.memory_space<vmem>>)
    %c3_i32_751 = arith.constant 3 : i32
    %c3_i32_752 = arith.constant 3 : i32
    %c0_i32_753 = arith.constant 0 : i32
    %c0_i32_754 = arith.constant 0 : i32
    %1059 = tpu.memref_slice %arg5[%374, %c0_i32_754] : memref<256x128xf32, #tpu.memory_space<any>> -> memref<1x128xf32, #tpu.memory_space<any>>
    %1060 = tpu.memref_squeeze %1059 : memref<1x128xf32, #tpu.memory_space<any>> -> memref<128xf32, #tpu.memory_space<any>>
    %c0_i32_755 = arith.constant 0 : i32
    %1061 = tpu.memref_slice %arg9[%c3_i32_751, %c3_i32_752, %c0_i32_755] : memref<8x8x128xf32, #tpu.memory_space<vmem>> -> memref<1x1x128xf32, #tpu.memory_space<vmem>>
    %1062 = tpu.memref_squeeze %1061 : memref<1x1x128xf32, #tpu.memory_space<vmem>> -> memref<128xf32, #tpu.memory_space<vmem>>
    %1063 = tpu.memref_slice %arg10[%c0_i32_753] : memref<1x!tpu.dma_semaphore, #tpu.memory_space<semaphore_mem>> -> memref<1x!tpu.dma_semaphore, #tpu.memory_space<semaphore_mem>>
    %1064 = tpu.memref_squeeze %1063 : memref<1x!tpu.dma_semaphore, #tpu.memory_space<semaphore_mem>> -> memref<!tpu.dma_semaphore, #tpu.memory_space<semaphore_mem>>
    tpu.wait_dma2 semaphore(%1064 : memref<!tpu.dma_semaphore, #tpu.memory_space<semaphore_mem>>) src(%1060 : memref<128xf32, #tpu.memory_space<any>>) dst(%1062 : memref<128xf32, #tpu.memory_space<vmem>>)
    %c3_i32_756 = arith.constant 3 : i32
    %c4_i32_757 = arith.constant 4 : i32
    %c0_i32_758 = arith.constant 0 : i32
    %c0_i32_759 = arith.constant 0 : i32
    %1065 = tpu.memref_slice %arg5[%385, %c0_i32_759] : memref<256x128xf32, #tpu.memory_space<any>> -> memref<1x128xf32, #tpu.memory_space<any>>
    %1066 = tpu.memref_squeeze %1065 : memref<1x128xf32, #tpu.memory_space<any>> -> memref<128xf32, #tpu.memory_space<any>>
    %c0_i32_760 = arith.constant 0 : i32
    %1067 = tpu.memref_slice %arg9[%c3_i32_756, %c4_i32_757, %c0_i32_760] : memref<8x8x128xf32, #tpu.memory_space<vmem>> -> memref<1x1x128xf32, #tpu.memory_space<vmem>>
    %1068 = tpu.memref_squeeze %1067 : memref<1x1x128xf32, #tpu.memory_space<vmem>> -> memref<128xf32, #tpu.memory_space<vmem>>
    %1069 = tpu.memref_slice %arg10[%c0_i32_758] : memref<1x!tpu.dma_semaphore, #tpu.memory_space<semaphore_mem>> -> memref<1x!tpu.dma_semaphore, #tpu.memory_space<semaphore_mem>>
    %1070 = tpu.memref_squeeze %1069 : memref<1x!tpu.dma_semaphore, #tpu.memory_space<semaphore_mem>> -> memref<!tpu.dma_semaphore, #tpu.memory_space<semaphore_mem>>
    tpu.wait_dma2 semaphore(%1070 : memref<!tpu.dma_semaphore, #tpu.memory_space<semaphore_mem>>) src(%1066 : memref<128xf32, #tpu.memory_space<any>>) dst(%1068 : memref<128xf32, #tpu.memory_space<vmem>>)
    %c3_i32_761 = arith.constant 3 : i32
    %c5_i32_762 = arith.constant 5 : i32
    %c0_i32_763 = arith.constant 0 : i32
    %c0_i32_764 = arith.constant 0 : i32
    %1071 = tpu.memref_slice %arg5[%396, %c0_i32_764] : memref<256x128xf32, #tpu.memory_space<any>> -> memref<1x128xf32, #tpu.memory_space<any>>
    %1072 = tpu.memref_squeeze %1071 : memref<1x128xf32, #tpu.memory_space<any>> -> memref<128xf32, #tpu.memory_space<any>>
    %c0_i32_765 = arith.constant 0 : i32
    %1073 = tpu.memref_slice %arg9[%c3_i32_761, %c5_i32_762, %c0_i32_765] : memref<8x8x128xf32, #tpu.memory_space<vmem>> -> memref<1x1x128xf32, #tpu.memory_space<vmem>>
    %1074 = tpu.memref_squeeze %1073 : memref<1x1x128xf32, #tpu.memory_space<vmem>> -> memref<128xf32, #tpu.memory_space<vmem>>
    %1075 = tpu.memref_slice %arg10[%c0_i32_763] : memref<1x!tpu.dma_semaphore, #tpu.memory_space<semaphore_mem>> -> memref<1x!tpu.dma_semaphore, #tpu.memory_space<semaphore_mem>>
    %1076 = tpu.memref_squeeze %1075 : memref<1x!tpu.dma_semaphore, #tpu.memory_space<semaphore_mem>> -> memref<!tpu.dma_semaphore, #tpu.memory_space<semaphore_mem>>
    tpu.wait_dma2 semaphore(%1076 : memref<!tpu.dma_semaphore, #tpu.memory_space<semaphore_mem>>) src(%1072 : memref<128xf32, #tpu.memory_space<any>>) dst(%1074 : memref<128xf32, #tpu.memory_space<vmem>>)
    %c3_i32_766 = arith.constant 3 : i32
    %c6_i32_767 = arith.constant 6 : i32
    %c0_i32_768 = arith.constant 0 : i32
    %c0_i32_769 = arith.constant 0 : i32
    %1077 = tpu.memref_slice %arg5[%407, %c0_i32_769] : memref<256x128xf32, #tpu.memory_space<any>> -> memref<1x128xf32, #tpu.memory_space<any>>
    %1078 = tpu.memref_squeeze %1077 : memref<1x128xf32, #tpu.memory_space<any>> -> memref<128xf32, #tpu.memory_space<any>>
    %c0_i32_770 = arith.constant 0 : i32
    %1079 = tpu.memref_slice %arg9[%c3_i32_766, %c6_i32_767, %c0_i32_770] : memref<8x8x128xf32, #tpu.memory_space<vmem>> -> memref<1x1x128xf32, #tpu.memory_space<vmem>>
    %1080 = tpu.memref_squeeze %1079 : memref<1x1x128xf32, #tpu.memory_space<vmem>> -> memref<128xf32, #tpu.memory_space<vmem>>
    %1081 = tpu.memref_slice %arg10[%c0_i32_768] : memref<1x!tpu.dma_semaphore, #tpu.memory_space<semaphore_mem>> -> memref<1x!tpu.dma_semaphore, #tpu.memory_space<semaphore_mem>>
    %1082 = tpu.memref_squeeze %1081 : memref<1x!tpu.dma_semaphore, #tpu.memory_space<semaphore_mem>> -> memref<!tpu.dma_semaphore, #tpu.memory_space<semaphore_mem>>
    tpu.wait_dma2 semaphore(%1082 : memref<!tpu.dma_semaphore, #tpu.memory_space<semaphore_mem>>) src(%1078 : memref<128xf32, #tpu.memory_space<any>>) dst(%1080 : memref<128xf32, #tpu.memory_space<vmem>>)
    %c3_i32_771 = arith.constant 3 : i32
    %c7_i32_772 = arith.constant 7 : i32
    %c0_i32_773 = arith.constant 0 : i32
    %c0_i32_774 = arith.constant 0 : i32
    %1083 = tpu.memref_slice %arg5[%418, %c0_i32_774] : memref<256x128xf32, #tpu.memory_space<any>> -> memref<1x128xf32, #tpu.memory_space<any>>
    %1084 = tpu.memref_squeeze %1083 : memref<1x128xf32, #tpu.memory_space<any>> -> memref<128xf32, #tpu.memory_space<any>>
    %c0_i32_775 = arith.constant 0 : i32
    %1085 = tpu.memref_slice %arg9[%c3_i32_771, %c7_i32_772, %c0_i32_775] : memref<8x8x128xf32, #tpu.memory_space<vmem>> -> memref<1x1x128xf32, #tpu.memory_space<vmem>>
    %1086 = tpu.memref_squeeze %1085 : memref<1x1x128xf32, #tpu.memory_space<vmem>> -> memref<128xf32, #tpu.memory_space<vmem>>
    %1087 = tpu.memref_slice %arg10[%c0_i32_773] : memref<1x!tpu.dma_semaphore, #tpu.memory_space<semaphore_mem>> -> memref<1x!tpu.dma_semaphore, #tpu.memory_space<semaphore_mem>>
    %1088 = tpu.memref_squeeze %1087 : memref<1x!tpu.dma_semaphore, #tpu.memory_space<semaphore_mem>> -> memref<!tpu.dma_semaphore, #tpu.memory_space<semaphore_mem>>
    tpu.wait_dma2 semaphore(%1088 : memref<!tpu.dma_semaphore, #tpu.memory_space<semaphore_mem>>) src(%1084 : memref<128xf32, #tpu.memory_space<any>>) dst(%1086 : memref<128xf32, #tpu.memory_space<vmem>>)
    %c4_i32_776 = arith.constant 4 : i32
    %c0_i32_777 = arith.constant 0 : i32
    %c0_i32_778 = arith.constant 0 : i32
    %1089 = tpu.memref_slice %arg4[%427, %c0_i32_778] : memref<256x128xf32, #tpu.memory_space<any>> -> memref<1x128xf32, #tpu.memory_space<any>>
    %1090 = tpu.memref_squeeze %1089 : memref<1x128xf32, #tpu.memory_space<any>> -> memref<128xf32, #tpu.memory_space<any>>
    %c0_i32_779 = arith.constant 0 : i32
    %1091 = tpu.memref_slice %arg7[%c4_i32_776, %c0_i32_779] : memref<8x128xf32, #tpu.memory_space<vmem>> -> memref<1x128xf32, #tpu.memory_space<vmem>>
    %1092 = tpu.memref_squeeze %1091 : memref<1x128xf32, #tpu.memory_space<vmem>> -> memref<128xf32, #tpu.memory_space<vmem>>
    %1093 = tpu.memref_slice %arg10[%c0_i32_777] : memref<1x!tpu.dma_semaphore, #tpu.memory_space<semaphore_mem>> -> memref<1x!tpu.dma_semaphore, #tpu.memory_space<semaphore_mem>>
    %1094 = tpu.memref_squeeze %1093 : memref<1x!tpu.dma_semaphore, #tpu.memory_space<semaphore_mem>> -> memref<!tpu.dma_semaphore, #tpu.memory_space<semaphore_mem>>
    tpu.wait_dma2 semaphore(%1094 : memref<!tpu.dma_semaphore, #tpu.memory_space<semaphore_mem>>) src(%1090 : memref<128xf32, #tpu.memory_space<any>>) dst(%1092 : memref<128xf32, #tpu.memory_space<vmem>>)
    %c4_i32_780 = arith.constant 4 : i32
    %c0_i32_781 = arith.constant 0 : i32
    %c0_i32_782 = arith.constant 0 : i32
    %1095 = tpu.memref_slice %arg5[%430, %c0_i32_782] : memref<256x128xf32, #tpu.memory_space<any>> -> memref<1x128xf32, #tpu.memory_space<any>>
    %1096 = tpu.memref_squeeze %1095 : memref<1x128xf32, #tpu.memory_space<any>> -> memref<128xf32, #tpu.memory_space<any>>
    %c0_i32_783 = arith.constant 0 : i32
    %1097 = tpu.memref_slice %arg8[%c4_i32_780, %c0_i32_783] : memref<8x128xf32, #tpu.memory_space<vmem>> -> memref<1x128xf32, #tpu.memory_space<vmem>>
    %1098 = tpu.memref_squeeze %1097 : memref<1x128xf32, #tpu.memory_space<vmem>> -> memref<128xf32, #tpu.memory_space<vmem>>
    %1099 = tpu.memref_slice %arg10[%c0_i32_781] : memref<1x!tpu.dma_semaphore, #tpu.memory_space<semaphore_mem>> -> memref<1x!tpu.dma_semaphore, #tpu.memory_space<semaphore_mem>>
    %1100 = tpu.memref_squeeze %1099 : memref<1x!tpu.dma_semaphore, #tpu.memory_space<semaphore_mem>> -> memref<!tpu.dma_semaphore, #tpu.memory_space<semaphore_mem>>
    tpu.wait_dma2 semaphore(%1100 : memref<!tpu.dma_semaphore, #tpu.memory_space<semaphore_mem>>) src(%1096 : memref<128xf32, #tpu.memory_space<any>>) dst(%1098 : memref<128xf32, #tpu.memory_space<vmem>>)
    %c4_i32_784 = arith.constant 4 : i32
    %c0_i32_785 = arith.constant 0 : i32
    %c0_i32_786 = arith.constant 0 : i32
    %c0_i32_787 = arith.constant 0 : i32
    %1101 = tpu.memref_slice %arg5[%447, %c0_i32_787] : memref<256x128xf32, #tpu.memory_space<any>> -> memref<1x128xf32, #tpu.memory_space<any>>
    %1102 = tpu.memref_squeeze %1101 : memref<1x128xf32, #tpu.memory_space<any>> -> memref<128xf32, #tpu.memory_space<any>>
    %c0_i32_788 = arith.constant 0 : i32
    %1103 = tpu.memref_slice %arg9[%c4_i32_784, %c0_i32_785, %c0_i32_788] : memref<8x8x128xf32, #tpu.memory_space<vmem>> -> memref<1x1x128xf32, #tpu.memory_space<vmem>>
    %1104 = tpu.memref_squeeze %1103 : memref<1x1x128xf32, #tpu.memory_space<vmem>> -> memref<128xf32, #tpu.memory_space<vmem>>
    %1105 = tpu.memref_slice %arg10[%c0_i32_786] : memref<1x!tpu.dma_semaphore, #tpu.memory_space<semaphore_mem>> -> memref<1x!tpu.dma_semaphore, #tpu.memory_space<semaphore_mem>>
    %1106 = tpu.memref_squeeze %1105 : memref<1x!tpu.dma_semaphore, #tpu.memory_space<semaphore_mem>> -> memref<!tpu.dma_semaphore, #tpu.memory_space<semaphore_mem>>
    tpu.wait_dma2 semaphore(%1106 : memref<!tpu.dma_semaphore, #tpu.memory_space<semaphore_mem>>) src(%1102 : memref<128xf32, #tpu.memory_space<any>>) dst(%1104 : memref<128xf32, #tpu.memory_space<vmem>>)
    %c4_i32_789 = arith.constant 4 : i32
    %c1_i32_790 = arith.constant 1 : i32
    %c0_i32_791 = arith.constant 0 : i32
    %c0_i32_792 = arith.constant 0 : i32
    %1107 = tpu.memref_slice %arg5[%458, %c0_i32_792] : memref<256x128xf32, #tpu.memory_space<any>> -> memref<1x128xf32, #tpu.memory_space<any>>
    %1108 = tpu.memref_squeeze %1107 : memref<1x128xf32, #tpu.memory_space<any>> -> memref<128xf32, #tpu.memory_space<any>>
    %c0_i32_793 = arith.constant 0 : i32
    %1109 = tpu.memref_slice %arg9[%c4_i32_789, %c1_i32_790, %c0_i32_793] : memref<8x8x128xf32, #tpu.memory_space<vmem>> -> memref<1x1x128xf32, #tpu.memory_space<vmem>>
    %1110 = tpu.memref_squeeze %1109 : memref<1x1x128xf32, #tpu.memory_space<vmem>> -> memref<128xf32, #tpu.memory_space<vmem>>
    %1111 = tpu.memref_slice %arg10[%c0_i32_791] : memref<1x!tpu.dma_semaphore, #tpu.memory_space<semaphore_mem>> -> memref<1x!tpu.dma_semaphore, #tpu.memory_space<semaphore_mem>>
    %1112 = tpu.memref_squeeze %1111 : memref<1x!tpu.dma_semaphore, #tpu.memory_space<semaphore_mem>> -> memref<!tpu.dma_semaphore, #tpu.memory_space<semaphore_mem>>
    tpu.wait_dma2 semaphore(%1112 : memref<!tpu.dma_semaphore, #tpu.memory_space<semaphore_mem>>) src(%1108 : memref<128xf32, #tpu.memory_space<any>>) dst(%1110 : memref<128xf32, #tpu.memory_space<vmem>>)
    %c4_i32_794 = arith.constant 4 : i32
    %c2_i32_795 = arith.constant 2 : i32
    %c0_i32_796 = arith.constant 0 : i32
    %c0_i32_797 = arith.constant 0 : i32
    %1113 = tpu.memref_slice %arg5[%469, %c0_i32_797] : memref<256x128xf32, #tpu.memory_space<any>> -> memref<1x128xf32, #tpu.memory_space<any>>
    %1114 = tpu.memref_squeeze %1113 : memref<1x128xf32, #tpu.memory_space<any>> -> memref<128xf32, #tpu.memory_space<any>>
    %c0_i32_798 = arith.constant 0 : i32
    %1115 = tpu.memref_slice %arg9[%c4_i32_794, %c2_i32_795, %c0_i32_798] : memref<8x8x128xf32, #tpu.memory_space<vmem>> -> memref<1x1x128xf32, #tpu.memory_space<vmem>>
    %1116 = tpu.memref_squeeze %1115 : memref<1x1x128xf32, #tpu.memory_space<vmem>> -> memref<128xf32, #tpu.memory_space<vmem>>
    %1117 = tpu.memref_slice %arg10[%c0_i32_796] : memref<1x!tpu.dma_semaphore, #tpu.memory_space<semaphore_mem>> -> memref<1x!tpu.dma_semaphore, #tpu.memory_space<semaphore_mem>>
    %1118 = tpu.memref_squeeze %1117 : memref<1x!tpu.dma_semaphore, #tpu.memory_space<semaphore_mem>> -> memref<!tpu.dma_semaphore, #tpu.memory_space<semaphore_mem>>
    tpu.wait_dma2 semaphore(%1118 : memref<!tpu.dma_semaphore, #tpu.memory_space<semaphore_mem>>) src(%1114 : memref<128xf32, #tpu.memory_space<any>>) dst(%1116 : memref<128xf32, #tpu.memory_space<vmem>>)
    %c4_i32_799 = arith.constant 4 : i32
    %c3_i32_800 = arith.constant 3 : i32
    %c0_i32_801 = arith.constant 0 : i32
    %c0_i32_802 = arith.constant 0 : i32
    %1119 = tpu.memref_slice %arg5[%480, %c0_i32_802] : memref<256x128xf32, #tpu.memory_space<any>> -> memref<1x128xf32, #tpu.memory_space<any>>
    %1120 = tpu.memref_squeeze %1119 : memref<1x128xf32, #tpu.memory_space<any>> -> memref<128xf32, #tpu.memory_space<any>>
    %c0_i32_803 = arith.constant 0 : i32
    %1121 = tpu.memref_slice %arg9[%c4_i32_799, %c3_i32_800, %c0_i32_803] : memref<8x8x128xf32, #tpu.memory_space<vmem>> -> memref<1x1x128xf32, #tpu.memory_space<vmem>>
    %1122 = tpu.memref_squeeze %1121 : memref<1x1x128xf32, #tpu.memory_space<vmem>> -> memref<128xf32, #tpu.memory_space<vmem>>
    %1123 = tpu.memref_slice %arg10[%c0_i32_801] : memref<1x!tpu.dma_semaphore, #tpu.memory_space<semaphore_mem>> -> memref<1x!tpu.dma_semaphore, #tpu.memory_space<semaphore_mem>>
    %1124 = tpu.memref_squeeze %1123 : memref<1x!tpu.dma_semaphore, #tpu.memory_space<semaphore_mem>> -> memref<!tpu.dma_semaphore, #tpu.memory_space<semaphore_mem>>
    tpu.wait_dma2 semaphore(%1124 : memref<!tpu.dma_semaphore, #tpu.memory_space<semaphore_mem>>) src(%1120 : memref<128xf32, #tpu.memory_space<any>>) dst(%1122 : memref<128xf32, #tpu.memory_space<vmem>>)
    %c4_i32_804 = arith.constant 4 : i32
    %c4_i32_805 = arith.constant 4 : i32
    %c0_i32_806 = arith.constant 0 : i32
    %c0_i32_807 = arith.constant 0 : i32
    %1125 = tpu.memref_slice %arg5[%491, %c0_i32_807] : memref<256x128xf32, #tpu.memory_space<any>> -> memref<1x128xf32, #tpu.memory_space<any>>
    %1126 = tpu.memref_squeeze %1125 : memref<1x128xf32, #tpu.memory_space<any>> -> memref<128xf32, #tpu.memory_space<any>>
    %c0_i32_808 = arith.constant 0 : i32
    %1127 = tpu.memref_slice %arg9[%c4_i32_804, %c4_i32_805, %c0_i32_808] : memref<8x8x128xf32, #tpu.memory_space<vmem>> -> memref<1x1x128xf32, #tpu.memory_space<vmem>>
    %1128 = tpu.memref_squeeze %1127 : memref<1x1x128xf32, #tpu.memory_space<vmem>> -> memref<128xf32, #tpu.memory_space<vmem>>
    %1129 = tpu.memref_slice %arg10[%c0_i32_806] : memref<1x!tpu.dma_semaphore, #tpu.memory_space<semaphore_mem>> -> memref<1x!tpu.dma_semaphore, #tpu.memory_space<semaphore_mem>>
    %1130 = tpu.memref_squeeze %1129 : memref<1x!tpu.dma_semaphore, #tpu.memory_space<semaphore_mem>> -> memref<!tpu.dma_semaphore, #tpu.memory_space<semaphore_mem>>
    tpu.wait_dma2 semaphore(%1130 : memref<!tpu.dma_semaphore, #tpu.memory_space<semaphore_mem>>) src(%1126 : memref<128xf32, #tpu.memory_space<any>>) dst(%1128 : memref<128xf32, #tpu.memory_space<vmem>>)
    %c4_i32_809 = arith.constant 4 : i32
    %c5_i32_810 = arith.constant 5 : i32
    %c0_i32_811 = arith.constant 0 : i32
    %c0_i32_812 = arith.constant 0 : i32
    %1131 = tpu.memref_slice %arg5[%502, %c0_i32_812] : memref<256x128xf32, #tpu.memory_space<any>> -> memref<1x128xf32, #tpu.memory_space<any>>
    %1132 = tpu.memref_squeeze %1131 : memref<1x128xf32, #tpu.memory_space<any>> -> memref<128xf32, #tpu.memory_space<any>>
    %c0_i32_813 = arith.constant 0 : i32
    %1133 = tpu.memref_slice %arg9[%c4_i32_809, %c5_i32_810, %c0_i32_813] : memref<8x8x128xf32, #tpu.memory_space<vmem>> -> memref<1x1x128xf32, #tpu.memory_space<vmem>>
    %1134 = tpu.memref_squeeze %1133 : memref<1x1x128xf32, #tpu.memory_space<vmem>> -> memref<128xf32, #tpu.memory_space<vmem>>
    %1135 = tpu.memref_slice %arg10[%c0_i32_811] : memref<1x!tpu.dma_semaphore, #tpu.memory_space<semaphore_mem>> -> memref<1x!tpu.dma_semaphore, #tpu.memory_space<semaphore_mem>>
    %1136 = tpu.memref_squeeze %1135 : memref<1x!tpu.dma_semaphore, #tpu.memory_space<semaphore_mem>> -> memref<!tpu.dma_semaphore, #tpu.memory_space<semaphore_mem>>
    tpu.wait_dma2 semaphore(%1136 : memref<!tpu.dma_semaphore, #tpu.memory_space<semaphore_mem>>) src(%1132 : memref<128xf32, #tpu.memory_space<any>>) dst(%1134 : memref<128xf32, #tpu.memory_space<vmem>>)
    %c4_i32_814 = arith.constant 4 : i32
    %c6_i32_815 = arith.constant 6 : i32
    %c0_i32_816 = arith.constant 0 : i32
    %c0_i32_817 = arith.constant 0 : i32
    %1137 = tpu.memref_slice %arg5[%513, %c0_i32_817] : memref<256x128xf32, #tpu.memory_space<any>> -> memref<1x128xf32, #tpu.memory_space<any>>
    %1138 = tpu.memref_squeeze %1137 : memref<1x128xf32, #tpu.memory_space<any>> -> memref<128xf32, #tpu.memory_space<any>>
    %c0_i32_818 = arith.constant 0 : i32
    %1139 = tpu.memref_slice %arg9[%c4_i32_814, %c6_i32_815, %c0_i32_818] : memref<8x8x128xf32, #tpu.memory_space<vmem>> -> memref<1x1x128xf32, #tpu.memory_space<vmem>>
    %1140 = tpu.memref_squeeze %1139 : memref<1x1x128xf32, #tpu.memory_space<vmem>> -> memref<128xf32, #tpu.memory_space<vmem>>
    %1141 = tpu.memref_slice %arg10[%c0_i32_816] : memref<1x!tpu.dma_semaphore, #tpu.memory_space<semaphore_mem>> -> memref<1x!tpu.dma_semaphore, #tpu.memory_space<semaphore_mem>>
    %1142 = tpu.memref_squeeze %1141 : memref<1x!tpu.dma_semaphore, #tpu.memory_space<semaphore_mem>> -> memref<!tpu.dma_semaphore, #tpu.memory_space<semaphore_mem>>
    tpu.wait_dma2 semaphore(%1142 : memref<!tpu.dma_semaphore, #tpu.memory_space<semaphore_mem>>) src(%1138 : memref<128xf32, #tpu.memory_space<any>>) dst(%1140 : memref<128xf32, #tpu.memory_space<vmem>>)
    %c4_i32_819 = arith.constant 4 : i32
    %c7_i32_820 = arith.constant 7 : i32
    %c0_i32_821 = arith.constant 0 : i32
    %c0_i32_822 = arith.constant 0 : i32
    %1143 = tpu.memref_slice %arg5[%524, %c0_i32_822] : memref<256x128xf32, #tpu.memory_space<any>> -> memref<1x128xf32, #tpu.memory_space<any>>
    %1144 = tpu.memref_squeeze %1143 : memref<1x128xf32, #tpu.memory_space<any>> -> memref<128xf32, #tpu.memory_space<any>>
    %c0_i32_823 = arith.constant 0 : i32
    %1145 = tpu.memref_slice %arg9[%c4_i32_819, %c7_i32_820, %c0_i32_823] : memref<8x8x128xf32, #tpu.memory_space<vmem>> -> memref<1x1x128xf32, #tpu.memory_space<vmem>>
    %1146 = tpu.memref_squeeze %1145 : memref<1x1x128xf32, #tpu.memory_space<vmem>> -> memref<128xf32, #tpu.memory_space<vmem>>
    %1147 = tpu.memref_slice %arg10[%c0_i32_821] : memref<1x!tpu.dma_semaphore, #tpu.memory_space<semaphore_mem>> -> memref<1x!tpu.dma_semaphore, #tpu.memory_space<semaphore_mem>>
    %1148 = tpu.memref_squeeze %1147 : memref<1x!tpu.dma_semaphore, #tpu.memory_space<semaphore_mem>> -> memref<!tpu.dma_semaphore, #tpu.memory_space<semaphore_mem>>
    tpu.wait_dma2 semaphore(%1148 : memref<!tpu.dma_semaphore, #tpu.memory_space<semaphore_mem>>) src(%1144 : memref<128xf32, #tpu.memory_space<any>>) dst(%1146 : memref<128xf32, #tpu.memory_space<vmem>>)
    %c5_i32_824 = arith.constant 5 : i32
    %c0_i32_825 = arith.constant 0 : i32
    %c0_i32_826 = arith.constant 0 : i32
    %1149 = tpu.memref_slice %arg4[%533, %c0_i32_826] : memref<256x128xf32, #tpu.memory_space<any>> -> memref<1x128xf32, #tpu.memory_space<any>>
    %1150 = tpu.memref_squeeze %1149 : memref<1x128xf32, #tpu.memory_space<any>> -> memref<128xf32, #tpu.memory_space<any>>
    %c0_i32_827 = arith.constant 0 : i32
    %1151 = tpu.memref_slice %arg7[%c5_i32_824, %c0_i32_827] : memref<8x128xf32, #tpu.memory_space<vmem>> -> memref<1x128xf32, #tpu.memory_space<vmem>>
    %1152 = tpu.memref_squeeze %1151 : memref<1x128xf32, #tpu.memory_space<vmem>> -> memref<128xf32, #tpu.memory_space<vmem>>
    %1153 = tpu.memref_slice %arg10[%c0_i32_825] : memref<1x!tpu.dma_semaphore, #tpu.memory_space<semaphore_mem>> -> memref<1x!tpu.dma_semaphore, #tpu.memory_space<semaphore_mem>>
    %1154 = tpu.memref_squeeze %1153 : memref<1x!tpu.dma_semaphore, #tpu.memory_space<semaphore_mem>> -> memref<!tpu.dma_semaphore, #tpu.memory_space<semaphore_mem>>
    tpu.wait_dma2 semaphore(%1154 : memref<!tpu.dma_semaphore, #tpu.memory_space<semaphore_mem>>) src(%1150 : memref<128xf32, #tpu.memory_space<any>>) dst(%1152 : memref<128xf32, #tpu.memory_space<vmem>>)
    %c5_i32_828 = arith.constant 5 : i32
    %c0_i32_829 = arith.constant 0 : i32
    %c0_i32_830 = arith.constant 0 : i32
    %1155 = tpu.memref_slice %arg5[%536, %c0_i32_830] : memref<256x128xf32, #tpu.memory_space<any>> -> memref<1x128xf32, #tpu.memory_space<any>>
    %1156 = tpu.memref_squeeze %1155 : memref<1x128xf32, #tpu.memory_space<any>> -> memref<128xf32, #tpu.memory_space<any>>
    %c0_i32_831 = arith.constant 0 : i32
    %1157 = tpu.memref_slice %arg8[%c5_i32_828, %c0_i32_831] : memref<8x128xf32, #tpu.memory_space<vmem>> -> memref<1x128xf32, #tpu.memory_space<vmem>>
    %1158 = tpu.memref_squeeze %1157 : memref<1x128xf32, #tpu.memory_space<vmem>> -> memref<128xf32, #tpu.memory_space<vmem>>
    %1159 = tpu.memref_slice %arg10[%c0_i32_829] : memref<1x!tpu.dma_semaphore, #tpu.memory_space<semaphore_mem>> -> memref<1x!tpu.dma_semaphore, #tpu.memory_space<semaphore_mem>>
    %1160 = tpu.memref_squeeze %1159 : memref<1x!tpu.dma_semaphore, #tpu.memory_space<semaphore_mem>> -> memref<!tpu.dma_semaphore, #tpu.memory_space<semaphore_mem>>
    tpu.wait_dma2 semaphore(%1160 : memref<!tpu.dma_semaphore, #tpu.memory_space<semaphore_mem>>) src(%1156 : memref<128xf32, #tpu.memory_space<any>>) dst(%1158 : memref<128xf32, #tpu.memory_space<vmem>>)
    %c5_i32_832 = arith.constant 5 : i32
    %c0_i32_833 = arith.constant 0 : i32
    %c0_i32_834 = arith.constant 0 : i32
    %c0_i32_835 = arith.constant 0 : i32
    %1161 = tpu.memref_slice %arg5[%553, %c0_i32_835] : memref<256x128xf32, #tpu.memory_space<any>> -> memref<1x128xf32, #tpu.memory_space<any>>
    %1162 = tpu.memref_squeeze %1161 : memref<1x128xf32, #tpu.memory_space<any>> -> memref<128xf32, #tpu.memory_space<any>>
    %c0_i32_836 = arith.constant 0 : i32
    %1163 = tpu.memref_slice %arg9[%c5_i32_832, %c0_i32_833, %c0_i32_836] : memref<8x8x128xf32, #tpu.memory_space<vmem>> -> memref<1x1x128xf32, #tpu.memory_space<vmem>>
    %1164 = tpu.memref_squeeze %1163 : memref<1x1x128xf32, #tpu.memory_space<vmem>> -> memref<128xf32, #tpu.memory_space<vmem>>
    %1165 = tpu.memref_slice %arg10[%c0_i32_834] : memref<1x!tpu.dma_semaphore, #tpu.memory_space<semaphore_mem>> -> memref<1x!tpu.dma_semaphore, #tpu.memory_space<semaphore_mem>>
    %1166 = tpu.memref_squeeze %1165 : memref<1x!tpu.dma_semaphore, #tpu.memory_space<semaphore_mem>> -> memref<!tpu.dma_semaphore, #tpu.memory_space<semaphore_mem>>
    tpu.wait_dma2 semaphore(%1166 : memref<!tpu.dma_semaphore, #tpu.memory_space<semaphore_mem>>) src(%1162 : memref<128xf32, #tpu.memory_space<any>>) dst(%1164 : memref<128xf32, #tpu.memory_space<vmem>>)
    %c5_i32_837 = arith.constant 5 : i32
    %c1_i32_838 = arith.constant 1 : i32
    %c0_i32_839 = arith.constant 0 : i32
    %c0_i32_840 = arith.constant 0 : i32
    %1167 = tpu.memref_slice %arg5[%564, %c0_i32_840] : memref<256x128xf32, #tpu.memory_space<any>> -> memref<1x128xf32, #tpu.memory_space<any>>
    %1168 = tpu.memref_squeeze %1167 : memref<1x128xf32, #tpu.memory_space<any>> -> memref<128xf32, #tpu.memory_space<any>>
    %c0_i32_841 = arith.constant 0 : i32
    %1169 = tpu.memref_slice %arg9[%c5_i32_837, %c1_i32_838, %c0_i32_841] : memref<8x8x128xf32, #tpu.memory_space<vmem>> -> memref<1x1x128xf32, #tpu.memory_space<vmem>>
    %1170 = tpu.memref_squeeze %1169 : memref<1x1x128xf32, #tpu.memory_space<vmem>> -> memref<128xf32, #tpu.memory_space<vmem>>
    %1171 = tpu.memref_slice %arg10[%c0_i32_839] : memref<1x!tpu.dma_semaphore, #tpu.memory_space<semaphore_mem>> -> memref<1x!tpu.dma_semaphore, #tpu.memory_space<semaphore_mem>>
    %1172 = tpu.memref_squeeze %1171 : memref<1x!tpu.dma_semaphore, #tpu.memory_space<semaphore_mem>> -> memref<!tpu.dma_semaphore, #tpu.memory_space<semaphore_mem>>
    tpu.wait_dma2 semaphore(%1172 : memref<!tpu.dma_semaphore, #tpu.memory_space<semaphore_mem>>) src(%1168 : memref<128xf32, #tpu.memory_space<any>>) dst(%1170 : memref<128xf32, #tpu.memory_space<vmem>>)
    %c5_i32_842 = arith.constant 5 : i32
    %c2_i32_843 = arith.constant 2 : i32
    %c0_i32_844 = arith.constant 0 : i32
    %c0_i32_845 = arith.constant 0 : i32
    %1173 = tpu.memref_slice %arg5[%575, %c0_i32_845] : memref<256x128xf32, #tpu.memory_space<any>> -> memref<1x128xf32, #tpu.memory_space<any>>
    %1174 = tpu.memref_squeeze %1173 : memref<1x128xf32, #tpu.memory_space<any>> -> memref<128xf32, #tpu.memory_space<any>>
    %c0_i32_846 = arith.constant 0 : i32
    %1175 = tpu.memref_slice %arg9[%c5_i32_842, %c2_i32_843, %c0_i32_846] : memref<8x8x128xf32, #tpu.memory_space<vmem>> -> memref<1x1x128xf32, #tpu.memory_space<vmem>>
    %1176 = tpu.memref_squeeze %1175 : memref<1x1x128xf32, #tpu.memory_space<vmem>> -> memref<128xf32, #tpu.memory_space<vmem>>
    %1177 = tpu.memref_slice %arg10[%c0_i32_844] : memref<1x!tpu.dma_semaphore, #tpu.memory_space<semaphore_mem>> -> memref<1x!tpu.dma_semaphore, #tpu.memory_space<semaphore_mem>>
    %1178 = tpu.memref_squeeze %1177 : memref<1x!tpu.dma_semaphore, #tpu.memory_space<semaphore_mem>> -> memref<!tpu.dma_semaphore, #tpu.memory_space<semaphore_mem>>
    tpu.wait_dma2 semaphore(%1178 : memref<!tpu.dma_semaphore, #tpu.memory_space<semaphore_mem>>) src(%1174 : memref<128xf32, #tpu.memory_space<any>>) dst(%1176 : memref<128xf32, #tpu.memory_space<vmem>>)
    %c5_i32_847 = arith.constant 5 : i32
    %c3_i32_848 = arith.constant 3 : i32
    %c0_i32_849 = arith.constant 0 : i32
    %c0_i32_850 = arith.constant 0 : i32
    %1179 = tpu.memref_slice %arg5[%586, %c0_i32_850] : memref<256x128xf32, #tpu.memory_space<any>> -> memref<1x128xf32, #tpu.memory_space<any>>
    %1180 = tpu.memref_squeeze %1179 : memref<1x128xf32, #tpu.memory_space<any>> -> memref<128xf32, #tpu.memory_space<any>>
    %c0_i32_851 = arith.constant 0 : i32
    %1181 = tpu.memref_slice %arg9[%c5_i32_847, %c3_i32_848, %c0_i32_851] : memref<8x8x128xf32, #tpu.memory_space<vmem>> -> memref<1x1x128xf32, #tpu.memory_space<vmem>>
    %1182 = tpu.memref_squeeze %1181 : memref<1x1x128xf32, #tpu.memory_space<vmem>> -> memref<128xf32, #tpu.memory_space<vmem>>
    %1183 = tpu.memref_slice %arg10[%c0_i32_849] : memref<1x!tpu.dma_semaphore, #tpu.memory_space<semaphore_mem>> -> memref<1x!tpu.dma_semaphore, #tpu.memory_space<semaphore_mem>>
    %1184 = tpu.memref_squeeze %1183 : memref<1x!tpu.dma_semaphore, #tpu.memory_space<semaphore_mem>> -> memref<!tpu.dma_semaphore, #tpu.memory_space<semaphore_mem>>
    tpu.wait_dma2 semaphore(%1184 : memref<!tpu.dma_semaphore, #tpu.memory_space<semaphore_mem>>) src(%1180 : memref<128xf32, #tpu.memory_space<any>>) dst(%1182 : memref<128xf32, #tpu.memory_space<vmem>>)
    %c5_i32_852 = arith.constant 5 : i32
    %c4_i32_853 = arith.constant 4 : i32
    %c0_i32_854 = arith.constant 0 : i32
    %c0_i32_855 = arith.constant 0 : i32
    %1185 = tpu.memref_slice %arg5[%597, %c0_i32_855] : memref<256x128xf32, #tpu.memory_space<any>> -> memref<1x128xf32, #tpu.memory_space<any>>
    %1186 = tpu.memref_squeeze %1185 : memref<1x128xf32, #tpu.memory_space<any>> -> memref<128xf32, #tpu.memory_space<any>>
    %c0_i32_856 = arith.constant 0 : i32
    %1187 = tpu.memref_slice %arg9[%c5_i32_852, %c4_i32_853, %c0_i32_856] : memref<8x8x128xf32, #tpu.memory_space<vmem>> -> memref<1x1x128xf32, #tpu.memory_space<vmem>>
    %1188 = tpu.memref_squeeze %1187 : memref<1x1x128xf32, #tpu.memory_space<vmem>> -> memref<128xf32, #tpu.memory_space<vmem>>
    %1189 = tpu.memref_slice %arg10[%c0_i32_854] : memref<1x!tpu.dma_semaphore, #tpu.memory_space<semaphore_mem>> -> memref<1x!tpu.dma_semaphore, #tpu.memory_space<semaphore_mem>>
    %1190 = tpu.memref_squeeze %1189 : memref<1x!tpu.dma_semaphore, #tpu.memory_space<semaphore_mem>> -> memref<!tpu.dma_semaphore, #tpu.memory_space<semaphore_mem>>
    tpu.wait_dma2 semaphore(%1190 : memref<!tpu.dma_semaphore, #tpu.memory_space<semaphore_mem>>) src(%1186 : memref<128xf32, #tpu.memory_space<any>>) dst(%1188 : memref<128xf32, #tpu.memory_space<vmem>>)
    %c5_i32_857 = arith.constant 5 : i32
    %c5_i32_858 = arith.constant 5 : i32
    %c0_i32_859 = arith.constant 0 : i32
    %c0_i32_860 = arith.constant 0 : i32
    %1191 = tpu.memref_slice %arg5[%608, %c0_i32_860] : memref<256x128xf32, #tpu.memory_space<any>> -> memref<1x128xf32, #tpu.memory_space<any>>
    %1192 = tpu.memref_squeeze %1191 : memref<1x128xf32, #tpu.memory_space<any>> -> memref<128xf32, #tpu.memory_space<any>>
    %c0_i32_861 = arith.constant 0 : i32
    %1193 = tpu.memref_slice %arg9[%c5_i32_857, %c5_i32_858, %c0_i32_861] : memref<8x8x128xf32, #tpu.memory_space<vmem>> -> memref<1x1x128xf32, #tpu.memory_space<vmem>>
    %1194 = tpu.memref_squeeze %1193 : memref<1x1x128xf32, #tpu.memory_space<vmem>> -> memref<128xf32, #tpu.memory_space<vmem>>
    %1195 = tpu.memref_slice %arg10[%c0_i32_859] : memref<1x!tpu.dma_semaphore, #tpu.memory_space<semaphore_mem>> -> memref<1x!tpu.dma_semaphore, #tpu.memory_space<semaphore_mem>>
    %1196 = tpu.memref_squeeze %1195 : memref<1x!tpu.dma_semaphore, #tpu.memory_space<semaphore_mem>> -> memref<!tpu.dma_semaphore, #tpu.memory_space<semaphore_mem>>
    tpu.wait_dma2 semaphore(%1196 : memref<!tpu.dma_semaphore, #tpu.memory_space<semaphore_mem>>) src(%1192 : memref<128xf32, #tpu.memory_space<any>>) dst(%1194 : memref<128xf32, #tpu.memory_space<vmem>>)
    %c5_i32_862 = arith.constant 5 : i32
    %c6_i32_863 = arith.constant 6 : i32
    %c0_i32_864 = arith.constant 0 : i32
    %c0_i32_865 = arith.constant 0 : i32
    %1197 = tpu.memref_slice %arg5[%619, %c0_i32_865] : memref<256x128xf32, #tpu.memory_space<any>> -> memref<1x128xf32, #tpu.memory_space<any>>
    %1198 = tpu.memref_squeeze %1197 : memref<1x128xf32, #tpu.memory_space<any>> -> memref<128xf32, #tpu.memory_space<any>>
    %c0_i32_866 = arith.constant 0 : i32
    %1199 = tpu.memref_slice %arg9[%c5_i32_862, %c6_i32_863, %c0_i32_866] : memref<8x8x128xf32, #tpu.memory_space<vmem>> -> memref<1x1x128xf32, #tpu.memory_space<vmem>>
    %1200 = tpu.memref_squeeze %1199 : memref<1x1x128xf32, #tpu.memory_space<vmem>> -> memref<128xf32, #tpu.memory_space<vmem>>
    %1201 = tpu.memref_slice %arg10[%c0_i32_864] : memref<1x!tpu.dma_semaphore, #tpu.memory_space<semaphore_mem>> -> memref<1x!tpu.dma_semaphore, #tpu.memory_space<semaphore_mem>>
    %1202 = tpu.memref_squeeze %1201 : memref<1x!tpu.dma_semaphore, #tpu.memory_space<semaphore_mem>> -> memref<!tpu.dma_semaphore, #tpu.memory_space<semaphore_mem>>
    tpu.wait_dma2 semaphore(%1202 : memref<!tpu.dma_semaphore, #tpu.memory_space<semaphore_mem>>) src(%1198 : memref<128xf32, #tpu.memory_space<any>>) dst(%1200 : memref<128xf32, #tpu.memory_space<vmem>>)
    %c5_i32_867 = arith.constant 5 : i32
    %c7_i32_868 = arith.constant 7 : i32
    %c0_i32_869 = arith.constant 0 : i32
    %c0_i32_870 = arith.constant 0 : i32
    %1203 = tpu.memref_slice %arg5[%630, %c0_i32_870] : memref<256x128xf32, #tpu.memory_space<any>> -> memref<1x128xf32, #tpu.memory_space<any>>
    %1204 = tpu.memref_squeeze %1203 : memref<1x128xf32, #tpu.memory_space<any>> -> memref<128xf32, #tpu.memory_space<any>>
    %c0_i32_871 = arith.constant 0 : i32
    %1205 = tpu.memref_slice %arg9[%c5_i32_867, %c7_i32_868, %c0_i32_871] : memref<8x8x128xf32, #tpu.memory_space<vmem>> -> memref<1x1x128xf32, #tpu.memory_space<vmem>>
    %1206 = tpu.memref_squeeze %1205 : memref<1x1x128xf32, #tpu.memory_space<vmem>> -> memref<128xf32, #tpu.memory_space<vmem>>
    %1207 = tpu.memref_slice %arg10[%c0_i32_869] : memref<1x!tpu.dma_semaphore, #tpu.memory_space<semaphore_mem>> -> memref<1x!tpu.dma_semaphore, #tpu.memory_space<semaphore_mem>>
    %1208 = tpu.memref_squeeze %1207 : memref<1x!tpu.dma_semaphore, #tpu.memory_space<semaphore_mem>> -> memref<!tpu.dma_semaphore, #tpu.memory_space<semaphore_mem>>
    tpu.wait_dma2 semaphore(%1208 : memref<!tpu.dma_semaphore, #tpu.memory_space<semaphore_mem>>) src(%1204 : memref<128xf32, #tpu.memory_space<any>>) dst(%1206 : memref<128xf32, #tpu.memory_space<vmem>>)
    %c6_i32_872 = arith.constant 6 : i32
    %c0_i32_873 = arith.constant 0 : i32
    %c0_i32_874 = arith.constant 0 : i32
    %1209 = tpu.memref_slice %arg4[%639, %c0_i32_874] : memref<256x128xf32, #tpu.memory_space<any>> -> memref<1x128xf32, #tpu.memory_space<any>>
    %1210 = tpu.memref_squeeze %1209 : memref<1x128xf32, #tpu.memory_space<any>> -> memref<128xf32, #tpu.memory_space<any>>
    %c0_i32_875 = arith.constant 0 : i32
    %1211 = tpu.memref_slice %arg7[%c6_i32_872, %c0_i32_875] : memref<8x128xf32, #tpu.memory_space<vmem>> -> memref<1x128xf32, #tpu.memory_space<vmem>>
    %1212 = tpu.memref_squeeze %1211 : memref<1x128xf32, #tpu.memory_space<vmem>> -> memref<128xf32, #tpu.memory_space<vmem>>
    %1213 = tpu.memref_slice %arg10[%c0_i32_873] : memref<1x!tpu.dma_semaphore, #tpu.memory_space<semaphore_mem>> -> memref<1x!tpu.dma_semaphore, #tpu.memory_space<semaphore_mem>>
    %1214 = tpu.memref_squeeze %1213 : memref<1x!tpu.dma_semaphore, #tpu.memory_space<semaphore_mem>> -> memref<!tpu.dma_semaphore, #tpu.memory_space<semaphore_mem>>
    tpu.wait_dma2 semaphore(%1214 : memref<!tpu.dma_semaphore, #tpu.memory_space<semaphore_mem>>) src(%1210 : memref<128xf32, #tpu.memory_space<any>>) dst(%1212 : memref<128xf32, #tpu.memory_space<vmem>>)
    %c6_i32_876 = arith.constant 6 : i32
    %c0_i32_877 = arith.constant 0 : i32
    %c0_i32_878 = arith.constant 0 : i32
    %1215 = tpu.memref_slice %arg5[%642, %c0_i32_878] : memref<256x128xf32, #tpu.memory_space<any>> -> memref<1x128xf32, #tpu.memory_space<any>>
    %1216 = tpu.memref_squeeze %1215 : memref<1x128xf32, #tpu.memory_space<any>> -> memref<128xf32, #tpu.memory_space<any>>
    %c0_i32_879 = arith.constant 0 : i32
    %1217 = tpu.memref_slice %arg8[%c6_i32_876, %c0_i32_879] : memref<8x128xf32, #tpu.memory_space<vmem>> -> memref<1x128xf32, #tpu.memory_space<vmem>>
    %1218 = tpu.memref_squeeze %1217 : memref<1x128xf32, #tpu.memory_space<vmem>> -> memref<128xf32, #tpu.memory_space<vmem>>
    %1219 = tpu.memref_slice %arg10[%c0_i32_877] : memref<1x!tpu.dma_semaphore, #tpu.memory_space<semaphore_mem>> -> memref<1x!tpu.dma_semaphore, #tpu.memory_space<semaphore_mem>>
    %1220 = tpu.memref_squeeze %1219 : memref<1x!tpu.dma_semaphore, #tpu.memory_space<semaphore_mem>> -> memref<!tpu.dma_semaphore, #tpu.memory_space<semaphore_mem>>
    tpu.wait_dma2 semaphore(%1220 : memref<!tpu.dma_semaphore, #tpu.memory_space<semaphore_mem>>) src(%1216 : memref<128xf32, #tpu.memory_space<any>>) dst(%1218 : memref<128xf32, #tpu.memory_space<vmem>>)
    %c6_i32_880 = arith.constant 6 : i32
    %c0_i32_881 = arith.constant 0 : i32
    %c0_i32_882 = arith.constant 0 : i32
    %c0_i32_883 = arith.constant 0 : i32
    %1221 = tpu.memref_slice %arg5[%659, %c0_i32_883] : memref<256x128xf32, #tpu.memory_space<any>> -> memref<1x128xf32, #tpu.memory_space<any>>
    %1222 = tpu.memref_squeeze %1221 : memref<1x128xf32, #tpu.memory_space<any>> -> memref<128xf32, #tpu.memory_space<any>>
    %c0_i32_884 = arith.constant 0 : i32
    %1223 = tpu.memref_slice %arg9[%c6_i32_880, %c0_i32_881, %c0_i32_884] : memref<8x8x128xf32, #tpu.memory_space<vmem>> -> memref<1x1x128xf32, #tpu.memory_space<vmem>>
    %1224 = tpu.memref_squeeze %1223 : memref<1x1x128xf32, #tpu.memory_space<vmem>> -> memref<128xf32, #tpu.memory_space<vmem>>
    %1225 = tpu.memref_slice %arg10[%c0_i32_882] : memref<1x!tpu.dma_semaphore, #tpu.memory_space<semaphore_mem>> -> memref<1x!tpu.dma_semaphore, #tpu.memory_space<semaphore_mem>>
    %1226 = tpu.memref_squeeze %1225 : memref<1x!tpu.dma_semaphore, #tpu.memory_space<semaphore_mem>> -> memref<!tpu.dma_semaphore, #tpu.memory_space<semaphore_mem>>
    tpu.wait_dma2 semaphore(%1226 : memref<!tpu.dma_semaphore, #tpu.memory_space<semaphore_mem>>) src(%1222 : memref<128xf32, #tpu.memory_space<any>>) dst(%1224 : memref<128xf32, #tpu.memory_space<vmem>>)
    %c6_i32_885 = arith.constant 6 : i32
    %c1_i32_886 = arith.constant 1 : i32
    %c0_i32_887 = arith.constant 0 : i32
    %c0_i32_888 = arith.constant 0 : i32
    %1227 = tpu.memref_slice %arg5[%670, %c0_i32_888] : memref<256x128xf32, #tpu.memory_space<any>> -> memref<1x128xf32, #tpu.memory_space<any>>
    %1228 = tpu.memref_squeeze %1227 : memref<1x128xf32, #tpu.memory_space<any>> -> memref<128xf32, #tpu.memory_space<any>>
    %c0_i32_889 = arith.constant 0 : i32
    %1229 = tpu.memref_slice %arg9[%c6_i32_885, %c1_i32_886, %c0_i32_889] : memref<8x8x128xf32, #tpu.memory_space<vmem>> -> memref<1x1x128xf32, #tpu.memory_space<vmem>>
    %1230 = tpu.memref_squeeze %1229 : memref<1x1x128xf32, #tpu.memory_space<vmem>> -> memref<128xf32, #tpu.memory_space<vmem>>
    %1231 = tpu.memref_slice %arg10[%c0_i32_887] : memref<1x!tpu.dma_semaphore, #tpu.memory_space<semaphore_mem>> -> memref<1x!tpu.dma_semaphore, #tpu.memory_space<semaphore_mem>>
    %1232 = tpu.memref_squeeze %1231 : memref<1x!tpu.dma_semaphore, #tpu.memory_space<semaphore_mem>> -> memref<!tpu.dma_semaphore, #tpu.memory_space<semaphore_mem>>
    tpu.wait_dma2 semaphore(%1232 : memref<!tpu.dma_semaphore, #tpu.memory_space<semaphore_mem>>) src(%1228 : memref<128xf32, #tpu.memory_space<any>>) dst(%1230 : memref<128xf32, #tpu.memory_space<vmem>>)
    %c6_i32_890 = arith.constant 6 : i32
    %c2_i32_891 = arith.constant 2 : i32
    %c0_i32_892 = arith.constant 0 : i32
    %c0_i32_893 = arith.constant 0 : i32
    %1233 = tpu.memref_slice %arg5[%681, %c0_i32_893] : memref<256x128xf32, #tpu.memory_space<any>> -> memref<1x128xf32, #tpu.memory_space<any>>
    %1234 = tpu.memref_squeeze %1233 : memref<1x128xf32, #tpu.memory_space<any>> -> memref<128xf32, #tpu.memory_space<any>>
    %c0_i32_894 = arith.constant 0 : i32
    %1235 = tpu.memref_slice %arg9[%c6_i32_890, %c2_i32_891, %c0_i32_894] : memref<8x8x128xf32, #tpu.memory_space<vmem>> -> memref<1x1x128xf32, #tpu.memory_space<vmem>>
    %1236 = tpu.memref_squeeze %1235 : memref<1x1x128xf32, #tpu.memory_space<vmem>> -> memref<128xf32, #tpu.memory_space<vmem>>
    %1237 = tpu.memref_slice %arg10[%c0_i32_892] : memref<1x!tpu.dma_semaphore, #tpu.memory_space<semaphore_mem>> -> memref<1x!tpu.dma_semaphore, #tpu.memory_space<semaphore_mem>>
    %1238 = tpu.memref_squeeze %1237 : memref<1x!tpu.dma_semaphore, #tpu.memory_space<semaphore_mem>> -> memref<!tpu.dma_semaphore, #tpu.memory_space<semaphore_mem>>
    tpu.wait_dma2 semaphore(%1238 : memref<!tpu.dma_semaphore, #tpu.memory_space<semaphore_mem>>) src(%1234 : memref<128xf32, #tpu.memory_space<any>>) dst(%1236 : memref<128xf32, #tpu.memory_space<vmem>>)
    %c6_i32_895 = arith.constant 6 : i32
    %c3_i32_896 = arith.constant 3 : i32
    %c0_i32_897 = arith.constant 0 : i32
    %c0_i32_898 = arith.constant 0 : i32
    %1239 = tpu.memref_slice %arg5[%692, %c0_i32_898] : memref<256x128xf32, #tpu.memory_space<any>> -> memref<1x128xf32, #tpu.memory_space<any>>
    %1240 = tpu.memref_squeeze %1239 : memref<1x128xf32, #tpu.memory_space<any>> -> memref<128xf32, #tpu.memory_space<any>>
    %c0_i32_899 = arith.constant 0 : i32
    %1241 = tpu.memref_slice %arg9[%c6_i32_895, %c3_i32_896, %c0_i32_899] : memref<8x8x128xf32, #tpu.memory_space<vmem>> -> memref<1x1x128xf32, #tpu.memory_space<vmem>>
    %1242 = tpu.memref_squeeze %1241 : memref<1x1x128xf32, #tpu.memory_space<vmem>> -> memref<128xf32, #tpu.memory_space<vmem>>
    %1243 = tpu.memref_slice %arg10[%c0_i32_897] : memref<1x!tpu.dma_semaphore, #tpu.memory_space<semaphore_mem>> -> memref<1x!tpu.dma_semaphore, #tpu.memory_space<semaphore_mem>>
    %1244 = tpu.memref_squeeze %1243 : memref<1x!tpu.dma_semaphore, #tpu.memory_space<semaphore_mem>> -> memref<!tpu.dma_semaphore, #tpu.memory_space<semaphore_mem>>
    tpu.wait_dma2 semaphore(%1244 : memref<!tpu.dma_semaphore, #tpu.memory_space<semaphore_mem>>) src(%1240 : memref<128xf32, #tpu.memory_space<any>>) dst(%1242 : memref<128xf32, #tpu.memory_space<vmem>>)
    %c6_i32_900 = arith.constant 6 : i32
    %c4_i32_901 = arith.constant 4 : i32
    %c0_i32_902 = arith.constant 0 : i32
    %c0_i32_903 = arith.constant 0 : i32
    %1245 = tpu.memref_slice %arg5[%703, %c0_i32_903] : memref<256x128xf32, #tpu.memory_space<any>> -> memref<1x128xf32, #tpu.memory_space<any>>
    %1246 = tpu.memref_squeeze %1245 : memref<1x128xf32, #tpu.memory_space<any>> -> memref<128xf32, #tpu.memory_space<any>>
    %c0_i32_904 = arith.constant 0 : i32
    %1247 = tpu.memref_slice %arg9[%c6_i32_900, %c4_i32_901, %c0_i32_904] : memref<8x8x128xf32, #tpu.memory_space<vmem>> -> memref<1x1x128xf32, #tpu.memory_space<vmem>>
    %1248 = tpu.memref_squeeze %1247 : memref<1x1x128xf32, #tpu.memory_space<vmem>> -> memref<128xf32, #tpu.memory_space<vmem>>
    %1249 = tpu.memref_slice %arg10[%c0_i32_902] : memref<1x!tpu.dma_semaphore, #tpu.memory_space<semaphore_mem>> -> memref<1x!tpu.dma_semaphore, #tpu.memory_space<semaphore_mem>>
    %1250 = tpu.memref_squeeze %1249 : memref<1x!tpu.dma_semaphore, #tpu.memory_space<semaphore_mem>> -> memref<!tpu.dma_semaphore, #tpu.memory_space<semaphore_mem>>
    tpu.wait_dma2 semaphore(%1250 : memref<!tpu.dma_semaphore, #tpu.memory_space<semaphore_mem>>) src(%1246 : memref<128xf32, #tpu.memory_space<any>>) dst(%1248 : memref<128xf32, #tpu.memory_space<vmem>>)
    %c6_i32_905 = arith.constant 6 : i32
    %c5_i32_906 = arith.constant 5 : i32
    %c0_i32_907 = arith.constant 0 : i32
    %c0_i32_908 = arith.constant 0 : i32
    %1251 = tpu.memref_slice %arg5[%714, %c0_i32_908] : memref<256x128xf32, #tpu.memory_space<any>> -> memref<1x128xf32, #tpu.memory_space<any>>
    %1252 = tpu.memref_squeeze %1251 : memref<1x128xf32, #tpu.memory_space<any>> -> memref<128xf32, #tpu.memory_space<any>>
    %c0_i32_909 = arith.constant 0 : i32
    %1253 = tpu.memref_slice %arg9[%c6_i32_905, %c5_i32_906, %c0_i32_909] : memref<8x8x128xf32, #tpu.memory_space<vmem>> -> memref<1x1x128xf32, #tpu.memory_space<vmem>>
    %1254 = tpu.memref_squeeze %1253 : memref<1x1x128xf32, #tpu.memory_space<vmem>> -> memref<128xf32, #tpu.memory_space<vmem>>
    %1255 = tpu.memref_slice %arg10[%c0_i32_907] : memref<1x!tpu.dma_semaphore, #tpu.memory_space<semaphore_mem>> -> memref<1x!tpu.dma_semaphore, #tpu.memory_space<semaphore_mem>>
    %1256 = tpu.memref_squeeze %1255 : memref<1x!tpu.dma_semaphore, #tpu.memory_space<semaphore_mem>> -> memref<!tpu.dma_semaphore, #tpu.memory_space<semaphore_mem>>
    tpu.wait_dma2 semaphore(%1256 : memref<!tpu.dma_semaphore, #tpu.memory_space<semaphore_mem>>) src(%1252 : memref<128xf32, #tpu.memory_space<any>>) dst(%1254 : memref<128xf32, #tpu.memory_space<vmem>>)
    %c6_i32_910 = arith.constant 6 : i32
    %c6_i32_911 = arith.constant 6 : i32
    %c0_i32_912 = arith.constant 0 : i32
    %c0_i32_913 = arith.constant 0 : i32
    %1257 = tpu.memref_slice %arg5[%725, %c0_i32_913] : memref<256x128xf32, #tpu.memory_space<any>> -> memref<1x128xf32, #tpu.memory_space<any>>
    %1258 = tpu.memref_squeeze %1257 : memref<1x128xf32, #tpu.memory_space<any>> -> memref<128xf32, #tpu.memory_space<any>>
    %c0_i32_914 = arith.constant 0 : i32
    %1259 = tpu.memref_slice %arg9[%c6_i32_910, %c6_i32_911, %c0_i32_914] : memref<8x8x128xf32, #tpu.memory_space<vmem>> -> memref<1x1x128xf32, #tpu.memory_space<vmem>>
    %1260 = tpu.memref_squeeze %1259 : memref<1x1x128xf32, #tpu.memory_space<vmem>> -> memref<128xf32, #tpu.memory_space<vmem>>
    %1261 = tpu.memref_slice %arg10[%c0_i32_912] : memref<1x!tpu.dma_semaphore, #tpu.memory_space<semaphore_mem>> -> memref<1x!tpu.dma_semaphore, #tpu.memory_space<semaphore_mem>>
    %1262 = tpu.memref_squeeze %1261 : memref<1x!tpu.dma_semaphore, #tpu.memory_space<semaphore_mem>> -> memref<!tpu.dma_semaphore, #tpu.memory_space<semaphore_mem>>
    tpu.wait_dma2 semaphore(%1262 : memref<!tpu.dma_semaphore, #tpu.memory_space<semaphore_mem>>) src(%1258 : memref<128xf32, #tpu.memory_space<any>>) dst(%1260 : memref<128xf32, #tpu.memory_space<vmem>>)
    %c6_i32_915 = arith.constant 6 : i32
    %c7_i32_916 = arith.constant 7 : i32
    %c0_i32_917 = arith.constant 0 : i32
    %c0_i32_918 = arith.constant 0 : i32
    %1263 = tpu.memref_slice %arg5[%736, %c0_i32_918] : memref<256x128xf32, #tpu.memory_space<any>> -> memref<1x128xf32, #tpu.memory_space<any>>
    %1264 = tpu.memref_squeeze %1263 : memref<1x128xf32, #tpu.memory_space<any>> -> memref<128xf32, #tpu.memory_space<any>>
    %c0_i32_919 = arith.constant 0 : i32
    %1265 = tpu.memref_slice %arg9[%c6_i32_915, %c7_i32_916, %c0_i32_919] : memref<8x8x128xf32, #tpu.memory_space<vmem>> -> memref<1x1x128xf32, #tpu.memory_space<vmem>>
    %1266 = tpu.memref_squeeze %1265 : memref<1x1x128xf32, #tpu.memory_space<vmem>> -> memref<128xf32, #tpu.memory_space<vmem>>
    %1267 = tpu.memref_slice %arg10[%c0_i32_917] : memref<1x!tpu.dma_semaphore, #tpu.memory_space<semaphore_mem>> -> memref<1x!tpu.dma_semaphore, #tpu.memory_space<semaphore_mem>>
    %1268 = tpu.memref_squeeze %1267 : memref<1x!tpu.dma_semaphore, #tpu.memory_space<semaphore_mem>> -> memref<!tpu.dma_semaphore, #tpu.memory_space<semaphore_mem>>
    tpu.wait_dma2 semaphore(%1268 : memref<!tpu.dma_semaphore, #tpu.memory_space<semaphore_mem>>) src(%1264 : memref<128xf32, #tpu.memory_space<any>>) dst(%1266 : memref<128xf32, #tpu.memory_space<vmem>>)
    %c7_i32_920 = arith.constant 7 : i32
    %c0_i32_921 = arith.constant 0 : i32
    %c0_i32_922 = arith.constant 0 : i32
    %1269 = tpu.memref_slice %arg4[%745, %c0_i32_922] : memref<256x128xf32, #tpu.memory_space<any>> -> memref<1x128xf32, #tpu.memory_space<any>>
    %1270 = tpu.memref_squeeze %1269 : memref<1x128xf32, #tpu.memory_space<any>> -> memref<128xf32, #tpu.memory_space<any>>
    %c0_i32_923 = arith.constant 0 : i32
    %1271 = tpu.memref_slice %arg7[%c7_i32_920, %c0_i32_923] : memref<8x128xf32, #tpu.memory_space<vmem>> -> memref<1x128xf32, #tpu.memory_space<vmem>>
    %1272 = tpu.memref_squeeze %1271 : memref<1x128xf32, #tpu.memory_space<vmem>> -> memref<128xf32, #tpu.memory_space<vmem>>
    %1273 = tpu.memref_slice %arg10[%c0_i32_921] : memref<1x!tpu.dma_semaphore, #tpu.memory_space<semaphore_mem>> -> memref<1x!tpu.dma_semaphore, #tpu.memory_space<semaphore_mem>>
    %1274 = tpu.memref_squeeze %1273 : memref<1x!tpu.dma_semaphore, #tpu.memory_space<semaphore_mem>> -> memref<!tpu.dma_semaphore, #tpu.memory_space<semaphore_mem>>
    tpu.wait_dma2 semaphore(%1274 : memref<!tpu.dma_semaphore, #tpu.memory_space<semaphore_mem>>) src(%1270 : memref<128xf32, #tpu.memory_space<any>>) dst(%1272 : memref<128xf32, #tpu.memory_space<vmem>>)
    %c7_i32_924 = arith.constant 7 : i32
    %c0_i32_925 = arith.constant 0 : i32
    %c0_i32_926 = arith.constant 0 : i32
    %1275 = tpu.memref_slice %arg5[%748, %c0_i32_926] : memref<256x128xf32, #tpu.memory_space<any>> -> memref<1x128xf32, #tpu.memory_space<any>>
    %1276 = tpu.memref_squeeze %1275 : memref<1x128xf32, #tpu.memory_space<any>> -> memref<128xf32, #tpu.memory_space<any>>
    %c0_i32_927 = arith.constant 0 : i32
    %1277 = tpu.memref_slice %arg8[%c7_i32_924, %c0_i32_927] : memref<8x128xf32, #tpu.memory_space<vmem>> -> memref<1x128xf32, #tpu.memory_space<vmem>>
    %1278 = tpu.memref_squeeze %1277 : memref<1x128xf32, #tpu.memory_space<vmem>> -> memref<128xf32, #tpu.memory_space<vmem>>
    %1279 = tpu.memref_slice %arg10[%c0_i32_925] : memref<1x!tpu.dma_semaphore, #tpu.memory_space<semaphore_mem>> -> memref<1x!tpu.dma_semaphore, #tpu.memory_space<semaphore_mem>>
    %1280 = tpu.memref_squeeze %1279 : memref<1x!tpu.dma_semaphore, #tpu.memory_space<semaphore_mem>> -> memref<!tpu.dma_semaphore, #tpu.memory_space<semaphore_mem>>
    tpu.wait_dma2 semaphore(%1280 : memref<!tpu.dma_semaphore, #tpu.memory_space<semaphore_mem>>) src(%1276 : memref<128xf32, #tpu.memory_space<any>>) dst(%1278 : memref<128xf32, #tpu.memory_space<vmem>>)
    %c7_i32_928 = arith.constant 7 : i32
    %c0_i32_929 = arith.constant 0 : i32
    %c0_i32_930 = arith.constant 0 : i32
    %c0_i32_931 = arith.constant 0 : i32
    %1281 = tpu.memref_slice %arg5[%765, %c0_i32_931] : memref<256x128xf32, #tpu.memory_space<any>> -> memref<1x128xf32, #tpu.memory_space<any>>
    %1282 = tpu.memref_squeeze %1281 : memref<1x128xf32, #tpu.memory_space<any>> -> memref<128xf32, #tpu.memory_space<any>>
    %c0_i32_932 = arith.constant 0 : i32
    %1283 = tpu.memref_slice %arg9[%c7_i32_928, %c0_i32_929, %c0_i32_932] : memref<8x8x128xf32, #tpu.memory_space<vmem>> -> memref<1x1x128xf32, #tpu.memory_space<vmem>>
    %1284 = tpu.memref_squeeze %1283 : memref<1x1x128xf32, #tpu.memory_space<vmem>> -> memref<128xf32, #tpu.memory_space<vmem>>
    %1285 = tpu.memref_slice %arg10[%c0_i32_930] : memref<1x!tpu.dma_semaphore, #tpu.memory_space<semaphore_mem>> -> memref<1x!tpu.dma_semaphore, #tpu.memory_space<semaphore_mem>>
    %1286 = tpu.memref_squeeze %1285 : memref<1x!tpu.dma_semaphore, #tpu.memory_space<semaphore_mem>> -> memref<!tpu.dma_semaphore, #tpu.memory_space<semaphore_mem>>
    tpu.wait_dma2 semaphore(%1286 : memref<!tpu.dma_semaphore, #tpu.memory_space<semaphore_mem>>) src(%1282 : memref<128xf32, #tpu.memory_space<any>>) dst(%1284 : memref<128xf32, #tpu.memory_space<vmem>>)
    %c7_i32_933 = arith.constant 7 : i32
    %c1_i32_934 = arith.constant 1 : i32
    %c0_i32_935 = arith.constant 0 : i32
    %c0_i32_936 = arith.constant 0 : i32
    %1287 = tpu.memref_slice %arg5[%776, %c0_i32_936] : memref<256x128xf32, #tpu.memory_space<any>> -> memref<1x128xf32, #tpu.memory_space<any>>
    %1288 = tpu.memref_squeeze %1287 : memref<1x128xf32, #tpu.memory_space<any>> -> memref<128xf32, #tpu.memory_space<any>>
    %c0_i32_937 = arith.constant 0 : i32
    %1289 = tpu.memref_slice %arg9[%c7_i32_933, %c1_i32_934, %c0_i32_937] : memref<8x8x128xf32, #tpu.memory_space<vmem>> -> memref<1x1x128xf32, #tpu.memory_space<vmem>>
    %1290 = tpu.memref_squeeze %1289 : memref<1x1x128xf32, #tpu.memory_space<vmem>> -> memref<128xf32, #tpu.memory_space<vmem>>
    %1291 = tpu.memref_slice %arg10[%c0_i32_935] : memref<1x!tpu.dma_semaphore, #tpu.memory_space<semaphore_mem>> -> memref<1x!tpu.dma_semaphore, #tpu.memory_space<semaphore_mem>>
    %1292 = tpu.memref_squeeze %1291 : memref<1x!tpu.dma_semaphore, #tpu.memory_space<semaphore_mem>> -> memref<!tpu.dma_semaphore, #tpu.memory_space<semaphore_mem>>
    tpu.wait_dma2 semaphore(%1292 : memref<!tpu.dma_semaphore, #tpu.memory_space<semaphore_mem>>) src(%1288 : memref<128xf32, #tpu.memory_space<any>>) dst(%1290 : memref<128xf32, #tpu.memory_space<vmem>>)
    %c7_i32_938 = arith.constant 7 : i32
    %c2_i32_939 = arith.constant 2 : i32
    %c0_i32_940 = arith.constant 0 : i32
    %c0_i32_941 = arith.constant 0 : i32
    %1293 = tpu.memref_slice %arg5[%787, %c0_i32_941] : memref<256x128xf32, #tpu.memory_space<any>> -> memref<1x128xf32, #tpu.memory_space<any>>
    %1294 = tpu.memref_squeeze %1293 : memref<1x128xf32, #tpu.memory_space<any>> -> memref<128xf32, #tpu.memory_space<any>>
    %c0_i32_942 = arith.constant 0 : i32
    %1295 = tpu.memref_slice %arg9[%c7_i32_938, %c2_i32_939, %c0_i32_942] : memref<8x8x128xf32, #tpu.memory_space<vmem>> -> memref<1x1x128xf32, #tpu.memory_space<vmem>>
    %1296 = tpu.memref_squeeze %1295 : memref<1x1x128xf32, #tpu.memory_space<vmem>> -> memref<128xf32, #tpu.memory_space<vmem>>
    %1297 = tpu.memref_slice %arg10[%c0_i32_940] : memref<1x!tpu.dma_semaphore, #tpu.memory_space<semaphore_mem>> -> memref<1x!tpu.dma_semaphore, #tpu.memory_space<semaphore_mem>>
    %1298 = tpu.memref_squeeze %1297 : memref<1x!tpu.dma_semaphore, #tpu.memory_space<semaphore_mem>> -> memref<!tpu.dma_semaphore, #tpu.memory_space<semaphore_mem>>
    tpu.wait_dma2 semaphore(%1298 : memref<!tpu.dma_semaphore, #tpu.memory_space<semaphore_mem>>) src(%1294 : memref<128xf32, #tpu.memory_space<any>>) dst(%1296 : memref<128xf32, #tpu.memory_space<vmem>>)
    %c7_i32_943 = arith.constant 7 : i32
    %c3_i32_944 = arith.constant 3 : i32
    %c0_i32_945 = arith.constant 0 : i32
    %c0_i32_946 = arith.constant 0 : i32
    %1299 = tpu.memref_slice %arg5[%798, %c0_i32_946] : memref<256x128xf32, #tpu.memory_space<any>> -> memref<1x128xf32, #tpu.memory_space<any>>
    %1300 = tpu.memref_squeeze %1299 : memref<1x128xf32, #tpu.memory_space<any>> -> memref<128xf32, #tpu.memory_space<any>>
    %c0_i32_947 = arith.constant 0 : i32
    %1301 = tpu.memref_slice %arg9[%c7_i32_943, %c3_i32_944, %c0_i32_947] : memref<8x8x128xf32, #tpu.memory_space<vmem>> -> memref<1x1x128xf32, #tpu.memory_space<vmem>>
    %1302 = tpu.memref_squeeze %1301 : memref<1x1x128xf32, #tpu.memory_space<vmem>> -> memref<128xf32, #tpu.memory_space<vmem>>
    %1303 = tpu.memref_slice %arg10[%c0_i32_945] : memref<1x!tpu.dma_semaphore, #tpu.memory_space<semaphore_mem>> -> memref<1x!tpu.dma_semaphore, #tpu.memory_space<semaphore_mem>>
    %1304 = tpu.memref_squeeze %1303 : memref<1x!tpu.dma_semaphore, #tpu.memory_space<semaphore_mem>> -> memref<!tpu.dma_semaphore, #tpu.memory_space<semaphore_mem>>
    tpu.wait_dma2 semaphore(%1304 : memref<!tpu.dma_semaphore, #tpu.memory_space<semaphore_mem>>) src(%1300 : memref<128xf32, #tpu.memory_space<any>>) dst(%1302 : memref<128xf32, #tpu.memory_space<vmem>>)
    %c7_i32_948 = arith.constant 7 : i32
    %c4_i32_949 = arith.constant 4 : i32
    %c0_i32_950 = arith.constant 0 : i32
    %c0_i32_951 = arith.constant 0 : i32
    %1305 = tpu.memref_slice %arg5[%809, %c0_i32_951] : memref<256x128xf32, #tpu.memory_space<any>> -> memref<1x128xf32, #tpu.memory_space<any>>
    %1306 = tpu.memref_squeeze %1305 : memref<1x128xf32, #tpu.memory_space<any>> -> memref<128xf32, #tpu.memory_space<any>>
    %c0_i32_952 = arith.constant 0 : i32
    %1307 = tpu.memref_slice %arg9[%c7_i32_948, %c4_i32_949, %c0_i32_952] : memref<8x8x128xf32, #tpu.memory_space<vmem>> -> memref<1x1x128xf32, #tpu.memory_space<vmem>>
    %1308 = tpu.memref_squeeze %1307 : memref<1x1x128xf32, #tpu.memory_space<vmem>> -> memref<128xf32, #tpu.memory_space<vmem>>
    %1309 = tpu.memref_slice %arg10[%c0_i32_950] : memref<1x!tpu.dma_semaphore, #tpu.memory_space<semaphore_mem>> -> memref<1x!tpu.dma_semaphore, #tpu.memory_space<semaphore_mem>>
    %1310 = tpu.memref_squeeze %1309 : memref<1x!tpu.dma_semaphore, #tpu.memory_space<semaphore_mem>> -> memref<!tpu.dma_semaphore, #tpu.memory_space<semaphore_mem>>
    tpu.wait_dma2 semaphore(%1310 : memref<!tpu.dma_semaphore, #tpu.memory_space<semaphore_mem>>) src(%1306 : memref<128xf32, #tpu.memory_space<any>>) dst(%1308 : memref<128xf32, #tpu.memory_space<vmem>>)
    %c7_i32_953 = arith.constant 7 : i32
    %c5_i32_954 = arith.constant 5 : i32
    %c0_i32_955 = arith.constant 0 : i32
    %c0_i32_956 = arith.constant 0 : i32
    %1311 = tpu.memref_slice %arg5[%820, %c0_i32_956] : memref<256x128xf32, #tpu.memory_space<any>> -> memref<1x128xf32, #tpu.memory_space<any>>
    %1312 = tpu.memref_squeeze %1311 : memref<1x128xf32, #tpu.memory_space<any>> -> memref<128xf32, #tpu.memory_space<any>>
    %c0_i32_957 = arith.constant 0 : i32
    %1313 = tpu.memref_slice %arg9[%c7_i32_953, %c5_i32_954, %c0_i32_957] : memref<8x8x128xf32, #tpu.memory_space<vmem>> -> memref<1x1x128xf32, #tpu.memory_space<vmem>>
    %1314 = tpu.memref_squeeze %1313 : memref<1x1x128xf32, #tpu.memory_space<vmem>> -> memref<128xf32, #tpu.memory_space<vmem>>
    %1315 = tpu.memref_slice %arg10[%c0_i32_955] : memref<1x!tpu.dma_semaphore, #tpu.memory_space<semaphore_mem>> -> memref<1x!tpu.dma_semaphore, #tpu.memory_space<semaphore_mem>>
    %1316 = tpu.memref_squeeze %1315 : memref<1x!tpu.dma_semaphore, #tpu.memory_space<semaphore_mem>> -> memref<!tpu.dma_semaphore, #tpu.memory_space<semaphore_mem>>
    tpu.wait_dma2 semaphore(%1316 : memref<!tpu.dma_semaphore, #tpu.memory_space<semaphore_mem>>) src(%1312 : memref<128xf32, #tpu.memory_space<any>>) dst(%1314 : memref<128xf32, #tpu.memory_space<vmem>>)
    %c7_i32_958 = arith.constant 7 : i32
    %c6_i32_959 = arith.constant 6 : i32
    %c0_i32_960 = arith.constant 0 : i32
    %c0_i32_961 = arith.constant 0 : i32
    %1317 = tpu.memref_slice %arg5[%831, %c0_i32_961] : memref<256x128xf32, #tpu.memory_space<any>> -> memref<1x128xf32, #tpu.memory_space<any>>
    %1318 = tpu.memref_squeeze %1317 : memref<1x128xf32, #tpu.memory_space<any>> -> memref<128xf32, #tpu.memory_space<any>>
    %c0_i32_962 = arith.constant 0 : i32
    %1319 = tpu.memref_slice %arg9[%c7_i32_958, %c6_i32_959, %c0_i32_962] : memref<8x8x128xf32, #tpu.memory_space<vmem>> -> memref<1x1x128xf32, #tpu.memory_space<vmem>>
    %1320 = tpu.memref_squeeze %1319 : memref<1x1x128xf32, #tpu.memory_space<vmem>> -> memref<128xf32, #tpu.memory_space<vmem>>
    %1321 = tpu.memref_slice %arg10[%c0_i32_960] : memref<1x!tpu.dma_semaphore, #tpu.memory_space<semaphore_mem>> -> memref<1x!tpu.dma_semaphore, #tpu.memory_space<semaphore_mem>>
    %1322 = tpu.memref_squeeze %1321 : memref<1x!tpu.dma_semaphore, #tpu.memory_space<semaphore_mem>> -> memref<!tpu.dma_semaphore, #tpu.memory_space<semaphore_mem>>
    tpu.wait_dma2 semaphore(%1322 : memref<!tpu.dma_semaphore, #tpu.memory_space<semaphore_mem>>) src(%1318 : memref<128xf32, #tpu.memory_space<any>>) dst(%1320 : memref<128xf32, #tpu.memory_space<vmem>>)
    %c7_i32_963 = arith.constant 7 : i32
    %c7_i32_964 = arith.constant 7 : i32
    %c0_i32_965 = arith.constant 0 : i32
    %c0_i32_966 = arith.constant 0 : i32
    %1323 = tpu.memref_slice %arg5[%842, %c0_i32_966] : memref<256x128xf32, #tpu.memory_space<any>> -> memref<1x128xf32, #tpu.memory_space<any>>
    %1324 = tpu.memref_squeeze %1323 : memref<1x128xf32, #tpu.memory_space<any>> -> memref<128xf32, #tpu.memory_space<any>>
    %c0_i32_967 = arith.constant 0 : i32
    %1325 = tpu.memref_slice %arg9[%c7_i32_963, %c7_i32_964, %c0_i32_967] : memref<8x8x128xf32, #tpu.memory_space<vmem>> -> memref<1x1x128xf32, #tpu.memory_space<vmem>>
    %1326 = tpu.memref_squeeze %1325 : memref<1x1x128xf32, #tpu.memory_space<vmem>> -> memref<128xf32, #tpu.memory_space<vmem>>
    %1327 = tpu.memref_slice %arg10[%c0_i32_965] : memref<1x!tpu.dma_semaphore, #tpu.memory_space<semaphore_mem>> -> memref<1x!tpu.dma_semaphore, #tpu.memory_space<semaphore_mem>>
    %1328 = tpu.memref_squeeze %1327 : memref<1x!tpu.dma_semaphore, #tpu.memory_space<semaphore_mem>> -> memref<!tpu.dma_semaphore, #tpu.memory_space<semaphore_mem>>
    tpu.wait_dma2 semaphore(%1328 : memref<!tpu.dma_semaphore, #tpu.memory_space<semaphore_mem>>) src(%1324 : memref<128xf32, #tpu.memory_space<any>>) dst(%1326 : memref<128xf32, #tpu.memory_space<vmem>>)
    %c0 = arith.constant 0 : index
    %c0_968 = arith.constant 0 : index
    %1329 = vector.load %arg7[%c0, %c0_968] : memref<8x128xf32, #tpu.memory_space<vmem>>, vector<8x128xf32>
    %c0_969 = arith.constant 0 : index
    %c0_970 = arith.constant 0 : index
    %1330 = vector.load %arg8[%c0_969, %c0_970] : memref<8x128xf32, #tpu.memory_space<vmem>>, vector<8x128xf32>
    %c0_971 = arith.constant 0 : index
    %c0_972 = arith.constant 0 : index
    %c0_973 = arith.constant 0 : index
    %1331 = vector.load %arg9[%c0_971, %c0_972, %c0_973] : memref<8x8x128xf32, #tpu.memory_space<vmem>>, vector<8x8x128xf32>
    %1332 = arith.mulf %1329, %1330 : vector<8x128xf32>
    %cst = arith.constant dense<0.000000e+00> : vector<8xf32>
    %1333 = vector.multi_reduction <add>, %1332, %cst [1] : vector<8x128xf32> to vector<8xf32>
    %1334 = vector.shape_cast %1333 : vector<8xf32> to vector<8x1xf32>
    %cst_974 = arith.constant 0.000000e+00 : f32
    %1335 = vector.broadcast %cst_974 : f32 to vector<8x1xf32>
    %1336 = arith.minimumf %1334, %1335 : vector<8x1xf32>
    %1337 = math.absf %1334 : vector<8x1xf32>
    %cst_975 = arith.constant 0.000000e+00 : f32
    %1338 = vector.broadcast %cst_975 : f32 to vector<8x1xf32>
    %1339 = arith.subf %1338, %1337 : vector<8x1xf32>
    %1340 = math.exp %1339 : vector<8x1xf32>
    %1341 = math.log1p %1340 : vector<8x1xf32>
    %1342 = arith.subf %1336, %1341 : vector<8x1xf32>
    %1343 = vector.shape_cast %1329 : vector<8x128xf32> to vector<8x1x128xf32>
    %1344 = vector.broadcast %1343 : vector<8x1x128xf32> to vector<8x8x128xf32>
    %1345 = arith.mulf %1331, %1344 : vector<8x8x128xf32>
    %cst_976 = arith.constant dense<0.000000e+00> : vector<8x8xf32>
    %1346 = vector.multi_reduction <add>, %1345, %cst_976 [2] : vector<8x8x128xf32> to vector<8x8xf32>
    %cst_977 = arith.constant 0.000000e+00 : f32
    %1347 = vector.broadcast %cst_977 : f32 to vector<8x8xf32>
    %1348 = arith.subf %1347, %1346 : vector<8x8xf32>
    %cst_978 = arith.constant 0.000000e+00 : f32
    %1349 = vector.broadcast %cst_978 : f32 to vector<8x8xf32>
    %1350 = arith.minimumf %1348, %1349 : vector<8x8xf32>
    %1351 = math.absf %1348 : vector<8x8xf32>
    %cst_979 = arith.constant 0.000000e+00 : f32
    %1352 = vector.broadcast %cst_979 : f32 to vector<8x8xf32>
    %1353 = arith.subf %1352, %1351 : vector<8x8xf32>
    %1354 = math.exp %1353 : vector<8x8xf32>
    %1355 = math.log1p %1354 : vector<8x8xf32>
    %1356 = arith.subf %1350, %1355 : vector<8x8xf32>
    %1357 = tpu.iota {dimensions = array<i32: 0>} : vector<8x1xi32>
    %1358 = vector.broadcast %0 : i32 to vector<8x1xi32>
    %1359 = arith.addi %1358, %1357 : vector<8x1xi32>
    %c16_i32 = arith.constant 16 : i32
    %1360 = vector.broadcast %c16_i32 : i32 to vector<8x1xi32>
    %1361 = arith.cmpi slt, %1359, %1360 : vector<8x1xi32>
    %cst_980 = arith.constant 0.000000e+00 : f32
    %1362 = vector.broadcast %cst_980 : f32 to vector<8x1xf32>
    %1363 = arith.select %1361, %1342, %1362 : vector<8x1xi1>, vector<8x1xf32>
    %cst_981 = arith.constant 0.000000e+00 : f32
    %1364 = vector.shape_cast %1361 : vector<8x1xi1> to vector<8x1xi1>
    %1365 = vector.broadcast %1364 : vector<8x1xi1> to vector<8x8xi1>
    %1366 = vector.broadcast %cst_981 : f32 to vector<8x8xf32>
    %1367 = arith.select %1365, %1356, %1366 : vector<8x8xi1>, vector<8x8xf32>
    %1368 = vector.shape_cast %1363 : vector<8x1xf32> to vector<1x8x1xf32>
    %cst_982 = arith.constant dense<0.000000e+00> : vector<1xf32>
    %1369 = vector.multi_reduction <add>, %1368, %cst_982 [1, 2] : vector<1x8x1xf32> to vector<1xf32>
    %1370 = vector.shape_cast %1369 : vector<1xf32> to vector<1x1x1xf32>
    %1371 = vector.extract %1370[0, 0, 0] : f32 from vector<1x1x1xf32>
    %1372 = vector.shape_cast %1367 : vector<8x8xf32> to vector<1x8x8xf32>
    %cst_983 = arith.constant dense<0.000000e+00> : vector<1xf32>
    %1373 = vector.multi_reduction <add>, %1372, %cst_983 [1, 2] : vector<1x8x8xf32> to vector<1xf32>
    %1374 = vector.shape_cast %1373 : vector<1xf32> to vector<1x1x1xf32>
    %1375 = vector.extract %1374[0, 0, 0] : f32 from vector<1x1x1xf32>
    %1376 = arith.addf %1371, %1375 : f32
    %cst_984 = arith.constant 0.000000e+00 : f32
    %1377 = arith.subf %cst_984, %1376 : f32
    %cst_985 = arith.constant 0.000000e+00 : f32
    %1378 = vector.broadcast %cst_985 : f32 to vector<1x1x128xf32>
    %1379 = vector.broadcast %1377 : f32 to vector<1x1x128xf32>
    %1380 = arith.addf %1378, %1379 : vector<1x1x128xf32>
    %c0_986 = arith.constant 0 : index
    %c0_987 = arith.constant 0 : index
    %c0_988 = arith.constant 0 : index
    %1381 = vector.load %arg6[%c0_986, %c0_987, %c0_988] : memref<1x1x128xf32, #tpu.memory_space<vmem>>, vector<1x1x128xf32>
    tpu.vector_store %arg6[%c0_986, %c0_987, %c0_988], %1380 {strides = array<i32>} : memref<1x1x128xf32, #tpu.memory_space<vmem>>, vector<1x1x128xf32>,
    return
  }
  func.func @transform_2(%arg0: i32, %arg1: memref<16xi32, #tpu.memory_space<smem>>, %arg2: memref<16xi32, #tpu.memory_space<smem>>, %arg3: memref<128xi32, #tpu.memory_space<smem>>) -> (i32, i32, i32) {
    %c0_i32 = arith.constant 0 : i32
    %c0_i32_0 = arith.constant 0 : i32
    %c0_i32_1 = arith.constant 0 : i32
    return %arg0, %c0_i32, %c0_i32_0 : i32, i32, i32
  }
}

</mosaic_0001>

<llo_original>
// kernel: tpu_custom_call.1
$region0: #{tpu_custom_call.1}
  #allocation0 [shape = 'u32[]', space=smem, size = 0x4, offset = 0x4, fixed_abs, tag = 'smem constant byte address 0x4 - core index']
  #allocation1 [shape = 'u32[72,128]{1,0:T(1,128)}', space=vmem, size = 0x9000, scoped, tag = 'internal scratch']
  #allocation2 [shape = 'f32[8,128]{1,0:T(8,128)}', space=vmem, size = 0x1000, scoped, tag = 'scratch operand']
  #allocation3 [shape = 'f32[8,128]{1,0:T(8,128)}', space=vmem, size = 0x1000, scoped, tag = 'scratch operand']
  #allocation4 [shape = 'f32[8,8,128]{2,1,0:T(8,128)}', space=vmem, size = 0x8000, scoped, tag = 'scratch operand']
  #allocation5 [shape = 's32[1]{0}', space=sflag, size = 0x4, scoped, tag = 'scratch operand']
  #allocation6 [shape = 's32[1]{0}', space=sflag, size = 0x4, scoped, tag = 'scoped memory for tpu_custom_call.1']
  #allocation7 [shape = 'u8[512]{0}', space=smem, size = 0x200, scoped, tag = 'prefetched SMEM operand 0']
  #allocation8 [shape = 'u8[512]{0}', space=smem, size = 0x200, scoped, tag = 'prefetched SMEM operand 1']
  #allocation9 [shape = 'u8[512]{0}', space=smem, size = 0x200, scoped, tag = 'prefetched SMEM operand 2']
  #allocation12 [shape = 's32[]', space=sflag, size = 0x4, offset = 0, fixed_abs, tag = 'sflag constant byte address 0x0 - dummy sync flag']
  #allocation13 [shape = 's32[]', space=sflag, size = 0x4, offset = 0, fixed_abs, tag = 'sflag constant byte address 0x0 - dummy sync flag']
  #allocation14 [shape = 'u32[]', space=smem, size = 0x4, offset = 0x44, fixed_abs, tag = 'smem constant byte address 0x44 - assertion arg 0']
  #allocation15 [shape = 'u32[]', space=smem, size = 0x4, offset = 0x48, fixed_abs, tag = 'smem constant byte address 0x48 - assertion arg 1']
  #allocation16 [shape = 's32[]', space=sflag, size = 0x4, offset = 0, fixed_abs, tag = 'sflag constant byte address 0x0 - dummy sync flag']
  #allocation17 [shape = 's32[]', space=sflag, size = 0x4, offset = 0, fixed_abs, tag = 'sflag constant byte address 0x0 - dummy sync flag']
  #allocation18 [shape = 's32[]', space=sflag, size = 0x4, offset = 0, fixed_abs, tag = 'sflag constant byte address 0x0 - dummy sync flag']
  #allocation19 [shape = 's32[]', space=sflag, size = 0x4, offset = 0, fixed_abs, tag = 'sflag constant byte address 0x0 - dummy sync flag']
  #allocation20 [shape = 's32[]', space=sflag, size = 0x4, offset = 0, fixed_abs, tag = 'sflag constant byte address 0x0 - dummy sync flag']
  #allocation21 [shape = 's32[]', space=sflag, size = 0x4, offset = 0, fixed_abs, tag = 'sflag constant byte address 0x0 - dummy sync flag']
  #allocation22 [shape = 's32[]', space=sflag, size = 0x4, offset = 0, fixed_abs, tag = 'sflag constant byte address 0x0 - dummy sync flag']
  #allocation23 [shape = 's32[]', space=sflag, size = 0x4, offset = 0, fixed_abs, tag = 'sflag constant byte address 0x0 - dummy sync flag']
  #allocation24 [shape = 's32[]', space=sflag, size = 0x4, offset = 0, fixed_abs, tag = 'sflag constant byte address 0x0 - dummy sync flag']
  #allocation25 [shape = 's32[]', space=sflag, size = 0x4, offset = 0, fixed_abs, tag = 'sflag constant byte address 0x0 - dummy sync flag']
  #allocation26 [shape = 's32[]', space=sflag, size = 0x4, offset = 0, fixed_abs, tag = 'sflag constant byte address 0x0 - dummy sync flag']
  #allocation27 [shape = 's32[]', space=sflag, size = 0x4, offset = 0, fixed_abs, tag = 'sflag constant byte address 0x0 - dummy sync flag']
  #allocation28 [shape = 's32[]', space=sflag, size = 0x4, offset = 0, fixed_abs, tag = 'sflag constant byte address 0x0 - dummy sync flag']
  #allocation29 [shape = 's32[]', space=sflag, size = 0x4, offset = 0, fixed_abs, tag = 'sflag constant byte address 0x0 - dummy sync flag']
  #allocation30 [shape = 's32[]', space=sflag, size = 0x4, offset = 0, fixed_abs, tag = 'sflag constant byte address 0x0 - dummy sync flag']
  #allocation31 [shape = 's32[]', space=sflag, size = 0x4, offset = 0, fixed_abs, tag = 'sflag constant byte address 0x0 - dummy sync flag']
  #allocation32 [shape = 's32[]', space=sflag, size = 0x4, offset = 0, fixed_abs, tag = 'sflag constant byte address 0x0 - dummy sync flag']
  #allocation33 [shape = 's32[]', space=sflag, size = 0x4, offset = 0, fixed_abs, tag = 'sflag constant byte address 0x0 - dummy sync flag']
  #allocation34 [shape = 's32[]', space=sflag, size = 0x4, offset = 0, fixed_abs, tag = 'sflag constant byte address 0x0 - dummy sync flag']
  #allocation35 [shape = 's32[]', space=sflag, size = 0x4, offset = 0, fixed_abs, tag = 'sflag constant byte address 0x0 - dummy sync flag']
  #allocation36 [shape = 's32[]', space=sflag, size = 0x4, offset = 0, fixed_abs, tag = 'sflag constant byte address 0x0 - dummy sync flag']
  #allocation37 [shape = 's32[]', space=sflag, size = 0x4, offset = 0, fixed_abs, tag = 'sflag constant byte address 0x0 - dummy sync flag']
  #allocation38 [shape = 's32[]', space=sflag, size = 0x4, offset = 0, fixed_abs, tag = 'sflag constant byte address 0x0 - dummy sync flag']
  #allocation39 [shape = 's32[]', space=sflag, size = 0x4, offset = 0, fixed_abs, tag = 'sflag constant byte address 0x0 - dummy sync flag']
  #allocation40 [shape = 's32[]', space=sflag, size = 0x4, offset = 0, fixed_abs, tag = 'sflag constant byte address 0x0 - dummy sync flag']
  #allocation41 [shape = 's32[]', space=sflag, size = 0x4, offset = 0, fixed_abs, tag = 'sflag constant byte address 0x0 - dummy sync flag']
  #allocation42 [shape = 's32[]', space=sflag, size = 0x4, offset = 0, fixed_abs, tag = 'sflag constant byte address 0x0 - dummy sync flag']
  #allocation43 [shape = 's32[]', space=sflag, size = 0x4, offset = 0, fixed_abs, tag = 'sflag constant byte address 0x0 - dummy sync flag']
  #allocation44 [shape = 's32[]', space=sflag, size = 0x4, offset = 0, fixed_abs, tag = 'sflag constant byte address 0x0 - dummy sync flag']
  #allocation45 [shape = 's32[]', space=sflag, size = 0x4, offset = 0, fixed_abs, tag = 'sflag constant byte address 0x0 - dummy sync flag']
  #allocation46 [shape = 's32[]', space=sflag, size = 0x4, offset = 0, fixed_abs, tag = 'sflag constant byte address 0x0 - dummy sync flag']
  #allocation47 [shape = 's32[]', space=sflag, size = 0x4, offset = 0, fixed_abs, tag = 'sflag constant byte address 0x0 - dummy sync flag']
  #allocation48 [shape = 's32[]', space=sflag, size = 0x4, offset = 0, fixed_abs, tag = 'sflag constant byte address 0x0 - dummy sync flag']
  #allocation49 [shape = 's32[]', space=sflag, size = 0x4, offset = 0, fixed_abs, tag = 'sflag constant byte address 0x0 - dummy sync flag']
  #allocation50 [shape = 's32[]', space=sflag, size = 0x4, offset = 0, fixed_abs, tag = 'sflag constant byte address 0x0 - dummy sync flag']
  #allocation51 [shape = 's32[]', space=sflag, size = 0x4, offset = 0, fixed_abs, tag = 'sflag constant byte address 0x0 - dummy sync flag']
  #allocation52 [shape = 's32[]', space=sflag, size = 0x4, offset = 0, fixed_abs, tag = 'sflag constant byte address 0x0 - dummy sync flag']
  #allocation53 [shape = 's32[]', space=sflag, size = 0x4, offset = 0, fixed_abs, tag = 'sflag constant byte address 0x0 - dummy sync flag']
  #allocation54 [shape = 's32[]', space=sflag, size = 0x4, offset = 0, fixed_abs, tag = 'sflag constant byte address 0x0 - dummy sync flag']
  #allocation55 [shape = 's32[]', space=sflag, size = 0x4, offset = 0, fixed_abs, tag = 'sflag constant byte address 0x0 - dummy sync flag']
  #allocation56 [shape = 's32[]', space=sflag, size = 0x4, offset = 0, fixed_abs, tag = 'sflag constant byte address 0x0 - dummy sync flag']
  #allocation57 [shape = 's32[]', space=sflag, size = 0x4, offset = 0, fixed_abs, tag = 'sflag constant byte address 0x0 - dummy sync flag']
  #allocation58 [shape = 's32[]', space=sflag, size = 0x4, offset = 0, fixed_abs, tag = 'sflag constant byte address 0x0 - dummy sync flag']
  #allocation59 [shape = 's32[]', space=sflag, size = 0x4, offset = 0, fixed_abs, tag = 'sflag constant byte address 0x0 - dummy sync flag']
  #allocation60 [shape = 's32[]', space=sflag, size = 0x4, offset = 0, fixed_abs, tag = 'sflag constant byte address 0x0 - dummy sync flag']
  #allocation61 [shape = 's32[]', space=sflag, size = 0x4, offset = 0, fixed_abs, tag = 'sflag constant byte address 0x0 - dummy sync flag']
  #allocation62 [shape = 's32[]', space=sflag, size = 0x4, offset = 0, fixed_abs, tag = 'sflag constant byte address 0x0 - dummy sync flag']
  #allocation63 [shape = 's32[]', space=sflag, size = 0x4, offset = 0, fixed_abs, tag = 'sflag constant byte address 0x0 - dummy sync flag']
  #allocation64 [shape = 's32[]', space=sflag, size = 0x4, offset = 0, fixed_abs, tag = 'sflag constant byte address 0x0 - dummy sync flag']
  #allocation65 [shape = 's32[]', space=sflag, size = 0x4, offset = 0, fixed_abs, tag = 'sflag constant byte address 0x0 - dummy sync flag']
  #allocation66 [shape = 's32[]', space=sflag, size = 0x4, offset = 0, fixed_abs, tag = 'sflag constant byte address 0x0 - dummy sync flag']
  #allocation67 [shape = 's32[]', space=sflag, size = 0x4, offset = 0, fixed_abs, tag = 'sflag constant byte address 0x0 - dummy sync flag']
  #allocation68 [shape = 's32[]', space=sflag, size = 0x4, offset = 0, fixed_abs, tag = 'sflag constant byte address 0x0 - dummy sync flag']
  #allocation69 [shape = 's32[]', space=sflag, size = 0x4, offset = 0, fixed_abs, tag = 'sflag constant byte address 0x0 - dummy sync flag']
  #allocation70 [shape = 's32[]', space=sflag, size = 0x4, offset = 0, fixed_abs, tag = 'sflag constant byte address 0x0 - dummy sync flag']
  #allocation71 [shape = 's32[]', space=sflag, size = 0x4, offset = 0, fixed_abs, tag = 'sflag constant byte address 0x0 - dummy sync flag']
  #allocation72 [shape = 's32[]', space=sflag, size = 0x4, offset = 0, fixed_abs, tag = 'sflag constant byte address 0x0 - dummy sync flag']
  #allocation73 [shape = 's32[]', space=sflag, size = 0x4, offset = 0, fixed_abs, tag = 'sflag constant byte address 0x0 - dummy sync flag']
  #allocation74 [shape = 's32[]', space=sflag, size = 0x4, offset = 0, fixed_abs, tag = 'sflag constant byte address 0x0 - dummy sync flag']
  #allocation75 [shape = 's32[]', space=sflag, size = 0x4, offset = 0, fixed_abs, tag = 'sflag constant byte address 0x0 - dummy sync flag']
  #allocation76 [shape = 's32[]', space=sflag, size = 0x4, offset = 0, fixed_abs, tag = 'sflag constant byte address 0x0 - dummy sync flag']
  #allocation77 [shape = 's32[]', space=sflag, size = 0x4, offset = 0, fixed_abs, tag = 'sflag constant byte address 0x0 - dummy sync flag']
  #allocation78 [shape = 's32[]', space=sflag, size = 0x4, offset = 0, fixed_abs, tag = 'sflag constant byte address 0x0 - dummy sync flag']
  #allocation79 [shape = 's32[]', space=sflag, size = 0x4, offset = 0, fixed_abs, tag = 'sflag constant byte address 0x0 - dummy sync flag']
  #allocation80 [shape = 's32[]', space=sflag, size = 0x4, offset = 0, fixed_abs, tag = 'sflag constant byte address 0x0 - dummy sync flag']
  #allocation81 [shape = 's32[]', space=sflag, size = 0x4, offset = 0, fixed_abs, tag = 'sflag constant byte address 0x0 - dummy sync flag']
  #allocation82 [shape = 's32[]', space=sflag, size = 0x4, offset = 0, fixed_abs, tag = 'sflag constant byte address 0x0 - dummy sync flag']
  #allocation83 [shape = 's32[]', space=sflag, size = 0x4, offset = 0, fixed_abs, tag = 'sflag constant byte address 0x0 - dummy sync flag']
  #allocation84 [shape = 's32[]', space=sflag, size = 0x4, offset = 0, fixed_abs, tag = 'sflag constant byte address 0x0 - dummy sync flag']
  #allocation85 [shape = 's32[]', space=sflag, size = 0x4, offset = 0, fixed_abs, tag = 'sflag constant byte address 0x0 - dummy sync flag']
  #allocation86 [shape = 's32[]', space=sflag, size = 0x4, offset = 0, fixed_abs, tag = 'sflag constant byte address 0x0 - dummy sync flag']
  #allocation87 [shape = 's32[]', space=sflag, size = 0x4, offset = 0, fixed_abs, tag = 'sflag constant byte address 0x0 - dummy sync flag']
  #allocation88 [shape = 's32[]', space=sflag, size = 0x4, offset = 0, fixed_abs, tag = 'sflag constant byte address 0x0 - dummy sync flag']
  #allocation89 [shape = 's32[]', space=sflag, size = 0x4, offset = 0, fixed_abs, tag = 'sflag constant byte address 0x0 - dummy sync flag']
  #allocation90 [shape = 's32[]', space=sflag, size = 0x4, offset = 0, fixed_abs, tag = 'sflag constant byte address 0x0 - dummy sync flag']
  #allocation91 [shape = 's32[]', space=sflag, size = 0x4, offset = 0, fixed_abs, tag = 'sflag constant byte address 0x0 - dummy sync flag']
  #allocation92 [shape = 's32[]', space=sflag, size = 0x4, offset = 0, fixed_abs, tag = 'sflag constant byte address 0x0 - dummy sync flag']
  #allocation93 [shape = 's32[]', space=sflag, size = 0x4, offset = 0, fixed_abs, tag = 'sflag constant byte address 0x0 - dummy sync flag']
  #allocation94 [shape = 's32[]', space=sflag, size = 0x4, offset = 0, fixed_abs, tag = 'sflag constant byte address 0x0 - dummy sync flag']
  #allocation95 [shape = 's32[]', space=sflag, size = 0x4, offset = 0, fixed_abs, tag = 'sflag constant byte address 0x0 - dummy sync flag']
  #allocation96 [shape = 's32[]', space=sflag, size = 0x4, offset = 0, fixed_abs, tag = 'sflag constant byte address 0x0 - dummy sync flag']
  #allocation97 [shape = 's32[]', space=sflag, size = 0x4, offset = 0, fixed_abs, tag = 'sflag constant byte address 0x0 - dummy sync flag']
  #allocation98 [shape = 's32[]', space=sflag, size = 0x4, offset = 0, fixed_abs, tag = 'sflag constant byte address 0x0 - dummy sync flag']
  #allocation99 [shape = 's32[]', space=sflag, size = 0x4, offset = 0, fixed_abs, tag = 'sflag constant byte address 0x0 - dummy sync flag']
  #allocation100 [shape = 's32[]', space=sflag, size = 0x4, offset = 0, fixed_abs, tag = 'sflag constant byte address 0x0 - dummy sync flag']
  #allocation101 [shape = 's32[]', space=sflag, size = 0x4, offset = 0, fixed_abs, tag = 'sflag constant byte address 0x0 - dummy sync flag']
  #allocation102 [shape = 's32[]', space=sflag, size = 0x4, offset = 0, fixed_abs, tag = 'sflag constant byte address 0x0 - dummy sync flag']
  #allocation103 [shape = 's32[]', space=sflag, size = 0x4, offset = 0, fixed_abs, tag = 'sflag constant byte address 0x0 - dummy sync flag']
  #allocation104 [shape = 's32[]', space=sflag, size = 0x4, offset = 0, fixed_abs, tag = 'sflag constant byte address 0x0 - dummy sync flag']
  #allocation105 [shape = 's32[]', space=sflag, size = 0x4, offset = 0, fixed_abs, tag = 'sflag constant byte address 0x0 - dummy sync flag']
  #allocation106 [shape = 's32[]', space=sflag, size = 0x4, offset = 0, fixed_abs, tag = 'sflag constant byte address 0x0 - dummy sync flag']
  #allocation107 [shape = 's32[]', space=sflag, size = 0x4, offset = 0, fixed_abs, tag = 'sflag constant byte address 0x0 - dummy sync flag']
  #allocation108 [shape = 's32[]', space=sflag, size = 0x4, offset = 0, fixed_abs, tag = 'sflag constant byte address 0x0 - dummy sync flag']
  #allocation109 [shape = 's32[]', space=sflag, size = 0x4, offset = 0, fixed_abs, tag = 'sflag constant byte address 0x0 - dummy sync flag']
  #allocation110 [shape = 's32[]', space=sflag, size = 0x4, offset = 0, fixed_abs, tag = 'sflag constant byte address 0x0 - dummy sync flag']
  #allocation111 [shape = 's32[]', space=sflag, size = 0x4, offset = 0, fixed_abs, tag = 'sflag constant byte address 0x0 - dummy sync flag']
  #allocation112 [shape = 's32[]', space=sflag, size = 0x4, offset = 0, fixed_abs, tag = 'sflag constant byte address 0x0 - dummy sync flag']
  #allocation113 [shape = 's32[]', space=sflag, size = 0x4, offset = 0, fixed_abs, tag = 'sflag constant byte address 0x0 - dummy sync flag']
  #allocation114 [shape = 's32[]', space=sflag, size = 0x4, offset = 0, fixed_abs, tag = 'sflag constant byte address 0x0 - dummy sync flag']
  #allocation115 [shape = 's32[]', space=sflag, size = 0x4, offset = 0, fixed_abs, tag = 'sflag constant byte address 0x0 - dummy sync flag']
  #allocation116 [shape = 's32[]', space=sflag, size = 0x4, offset = 0, fixed_abs, tag = 'sflag constant byte address 0x0 - dummy sync flag']
  #allocation117 [shape = 's32[]', space=sflag, size = 0x4, offset = 0, fixed_abs, tag = 'sflag constant byte address 0x0 - dummy sync flag']
  #allocation118 [shape = 's32[]', space=sflag, size = 0x4, offset = 0, fixed_abs, tag = 'sflag constant byte address 0x0 - dummy sync flag']
  #allocation119 [shape = 's32[]', space=sflag, size = 0x4, offset = 0, fixed_abs, tag = 'sflag constant byte address 0x0 - dummy sync flag']
  #allocation120 [shape = 's32[]', space=sflag, size = 0x4, offset = 0, fixed_abs, tag = 'sflag constant byte address 0x0 - dummy sync flag']
  #allocation121 [shape = 's32[]', space=sflag, size = 0x4, offset = 0, fixed_abs, tag = 'sflag constant byte address 0x0 - dummy sync flag']
  #allocation122 [shape = 's32[]', space=sflag, size = 0x4, offset = 0, fixed_abs, tag = 'sflag constant byte address 0x0 - dummy sync flag']
  #allocation123 [shape = 's32[]', space=sflag, size = 0x4, offset = 0, fixed_abs, tag = 'sflag constant byte address 0x0 - dummy sync flag']
  #allocation124 [shape = 's32[]', space=sflag, size = 0x4, offset = 0, fixed_abs, tag = 'sflag constant byte address 0x0 - dummy sync flag']
  #allocation125 [shape = 's32[]', space=sflag, size = 0x4, offset = 0, fixed_abs, tag = 'sflag constant byte address 0x0 - dummy sync flag']
  #allocation126 [shape = 's32[]', space=sflag, size = 0x4, offset = 0, fixed_abs, tag = 'sflag constant byte address 0x0 - dummy sync flag']
  #allocation127 [shape = 's32[]', space=sflag, size = 0x4, offset = 0, fixed_abs, tag = 'sflag constant byte address 0x0 - dummy sync flag']
  #allocation128 [shape = 's32[]', space=sflag, size = 0x4, offset = 0, fixed_abs, tag = 'sflag constant byte address 0x0 - dummy sync flag']
  #allocation129 [shape = 's32[]', space=sflag, size = 0x4, offset = 0, fixed_abs, tag = 'sflag constant byte address 0x0 - dummy sync flag']
  #allocation130 [shape = 's32[]', space=sflag, size = 0x4, offset = 0, fixed_abs, tag = 'sflag constant byte address 0x0 - dummy sync flag']
  #allocation131 [shape = 's32[]', space=sflag, size = 0x4, offset = 0, fixed_abs, tag = 'sflag constant byte address 0x0 - dummy sync flag']
  #allocation132 [shape = 's32[]', space=sflag, size = 0x4, offset = 0, fixed_abs, tag = 'sflag constant byte address 0x0 - dummy sync flag']
  #allocation133 [shape = 's32[]', space=sflag, size = 0x4, offset = 0, fixed_abs, tag = 'sflag constant byte address 0x0 - dummy sync flag']
  #allocation134 [shape = 's32[]', space=sflag, size = 0x4, offset = 0, fixed_abs, tag = 'sflag constant byte address 0x0 - dummy sync flag']
  #allocation135 [shape = 's32[]', space=sflag, size = 0x4, offset = 0, fixed_abs, tag = 'sflag constant byte address 0x0 - dummy sync flag']
  #allocation136 [shape = 's32[]', space=sflag, size = 0x4, offset = 0, fixed_abs, tag = 'sflag constant byte address 0x0 - dummy sync flag']
  #allocation137 [shape = 's32[]', space=sflag, size = 0x4, offset = 0, fixed_abs, tag = 'sflag constant byte address 0x0 - dummy sync flag']
  #allocation138 [shape = 's32[]', space=sflag, size = 0x4, offset = 0, fixed_abs, tag = 'sflag constant byte address 0x0 - dummy sync flag']
  #allocation139 [shape = 's32[]', space=sflag, size = 0x4, offset = 0, fixed_abs, tag = 'sflag constant byte address 0x0 - dummy sync flag']
  #allocation140 [shape = 's32[]', space=sflag, size = 0x4, offset = 0, fixed_abs, tag = 'sflag constant byte address 0x0 - dummy sync flag']
  #allocation141 [shape = 's32[]', space=sflag, size = 0x4, offset = 0, fixed_abs, tag = 'sflag constant byte address 0x0 - dummy sync flag']
  #allocation142 [shape = 's32[]', space=sflag, size = 0x4, offset = 0, fixed_abs, tag = 'sflag constant byte address 0x0 - dummy sync flag']
  #allocation143 [shape = 's32[]', space=sflag, size = 0x4, offset = 0, fixed_abs, tag = 'sflag constant byte address 0x0 - dummy sync flag']
  #allocation144 [shape = 's32[]', space=sflag, size = 0x4, offset = 0, fixed_abs, tag = 'sflag constant byte address 0x0 - dummy sync flag']
  #allocation145 [shape = 's32[]', space=sflag, size = 0x4, offset = 0, fixed_abs, tag = 'sflag constant byte address 0x0 - dummy sync flag']
  #allocation146 [shape = 's32[]', space=sflag, size = 0x4, offset = 0, fixed_abs, tag = 'sflag constant byte address 0x0 - dummy sync flag']
  #allocation147 [shape = 's32[]', space=sflag, size = 0x4, offset = 0, fixed_abs, tag = 'sflag constant byte address 0x0 - dummy sync flag']
  #allocation148 [shape = 's32[]', space=sflag, size = 0x4, offset = 0, fixed_abs, tag = 'sflag constant byte address 0x0 - dummy sync flag']
  #allocation149 [shape = 's32[]', space=sflag, size = 0x4, offset = 0, fixed_abs, tag = 'sflag constant byte address 0x0 - dummy sync flag']
  #allocation150 [shape = 's32[]', space=sflag, size = 0x4, offset = 0, fixed_abs, tag = 'sflag constant byte address 0x0 - dummy sync flag']
  #allocation151 [shape = 's32[]', space=sflag, size = 0x4, offset = 0, fixed_abs, tag = 'sflag constant byte address 0x0 - dummy sync flag']
  #allocation152 [shape = 's32[]', space=sflag, size = 0x4, offset = 0, fixed_abs, tag = 'sflag constant byte address 0x0 - dummy sync flag']
  #allocation153 [shape = 's32[]', space=sflag, size = 0x4, offset = 0, fixed_abs, tag = 'sflag constant byte address 0x0 - dummy sync flag']
  #allocation154 [shape = 's32[]', space=sflag, size = 0x4, offset = 0, fixed_abs, tag = 'sflag constant byte address 0x0 - dummy sync flag']
  #allocation155 [shape = 's32[]', space=sflag, size = 0x4, offset = 0, fixed_abs, tag = 'sflag constant byte address 0x0 - dummy sync flag']
  #allocation156 [shape = 's32[]', space=sflag, size = 0x4, offset = 0, fixed_abs, tag = 'sflag constant byte address 0x0 - dummy sync flag']
  #allocation157 [shape = 's32[]', space=sflag, size = 0x4, offset = 0, fixed_abs, tag = 'sflag constant byte address 0x0 - dummy sync flag']
  #allocation158 [shape = 's32[]', space=sflag, size = 0x4, offset = 0, fixed_abs, tag = 'sflag constant byte address 0x0 - dummy sync flag']
  #allocation159 [shape = 's32[]', space=sflag, size = 0x4, offset = 0, fixed_abs, tag = 'sflag constant byte address 0x0 - dummy sync flag']
  #allocation160 [shape = 's32[]', space=sflag, size = 0x4, offset = 0, fixed_abs, tag = 'sflag constant byte address 0x0 - dummy sync flag']
  #allocation161 [shape = 's32[]', space=sflag, size = 0x4, offset = 0, fixed_abs, tag = 'sflag constant byte address 0x0 - dummy sync flag']
  #allocation162 [shape = 's32[]', space=sflag, size = 0x4, offset = 0, fixed_abs, tag = 'sflag constant byte address 0x0 - dummy sync flag']
  #allocation163 [shape = 's32[]', space=sflag, size = 0x4, offset = 0, fixed_abs, tag = 'sflag constant byte address 0x0 - dummy sync flag']
  #allocation164 [shape = 's32[]', space=sflag, size = 0x4, offset = 0, fixed_abs, tag = 'sflag constant byte address 0x0 - dummy sync flag']
  #allocation165 [shape = 's32[]', space=sflag, size = 0x4, offset = 0, fixed_abs, tag = 'sflag constant byte address 0x0 - dummy sync flag']
  #allocation166 [shape = 's32[]', space=sflag, size = 0x4, offset = 0, fixed_abs, tag = 'sflag constant byte address 0x0 - dummy sync flag']
  #allocation167 [shape = 's32[]', space=sflag, size = 0x4, offset = 0, fixed_abs, tag = 'sflag constant byte address 0x0 - dummy sync flag']
  #allocation168 [shape = 's32[]', space=sflag, size = 0x4, offset = 0, fixed_abs, tag = 'sflag constant byte address 0x0 - dummy sync flag']
  #allocation169 [shape = 's32[]', space=sflag, size = 0x4, offset = 0, fixed_abs, tag = 'sflag constant byte address 0x0 - dummy sync flag']
  #allocation170 [shape = 's32[]', space=sflag, size = 0x4, offset = 0, fixed_abs, tag = 'sflag constant byte address 0x0 - dummy sync flag']
  #allocation171 [shape = 's32[]', space=sflag, size = 0x4, offset = 0, fixed_abs, tag = 'sflag constant byte address 0x0 - dummy sync flag']
  #allocation172 [shape = 's32[]', space=sflag, size = 0x4, offset = 0, fixed_abs, tag = 'sflag constant byte address 0x0 - dummy sync flag']
  #allocation173 [shape = 's32[]', space=sflag, size = 0x4, offset = 0, fixed_abs, tag = 'sflag constant byte address 0x0 - dummy sync flag']
  %s0 = inlined_call_operand.hbm [shape: s32[16], index: 0, kind: input, shape index: {}]
  %s1 = inlined_call_operand.hbm [shape: s32[16], index: 1, kind: input, shape index: {}]
  %s2 = inlined_call_operand.vmem [shape: s32[128], index: 2, kind: input, shape index: {}]
  %s3 = inlined_call_operand.hbm [shape: f32[256,128], index: 3, kind: input, shape index: {}]
  %s4 = inlined_call_operand.hbm [shape: f32[256,128], index: 4, kind: input, shape index: {}]
  %s5 = inlined_call_operand.hbm [shape: f32[2,1,128], index: 5, kind: output, shape index: {}]
  %s6 = sld [smem:[#allocation0]]
  $region345: #{tpu_custom_call.1} parent=0
    _
  %s8 = ssub.s32 1, %s6
  %s9 = scalar_select 0, %s8, %s6
  %s11 = sshll.u32 %s0, 4
  %s12 = int_to_ptr.hbm [resolvable:$true] %s11
  %14 = dma.hbm_to_smem %s12, 16, [#allocation7], [#allocation6]
  %s16 = sshll.u32 %s1, 4
  %s17 = int_to_ptr.hbm [resolvable:$true] %s16
  %19 = dma.hbm_to_smem %s17, 16, [#allocation8], [#allocation6]
  %s21 = sshll.u32 %s2, 4
  %s22 = int_to_ptr.vmem [resolvable:$true] %s21
  %24 = dma.vmem_to_smem %s22, 16, [#allocation9], [#allocation6]
  %26 = dma.done [#allocation6], 48
  %27 = sfence
  $region1: #{tpu_custom_call.1} parent=0
    #allocation10 [shape = 'u8[1024]{0}', space=vmem, size = 0x400, scoped, tag = 'output window, operand 0']
    #allocation11 [shape = 's32[2]{0}', space=sflag, size = 0x8, scoped, tag = 'scoped memory for tpu_custom_call.1']
    %28 = vsyncpa [#allocation11], 0
    %s29 = scalar_lea.sflag [#allocation11], 1
    %30 = vsyncpa %s29, 0
    loop: start=0, step=1, limit=3
    $region2: #{tpu_custom_call.1} parent=1 // loop_pre_header
      _
    $region3: #{tpu_custom_call.1} parent=1 // loop_header
      %s32 = sphi 0, %s36
      %p33 = scmp.ge.s32.totalorder %s32, 3
      %s41 = sphi 0, %s43
      %s44 = sphi 0, %s41
      %s54 = sphi 0, %s44
    $region4: #{tpu_custom_call.1} parent=1 // loop_header_branch
      %35 = sbr.rel (%p33) target = $region8
    $region5: #{tpu_custom_call.1} parent=1 // loop_body
      %s37 = ssub.s32 %s32, 1
      %s38 = sadd.s32 %s32, 1
      %s39 = ssub.s32 %s32, %s38
      %p40 = scmp.eq.s32.totalorder %s39, 0
      %s42 = sadd.s32 %s41, 1
      %s43 = scalar_select %p40, %s41, %s42
      %p45 = pneg %p40
      %p46 = scmp.eq.s32.totalorder %s32, 1
      %p47 = por %p45, %p46
      %p48 = scmp.ne.s32.totalorder %s41, %s44
      %p49 = scmp.eq.s32.totalorder %s32, 0
      %p50 = por %p48, %p49
      %p51 = scmp.ne.s32.totalorder %s41, %s44
      %p52 = scmp.eq.s32.totalorder %s37, 1
      %p53 = por %p51, %p52
      %p55 = scmp.ne.s32.totalorder %s44, %s54
      %p56 = scmp.eq.s32.totalorder %s37, 0
      %p57 = por %p55, %p56
      %p58 = scmp.lt.s32.totalorder %s32, 2
      // Predicated region
      $region9: #{tpu_custom_call.1} parent=5 // pred_check
        %p59 = pneg %p58
      $region10: #{tpu_custom_call.1} parent=5 // pred_check_branch
        %61 = sbr.rel (%p59) target = $region12
      $region11: #{tpu_custom_call.1} parent=5 // pred_region
        %p62 = pneg %p50
        %p63 = pneg %p47
        %s64 = sand.u32 %s41, 1
        %s65 = scalar_lea.sflag [#allocation11], %s64
        %s66 = sand.u32 %s41, 1
        %s67 = scalar_lea.vmem [#allocation10], %s66
        %s68 = smul.u32 %s32, 8
        %s69 = sld [smem:[#allocation7 + %s68]]
        %s70 = sld [smem:[#allocation8 + %s68]]
        %s71 = scalar_lea.hbm %s3, %s69
        // Predicated region
        $region13: #{tpu_custom_call.1} parent=11 // pred_check
          _
        $region14: #{tpu_custom_call.1} parent=11 // pred_check_branch
          %73 = sbr.rel target = $region16
        $region15: #{tpu_custom_call.1} parent=11 // pred_region
          %74 = sst [smem:[#allocation14]] [#allocation13]
          %75 = sst [smem:[#allocation15]] [#allocation12]
        $region16: #{tpu_custom_call.1} parent=11 // pred_fallthru
          _
        %77 = shalt.err (0)
        %s79 = sshll.u32 %s71, 4
        %s80 = int_to_ptr.hbm [resolvable:$true] %s79
        %s81 = sshll.u32 [#allocation2], 4
        %s82 = int_to_ptr.vmem [resolvable:$true] %s81
        %84 = dma.hbm_to_vmem [thread:$0]  %s80, 16, %s82, [#allocation5]
        %s85 = scalar_lea.hbm %s4, %s70
        // Predicated region
        $region17: #{tpu_custom_call.1} parent=11 // pred_check
          _
        $region18: #{tpu_custom_call.1} parent=11 // pred_check_branch
          %87 = sbr.rel target = $region20
        $region19: #{tpu_custom_call.1} parent=11 // pred_region
          %88 = sst [smem:[#allocation14]] [#allocation17]
          %89 = sst [smem:[#allocation15]] [#allocation16]
        $region20: #{tpu_custom_call.1} parent=11 // pred_fallthru
          _
        %91 = shalt.err (0)
        %s93 = sshll.u32 %s85, 4
        %s94 = int_to_ptr.hbm [resolvable:$true] %s93
        %s95 = sshll.u32 [#allocation3], 4
        %s96 = int_to_ptr.vmem [resolvable:$true] %s95
        %98 = dma.hbm_to_vmem [thread:$0]  %s94, 16, %s96, [#allocation5]
        %s99 = smul.u32 %s32, 64
        %s100 = sld [smem:[#allocation9 + %s99]]
        %s101 = scalar_lea.hbm %s4, %s100
        // Predicated region
        $region21: #{tpu_custom_call.1} parent=11 // pred_check
          _
        $region22: #{tpu_custom_call.1} parent=11 // pred_check_branch
          %103 = sbr.rel target = $region24
        $region23: #{tpu_custom_call.1} parent=11 // pred_region
          %104 = sst [smem:[#allocation14]] [#allocation19]
          %105 = sst [smem:[#allocation15]] [#allocation18]
        $region24: #{tpu_custom_call.1} parent=11 // pred_fallthru
          _
        %107 = shalt.err (0)
        %s109 = sshll.u32 %s101, 4
        %s110 = int_to_ptr.hbm [resolvable:$true] %s109
        %s111 = sshll.u32 [#allocation4], 4
        %s112 = int_to_ptr.vmem [resolvable:$true] %s111
        %114 = dma.hbm_to_vmem [thread:$0]  %s110, 16, %s112, [#allocation5]
        %s115 = sadd.s32 %s99, 1
        %s116 = sld [smem:[#allocation9 + %s115]]
        %s117 = scalar_lea.hbm %s4, %s116
        %s118 = scalar_lea.vmem [#allocation4], 1
        // Predicated region
        $region25: #{tpu_custom_call.1} parent=11 // pred_check
          _
        $region26: #{tpu_custom_call.1} parent=11 // pred_check_branch
          %120 = sbr.rel target = $region28
        $region27: #{tpu_custom_call.1} parent=11 // pred_region
          %121 = sst [smem:[#allocation14]] [#allocation21]
          %122 = sst [smem:[#allocation15]] [#allocation20]
        $region28: #{tpu_custom_call.1} parent=11 // pred_fallthru
          _
        %124 = shalt.err (0)
        %s126 = sshll.u32 %s117, 4
        %s127 = int_to_ptr.hbm [resolvable:$true] %s126
        %s128 = sshll.u32 %s118, 4
        %s129 = int_to_ptr.vmem [resolvable:$true] %s128
        %131 = dma.hbm_to_vmem [thread:$0]  %s127, 16, %s129, [#allocation5]
        %s132 = sadd.s32 %s99, 2
        %s133 = sld [smem:[#allocation9 + %s132]]
        %s134 = scalar_lea.hbm %s4, %s133
        %s135 = scalar_lea.vmem [#allocation4], 2
        // Predicated region
        $region29: #{tpu_custom_call.1} parent=11 // pred_check
          _
        $region30: #{tpu_custom_call.1} parent=11 // pred_check_branch
          %137 = sbr.rel target = $region32
        $region31: #{tpu_custom_call.1} parent=11 // pred_region
          %138 = sst [smem:[#allocation14]] [#allocation23]
          %139 = sst [smem:[#allocation15]] [#allocation22]
        $region32: #{tpu_custom_call.1} parent=11 // pred_fallthru
          _
        %141 = shalt.err (0)
        %s143 = sshll.u32 %s134, 4
        %s144 = int_to_ptr.hbm [resolvable:$true] %s143
        %s145 = sshll.u32 %s135, 4
        %s146 = int_to_ptr.vmem [resolvable:$true] %s145
        %148 = dma.hbm_to_vmem [thread:$0]  %s144, 16, %s146, [#allocation5]
        %s149 = sadd.s32 %s99, 3
        %s150 = sld [smem:[#allocation9 + %s149]]
        %s151 = scalar_lea.hbm %s4, %s150
        %s152 = scalar_lea.vmem [#allocation4], 3
        // Predicated region
        $region33: #{tpu_custom_call.1} parent=11 // pred_check
          _
        $region34: #{tpu_custom_call.1} parent=11 // pred_check_branch
          %154 = sbr.rel target = $region36
        $region35: #{tpu_custom_call.1} parent=11 // pred_region
          %155 = sst [smem:[#allocation14]] [#allocation25]
          %156 = sst [smem:[#allocation15]] [#allocation24]
        $region36: #{tpu_custom_call.1} parent=11 // pred_fallthru
          _
        %158 = shalt.err (0)
        %s160 = sshll.u32 %s151, 4
        %s161 = int_to_ptr.hbm [resolvable:$true] %s160
        %s162 = sshll.u32 %s152, 4
        %s163 = int_to_ptr.vmem [resolvable:$true] %s162
        %165 = dma.hbm_to_vmem [thread:$0]  %s161, 16, %s163, [#allocation5]
        %s166 = sadd.s32 %s99, 4
        %s167 = sld [smem:[#allocation9 + %s166]]
        %s168 = scalar_lea.hbm %s4, %s167
        %s169 = scalar_lea.vmem [#allocation4], 4
        // Predicated region
        $region37: #{tpu_custom_call.1} parent=11 // pred_check
          _
        $region38: #{tpu_custom_call.1} parent=11 // pred_check_branch
          %171 = sbr.rel target = $region40
        $region39: #{tpu_custom_call.1} parent=11 // pred_region
          %172 = sst [smem:[#allocation14]] [#allocation27]
          %173 = sst [smem:[#allocation15]] [#allocation26]
        $region40: #{tpu_custom_call.1} parent=11 // pred_fallthru
          _
        %175 = shalt.err (0)
        %s177 = sshll.u32 %s168, 4
        %s178 = int_to_ptr.hbm [resolvable:$true] %s177
        %s179 = sshll.u32 %s169, 4
        %s180 = int_to_ptr.vmem [resolvable:$true] %s179
        %182 = dma.hbm_to_vmem [thread:$0]  %s178, 16, %s180, [#allocation5]
        %s183 = sadd.s32 %s99, 5
        %s184 = sld [smem:[#allocation9 + %s183]]
        %s185 = scalar_lea.hbm %s4, %s184
        %s186 = scalar_lea.vmem [#allocation4], 5
        // Predicated region
        $region41: #{tpu_custom_call.1} parent=11 // pred_check
          _
        $region42: #{tpu_custom_call.1} parent=11 // pred_check_branch
          %188 = sbr.rel target = $region44
        $region43: #{tpu_custom_call.1} parent=11 // pred_region
          %189 = sst [smem:[#allocation14]] [#allocation29]
          %190 = sst [smem:[#allocation15]] [#allocation28]
        $region44: #{tpu_custom_call.1} parent=11 // pred_fallthru
          _
        %192 = shalt.err (0)
        %s194 = sshll.u32 %s185, 4
        %s195 = int_to_ptr.hbm [resolvable:$true] %s194
        %s196 = sshll.u32 %s186, 4
        %s197 = int_to_ptr.vmem [resolvable:$true] %s196
        %199 = dma.hbm_to_vmem [thread:$0]  %s195, 16, %s197, [#allocation5]
        %s200 = sadd.s32 %s99, 6
        %s201 = sld [smem:[#allocation9 + %s200]]
        %s202 = scalar_lea.hbm %s4, %s201
        %s203 = scalar_lea.vmem [#allocation4], 6
        // Predicated region
        $region45: #{tpu_custom_call.1} parent=11 // pred_check
          _
        $region46: #{tpu_custom_call.1} parent=11 // pred_check_branch
          %205 = sbr.rel target = $region48
        $region47: #{tpu_custom_call.1} parent=11 // pred_region
          %206 = sst [smem:[#allocation14]] [#allocation31]
          %207 = sst [smem:[#allocation15]] [#allocation30]
        $region48: #{tpu_custom_call.1} parent=11 // pred_fallthru
          _
        %209 = shalt.err (0)
        %s211 = sshll.u32 %s202, 4
        %s212 = int_to_ptr.hbm [resolvable:$true] %s211
        %s213 = sshll.u32 %s203, 4
        %s214 = int_to_ptr.vmem [resolvable:$true] %s213
        %216 = dma.hbm_to_vmem [thread:$0]  %s212, 16, %s214, [#allocation5]
        %s217 = sadd.s32 %s99, 7
        %s218 = sld [smem:[#allocation9 + %s217]]
        %s219 = scalar_lea.hbm %s4, %s218
        %s220 = scalar_lea.vmem [#allocation4], 7
        // Predicated region
        $region49: #{tpu_custom_call.1} parent=11 // pred_check
          _
        $region50: #{tpu_custom_call.1} parent=11 // pred_check_branch
          %222 = sbr.rel target = $region52
        $region51: #{tpu_custom_call.1} parent=11 // pred_region
          %223 = sst [smem:[#allocation14]] [#allocation33]
          %224 = sst [smem:[#allocation15]] [#allocation32]
        $region52: #{tpu_custom_call.1} parent=11 // pred_fallthru
          _
        %226 = shalt.err (0)
        %s228 = sshll.u32 %s219, 4
        %s229 = int_to_ptr.hbm [resolvable:$true] %s228
        %s230 = sshll.u32 %s220, 4
        %s231 = int_to_ptr.vmem [resolvable:$true] %s230
        %233 = dma.hbm_to_vmem [thread:$0]  %s229, 16, %s231, [#allocation5]
        %s234 = sadd.s32 %s68, 1
        %s235 = sld [smem:[#allocation7 + %s234]]
        %s236 = sld [smem:[#allocation8 + %s234]]
        %s237 = scalar_lea.hbm %s3, %s235
        %s238 = scalar_lea.vmem [#allocation2], 1
        // Predicated region
        $region53: #{tpu_custom_call.1} parent=11 // pred_check
          _
        $region54: #{tpu_custom_call.1} parent=11 // pred_check_branch
          %240 = sbr.rel target = $region56
        $region55: #{tpu_custom_call.1} parent=11 // pred_region
          %241 = sst [smem:[#allocation14]] [#allocation35]
          %242 = sst [smem:[#allocation15]] [#allocation34]
        $region56: #{tpu_custom_call.1} parent=11 // pred_fallthru
          _
        %244 = shalt.err (0)
        %s246 = sshll.u32 %s237, 4
        %s247 = int_to_ptr.hbm [resolvable:$true] %s246
        %s248 = sshll.u32 %s238, 4
        %s249 = int_to_ptr.vmem [resolvable:$true] %s248
        %251 = dma.hbm_to_vmem [thread:$0]  %s247, 16, %s249, [#allocation5]
        %s252 = scalar_lea.hbm %s4, %s236
        %s253 = scalar_lea.vmem [#allocation3], 1
        // Predicated region
        $region57: #{tpu_custom_call.1} parent=11 // pred_check
          _
        $region58: #{tpu_custom_call.1} parent=11 // pred_check_branch
          %255 = sbr.rel target = $region60
        $region59: #{tpu_custom_call.1} parent=11 // pred_region
          %256 = sst [smem:[#allocation14]] [#allocation37]
          %257 = sst [smem:[#allocation15]] [#allocation36]
        $region60: #{tpu_custom_call.1} parent=11 // pred_fallthru
          _
        %259 = shalt.err (0)
        %s261 = sshll.u32 %s252, 4
        %s262 = int_to_ptr.hbm [resolvable:$true] %s261
        %s263 = sshll.u32 %s253, 4
        %s264 = int_to_ptr.vmem [resolvable:$true] %s263
        %266 = dma.hbm_to_vmem [thread:$0]  %s262, 16, %s264, [#allocation5]
        %s267 = smul.u32 %s234, 8
        %s268 = sld [smem:[#allocation9 + %s267]]
        %s269 = scalar_lea.hbm %s4, %s268
        %s270 = scalar_lea.vmem [#allocation4], 8
        // Predicated region
        $region61: #{tpu_custom_call.1} parent=11 // pred_check
          _
        $region62: #{tpu_custom_call.1} parent=11 // pred_check_branch
          %272 = sbr.rel target = $region64
        $region63: #{tpu_custom_call.1} parent=11 // pred_region
          %273 = sst [smem:[#allocation14]] [#allocation39]
          %274 = sst [smem:[#allocation15]] [#allocation38]
        $region64: #{tpu_custom_call.1} parent=11 // pred_fallthru
          _
        %276 = shalt.err (0)
        %s278 = sshll.u32 %s269, 4
        %s279 = int_to_ptr.hbm [resolvable:$true] %s278
        %s280 = sshll.u32 %s270, 4
        %s281 = int_to_ptr.vmem [resolvable:$true] %s280
        %283 = dma.hbm_to_vmem [thread:$0]  %s279, 16, %s281, [#allocation5]
        %s284 = sadd.s32 %s267, 1
        %s285 = sld [smem:[#allocation9 + %s284]]
        %s286 = scalar_lea.hbm %s4, %s285
        %s287 = scalar_lea.vmem [#allocation4], 9
        // Predicated region
        $region65: #{tpu_custom_call.1} parent=11 // pred_check
          _
        $region66: #{tpu_custom_call.1} parent=11 // pred_check_branch
          %289 = sbr.rel target = $region68
        $region67: #{tpu_custom_call.1} parent=11 // pred_region
          %290 = sst [smem:[#allocation14]] [#allocation41]
          %291 = sst [smem:[#allocation15]] [#allocation40]
        $region68: #{tpu_custom_call.1} parent=11 // pred_fallthru
          _
        %293 = shalt.err (0)
        %s295 = sshll.u32 %s286, 4
        %s296 = int_to_ptr.hbm [resolvable:$true] %s295
        %s297 = sshll.u32 %s287, 4
        %s298 = int_to_ptr.vmem [resolvable:$true] %s297
        %300 = dma.hbm_to_vmem [thread:$0]  %s296, 16, %s298, [#allocation5]
        %s301 = sadd.s32 %s267, 2
        %s302 = sld [smem:[#allocation9 + %s301]]
        %s303 = scalar_lea.hbm %s4, %s302
        %s304 = scalar_lea.vmem [#allocation4], 10
        // Predicated region
        $region69: #{tpu_custom_call.1} parent=11 // pred_check
          _
        $region70: #{tpu_custom_call.1} parent=11 // pred_check_branch
          %306 = sbr.rel target = $region72
        $region71: #{tpu_custom_call.1} parent=11 // pred_region
          %307 = sst [smem:[#allocation14]] [#allocation43]
          %308 = sst [smem:[#allocation15]] [#allocation42]
        $region72: #{tpu_custom_call.1} parent=11 // pred_fallthru
          _
        %310 = shalt.err (0)
        %s312 = sshll.u32 %s303, 4
        %s313 = int_to_ptr.hbm [resolvable:$true] %s312
        %s314 = sshll.u32 %s304, 4
        %s315 = int_to_ptr.vmem [resolvable:$true] %s314
        %317 = dma.hbm_to_vmem [thread:$0]  %s313, 16, %s315, [#allocation5]
        %s318 = sadd.s32 %s267, 3
        %s319 = sld [smem:[#allocation9 + %s318]]
        %s320 = scalar_lea.hbm %s4, %s319
        %s321 = scalar_lea.vmem [#allocation4], 11
        // Predicated region
        $region73: #{tpu_custom_call.1} parent=11 // pred_check
          _
        $region74: #{tpu_custom_call.1} parent=11 // pred_check_branch
          %323 = sbr.rel target = $region76
        $region75: #{tpu_custom_call.1} parent=11 // pred_region
          %324 = sst [smem:[#allocation14]] [#allocation45]
          %325 = sst [smem:[#allocation15]] [#allocation44]
        $region76: #{tpu_custom_call.1} parent=11 // pred_fallthru
          _
        %327 = shalt.err (0)
        %s329 = sshll.u32 %s320, 4
        %s330 = int_to_ptr.hbm [resolvable:$true] %s329
        %s331 = sshll.u32 %s321, 4
        %s332 = int_to_ptr.vmem [resolvable:$true] %s331
        %334 = dma.hbm_to_vmem [thread:$0]  %s330, 16, %s332, [#allocation5]
        %s335 = sadd.s32 %s267, 4
        %s336 = sld [smem:[#allocation9 + %s335]]
        %s337 = scalar_lea.hbm %s4, %s336
        %s338 = scalar_lea.vmem [#allocation4], 12
        // Predicated region
        $region77: #{tpu_custom_call.1} parent=11 // pred_check
          _
        $region78: #{tpu_custom_call.1} parent=11 // pred_check_branch
          %340 = sbr.rel target = $region80
        $region79: #{tpu_custom_call.1} parent=11 // pred_region
          %341 = sst [smem:[#allocation14]] [#allocation47]
          %342 = sst [smem:[#allocation15]] [#allocation46]
        $region80: #{tpu_custom_call.1} parent=11 // pred_fallthru
          _
        %344 = shalt.err (0)
        %s346 = sshll.u32 %s337, 4
        %s347 = int_to_ptr.hbm [resolvable:$true] %s346
        %s348 = sshll.u32 %s338, 4
        %s349 = int_to_ptr.vmem [resolvable:$true] %s348
        %351 = dma.hbm_to_vmem [thread:$0]  %s347, 16, %s349, [#allocation5]
        %s352 = sadd.s32 %s267, 5
        %s353 = sld [smem:[#allocation9 + %s352]]
        %s354 = scalar_lea.hbm %s4, %s353
        %s355 = scalar_lea.vmem [#allocation4], 13
        // Predicated region
        $region81: #{tpu_custom_call.1} parent=11 // pred_check
          _
        $region82: #{tpu_custom_call.1} parent=11 // pred_check_branch
          %357 = sbr.rel target = $region84
        $region83: #{tpu_custom_call.1} parent=11 // pred_region
          %358 = sst [smem:[#allocation14]] [#allocation49]
          %359 = sst [smem:[#allocation15]] [#allocation48]
        $region84: #{tpu_custom_call.1} parent=11 // pred_fallthru
          _
        %361 = shalt.err (0)
        %s363 = sshll.u32 %s354, 4
        %s364 = int_to_ptr.hbm [resolvable:$true] %s363
        %s365 = sshll.u32 %s355, 4
        %s366 = int_to_ptr.vmem [resolvable:$true] %s365
        %368 = dma.hbm_to_vmem [thread:$0]  %s364, 16, %s366, [#allocation5]
        %s369 = sadd.s32 %s267, 6
        %s370 = sld [smem:[#allocation9 + %s369]]
        %s371 = scalar_lea.hbm %s4, %s370
        %s372 = scalar_lea.vmem [#allocation4], 14
        // Predicated region
        $region85: #{tpu_custom_call.1} parent=11 // pred_check
          _
        $region86: #{tpu_custom_call.1} parent=11 // pred_check_branch
          %374 = sbr.rel target = $region88
        $region87: #{tpu_custom_call.1} parent=11 // pred_region
          %375 = sst [smem:[#allocation14]] [#allocation51]
          %376 = sst [smem:[#allocation15]] [#allocation50]
        $region88: #{tpu_custom_call.1} parent=11 // pred_fallthru
          _
        %378 = shalt.err (0)
        %s380 = sshll.u32 %s371, 4
        %s381 = int_to_ptr.hbm [resolvable:$true] %s380
        %s382 = sshll.u32 %s372, 4
        %s383 = int_to_ptr.vmem [resolvable:$true] %s382
        %385 = dma.hbm_to_vmem [thread:$0]  %s381, 16, %s383, [#allocation5]
        %s386 = sadd.s32 %s267, 7
        %s387 = sld [smem:[#allocation9 + %s386]]
        %s388 = scalar_lea.hbm %s4, %s387
        %s389 = scalar_lea.vmem [#allocation4], 15
        // Predicated region
        $region89: #{tpu_custom_call.1} parent=11 // pred_check
          _
        $region90: #{tpu_custom_call.1} parent=11 // pred_check_branch
          %391 = sbr.rel target = $region92
        $region91: #{tpu_custom_call.1} parent=11 // pred_region
          %392 = sst [smem:[#allocation14]] [#allocation53]
          %393 = sst [smem:[#allocation15]] [#allocation52]
        $region92: #{tpu_custom_call.1} parent=11 // pred_fallthru
          _
        %395 = shalt.err (0)
        %s397 = sshll.u32 %s388, 4
        %s398 = int_to_ptr.hbm [resolvable:$true] %s397
        %s399 = sshll.u32 %s389, 4
        %s400 = int_to_ptr.vmem [resolvable:$true] %s399
        %402 = dma.hbm_to_vmem [thread:$0]  %s398, 16, %s400, [#allocation5]
        %s403 = sadd.s32 %s68, 2
        %s404 = sld [smem:[#allocation7 + %s403]]
        %s405 = sld [smem:[#allocation8 + %s403]]
        %s406 = scalar_lea.hbm %s3, %s404
        %s407 = scalar_lea.vmem [#allocation2], 2
        // Predicated region
        $region93: #{tpu_custom_call.1} parent=11 // pred_check
          _
        $region94: #{tpu_custom_call.1} parent=11 // pred_check_branch
          %409 = sbr.rel target = $region96
        $region95: #{tpu_custom_call.1} parent=11 // pred_region
          %410 = sst [smem:[#allocation14]] [#allocation55]
          %411 = sst [smem:[#allocation15]] [#allocation54]
        $region96: #{tpu_custom_call.1} parent=11 // pred_fallthru
          _
        %413 = shalt.err (0)
        %s415 = sshll.u32 %s406, 4
        %s416 = int_to_ptr.hbm [resolvable:$true] %s415
        %s417 = sshll.u32 %s407, 4
        %s418 = int_to_ptr.vmem [resolvable:$true] %s417
        %420 = dma.hbm_to_vmem [thread:$0]  %s416, 16, %s418, [#allocation5]
        %s421 = scalar_lea.hbm %s4, %s405
        %s422 = scalar_lea.vmem [#allocation3], 2
        // Predicated region
        $region97: #{tpu_custom_call.1} parent=11 // pred_check
          _
        $region98: #{tpu_custom_call.1} parent=11 // pred_check_branch
          %424 = sbr.rel target = $region100
        $region99: #{tpu_custom_call.1} parent=11 // pred_region
          %425 = sst [smem:[#allocation14]] [#allocation57]
          %426 = sst [smem:[#allocation15]] [#allocation56]
        $region100: #{tpu_custom_call.1} parent=11 // pred_fallthru
          _
        %428 = shalt.err (0)
        %s430 = sshll.u32 %s421, 4
        %s431 = int_to_ptr.hbm [resolvable:$true] %s430
        %s432 = sshll.u32 %s422, 4
        %s433 = int_to_ptr.vmem [resolvable:$true] %s432
        %435 = dma.hbm_to_vmem [thread:$0]  %s431, 16, %s433, [#allocation5]
        %s436 = smul.u32 %s403, 8
        %s437 = sld [smem:[#allocation9 + %s436]]
        %s438 = scalar_lea.hbm %s4, %s437
        %s439 = scalar_lea.vmem [#allocation4], 16
        // Predicated region
        $region101: #{tpu_custom_call.1} parent=11 // pred_check
          _
        $region102: #{tpu_custom_call.1} parent=11 // pred_check_branch
          %441 = sbr.rel target = $region104
        $region103: #{tpu_custom_call.1} parent=11 // pred_region
          %442 = sst [smem:[#allocation14]] [#allocation59]
          %443 = sst [smem:[#allocation15]] [#allocation58]
        $region104: #{tpu_custom_call.1} parent=11 // pred_fallthru
          _
        %445 = shalt.err (0)
        %s447 = sshll.u32 %s438, 4
        %s448 = int_to_ptr.hbm [resolvable:$true] %s447
        %s449 = sshll.u32 %s439, 4
        %s450 = int_to_ptr.vmem [resolvable:$true] %s449
        %452 = dma.hbm_to_vmem [thread:$0]  %s448, 16, %s450, [#allocation5]
        %s453 = sadd.s32 %s436, 1
        %s454 = sld [smem:[#allocation9 + %s453]]
        %s455 = scalar_lea.hbm %s4, %s454
        %s456 = scalar_lea.vmem [#allocation4], 17
        // Predicated region
        $region105: #{tpu_custom_call.1} parent=11 // pred_check
          _
        $region106: #{tpu_custom_call.1} parent=11 // pred_check_branch
          %458 = sbr.rel target = $region108
        $region107: #{tpu_custom_call.1} parent=11 // pred_region
          %459 = sst [smem:[#allocation14]] [#allocation61]
          %460 = sst [smem:[#allocation15]] [#allocation60]
        $region108: #{tpu_custom_call.1} parent=11 // pred_fallthru
          _
        %462 = shalt.err (0)
        %s464 = sshll.u32 %s455, 4
        %s465 = int_to_ptr.hbm [resolvable:$true] %s464
        %s466 = sshll.u32 %s456, 4
        %s467 = int_to_ptr.vmem [resolvable:$true] %s466
        %469 = dma.hbm_to_vmem [thread:$0]  %s465, 16, %s467, [#allocation5]
        %s470 = sadd.s32 %s436, 2
        %s471 = sld [smem:[#allocation9 + %s470]]
        %s472 = scalar_lea.hbm %s4, %s471
        %s473 = scalar_lea.vmem [#allocation4], 18
        // Predicated region
        $region109: #{tpu_custom_call.1} parent=11 // pred_check
          _
        $region110: #{tpu_custom_call.1} parent=11 // pred_check_branch
          %475 = sbr.rel target = $region112
        $region111: #{tpu_custom_call.1} parent=11 // pred_region
          %476 = sst [smem:[#allocation14]] [#allocation63]
          %477 = sst [smem:[#allocation15]] [#allocation62]
        $region112: #{tpu_custom_call.1} parent=11 // pred_fallthru
          _
        %479 = shalt.err (0)
        %s481 = sshll.u32 %s472, 4
        %s482 = int_to_ptr.hbm [resolvable:$true] %s481
        %s483 = sshll.u32 %s473, 4
        %s484 = int_to_ptr.vmem [resolvable:$true] %s483
        %486 = dma.hbm_to_vmem [thread:$0]  %s482, 16, %s484, [#allocation5]
        %s487 = sadd.s32 %s436, 3
        %s488 = sld [smem:[#allocation9 + %s487]]
        %s489 = scalar_lea.hbm %s4, %s488
        %s490 = scalar_lea.vmem [#allocation4], 19
        // Predicated region
        $region113: #{tpu_custom_call.1} parent=11 // pred_check
          _
        $region114: #{tpu_custom_call.1} parent=11 // pred_check_branch
          %492 = sbr.rel target = $region116
        $region115: #{tpu_custom_call.1} parent=11 // pred_region
          %493 = sst [smem:[#allocation14]] [#allocation65]
          %494 = sst [smem:[#allocation15]] [#allocation64]
        $region116: #{tpu_custom_call.1} parent=11 // pred_fallthru
          _
        %496 = shalt.err (0)
        %s498 = sshll.u32 %s489, 4
        %s499 = int_to_ptr.hbm [resolvable:$true] %s498
        %s500 = sshll.u32 %s490, 4
        %s501 = int_to_ptr.vmem [resolvable:$true] %s500
        %503 = dma.hbm_to_vmem [thread:$0]  %s499, 16, %s501, [#allocation5]
        %s504 = sadd.s32 %s436, 4
        %s505 = sld [smem:[#allocation9 + %s504]]
        %s506 = scalar_lea.hbm %s4, %s505
        %s507 = scalar_lea.vmem [#allocation4], 20
        // Predicated region
        $region117: #{tpu_custom_call.1} parent=11 // pred_check
          _
        $region118: #{tpu_custom_call.1} parent=11 // pred_check_branch
          %509 = sbr.rel target = $region120
        $region119: #{tpu_custom_call.1} parent=11 // pred_region
          %510 = sst [smem:[#allocation14]] [#allocation67]
          %511 = sst [smem:[#allocation15]] [#allocation66]
        $region120: #{tpu_custom_call.1} parent=11 // pred_fallthru
          _
        %513 = shalt.err (0)
        %s515 = sshll.u32 %s506, 4
        %s516 = int_to_ptr.hbm [resolvable:$true] %s515
        %s517 = sshll.u32 %s507, 4
        %s518 = int_to_ptr.vmem [resolvable:$true] %s517
        %520 = dma.hbm_to_vmem [thread:$0]  %s516, 16, %s518, [#allocation5]
        %s521 = sadd.s32 %s436, 5
        %s522 = sld [smem:[#allocation9 + %s521]]
        %s523 = scalar_lea.hbm %s4, %s522
        %s524 = scalar_lea.vmem [#allocation4], 21
        // Predicated region
        $region121: #{tpu_custom_call.1} parent=11 // pred_check
          _
        $region122: #{tpu_custom_call.1} parent=11 // pred_check_branch
          %526 = sbr.rel target = $region124
        $region123: #{tpu_custom_call.1} parent=11 // pred_region
          %527 = sst [smem:[#allocation14]] [#allocation69]
          %528 = sst [smem:[#allocation15]] [#allocation68]
        $region124: #{tpu_custom_call.1} parent=11 // pred_fallthru
          _
        %530 = shalt.err (0)
        %s532 = sshll.u32 %s523, 4
        %s533 = int_to_ptr.hbm [resolvable:$true] %s532
        %s534 = sshll.u32 %s524, 4
        %s535 = int_to_ptr.vmem [resolvable:$true] %s534
        %537 = dma.hbm_to_vmem [thread:$0]  %s533, 16, %s535, [#allocation5]
        %s538 = sadd.s32 %s436, 6
        %s539 = sld [smem:[#allocation9 + %s538]]
        %s540 = scalar_lea.hbm %s4, %s539
        %s541 = scalar_lea.vmem [#allocation4], 22
        // Predicated region
        $region125: #{tpu_custom_call.1} parent=11 // pred_check
          _
        $region126: #{tpu_custom_call.1} parent=11 // pred_check_branch
          %543 = sbr.rel target = $region128
        $region127: #{tpu_custom_call.1} parent=11 // pred_region
          %544 = sst [smem:[#allocation14]] [#allocation71]
          %545 = sst [smem:[#allocation15]] [#allocation70]
        $region128: #{tpu_custom_call.1} parent=11 // pred_fallthru
          _
        %547 = shalt.err (0)
        %s549 = sshll.u32 %s540, 4
        %s550 = int_to_ptr.hbm [resolvable:$true] %s549
        %s551 = sshll.u32 %s541, 4
        %s552 = int_to_ptr.vmem [resolvable:$true] %s551
        %554 = dma.hbm_to_vmem [thread:$0]  %s550, 16, %s552, [#allocation5]
        %s555 = sadd.s32 %s436, 7
        %s556 = sld [smem:[#allocation9 + %s555]]
        %s557 = scalar_lea.hbm %s4, %s556
        %s558 = scalar_lea.vmem [#allocation4], 23
        // Predicated region
        $region129: #{tpu_custom_call.1} parent=11 // pred_check
          _
        $region130: #{tpu_custom_call.1} parent=11 // pred_check_branch
          %560 = sbr.rel target = $region132
        $region131: #{tpu_custom_call.1} parent=11 // pred_region
          %561 = sst [smem:[#allocation14]] [#allocation73]
          %562 = sst [smem:[#allocation15]] [#allocation72]
        $region132: #{tpu_custom_call.1} parent=11 // pred_fallthru
          _
        %564 = shalt.err (0)
        %s566 = sshll.u32 %s557, 4
        %s567 = int_to_ptr.hbm [resolvable:$true] %s566
        %s568 = sshll.u32 %s558, 4
        %s569 = int_to_ptr.vmem [resolvable:$true] %s568
        %571 = dma.hbm_to_vmem [thread:$0]  %s567, 16, %s569, [#allocation5]
        %s572 = sadd.s32 %s68, 3
        %s573 = sld [smem:[#allocation7 + %s572]]
        %s574 = sld [smem:[#allocation8 + %s572]]
        %s575 = scalar_lea.hbm %s3, %s573
        %s576 = scalar_lea.vmem [#allocation2], 3
        // Predicated region
        $region133: #{tpu_custom_call.1} parent=11 // pred_check
          _
        $region134: #{tpu_custom_call.1} parent=11 // pred_check_branch
          %578 = sbr.rel target = $region136
        $region135: #{tpu_custom_call.1} parent=11 // pred_region
          %579 = sst [smem:[#allocation14]] [#allocation75]
          %580 = sst [smem:[#allocation15]] [#allocation74]
        $region136: #{tpu_custom_call.1} parent=11 // pred_fallthru
          _
        %582 = shalt.err (0)
        %s584 = sshll.u32 %s575, 4
        %s585 = int_to_ptr.hbm [resolvable:$true] %s584
        %s586 = sshll.u32 %s576, 4
        %s587 = int_to_ptr.vmem [resolvable:$true] %s586
        %589 = dma.hbm_to_vmem [thread:$0]  %s585, 16, %s587, [#allocation5]
        %s590 = scalar_lea.hbm %s4, %s574
        %s591 = scalar_lea.vmem [#allocation3], 3
        // Predicated region
        $region137: #{tpu_custom_call.1} parent=11 // pred_check
          _
        $region138: #{tpu_custom_call.1} parent=11 // pred_check_branch
          %593 = sbr.rel target = $region140
        $region139: #{tpu_custom_call.1} parent=11 // pred_region
          %594 = sst [smem:[#allocation14]] [#allocation77]
          %595 = sst [smem:[#allocation15]] [#allocation76]
        $region140: #{tpu_custom_call.1} parent=11 // pred_fallthru
          _
        %597 = shalt.err (0)
        %s599 = sshll.u32 %s590, 4
        %s600 = int_to_ptr.hbm [resolvable:$true] %s599
        %s601 = sshll.u32 %s591, 4
        %s602 = int_to_ptr.vmem [resolvable:$true] %s601
        %604 = dma.hbm_to_vmem [thread:$0]  %s600, 16, %s602, [#allocation5]
        %s605 = smul.u32 %s572, 8
        %s606 = sld [smem:[#allocation9 + %s605]]
        %s607 = scalar_lea.hbm %s4, %s606
        %s608 = scalar_lea.vmem [#allocation4], 24
        // Predicated region
        $region141: #{tpu_custom_call.1} parent=11 // pred_check
          _
        $region142: #{tpu_custom_call.1} parent=11 // pred_check_branch
          %610 = sbr.rel target = $region144
        $region143: #{tpu_custom_call.1} parent=11 // pred_region
          %611 = sst [smem:[#allocation14]] [#allocation79]
          %612 = sst [smem:[#allocation15]] [#allocation78]
        $region144: #{tpu_custom_call.1} parent=11 // pred_fallthru
          _
        %614 = shalt.err (0)
        %s616 = sshll.u32 %s607, 4
        %s617 = int_to_ptr.hbm [resolvable:$true] %s616
        %s618 = sshll.u32 %s608, 4
        %s619 = int_to_ptr.vmem [resolvable:$true] %s618
        %621 = dma.hbm_to_vmem [thread:$0]  %s617, 16, %s619, [#allocation5]
        %s622 = sadd.s32 %s605, 1
        %s623 = sld [smem:[#allocation9 + %s622]]
        %s624 = scalar_lea.hbm %s4, %s623
        %s625 = scalar_lea.vmem [#allocation4], 25
        // Predicated region
        $region145: #{tpu_custom_call.1} parent=11 // pred_check
          _
        $region146: #{tpu_custom_call.1} parent=11 // pred_check_branch
          %627 = sbr.rel target = $region148
        $region147: #{tpu_custom_call.1} parent=11 // pred_region
          %628 = sst [smem:[#allocation14]] [#allocation81]
          %629 = sst [smem:[#allocation15]] [#allocation80]
        $region148: #{tpu_custom_call.1} parent=11 // pred_fallthru
          _
        %631 = shalt.err (0)
        %s633 = sshll.u32 %s624, 4
        %s634 = int_to_ptr.hbm [resolvable:$true] %s633
        %s635 = sshll.u32 %s625, 4
        %s636 = int_to_ptr.vmem [resolvable:$true] %s635
        %638 = dma.hbm_to_vmem [thread:$0]  %s634, 16, %s636, [#allocation5]
        %s639 = sadd.s32 %s605, 2
        %s640 = sld [smem:[#allocation9 + %s639]]
        %s641 = scalar_lea.hbm %s4, %s640
        %s642 = scalar_lea.vmem [#allocation4], 26
        // Predicated region
        $region149: #{tpu_custom_call.1} parent=11 // pred_check
          _
        $region150: #{tpu_custom_call.1} parent=11 // pred_check_branch
          %644 = sbr.rel target = $region152
        $region151: #{tpu_custom_call.1} parent=11 // pred_region
          %645 = sst [smem:[#allocation14]] [#allocation83]
          %646 = sst [smem:[#allocation15]] [#allocation82]
        $region152: #{tpu_custom_call.1} parent=11 // pred_fallthru
          _
        %648 = shalt.err (0)
        %s650 = sshll.u32 %s641, 4
        %s651 = int_to_ptr.hbm [resolvable:$true] %s650
        %s652 = sshll.u32 %s642, 4
        %s653 = int_to_ptr.vmem [resolvable:$true] %s652
        %655 = dma.hbm_to_vmem [thread:$0]  %s651, 16, %s653, [#allocation5]
        %s656 = sadd.s32 %s605, 3
        %s657 = sld [smem:[#allocation9 + %s656]]
        %s658 = scalar_lea.hbm %s4, %s657
        %s659 = scalar_lea.vmem [#allocation4], 27
        // Predicated region
        $region153: #{tpu_custom_call.1} parent=11 // pred_check
          _
        $region154: #{tpu_custom_call.1} parent=11 // pred_check_branch
          %661 = sbr.rel target = $region156
        $region155: #{tpu_custom_call.1} parent=11 // pred_region
          %662 = sst [smem:[#allocation14]] [#allocation85]
          %663 = sst [smem:[#allocation15]] [#allocation84]
        $region156: #{tpu_custom_call.1} parent=11 // pred_fallthru
          _
        %665 = shalt.err (0)
        %s667 = sshll.u32 %s658, 4
        %s668 = int_to_ptr.hbm [resolvable:$true] %s667
        %s669 = sshll.u32 %s659, 4
        %s670 = int_to_ptr.vmem [resolvable:$true] %s669
        %672 = dma.hbm_to_vmem [thread:$0]  %s668, 16, %s670, [#allocation5]
        %s673 = sadd.s32 %s605, 4
        %s674 = sld [smem:[#allocation9 + %s673]]
        %s675 = scalar_lea.hbm %s4, %s674
        %s676 = scalar_lea.vmem [#allocation4], 28
        // Predicated region
        $region157: #{tpu_custom_call.1} parent=11 // pred_check
          _
        $region158: #{tpu_custom_call.1} parent=11 // pred_check_branch
          %678 = sbr.rel target = $region160
        $region159: #{tpu_custom_call.1} parent=11 // pred_region
          %679 = sst [smem:[#allocation14]] [#allocation87]
          %680 = sst [smem:[#allocation15]] [#allocation86]
        $region160: #{tpu_custom_call.1} parent=11 // pred_fallthru
          _
        %682 = shalt.err (0)
        %s684 = sshll.u32 %s675, 4
        %s685 = int_to_ptr.hbm [resolvable:$true] %s684
        %s686 = sshll.u32 %s676, 4
        %s687 = int_to_ptr.vmem [resolvable:$true] %s686
        %689 = dma.hbm_to_vmem [thread:$0]  %s685, 16, %s687, [#allocation5]
        %s690 = sadd.s32 %s605, 5
        %s691 = sld [smem:[#allocation9 + %s690]]
        %s692 = scalar_lea.hbm %s4, %s691
        %s693 = scalar_lea.vmem [#allocation4], 29
        // Predicated region
        $region161: #{tpu_custom_call.1} parent=11 // pred_check
          _
        $region162: #{tpu_custom_call.1} parent=11 // pred_check_branch
          %695 = sbr.rel target = $region164
        $region163: #{tpu_custom_call.1} parent=11 // pred_region
          %696 = sst [smem:[#allocation14]] [#allocation89]
          %697 = sst [smem:[#allocation15]] [#allocation88]
        $region164: #{tpu_custom_call.1} parent=11 // pred_fallthru
          _
        %699 = shalt.err (0)
        %s701 = sshll.u32 %s692, 4
        %s702 = int_to_ptr.hbm [resolvable:$true] %s701
        %s703 = sshll.u32 %s693, 4
        %s704 = int_to_ptr.vmem [resolvable:$true] %s703
        %706 = dma.hbm_to_vmem [thread:$0]  %s702, 16, %s704, [#allocation5]
        %s707 = sadd.s32 %s605, 6
        %s708 = sld [smem:[#allocation9 + %s707]]
        %s709 = scalar_lea.hbm %s4, %s708
        %s710 = scalar_lea.vmem [#allocation4], 30
        // Predicated region
        $region165: #{tpu_custom_call.1} parent=11 // pred_check
          _
        $region166: #{tpu_custom_call.1} parent=11 // pred_check_branch
          %712 = sbr.rel target = $region168
        $region167: #{tpu_custom_call.1} parent=11 // pred_region
          %713 = sst [smem:[#allocation14]] [#allocation91]
          %714 = sst [smem:[#allocation15]] [#allocation90]
        $region168: #{tpu_custom_call.1} parent=11 // pred_fallthru
          _
        %716 = shalt.err (0)
        %s718 = sshll.u32 %s709, 4
        %s719 = int_to_ptr.hbm [resolvable:$true] %s718
        %s720 = sshll.u32 %s710, 4
        %s721 = int_to_ptr.vmem [resolvable:$true] %s720
        %723 = dma.hbm_to_vmem [thread:$0]  %s719, 16, %s721, [#allocation5]
        %s724 = sadd.s32 %s605, 7
        %s725 = sld [smem:[#allocation9 + %s724]]
        %s726 = scalar_lea.hbm %s4, %s725
        %s727 = scalar_lea.vmem [#allocation4], 31
        // Predicated region
        $region169: #{tpu_custom_call.1} parent=11 // pred_check
          _
        $region170: #{tpu_custom_call.1} parent=11 // pred_check_branch
          %729 = sbr.rel target = $region172
        $region171: #{tpu_custom_call.1} parent=11 // pred_region
          %730 = sst [smem:[#allocation14]] [#allocation93]
          %731 = sst [smem:[#allocation15]] [#allocation92]
        $region172: #{tpu_custom_call.1} parent=11 // pred_fallthru
          _
        %733 = shalt.err (0)
        %s735 = sshll.u32 %s726, 4
        %s736 = int_to_ptr.hbm [resolvable:$true] %s735
        %s737 = sshll.u32 %s727, 4
        %s738 = int_to_ptr.vmem [resolvable:$true] %s737
        %740 = dma.hbm_to_vmem [thread:$0]  %s736, 16, %s738, [#allocation5]
        %s741 = sadd.s32 %s68, 4
        %s742 = sld [smem:[#allocation7 + %s741]]
        %s743 = sld [smem:[#allocation8 + %s741]]
        %s744 = scalar_lea.hbm %s3, %s742
        %s745 = scalar_lea.vmem [#allocation2], 4
        // Predicated region
        $region173: #{tpu_custom_call.1} parent=11 // pred_check
          _
        $region174: #{tpu_custom_call.1} parent=11 // pred_check_branch
          %747 = sbr.rel target = $region176
        $region175: #{tpu_custom_call.1} parent=11 // pred_region
          %748 = sst [smem:[#allocation14]] [#allocation95]
          %749 = sst [smem:[#allocation15]] [#allocation94]
        $region176: #{tpu_custom_call.1} parent=11 // pred_fallthru
          _
        %751 = shalt.err (0)
        %s753 = sshll.u32 %s744, 4
        %s754 = int_to_ptr.hbm [resolvable:$true] %s753
        %s755 = sshll.u32 %s745, 4
        %s756 = int_to_ptr.vmem [resolvable:$true] %s755
        %758 = dma.hbm_to_vmem [thread:$0]  %s754, 16, %s756, [#allocation5]
        %s759 = scalar_lea.hbm %s4, %s743
        %s760 = scalar_lea.vmem [#allocation3], 4
        // Predicated region
        $region177: #{tpu_custom_call.1} parent=11 // pred_check
          _
        $region178: #{tpu_custom_call.1} parent=11 // pred_check_branch
          %762 = sbr.rel target = $region180
        $region179: #{tpu_custom_call.1} parent=11 // pred_region
          %763 = sst [smem:[#allocation14]] [#allocation97]
          %764 = sst [smem:[#allocation15]] [#allocation96]
        $region180: #{tpu_custom_call.1} parent=11 // pred_fallthru
          _
        %766 = shalt.err (0)
        %s768 = sshll.u32 %s759, 4
        %s769 = int_to_ptr.hbm [resolvable:$true] %s768
        %s770 = sshll.u32 %s760, 4
        %s771 = int_to_ptr.vmem [resolvable:$true] %s770
        %773 = dma.hbm_to_vmem [thread:$0]  %s769, 16, %s771, [#allocation5]
        %s774 = smul.u32 %s741, 8
        %s775 = sld [smem:[#allocation9 + %s774]]
        %s776 = scalar_lea.hbm %s4, %s775
        %s777 = scalar_lea.vmem [#allocation4], 32
        // Predicated region
        $region181: #{tpu_custom_call.1} parent=11 // pred_check
          _
        $region182: #{tpu_custom_call.1} parent=11 // pred_check_branch
          %779 = sbr.rel target = $region184
        $region183: #{tpu_custom_call.1} parent=11 // pred_region
          %780 = sst [smem:[#allocation14]] [#allocation99]
          %781 = sst [smem:[#allocation15]] [#allocation98]
        $region184: #{tpu_custom_call.1} parent=11 // pred_fallthru
          _
        %783 = shalt.err (0)
        %s785 = sshll.u32 %s776, 4
        %s786 = int_to_ptr.hbm [resolvable:$true] %s785
        %s787 = sshll.u32 %s777, 4
        %s788 = int_to_ptr.vmem [resolvable:$true] %s787
        %790 = dma.hbm_to_vmem [thread:$0]  %s786, 16, %s788, [#allocation5]
        %s791 = sadd.s32 %s774, 1
        %s792 = sld [smem:[#allocation9 + %s791]]
        %s793 = scalar_lea.hbm %s4, %s792
        %s794 = scalar_lea.vmem [#allocation4], 33
        // Predicated region
        $region185: #{tpu_custom_call.1} parent=11 // pred_check
          _
        $region186: #{tpu_custom_call.1} parent=11 // pred_check_branch
          %796 = sbr.rel target = $region188
        $region187: #{tpu_custom_call.1} parent=11 // pred_region
          %797 = sst [smem:[#allocation14]] [#allocation101]
          %798 = sst [smem:[#allocation15]] [#allocation100]
        $region188: #{tpu_custom_call.1} parent=11 // pred_fallthru
          _
        %800 = shalt.err (0)
        %s802 = sshll.u32 %s793, 4
        %s803 = int_to_ptr.hbm [resolvable:$true] %s802
        %s804 = sshll.u32 %s794, 4
        %s805 = int_to_ptr.vmem [resolvable:$true] %s804
        %807 = dma.hbm_to_vmem [thread:$0]  %s803, 16, %s805, [#allocation5]
        %s808 = sadd.s32 %s774, 2
        %s809 = sld [smem:[#allocation9 + %s808]]
        %s810 = scalar_lea.hbm %s4, %s809
        %s811 = scalar_lea.vmem [#allocation4], 34
        // Predicated region
        $region189: #{tpu_custom_call.1} parent=11 // pred_check
          _
        $region190: #{tpu_custom_call.1} parent=11 // pred_check_branch
          %813 = sbr.rel target = $region192
        $region191: #{tpu_custom_call.1} parent=11 // pred_region
          %814 = sst [smem:[#allocation14]] [#allocation103]
          %815 = sst [smem:[#allocation15]] [#allocation102]
        $region192: #{tpu_custom_call.1} parent=11 // pred_fallthru
          _
        %817 = shalt.err (0)
        %s819 = sshll.u32 %s810, 4
        %s820 = int_to_ptr.hbm [resolvable:$true] %s819
        %s821 = sshll.u32 %s811, 4
        %s822 = int_to_ptr.vmem [resolvable:$true] %s821
        %824 = dma.hbm_to_vmem [thread:$0]  %s820, 16, %s822, [#allocation5]
        %s825 = sadd.s32 %s774, 3
        %s826 = sld [smem:[#allocation9 + %s825]]
        %s827 = scalar_lea.hbm %s4, %s826
        %s828 = scalar_lea.vmem [#allocation4], 35
        // Predicated region
        $region193: #{tpu_custom_call.1} parent=11 // pred_check
          _
        $region194: #{tpu_custom_call.1} parent=11 // pred_check_branch
          %830 = sbr.rel target = $region196
        $region195: #{tpu_custom_call.1} parent=11 // pred_region
          %831 = sst [smem:[#allocation14]] [#allocation105]
          %832 = sst [smem:[#allocation15]] [#allocation104]
        $region196: #{tpu_custom_call.1} parent=11 // pred_fallthru
          _
        %834 = shalt.err (0)
        %s836 = sshll.u32 %s827, 4
        %s837 = int_to_ptr.hbm [resolvable:$true] %s836
        %s838 = sshll.u32 %s828, 4
        %s839 = int_to_ptr.vmem [resolvable:$true] %s838
        %841 = dma.hbm_to_vmem [thread:$0]  %s837, 16, %s839, [#allocation5]
        %s842 = sadd.s32 %s774, 4
        %s843 = sld [smem:[#allocation9 + %s842]]
        %s844 = scalar_lea.hbm %s4, %s843
        %s845 = scalar_lea.vmem [#allocation4], 36
        // Predicated region
        $region197: #{tpu_custom_call.1} parent=11 // pred_check
          _
        $region198: #{tpu_custom_call.1} parent=11 // pred_check_branch
          %847 = sbr.rel target = $region200
        $region199: #{tpu_custom_call.1} parent=11 // pred_region
          %848 = sst [smem:[#allocation14]] [#allocation107]
          %849 = sst [smem:[#allocation15]] [#allocation106]
        $region200: #{tpu_custom_call.1} parent=11 // pred_fallthru
          _
        %851 = shalt.err (0)
        %s853 = sshll.u32 %s844, 4
        %s854 = int_to_ptr.hbm [resolvable:$true] %s853
        %s855 = sshll.u32 %s845, 4
        %s856 = int_to_ptr.vmem [resolvable:$true] %s855
        %858 = dma.hbm_to_vmem [thread:$0]  %s854, 16, %s856, [#allocation5]
        %s859 = sadd.s32 %s774, 5
        %s860 = sld [smem:[#allocation9 + %s859]]
        %s861 = scalar_lea.hbm %s4, %s860
        %s862 = scalar_lea.vmem [#allocation4], 37
        // Predicated region
        $region201: #{tpu_custom_call.1} parent=11 // pred_check
          _
        $region202: #{tpu_custom_call.1} parent=11 // pred_check_branch
          %864 = sbr.rel target = $region204
        $region203: #{tpu_custom_call.1} parent=11 // pred_region
          %865 = sst [smem:[#allocation14]] [#allocation109]
          %866 = sst [smem:[#allocation15]] [#allocation108]
        $region204: #{tpu_custom_call.1} parent=11 // pred_fallthru
          _
        %868 = shalt.err (0)
        %s870 = sshll.u32 %s861, 4
        %s871 = int_to_ptr.hbm [resolvable:$true] %s870
        %s872 = sshll.u32 %s862, 4
        %s873 = int_to_ptr.vmem [resolvable:$true] %s872
        %875 = dma.hbm_to_vmem [thread:$0]  %s871, 16, %s873, [#allocation5]
        %s876 = sadd.s32 %s774, 6
        %s877 = sld [smem:[#allocation9 + %s876]]
        %s878 = scalar_lea.hbm %s4, %s877
        %s879 = scalar_lea.vmem [#allocation4], 38
        // Predicated region
        $region205: #{tpu_custom_call.1} parent=11 // pred_check
          _
        $region206: #{tpu_custom_call.1} parent=11 // pred_check_branch
          %881 = sbr.rel target = $region208
        $region207: #{tpu_custom_call.1} parent=11 // pred_region
          %882 = sst [smem:[#allocation14]] [#allocation111]
          %883 = sst [smem:[#allocation15]] [#allocation110]
        $region208: #{tpu_custom_call.1} parent=11 // pred_fallthru
          _
        %885 = shalt.err (0)
        %s887 = sshll.u32 %s878, 4
        %s888 = int_to_ptr.hbm [resolvable:$true] %s887
        %s889 = sshll.u32 %s879, 4
        %s890 = int_to_ptr.vmem [resolvable:$true] %s889
        %892 = dma.hbm_to_vmem [thread:$0]  %s888, 16, %s890, [#allocation5]
        %s893 = sadd.s32 %s774, 7
        %s894 = sld [smem:[#allocation9 + %s893]]
        %s895 = scalar_lea.hbm %s4, %s894
        %s896 = scalar_lea.vmem [#allocation4], 39
        // Predicated region
        $region209: #{tpu_custom_call.1} parent=11 // pred_check
          _
        $region210: #{tpu_custom_call.1} parent=11 // pred_check_branch
          %898 = sbr.rel target = $region212
        $region211: #{tpu_custom_call.1} parent=11 // pred_region
          %899 = sst [smem:[#allocation14]] [#allocation113]
          %900 = sst [smem:[#allocation15]] [#allocation112]
        $region212: #{tpu_custom_call.1} parent=11 // pred_fallthru
          _
        %902 = shalt.err (0)
        %s904 = sshll.u32 %s895, 4
        %s905 = int_to_ptr.hbm [resolvable:$true] %s904
        %s906 = sshll.u32 %s896, 4
        %s907 = int_to_ptr.vmem [resolvable:$true] %s906
        %909 = dma.hbm_to_vmem [thread:$0]  %s905, 16, %s907, [#allocation5]
        %s910 = sadd.s32 %s68, 5
        %s911 = sld [smem:[#allocation7 + %s910]]
        %s912 = sld [smem:[#allocation8 + %s910]]
        %s913 = scalar_lea.hbm %s3, %s911
        %s914 = scalar_lea.vmem [#allocation2], 5
        // Predicated region
        $region213: #{tpu_custom_call.1} parent=11 // pred_check
          _
        $region214: #{tpu_custom_call.1} parent=11 // pred_check_branch
          %916 = sbr.rel target = $region216
        $region215: #{tpu_custom_call.1} parent=11 // pred_region
          %917 = sst [smem:[#allocation14]] [#allocation115]
          %918 = sst [smem:[#allocation15]] [#allocation114]
        $region216: #{tpu_custom_call.1} parent=11 // pred_fallthru
          _
        %920 = shalt.err (0)
        %s922 = sshll.u32 %s913, 4
        %s923 = int_to_ptr.hbm [resolvable:$true] %s922
        %s924 = sshll.u32 %s914, 4
        %s925 = int_to_ptr.vmem [resolvable:$true] %s924
        %927 = dma.hbm_to_vmem [thread:$0]  %s923, 16, %s925, [#allocation5]
        %s928 = scalar_lea.hbm %s4, %s912
        %s929 = scalar_lea.vmem [#allocation3], 5
        // Predicated region
        $region217: #{tpu_custom_call.1} parent=11 // pred_check
          _
        $region218: #{tpu_custom_call.1} parent=11 // pred_check_branch
          %931 = sbr.rel target = $region220
        $region219: #{tpu_custom_call.1} parent=11 // pred_region
          %932 = sst [smem:[#allocation14]] [#allocation117]
          %933 = sst [smem:[#allocation15]] [#allocation116]
        $region220: #{tpu_custom_call.1} parent=11 // pred_fallthru
          _
        %935 = shalt.err (0)
        %s937 = sshll.u32 %s928, 4
        %s938 = int_to_ptr.hbm [resolvable:$true] %s937
        %s939 = sshll.u32 %s929, 4
        %s940 = int_to_ptr.vmem [resolvable:$true] %s939
        %942 = dma.hbm_to_vmem [thread:$0]  %s938, 16, %s940, [#allocation5]
        %s943 = smul.u32 %s910, 8
        %s944 = sld [smem:[#allocation9 + %s943]]
        %s945 = scalar_lea.hbm %s4, %s944
        %s946 = scalar_lea.vmem [#allocation4], 40
        // Predicated region
        $region221: #{tpu_custom_call.1} parent=11 // pred_check
          _
        $region222: #{tpu_custom_call.1} parent=11 // pred_check_branch
          %948 = sbr.rel target = $region224
        $region223: #{tpu_custom_call.1} parent=11 // pred_region
          %949 = sst [smem:[#allocation14]] [#allocation119]
          %950 = sst [smem:[#allocation15]] [#allocation118]
        $region224: #{tpu_custom_call.1} parent=11 // pred_fallthru
          _
        %952 = shalt.err (0)
        %s954 = sshll.u32 %s945, 4
        %s955 = int_to_ptr.hbm [resolvable:$true] %s954
        %s956 = sshll.u32 %s946, 4
        %s957 = int_to_ptr.vmem [resolvable:$true] %s956
        %959 = dma.hbm_to_vmem [thread:$0]  %s955, 16, %s957, [#allocation5]
        %s960 = sadd.s32 %s943, 1
        %s961 = sld [smem:[#allocation9 + %s960]]
        %s962 = scalar_lea.hbm %s4, %s961
        %s963 = scalar_lea.vmem [#allocation4], 41
        // Predicated region
        $region225: #{tpu_custom_call.1} parent=11 // pred_check
          _
        $region226: #{tpu_custom_call.1} parent=11 // pred_check_branch
          %965 = sbr.rel target = $region228
        $region227: #{tpu_custom_call.1} parent=11 // pred_region
          %966 = sst [smem:[#allocation14]] [#allocation121]
          %967 = sst [smem:[#allocation15]] [#allocation120]
        $region228: #{tpu_custom_call.1} parent=11 // pred_fallthru
          _
        %969 = shalt.err (0)
        %s971 = sshll.u32 %s962, 4
        %s972 = int_to_ptr.hbm [resolvable:$true] %s971
        %s973 = sshll.u32 %s963, 4
        %s974 = int_to_ptr.vmem [resolvable:$true] %s973
        %976 = dma.hbm_to_vmem [thread:$0]  %s972, 16, %s974, [#allocation5]
        %s977 = sadd.s32 %s943, 2
        %s978 = sld [smem:[#allocation9 + %s977]]
        %s979 = scalar_lea.hbm %s4, %s978
        %s980 = scalar_lea.vmem [#allocation4], 42
        // Predicated region
        $region229: #{tpu_custom_call.1} parent=11 // pred_check
          _
        $region230: #{tpu_custom_call.1} parent=11 // pred_check_branch
          %982 = sbr.rel target = $region232
        $region231: #{tpu_custom_call.1} parent=11 // pred_region
          %983 = sst [smem:[#allocation14]] [#allocation123]
          %984 = sst [smem:[#allocation15]] [#allocation122]
        $region232: #{tpu_custom_call.1} parent=11 // pred_fallthru
          _
        %986 = shalt.err (0)
        %s988 = sshll.u32 %s979, 4
        %s989 = int_to_ptr.hbm [resolvable:$true] %s988
        %s990 = sshll.u32 %s980, 4
        %s991 = int_to_ptr.vmem [resolvable:$true] %s990
        %993 = dma.hbm_to_vmem [thread:$0]  %s989, 16, %s991, [#allocation5]
        %s994 = sadd.s32 %s943, 3
        %s995 = sld [smem:[#allocation9 + %s994]]
        %s996 = scalar_lea.hbm %s4, %s995
        %s997 = scalar_lea.vmem [#allocation4], 43
        // Predicated region
        $region233: #{tpu_custom_call.1} parent=11 // pred_check
          _
        $region234: #{tpu_custom_call.1} parent=11 // pred_check_branch
          %999 = sbr.rel target = $region236
        $region235: #{tpu_custom_call.1} parent=11 // pred_region
          %1000 = sst [smem:[#allocation14]] [#allocation125]
          %1001 = sst [smem:[#allocation15]] [#allocation124]
        $region236: #{tpu_custom_call.1} parent=11 // pred_fallthru
          _
        %1003 = shalt.err (0)
        %s1005 = sshll.u32 %s996, 4
        %s1006 = int_to_ptr.hbm [resolvable:$true] %s1005
        %s1007 = sshll.u32 %s997, 4
        %s1008 = int_to_ptr.vmem [resolvable:$true] %s1007
        %1010 = dma.hbm_to_vmem [thread:$0]  %s1006, 16, %s1008, [#allocation5]
        %s1011 = sadd.s32 %s943, 4
        %s1012 = sld [smem:[#allocation9 + %s1011]]
        %s1013 = scalar_lea.hbm %s4, %s1012
        %s1014 = scalar_lea.vmem [#allocation4], 44
        // Predicated region
        $region237: #{tpu_custom_call.1} parent=11 // pred_check
          _
        $region238: #{tpu_custom_call.1} parent=11 // pred_check_branch
          %1016 = sbr.rel target = $region240
        $region239: #{tpu_custom_call.1} parent=11 // pred_region
          %1017 = sst [smem:[#allocation14]] [#allocation127]
          %1018 = sst [smem:[#allocation15]] [#allocation126]
        $region240: #{tpu_custom_call.1} parent=11 // pred_fallthru
          _
        %1020 = shalt.err (0)
        %s1022 = sshll.u32 %s1013, 4
        %s1023 = int_to_ptr.hbm [resolvable:$true] %s1022
        %s1024 = sshll.u32 %s1014, 4
        %s1025 = int_to_ptr.vmem [resolvable:$true] %s1024
        %1027 = dma.hbm_to_vmem [thread:$0]  %s1023, 16, %s1025, [#allocation5]
        %s1028 = sadd.s32 %s943, 5
        %s1029 = sld [smem:[#allocation9 + %s1028]]
        %s1030 = scalar_lea.hbm %s4, %s1029
        %s1031 = scalar_lea.vmem [#allocation4], 45
        // Predicated region
        $region241: #{tpu_custom_call.1} parent=11 // pred_check
          _
        $region242: #{tpu_custom_call.1} parent=11 // pred_check_branch
          %1033 = sbr.rel target = $region244
        $region243: #{tpu_custom_call.1} parent=11 // pred_region
          %1034 = sst [smem:[#allocation14]] [#allocation129]
          %1035 = sst [smem:[#allocation15]] [#allocation128]
        $region244: #{tpu_custom_call.1} parent=11 // pred_fallthru
          _
        %1037 = shalt.err (0)
        %s1039 = sshll.u32 %s1030, 4
        %s1040 = int_to_ptr.hbm [resolvable:$true] %s1039
        %s1041 = sshll.u32 %s1031, 4
        %s1042 = int_to_ptr.vmem [resolvable:$true] %s1041
        %1044 = dma.hbm_to_vmem [thread:$0]  %s1040, 16, %s1042, [#allocation5]
        %s1045 = sadd.s32 %s943, 6
        %s1046 = sld [smem:[#allocation9 + %s1045]]
        %s1047 = scalar_lea.hbm %s4, %s1046
        %s1048 = scalar_lea.vmem [#allocation4], 46
        // Predicated region
        $region245: #{tpu_custom_call.1} parent=11 // pred_check
          _
        $region246: #{tpu_custom_call.1} parent=11 // pred_check_branch
          %1050 = sbr.rel target = $region248
        $region247: #{tpu_custom_call.1} parent=11 // pred_region
          %1051 = sst [smem:[#allocation14]] [#allocation131]
          %1052 = sst [smem:[#allocation15]] [#allocation130]
        $region248: #{tpu_custom_call.1} parent=11 // pred_fallthru
          _
        %1054 = shalt.err (0)
        %s1056 = sshll.u32 %s1047, 4
        %s1057 = int_to_ptr.hbm [resolvable:$true] %s1056
        %s1058 = sshll.u32 %s1048, 4
        %s1059 = int_to_ptr.vmem [resolvable:$true] %s1058
        %1061 = dma.hbm_to_vmem [thread:$0]  %s1057, 16, %s1059, [#allocation5]
        %s1062 = sadd.s32 %s943, 7
        %s1063 = sld [smem:[#allocation9 + %s1062]]
        %s1064 = scalar_lea.hbm %s4, %s1063
        %s1065 = scalar_lea.vmem [#allocation4], 47
        // Predicated region
        $region249: #{tpu_custom_call.1} parent=11 // pred_check
          _
        $region250: #{tpu_custom_call.1} parent=11 // pred_check_branch
          %1067 = sbr.rel target = $region252
        $region251: #{tpu_custom_call.1} parent=11 // pred_region
          %1068 = sst [smem:[#allocation14]] [#allocation133]
          %1069 = sst [smem:[#allocation15]] [#allocation132]
        $region252: #{tpu_custom_call.1} parent=11 // pred_fallthru
          _
        %1071 = shalt.err (0)
        %s1073 = sshll.u32 %s1064, 4
        %s1074 = int_to_ptr.hbm [resolvable:$true] %s1073
        %s1075 = sshll.u32 %s1065, 4
        %s1076 = int_to_ptr.vmem [resolvable:$true] %s1075
        %1078 = dma.hbm_to_vmem [thread:$0]  %s1074, 16, %s1076, [#allocation5]
        %s1079 = sadd.s32 %s68, 6
        %s1080 = sld [smem:[#allocation7 + %s1079]]
        %s1081 = sld [smem:[#allocation8 + %s1079]]
        %s1082 = scalar_lea.hbm %s3, %s1080
        %s1083 = scalar_lea.vmem [#allocation2], 6
        // Predicated region
        $region253: #{tpu_custom_call.1} parent=11 // pred_check
          _
        $region254: #{tpu_custom_call.1} parent=11 // pred_check_branch
          %1085 = sbr.rel target = $region256
        $region255: #{tpu_custom_call.1} parent=11 // pred_region
          %1086 = sst [smem:[#allocation14]] [#allocation135]
          %1087 = sst [smem:[#allocation15]] [#allocation134]
        $region256: #{tpu_custom_call.1} parent=11 // pred_fallthru
          _
        %1089 = shalt.err (0)
        %s1091 = sshll.u32 %s1082, 4
        %s1092 = int_to_ptr.hbm [resolvable:$true] %s1091
        %s1093 = sshll.u32 %s1083, 4
        %s1094 = int_to_ptr.vmem [resolvable:$true] %s1093
        %1096 = dma.hbm_to_vmem [thread:$0]  %s1092, 16, %s1094, [#allocation5]
        %s1097 = scalar_lea.hbm %s4, %s1081
        %s1098 = scalar_lea.vmem [#allocation3], 6
        // Predicated region
        $region257: #{tpu_custom_call.1} parent=11 // pred_check
          _
        $region258: #{tpu_custom_call.1} parent=11 // pred_check_branch
          %1100 = sbr.rel target = $region260
        $region259: #{tpu_custom_call.1} parent=11 // pred_region
          %1101 = sst [smem:[#allocation14]] [#allocation137]
          %1102 = sst [smem:[#allocation15]] [#allocation136]
        $region260: #{tpu_custom_call.1} parent=11 // pred_fallthru
          _
        %1104 = shalt.err (0)
        %s1106 = sshll.u32 %s1097, 4
        %s1107 = int_to_ptr.hbm [resolvable:$true] %s1106
        %s1108 = sshll.u32 %s1098, 4
        %s1109 = int_to_ptr.vmem [resolvable:$true] %s1108
        %1111 = dma.hbm_to_vmem [thread:$0]  %s1107, 16, %s1109, [#allocation5]
        %s1112 = smul.u32 %s1079, 8
        %s1113 = sld [smem:[#allocation9 + %s1112]]
        %s1114 = scalar_lea.hbm %s4, %s1113
        %s1115 = scalar_lea.vmem [#allocation4], 48
        // Predicated region
        $region261: #{tpu_custom_call.1} parent=11 // pred_check
          _
        $region262: #{tpu_custom_call.1} parent=11 // pred_check_branch
          %1117 = sbr.rel target = $region264
        $region263: #{tpu_custom_call.1} parent=11 // pred_region
          %1118 = sst [smem:[#allocation14]] [#allocation139]
          %1119 = sst [smem:[#allocation15]] [#allocation138]
        $region264: #{tpu_custom_call.1} parent=11 // pred_fallthru
          _
        %1121 = shalt.err (0)
        %s1123 = sshll.u32 %s1114, 4
        %s1124 = int_to_ptr.hbm [resolvable:$true] %s1123
        %s1125 = sshll.u32 %s1115, 4
        %s1126 = int_to_ptr.vmem [resolvable:$true] %s1125
        %1128 = dma.hbm_to_vmem [thread:$0]  %s1124, 16, %s1126, [#allocation5]
        %s1129 = sadd.s32 %s1112, 1
        %s1130 = sld [smem:[#allocation9 + %s1129]]
        %s1131 = scalar_lea.hbm %s4, %s1130
        %s1132 = scalar_lea.vmem [#allocation4], 49
        // Predicated region
        $region265: #{tpu_custom_call.1} parent=11 // pred_check
          _
        $region266: #{tpu_custom_call.1} parent=11 // pred_check_branch
          %1134 = sbr.rel target = $region268
        $region267: #{tpu_custom_call.1} parent=11 // pred_region
          %1135 = sst [smem:[#allocation14]] [#allocation141]
          %1136 = sst [smem:[#allocation15]] [#allocation140]
        $region268: #{tpu_custom_call.1} parent=11 // pred_fallthru
          _
        %1138 = shalt.err (0)
        %s1140 = sshll.u32 %s1131, 4
        %s1141 = int_to_ptr.hbm [resolvable:$true] %s1140
        %s1142 = sshll.u32 %s1132, 4
        %s1143 = int_to_ptr.vmem [resolvable:$true] %s1142
        %1145 = dma.hbm_to_vmem [thread:$0]  %s1141, 16, %s1143, [#allocation5]
        %s1146 = sadd.s32 %s1112, 2
        %s1147 = sld [smem:[#allocation9 + %s1146]]
        %s1148 = scalar_lea.hbm %s4, %s1147
        %s1149 = scalar_lea.vmem [#allocation4], 50
        // Predicated region
        $region269: #{tpu_custom_call.1} parent=11 // pred_check
          _
        $region270: #{tpu_custom_call.1} parent=11 // pred_check_branch
          %1151 = sbr.rel target = $region272
        $region271: #{tpu_custom_call.1} parent=11 // pred_region
          %1152 = sst [smem:[#allocation14]] [#allocation143]
          %1153 = sst [smem:[#allocation15]] [#allocation142]
        $region272: #{tpu_custom_call.1} parent=11 // pred_fallthru
          _
        %1155 = shalt.err (0)
        %s1157 = sshll.u32 %s1148, 4
        %s1158 = int_to_ptr.hbm [resolvable:$true] %s1157
        %s1159 = sshll.u32 %s1149, 4
        %s1160 = int_to_ptr.vmem [resolvable:$true] %s1159
        %1162 = dma.hbm_to_vmem [thread:$0]  %s1158, 16, %s1160, [#allocation5]
        %s1163 = sadd.s32 %s1112, 3
        %s1164 = sld [smem:[#allocation9 + %s1163]]
        %s1165 = scalar_lea.hbm %s4, %s1164
        %s1166 = scalar_lea.vmem [#allocation4], 51
        // Predicated region
        $region273: #{tpu_custom_call.1} parent=11 // pred_check
          _
        $region274: #{tpu_custom_call.1} parent=11 // pred_check_branch
          %1168 = sbr.rel target = $region276
        $region275: #{tpu_custom_call.1} parent=11 // pred_region
          %1169 = sst [smem:[#allocation14]] [#allocation145]
          %1170 = sst [smem:[#allocation15]] [#allocation144]
        $region276: #{tpu_custom_call.1} parent=11 // pred_fallthru
          _
        %1172 = shalt.err (0)
        %s1174 = sshll.u32 %s1165, 4
        %s1175 = int_to_ptr.hbm [resolvable:$true] %s1174
        %s1176 = sshll.u32 %s1166, 4
        %s1177 = int_to_ptr.vmem [resolvable:$true] %s1176
        %1179 = dma.hbm_to_vmem [thread:$0]  %s1175, 16, %s1177, [#allocation5]
        %s1180 = sadd.s32 %s1112, 4
        %s1181 = sld [smem:[#allocation9 + %s1180]]
        %s1182 = scalar_lea.hbm %s4, %s1181
        %s1183 = scalar_lea.vmem [#allocation4], 52
        // Predicated region
        $region277: #{tpu_custom_call.1} parent=11 // pred_check
          _
        $region278: #{tpu_custom_call.1} parent=11 // pred_check_branch
          %1185 = sbr.rel target = $region280
        $region279: #{tpu_custom_call.1} parent=11 // pred_region
          %1186 = sst [smem:[#allocation14]] [#allocation147]
          %1187 = sst [smem:[#allocation15]] [#allocation146]
        $region280: #{tpu_custom_call.1} parent=11 // pred_fallthru
          _
        %1189 = shalt.err (0)
        %s1191 = sshll.u32 %s1182, 4
        %s1192 = int_to_ptr.hbm [resolvable:$true] %s1191
        %s1193 = sshll.u32 %s1183, 4
        %s1194 = int_to_ptr.vmem [resolvable:$true] %s1193
        %1196 = dma.hbm_to_vmem [thread:$0]  %s1192, 16, %s1194, [#allocation5]
        %s1197 = sadd.s32 %s1112, 5
        %s1198 = sld [smem:[#allocation9 + %s1197]]
        %s1199 = scalar_lea.hbm %s4, %s1198
        %s1200 = scalar_lea.vmem [#allocation4], 53
        // Predicated region
        $region281: #{tpu_custom_call.1} parent=11 // pred_check
          _
        $region282: #{tpu_custom_call.1} parent=11 // pred_check_branch
          %1202 = sbr.rel target = $region284
        $region283: #{tpu_custom_call.1} parent=11 // pred_region
          %1203 = sst [smem:[#allocation14]] [#allocation149]
          %1204 = sst [smem:[#allocation15]] [#allocation148]
        $region284: #{tpu_custom_call.1} parent=11 // pred_fallthru
          _
        %1206 = shalt.err (0)
        %s1208 = sshll.u32 %s1199, 4
        %s1209 = int_to_ptr.hbm [resolvable:$true] %s1208
        %s1210 = sshll.u32 %s1200, 4
        %s1211 = int_to_ptr.vmem [resolvable:$true] %s1210
        %1213 = dma.hbm_to_vmem [thread:$0]  %s1209, 16, %s1211, [#allocation5]
        %s1214 = sadd.s32 %s1112, 6
        %s1215 = sld [smem:[#allocation9 + %s1214]]
        %s1216 = scalar_lea.hbm %s4, %s1215
        %s1217 = scalar_lea.vmem [#allocation4], 54
        // Predicated region
        $region285: #{tpu_custom_call.1} parent=11 // pred_check
          _
        $region286: #{tpu_custom_call.1} parent=11 // pred_check_branch
          %1219 = sbr.rel target = $region288
        $region287: #{tpu_custom_call.1} parent=11 // pred_region
          %1220 = sst [smem:[#allocation14]] [#allocation151]
          %1221 = sst [smem:[#allocation15]] [#allocation150]
        $region288: #{tpu_custom_call.1} parent=11 // pred_fallthru
          _
        %1223 = shalt.err (0)
        %s1225 = sshll.u32 %s1216, 4
        %s1226 = int_to_ptr.hbm [resolvable:$true] %s1225
        %s1227 = sshll.u32 %s1217, 4
        %s1228 = int_to_ptr.vmem [resolvable:$true] %s1227
        %1230 = dma.hbm_to_vmem [thread:$0]  %s1226, 16, %s1228, [#allocation5]
        %s1231 = sadd.s32 %s1112, 7
        %s1232 = sld [smem:[#allocation9 + %s1231]]
        %s1233 = scalar_lea.hbm %s4, %s1232
        %s1234 = scalar_lea.vmem [#allocation4], 55
        // Predicated region
        $region289: #{tpu_custom_call.1} parent=11 // pred_check
          _
        $region290: #{tpu_custom_call.1} parent=11 // pred_check_branch
          %1236 = sbr.rel target = $region292
        $region291: #{tpu_custom_call.1} parent=11 // pred_region
          %1237 = sst [smem:[#allocation14]] [#allocation153]
          %1238 = sst [smem:[#allocation15]] [#allocation152]
        $region292: #{tpu_custom_call.1} parent=11 // pred_fallthru
          _
        %1240 = shalt.err (0)
        %s1242 = sshll.u32 %s1233, 4
        %s1243 = int_to_ptr.hbm [resolvable:$true] %s1242
        %s1244 = sshll.u32 %s1234, 4
        %s1245 = int_to_ptr.vmem [resolvable:$true] %s1244
        %1247 = dma.hbm_to_vmem [thread:$0]  %s1243, 16, %s1245, [#allocation5]
        %s1248 = sadd.s32 %s68, 7
        %s1249 = sld [smem:[#allocation7 + %s1248]]
        %s1250 = sld [smem:[#allocation8 + %s1248]]
        %s1251 = scalar_lea.hbm %s3, %s1249
        %s1252 = scalar_lea.vmem [#allocation2], 7
        // Predicated region
        $region293: #{tpu_custom_call.1} parent=11 // pred_check
          _
        $region294: #{tpu_custom_call.1} parent=11 // pred_check_branch
          %1254 = sbr.rel target = $region296
        $region295: #{tpu_custom_call.1} parent=11 // pred_region
          %1255 = sst [smem:[#allocation14]] [#allocation155]
          %1256 = sst [smem:[#allocation15]] [#allocation154]
        $region296: #{tpu_custom_call.1} parent=11 // pred_fallthru
          _
        %1258 = shalt.err (0)
        %s1260 = sshll.u32 %s1251, 4
        %s1261 = int_to_ptr.hbm [resolvable:$true] %s1260
        %s1262 = sshll.u32 %s1252, 4
        %s1263 = int_to_ptr.vmem [resolvable:$true] %s1262
        %1265 = dma.hbm_to_vmem [thread:$0]  %s1261, 16, %s1263, [#allocation5]
        %s1266 = scalar_lea.hbm %s4, %s1250
        %s1267 = scalar_lea.vmem [#allocation3], 7
        // Predicated region
        $region297: #{tpu_custom_call.1} parent=11 // pred_check
          _
        $region298: #{tpu_custom_call.1} parent=11 // pred_check_branch
          %1269 = sbr.rel target = $region300
        $region299: #{tpu_custom_call.1} parent=11 // pred_region
          %1270 = sst [smem:[#allocation14]] [#allocation157]
          %1271 = sst [smem:[#allocation15]] [#allocation156]
        $region300: #{tpu_custom_call.1} parent=11 // pred_fallthru
          _
        %1273 = shalt.err (0)
        %s1275 = sshll.u32 %s1266, 4
        %s1276 = int_to_ptr.hbm [resolvable:$true] %s1275
        %s1277 = sshll.u32 %s1267, 4
        %s1278 = int_to_ptr.vmem [resolvable:$true] %s1277
        %1280 = dma.hbm_to_vmem [thread:$0]  %s1276, 16, %s1278, [#allocation5]
        %s1281 = smul.u32 %s1248, 8
        %s1282 = sld [smem:[#allocation9 + %s1281]]
        %s1283 = scalar_lea.hbm %s4, %s1282
        %s1284 = scalar_lea.vmem [#allocation4], 56
        // Predicated region
        $region301: #{tpu_custom_call.1} parent=11 // pred_check
          _
        $region302: #{tpu_custom_call.1} parent=11 // pred_check_branch
          %1286 = sbr.rel target = $region304
        $region303: #{tpu_custom_call.1} parent=11 // pred_region
          %1287 = sst [smem:[#allocation14]] [#allocation159]
          %1288 = sst [smem:[#allocation15]] [#allocation158]
        $region304: #{tpu_custom_call.1} parent=11 // pred_fallthru
          _
        %1290 = shalt.err (0)
        %s1292 = sshll.u32 %s1283, 4
        %s1293 = int_to_ptr.hbm [resolvable:$true] %s1292
        %s1294 = sshll.u32 %s1284, 4
        %s1295 = int_to_ptr.vmem [resolvable:$true] %s1294
        %1297 = dma.hbm_to_vmem [thread:$0]  %s1293, 16, %s1295, [#allocation5]
        %s1298 = sadd.s32 %s1281, 1
        %s1299 = sld [smem:[#allocation9 + %s1298]]
        %s1300 = scalar_lea.hbm %s4, %s1299
        %s1301 = scalar_lea.vmem [#allocation4], 57
        // Predicated region
        $region305: #{tpu_custom_call.1} parent=11 // pred_check
          _
        $region306: #{tpu_custom_call.1} parent=11 // pred_check_branch
          %1303 = sbr.rel target = $region308
        $region307: #{tpu_custom_call.1} parent=11 // pred_region
          %1304 = sst [smem:[#allocation14]] [#allocation161]
          %1305 = sst [smem:[#allocation15]] [#allocation160]
        $region308: #{tpu_custom_call.1} parent=11 // pred_fallthru
          _
        %1307 = shalt.err (0)
        %s1309 = sshll.u32 %s1300, 4
        %s1310 = int_to_ptr.hbm [resolvable:$true] %s1309
        %s1311 = sshll.u32 %s1301, 4
        %s1312 = int_to_ptr.vmem [resolvable:$true] %s1311
        %1314 = dma.hbm_to_vmem [thread:$0]  %s1310, 16, %s1312, [#allocation5]
        %s1315 = sadd.s32 %s1281, 2
        %s1316 = sld [smem:[#allocation9 + %s1315]]
        %s1317 = scalar_lea.hbm %s4, %s1316
        %s1318 = scalar_lea.vmem [#allocation4], 58
        // Predicated region
        $region309: #{tpu_custom_call.1} parent=11 // pred_check
          _
        $region310: #{tpu_custom_call.1} parent=11 // pred_check_branch
          %1320 = sbr.rel target = $region312
        $region311: #{tpu_custom_call.1} parent=11 // pred_region
          %1321 = sst [smem:[#allocation14]] [#allocation163]
          %1322 = sst [smem:[#allocation15]] [#allocation162]
        $region312: #{tpu_custom_call.1} parent=11 // pred_fallthru
          _
        %1324 = shalt.err (0)
        %s1326 = sshll.u32 %s1317, 4
        %s1327 = int_to_ptr.hbm [resolvable:$true] %s1326
        %s1328 = sshll.u32 %s1318, 4
        %s1329 = int_to_ptr.vmem [resolvable:$true] %s1328
        %1331 = dma.hbm_to_vmem [thread:$0]  %s1327, 16, %s1329, [#allocation5]
        %s1332 = sadd.s32 %s1281, 3
        %s1333 = sld [smem:[#allocation9 + %s1332]]
        %s1334 = scalar_lea.hbm %s4, %s1333
        %s1335 = scalar_lea.vmem [#allocation4], 59
        // Predicated region
        $region313: #{tpu_custom_call.1} parent=11 // pred_check
          _
        $region314: #{tpu_custom_call.1} parent=11 // pred_check_branch
          %1337 = sbr.rel target = $region316
        $region315: #{tpu_custom_call.1} parent=11 // pred_region
          %1338 = sst [smem:[#allocation14]] [#allocation165]
          %1339 = sst [smem:[#allocation15]] [#allocation164]
        $region316: #{tpu_custom_call.1} parent=11 // pred_fallthru
          _
        %1341 = shalt.err (0)
        %s1343 = sshll.u32 %s1334, 4
        %s1344 = int_to_ptr.hbm [resolvable:$true] %s1343
        %s1345 = sshll.u32 %s1335, 4
        %s1346 = int_to_ptr.vmem [resolvable:$true] %s1345
        %1348 = dma.hbm_to_vmem [thread:$0]  %s1344, 16, %s1346, [#allocation5]
        %s1349 = sadd.s32 %s1281, 4
        %s1350 = sld [smem:[#allocation9 + %s1349]]
        %s1351 = scalar_lea.hbm %s4, %s1350
        %s1352 = scalar_lea.vmem [#allocation4], 60
        // Predicated region
        $region317: #{tpu_custom_call.1} parent=11 // pred_check
          _
        $region318: #{tpu_custom_call.1} parent=11 // pred_check_branch
          %1354 = sbr.rel target = $region320
        $region319: #{tpu_custom_call.1} parent=11 // pred_region
          %1355 = sst [smem:[#allocation14]] [#allocation167]
          %1356 = sst [smem:[#allocation15]] [#allocation166]
        $region320: #{tpu_custom_call.1} parent=11 // pred_fallthru
          _
        %1358 = shalt.err (0)
        %s1360 = sshll.u32 %s1351, 4
        %s1361 = int_to_ptr.hbm [resolvable:$true] %s1360
        %s1362 = sshll.u32 %s1352, 4
        %s1363 = int_to_ptr.vmem [resolvable:$true] %s1362
        %1365 = dma.hbm_to_vmem [thread:$0]  %s1361, 16, %s1363, [#allocation5]
        %s1366 = sadd.s32 %s1281, 5
        %s1367 = sld [smem:[#allocation9 + %s1366]]
        %s1368 = scalar_lea.hbm %s4, %s1367
        %s1369 = scalar_lea.vmem [#allocation4], 61
        // Predicated region
        $region321: #{tpu_custom_call.1} parent=11 // pred_check
          _
        $region322: #{tpu_custom_call.1} parent=11 // pred_check_branch
          %1371 = sbr.rel target = $region324
        $region323: #{tpu_custom_call.1} parent=11 // pred_region
          %1372 = sst [smem:[#allocation14]] [#allocation169]
          %1373 = sst [smem:[#allocation15]] [#allocation168]
        $region324: #{tpu_custom_call.1} parent=11 // pred_fallthru
          _
        %1375 = shalt.err (0)
        %s1377 = sshll.u32 %s1368, 4
        %s1378 = int_to_ptr.hbm [resolvable:$true] %s1377
        %s1379 = sshll.u32 %s1369, 4
        %s1380 = int_to_ptr.vmem [resolvable:$true] %s1379
        %1382 = dma.hbm_to_vmem [thread:$0]  %s1378, 16, %s1380, [#allocation5]
        %s1383 = sadd.s32 %s1281, 6
        %s1384 = sld [smem:[#allocation9 + %s1383]]
        %s1385 = scalar_lea.hbm %s4, %s1384
        %s1386 = scalar_lea.vmem [#allocation4], 62
        // Predicated region
        $region325: #{tpu_custom_call.1} parent=11 // pred_check
          _
        $region326: #{tpu_custom_call.1} parent=11 // pred_check_branch
          %1388 = sbr.rel target = $region328
        $region327: #{tpu_custom_call.1} parent=11 // pred_region
          %1389 = sst [smem:[#allocation14]] [#allocation171]
          %1390 = sst [smem:[#allocation15]] [#allocation170]
        $region328: #{tpu_custom_call.1} parent=11 // pred_fallthru
          _
        %1392 = shalt.err (0)
        %s1394 = sshll.u32 %s1385, 4
        %s1395 = int_to_ptr.hbm [resolvable:$true] %s1394
        %s1396 = sshll.u32 %s1386, 4
        %s1397 = int_to_ptr.vmem [resolvable:$true] %s1396
        %1399 = dma.hbm_to_vmem [thread:$0]  %s1395, 16, %s1397, [#allocation5]
        %s1400 = sadd.s32 %s1281, 7
        %s1401 = sld [smem:[#allocation9 + %s1400]]
        %s1402 = scalar_lea.hbm %s4, %s1401
        %s1403 = scalar_lea.vmem [#allocation4], 63
        // Predicated region
        $region329: #{tpu_custom_call.1} parent=11 // pred_check
          _
        $region330: #{tpu_custom_call.1} parent=11 // pred_check_branch
          %1405 = sbr.rel target = $region332
        $region331: #{tpu_custom_call.1} parent=11 // pred_region
          %1406 = sst [smem:[#allocation14]] [#allocation173]
          %1407 = sst [smem:[#allocation15]] [#allocation172]
        $region332: #{tpu_custom_call.1} parent=11 // pred_fallthru
          _
        %1409 = shalt.err (0)
        %s1411 = sshll.u32 %s1402, 4
        %s1412 = int_to_ptr.hbm [resolvable:$true] %s1411
        %s1413 = sshll.u32 %s1403, 4
        %s1414 = int_to_ptr.vmem [resolvable:$true] %s1413
        %1416 = dma.hbm_to_vmem [thread:$0]  %s1412, 16, %s1414, [#allocation5]
        %1418 = dma.done [#allocation5], 16
        %1420 = dma.done [#allocation5], 16
        %1422 = dma.done [#allocation5], 16
        %1424 = dma.done [#allocation5], 16
        %1426 = dma.done [#allocation5], 16
        %1428 = dma.done [#allocation5], 16
        %1430 = dma.done [#allocation5], 16
        %1432 = dma.done [#allocation5], 16
        %1434 = dma.done [#allocation5], 16
        %1436 = dma.done [#allocation5], 16
        %1438 = dma.done [#allocation5], 16
        %1440 = dma.done [#allocation5], 16
        %1442 = dma.done [#allocation5], 16
        %1444 = dma.done [#allocation5], 16
        %1446 = dma.done [#allocation5], 16
        %1448 = dma.done [#allocation5], 16
        %1450 = dma.done [#allocation5], 16
        %1452 = dma.done [#allocation5], 16
        %1454 = dma.done [#allocation5], 16
        %1456 = dma.done [#allocation5], 16
        %1458 = dma.done [#allocation5], 16
        %1460 = dma.done [#allocation5], 16
        %1462 = dma.done [#allocation5], 16
        %1464 = dma.done [#allocation5], 16
        %1466 = dma.done [#allocation5], 16
        %1468 = dma.done [#allocation5], 16
        %1470 = dma.done [#allocation5], 16
        %1472 = dma.done [#allocation5], 16
        %1474 = dma.done [#allocation5], 16
        %1476 = dma.done [#allocation5], 16
        %1478 = dma.done [#allocation5], 16
        %1480 = dma.done [#allocation5], 16
        %1482 = dma.done [#allocation5], 16
        %1484 = dma.done [#allocation5], 16
        %1486 = dma.done [#allocation5], 16
        %1488 = dma.done [#allocation5], 16
        %1490 = dma.done [#allocation5], 16
        %1492 = dma.done [#allocation5], 16
        %1494 = dma.done [#allocation5], 16
        %1496 = dma.done [#allocation5], 16
        %1498 = dma.done [#allocation5], 16
        %1500 = dma.done [#allocation5], 16
        %1502 = dma.done [#allocation5], 16
        %1504 = dma.done [#allocation5], 16
        %1506 = dma.done [#allocation5], 16
        %1508 = dma.done [#allocation5], 16
        %1510 = dma.done [#allocation5], 16
        %1512 = dma.done [#allocation5], 16
        %1514 = dma.done [#allocation5], 16
        %1516 = dma.done [#allocation5], 16
        %1518 = dma.done [#allocation5], 16
        %1520 = dma.done [#allocation5], 16
        %1522 = dma.done [#allocation5], 16
        %1524 = dma.done [#allocation5], 16
        %1526 = dma.done [#allocation5], 16
        %1528 = dma.done [#allocation5], 16
        %1530 = dma.done [#allocation5], 16
        %1532 = dma.done [#allocation5], 16
        %1534 = dma.done [#allocation5], 16
        %1536 = dma.done [#allocation5], 16
        %1538 = dma.done [#allocation5], 16
        %1540 = dma.done [#allocation5], 16
        %1542 = dma.done [#allocation5], 16
        %1544 = dma.done [#allocation5], 16
        %1546 = dma.done [#allocation5], 16
        %1548 = dma.done [#allocation5], 16
        %1550 = dma.done [#allocation5], 16
        %1552 = dma.done [#allocation5], 16
        %1554 = dma.done [#allocation5], 16
        %1556 = dma.done [#allocation5], 16
        %1558 = dma.done [#allocation5], 16
        %1560 = dma.done [#allocation5], 16
        %1562 = dma.done [#allocation5], 16
        %1564 = dma.done [#allocation5], 16
        %1566 = dma.done [#allocation5], 16
        %1568 = dma.done [#allocation5], 16
        %1570 = dma.done [#allocation5], 16
        %1572 = dma.done [#allocation5], 16
        %1574 = dma.done [#allocation5], 16
        %1576 = dma.done [#allocation5], 16
        %v1577 = vld [vmem:[#allocation2] sm:$0xff]
        %v1578 = vld [vmem:[#allocation3] sm:$0xff]
        %v1579 = vld [vmem:[#allocation4] sm:$0xff]
        %v1580 = vld [vmem:[#allocation4 + $0x8] sm:$0xff]
        %v1581 = vld [vmem:[#allocation4 + $0x10] sm:$0xff]
        %v1582 = vld [vmem:[#allocation4 + $0x18] sm:$0xff]
        %v1583 = vld [vmem:[#allocation4 + $0x20] sm:$0xff]
        %v1584 = vld [vmem:[#allocation4 + $0x28] sm:$0xff]
        %v1585 = vld [vmem:[#allocation4 + $0x30] sm:$0xff]
        %v1586 = vld [vmem:[#allocation4 + $0x38] sm:$0xff]
        %v1587 = vmul.f32 %v1577, %v1578
        %1588 = vadd.xlane.f32.xlu0 %v1587
        %v1589 = vpop.xlane.xlu0 %1588
        %v1590 = vmin.f32 %v1589, 0.0
        %v1591 = vand.u32 2147483647, %v1589
        %v1592 = vsub.f32 0.0, %v1591
        %v1593 = vmul.f32 %v1592, 1.442695
        %v1594 = vpow.pop %v1593
        %v1595 = vadd.f32 %v1594, 1.0
        %v1596 = vlog2.pop %v1595
        %v1597 = vmul.f32 %v1596, 0.6931472
        %v1598 = vmul.f32 -0.5, %v1594
        %v1599 = vadd.f32 %v1598, 1.0
        %v1600 = vmul.f32 %v1599, %v1594
        %v1601 = vand.u32 2147483647, %v1594
        %vm1602 = vcmp.lt.f32.partialorder %v1601, 0.0004427343
        %v1603 = vsel %vm1602, %v1600, %v1597
        %v1604 = vsub.f32 %v1590, %v1603
        %v1606 = vrot.slane %v1577, 1
        %v1607 = vrot.slane %v1577, 2
        %v1608 = vrot.slane %v1577, 3
        %v1609 = vrot.slane %v1577, 4
        %v1610 = vrot.slane %v1577, 5
        %v1611 = vrot.slane %v1577, 6
        %v1612 = vrot.slane %v1577, 7
        %v1613 = vperm.slane %v1577, 0
        %v1614 = vperm.slane %v1606, 0
        %v1615 = vperm.slane %v1607, 0
        %v1616 = vperm.slane %v1608, 0
        %v1617 = vperm.slane %v1609, 0
        %v1618 = vperm.slane %v1610, 0
        %v1619 = vperm.slane %v1611, 0
        %v1620 = vperm.slane %v1612, 0
        %v1629 = vmul.f32 %v1579, %v1613
        %v1630 = vmul.f32 %v1580, %v1614
        %v1631 = vmul.f32 %v1581, %v1615
        %v1632 = vmul.f32 %v1582, %v1616
        %v1633 = vmul.f32 %v1583, %v1617
        %v1634 = vmul.f32 %v1584, %v1618
        %v1635 = vmul.f32 %v1585, %v1619
        %v1636 = vmul.f32 %v1586, %v1620
        %1637 = vadd.xlane.f32.xlu0 %v1629
        %v1638 = vpop.xlane.xlu0 %1637
        %1639 = vadd.xlane.f32.xlu0 %v1630
        %v1640 = vpop.xlane.xlu0 %1639
        %1641 = vadd.xlane.f32.xlu0 %v1631
        %v1642 = vpop.xlane.xlu0 %1641
        %1643 = vadd.xlane.f32.xlu0 %v1632
        %v1644 = vpop.xlane.xlu0 %1643
        %1645 = vadd.xlane.f32.xlu0 %v1633
        %v1646 = vpop.xlane.xlu0 %1645
        %1647 = vadd.xlane.f32.xlu0 %v1634
        %v1648 = vpop.xlane.xlu0 %1647
        %1649 = vadd.xlane.f32.xlu0 %v1635
        %v1650 = vpop.xlane.xlu0 %1649
        %1651 = vadd.xlane.f32.xlu0 %v1636
        %v1652 = vpop.xlane.xlu0 %1651
        %v1653 = vsub.f32 0.0, %v1638
        %v1654 = vsub.f32 0.0, %v1640
        %v1655 = vsub.f32 0.0, %v1642
        %v1656 = vsub.f32 0.0, %v1644
        %v1657 = vsub.f32 0.0, %v1646
        %v1658 = vsub.f32 0.0, %v1648
        %v1659 = vsub.f32 0.0, %v1650
        %v1660 = vsub.f32 0.0, %v1652
        %v1661 = vmin.f32 %v1653, 0.0
        %v1662 = vmin.f32 %v1654, 0.0
        %v1663 = vmin.f32 %v1655, 0.0
        %v1664 = vmin.f32 %v1656, 0.0
        %v1665 = vmin.f32 %v1657, 0.0
        %v1666 = vmin.f32 %v1658, 0.0
        %v1667 = vmin.f32 %v1659, 0.0
        %v1668 = vmin.f32 %v1660, 0.0
        %v1669 = vand.u32 2147483647, %v1653
        %v1670 = vand.u32 2147483647, %v1654
        %v1671 = vand.u32 2147483647, %v1655
        %v1672 = vand.u32 2147483647, %v1656
        %v1673 = vand.u32 2147483647, %v1657
        %v1674 = vand.u32 2147483647, %v1658
        %v1675 = vand.u32 2147483647, %v1659
        %v1676 = vand.u32 2147483647, %v1660
        %v1677 = vsub.f32 0.0, %v1669
        %v1678 = vsub.f32 0.0, %v1670
        %v1679 = vsub.f32 0.0, %v1671
        %v1680 = vsub.f32 0.0, %v1672
        %v1681 = vsub.f32 0.0, %v1673
        %v1682 = vsub.f32 0.0, %v1674
        %v1683 = vsub.f32 0.0, %v1675
        %v1684 = vsub.f32 0.0, %v1676
        %v1685 = vmul.f32 %v1677, 1.442695
        %v1686 = vpow.pop %v1685
        %v1687 = vmul.f32 %v1678, 1.442695
        %v1688 = vpow.pop %v1687
        %v1689 = vmul.f32 %v1679, 1.442695
        %v1690 = vpow.pop %v1689
        %v1691 = vmul.f32 %v1680, 1.442695
        %v1692 = vpow.pop %v1691
        %v1693 = vmul.f32 %v1681, 1.442695
        %v1694 = vpow.pop %v1693
        %v1695 = vmul.f32 %v1682, 1.442695
        %v1696 = vpow.pop %v1695
        %v1697 = vmul.f32 %v1683, 1.442695
        %v1698 = vpow.pop %v1697
        %v1699 = vmul.f32 %v1684, 1.442695
        %v1700 = vpow.pop %v1699
        %v1701 = vadd.f32 %v1686, 1.0
        %v1702 = vlog2.pop %v1701
        %v1703 = vmul.f32 %v1702, 0.6931472
        %v1704 = vmul.f32 -0.5, %v1686
        %v1705 = vadd.f32 %v1704, 1.0
        %v1706 = vmul.f32 %v1705, %v1686
        %v1707 = vand.u32 2147483647, %v1686
        %vm1708 = vcmp.lt.f32.partialorder %v1707, 0.0004427343
        %v1709 = vsel %vm1708, %v1706, %v1703
        %v1710 = vadd.f32 %v1688, 1.0
        %v1711 = vlog2.pop %v1710
        %v1712 = vmul.f32 %v1711, 0.6931472
        %v1713 = vmul.f32 -0.5, %v1688
        %v1714 = vadd.f32 %v1713, 1.0
        %v1715 = vmul.f32 %v1714, %v1688
        %v1716 = vand.u32 2147483647, %v1688
        %vm1717 = vcmp.lt.f32.partialorder %v1716, 0.0004427343
        %v1718 = vsel %vm1717, %v1715, %v1712
        %v1719 = vadd.f32 %v1690, 1.0
        %v1720 = vlog2.pop %v1719
        %v1721 = vmul.f32 %v1720, 0.6931472
        %v1722 = vmul.f32 -0.5, %v1690
        %v1723 = vadd.f32 %v1722, 1.0
        %v1724 = vmul.f32 %v1723, %v1690
        %v1725 = vand.u32 2147483647, %v1690
        %vm1726 = vcmp.lt.f32.partialorder %v1725, 0.0004427343
        %v1727 = vsel %vm1726, %v1724, %v1721
        %v1728 = vadd.f32 %v1692, 1.0
        %v1729 = vlog2.pop %v1728
        %v1730 = vmul.f32 %v1729, 0.6931472
        %v1731 = vmul.f32 -0.5, %v1692
        %v1732 = vadd.f32 %v1731, 1.0
        %v1733 = vmul.f32 %v1732, %v1692
        %v1734 = vand.u32 2147483647, %v1692
        %vm1735 = vcmp.lt.f32.partialorder %v1734, 0.0004427343
        %v1736 = vsel %vm1735, %v1733, %v1730
        %v1737 = vadd.f32 %v1694, 1.0
        %v1738 = vlog2.pop %v1737
        %v1739 = vmul.f32 %v1738, 0.6931472
        %v1740 = vmul.f32 -0.5, %v1694
        %v1741 = vadd.f32 %v1740, 1.0
        %v1742 = vmul.f32 %v1741, %v1694
        %v1743 = vand.u32 2147483647, %v1694
        %vm1744 = vcmp.lt.f32.partialorder %v1743, 0.0004427343
        %v1745 = vsel %vm1744, %v1742, %v1739
        %v1746 = vadd.f32 %v1696, 1.0
        %v1747 = vlog2.pop %v1746
        %v1748 = vmul.f32 %v1747, 0.6931472
        %v1749 = vmul.f32 -0.5, %v1696
        %v1750 = vadd.f32 %v1749, 1.0
        %v1751 = vmul.f32 %v1750, %v1696
        %v1752 = vand.u32 2147483647, %v1696
        %vm1753 = vcmp.lt.f32.partialorder %v1752, 0.0004427343
        %v1754 = vsel %vm1753, %v1751, %v1748
        %v1755 = vadd.f32 %v1698, 1.0
        %v1756 = vlog2.pop %v1755
        %v1757 = vmul.f32 %v1756, 0.6931472
        %v1758 = vmul.f32 -0.5, %v1698
        %v1759 = vadd.f32 %v1758, 1.0
        %v1760 = vmul.f32 %v1759, %v1698
        %v1761 = vand.u32 2147483647, %v1698
        %vm1762 = vcmp.lt.f32.partialorder %v1761, 0.0004427343
        %v1763 = vsel %vm1762, %v1760, %v1757
        %v1764 = vadd.f32 %v1700, 1.0
        %v1765 = vlog2.pop %v1764
        %v1766 = vmul.f32 %v1765, 0.6931472
        %v1767 = vmul.f32 -0.5, %v1700
        %v1768 = vadd.f32 %v1767, 1.0
        %v1769 = vmul.f32 %v1768, %v1700
        %v1770 = vand.u32 2147483647, %v1700
        %vm1771 = vcmp.lt.f32.partialorder %v1770, 0.0004427343
        %v1772 = vsel %vm1771, %v1769, %v1766
        %v1773 = vsub.f32 %v1661, %v1709
        %v1774 = vsub.f32 %v1662, %v1718
        %v1775 = vsub.f32 %v1663, %v1727
        %v1776 = vsub.f32 %v1664, %v1736
        %v1777 = vsub.f32 %v1665, %v1745
        %v1778 = vsub.f32 %v1666, %v1754
        %v1779 = vsub.f32 %v1667, %v1763
        %v1780 = vsub.f32 %v1668, %v1772
        %v1781 = vlaneseq
        %v1782 = vshrl.u32 %v1781, 7
        %v1783 = vstv %s68
        %v1784 = vadd.s32 %v1783, %v1782
        %vm1785 = vcmp.lt.s32.totalorder %v1784, 16
        %v1786 = vsel %vm1785, %v1604, 0.0
        %v1787 = vsel %vm1785, 1, 0
        %vm1788 = vcmp.eq.s32.totalorder %v1787, 1
        %v1797 = vlaneseq
        %v1798 = vand.u32 %v1797, 127
        %v1799 = vperm.slane %v1773, %v1798
        %v1800 = vperm.slane %v1774, %v1798
        %v1801 = vperm.slane %v1775, %v1798
        %v1802 = vperm.slane %v1776, %v1798
        %v1803 = vperm.slane %v1777, %v1798
        %v1804 = vperm.slane %v1778, %v1798
        %v1805 = vperm.slane %v1779, %v1798
        %v1806 = vperm.slane %v1780, %v1798
        %vm1807 = vcmask 1041409
        %v1808 = vsel %vm1807, %v1800, %v1799
        %vm1809 = vcmask 1042434
        %v1810 = vsel %vm1809, %v1801, %v1808
        %vm1811 = vcmask 1043459
        %v1812 = vsel %vm1811, %v1802, %v1810
        %vm1813 = vcmask 1044484
        %v1814 = vsel %vm1813, %v1803, %v1812
        %vm1815 = vcmask 1045509
        %v1816 = vsel %vm1815, %v1804, %v1814
        %vm1817 = vcmask 1046534
        %v1818 = vsel %vm1817, %v1805, %v1816
        %vm1819 = vcmask 1047559
        %v1820 = vsel %vm1819, %v1806, %v1818
        %v1822 = vsel %vm1788, %v1820, 0.0
        %vm1823 = vcmask 7168
        %v1824 = vsel %vm1823, %v1786, 0.0
        %1825 = vadd.xlane.f32.xlu0 %v1824
        %v1826 = vpop.xlane.xlu0 %1825
        %v1827 = vrot.slane %v1826, 4
        %v1828 = vadd.f32 %v1826, %v1827
        %v1829 = vrot.slane %v1828, 2
        %v1830 = vadd.f32 %v1828, %v1829
        %v1831 = vrot.slane %v1830, 1
        %v1832 = vadd.f32 %v1830, %v1831
        %s1833 = vtos %v1832
        %vm1834 = vcmask 64512
        %v1835 = vsel %vm1834, %v1822, 0.0
        %1836 = vadd.xlane.f32.xlu0 %v1835
        %v1837 = vpop.xlane.xlu0 %1836
        %v1838 = vrot.slane %v1837, 4
        %v1839 = vadd.f32 %v1837, %v1838
        %v1840 = vrot.slane %v1839, 2
        %v1841 = vadd.f32 %v1839, %v1840
        %v1842 = vrot.slane %v1841, 1
        %v1843 = vadd.f32 %v1841, %v1842
        %s1844 = vtos %v1843
        %s1845 = sadd.f32 %s1833, %s1844
        %s1846 = ssub.f32 0.0, %s1845
        %v1847 = vstv %s1846
        %v1848 = vadd.f32 %v1847, 0.0
        %1849 = vst [vmem:[%s67] sm:$0x1] %v1848
        %s1850 = sand.u32 %s41, 1
        %s1851 = scalar_lea.sflag [#allocation11], %s1850
        %s1852 = sand.u32 %s41, 1
        %s1853 = scalar_lea.vmem [#allocation10], %s1852
        // Predicated region
        $region333: #{tpu_custom_call.1} parent=11 // pred_check
          %p1854 = pneg %p47
        $region334: #{tpu_custom_call.1} parent=11 // pred_check_branch
          %1856 = sbr.rel (%p1854) target = $region336
        $region335: #{tpu_custom_call.1} parent=11 // pred_region
          %1858 = vsyncadd %s1851, 0
          %s1859 = scalar_lea.hbm %s5, %s32
          %s1861 = sshll.u32 %s1853, 4
          %s1862 = int_to_ptr.vmem [resolvable:$true] %s1861
          %s1863 = sshll.u32 %s1859, 4
          %s1864 = int_to_ptr.hbm [resolvable:$true] %s1863
          %1866 = dma.vmem_to_hbm [thread:$0]  %s1862, 16, %s1864, %s1851
        $region336: #{tpu_custom_call.1} parent=11 // pred_fallthru
          _
      $region12: #{tpu_custom_call.1} parent=5 // pred_fallthru
        _
      %p1867 = scmp.le.s32.totalorder 1, %s32
      // Predicated region
      $region337: #{tpu_custom_call.1} parent=5 // pred_check
        %p1868 = pneg %p1867
      $region338: #{tpu_custom_call.1} parent=5 // pred_check_branch
        %1870 = sbr.rel (%p1868) target = $region340
      $region339: #{tpu_custom_call.1} parent=5 // pred_region
        %s1871 = ssub.s32 %s32, 1
        // Predicated region
        $region341: #{tpu_custom_call.1} parent=339 // pred_check
          %p1872 = pneg %p53
        $region342: #{tpu_custom_call.1} parent=339 // pred_check_branch
          %1874 = sbr.rel (%p1872) target = $region344
        $region343: #{tpu_custom_call.1} parent=339 // pred_region
          %s1875 = sand.u32 %s44, 1
          %s1876 = scalar_lea.sflag [#allocation11], %s1875
          %s1877 = sand.u32 %s44, 1
          %s1878 = scalar_lea.vmem [#allocation10], %s1877
          %1880 = dma.done %s1876, 16
        $region344: #{tpu_custom_call.1} parent=339 // pred_fallthru
          _
      $region340: #{tpu_custom_call.1} parent=5 // pred_fallthru
        _
    $region6: #{tpu_custom_call.1} parent=1 // loop_footer
      %s36 = sadd.s32 1, %s32
    $region7: #{tpu_custom_call.1} parent=1 // loop_footer_branch
      %31 = sbr.rel target = $region3
    $region8: #{tpu_custom_call.1} parent=1 // loop_exit
      _
    %1881 = vsyncpa [#allocation11], 1
    %s1882 = scalar_lea.sflag [#allocation11], 1
    %1883 = vsyncpa %s1882, 1
  %1884 = vsyncmov [#allocation5]
  %s1885 = vpop.sfrf %1884
  %p1886 = scmp.eq.s32.totalorder %s1885, 0
  %p1887 = pneg %p1886
  %1889 = shalt.err (%p1887)

</llo_original>
